<compile_context>
chip_gen: v7x
topology: tpu7x:2x2x1
jax: 0.10.0
libtpu: 0.0.40
codegen_flags: <defaults>
</compile_context>

<pallas_src>
import jax
import jax.numpy as jnp
import numpy as np
from jax.experimental import pallas as pl
from jax.experimental.pallas import tpu as pltpu

_EPS = 1e-5


# ----------------------------- shared conv helper -----------------------------------

def _conv3x3_acc(get_tap, w_ref, m, cout):
    """3x3 conv as 9 accumulated MXU dots: acc += tap(dy,dx) @ W[dy*3+dx].

    Avoids materialising a concatenated (m, 9*C) im2col matrix (lane-axis concat and
    a big spilled intermediate); identical FLOPs, f32 accumulation."""
    acc = jnp.zeros((m, cout), jnp.float32)
    for k in range(9):
        dy, dx = divmod(k, 3)
        acc = acc + jnp.dot(get_tap(dy, dx), w_ref[k],
                            preferred_element_type=jnp.float32)
    return acc


# ----------------------------- stride-1 fused BasicBlock kernel ---------------------

def _make_block_kernel_s1(bt, h, w, cin, cout, equal_in_out):
    """Fused BasicBlock, stride 1, Bt images per grid step.

    Scratch a_pad/b_pad are bf16, padded to (H+2, W+4): 1 halo row top/bottom and 2
    halo cols left/right so every scratch *store* lands on an even (bf16-pack-aligned)
    W offset.  Interior lives at [1:h+1, 2:w+2]; conv taps read [dy:dy+h, dx+1:dx+w+1].
    """
    m = bt * h * w

    def kernel(*refs):
        if equal_in_out:
            (x_ref, s1_ref, b1_ref, w1_ref, s2_ref, b2_ref, w2_ref,
             o_ref, a_pad, b_pad) = refs
            wsc_ref = None
        else:
            (x_ref, s1_ref, b1_ref, w1_ref, s2_ref, b2_ref, w2_ref, wsc_ref,
             o_ref, a_pad, b_pad) = refs

        def zero_halo(pad, c):
            # Re-zero only the halo strips (interior is fully overwritten each step).
            # Not gated on program_id==0: scratch is per-TensorCore under a "parallel"
            # grid and only one core sees step 0.
            pad[:, 0:1, :, :] = jnp.zeros((bt, 1, w + 4, c), pad.dtype)
            pad[:, h + 1:h + 2, :, :] = jnp.zeros((bt, 1, w + 4, c), pad.dtype)
            pad[:, :, 0:2, :] = jnp.zeros((bt, h + 2, 2, c), pad.dtype)
            pad[:, :, w + 2:w + 4, :] = jnp.zeros((bt, h + 2, 2, c), pad.dtype)

        zero_halo(a_pad, cin)
        zero_halo(b_pad, cout)

        # ---- a = relu(bn1(x)) in f32 (v5e VPU); single bf16 cast on the store ----
        x = x_ref[...]                                            # (bt, h, w, cin) f32
        a = jnp.maximum(x * s1_ref[...] + b1_ref[...], 0.0)
        a_pad[:, 1:h + 1, 2:w + 2, :] = a.astype(a_pad.dtype)

        # ---- conv1: 3x3 / stride 1 / pad 1, M = bt*h*w ----
        def tap_a(dy, dx):
            return a_pad[:, dy:dy + h, dx + 1:dx + 1 + w, :].reshape(m, cin)
        h1 = _conv3x3_acc(tap_a, w1_ref, m, cout)

        # ---- b = relu(bn2(h1));  dropout elided (dropRate=0.0 / eval mode) ----
        b = jnp.maximum(h1 * s2_ref[...] + b2_ref[...], 0.0)
        b_pad[:, 1:h + 1, 2:w + 2, :] = b.reshape(bt, h, w, cout).astype(b_pad.dtype)

        # ---- conv2: 3x3 / stride 1 / pad 1 ----
        def tap_b(dy, dx):
            return b_pad[:, dy:dy + h, dx + 1:dx + 1 + w, :].reshape(m, cout)
        h2 = _conv3x3_acc(tap_b, w2_ref, m, cout)

        # ---- shortcut + residual add (f32 epilogue, no extra HBM pass) ----
        if equal_in_out:
            sc = x.reshape(m, cin)                                # identity shortcut
        else:
            a_in = a_pad[:, 1:h + 1, 2:w + 2, :].reshape(m, cin)  # already bf16
            sc = jnp.dot(a_in, wsc_ref[...], preferred_element_type=jnp.float32)

        o_ref[...] = (sc + h2).reshape(bt, h, w, cout).astype(o_ref.dtype)

    return kernel


# ----------------------------- strided (stride>1) BasicBlock kernel -----------------

def _make_block_kernel_strided(h, w, cin, cout, stride, equal_in_out):
    """Fused BasicBlock with stride > 1 (one image per grid step).

    a_pad stays f32 with 1-px padding and strided pl.ds tap reads (the layout already
    validated on hardware); strided reads of packed bf16 sublanes are lowering-fragile
    and WRN only has one strided block per group.  b_pad (the stride-1 second conv)
    uses the bf16 / aligned-store layout."""
    assert stride > 1 and not equal_in_out
    ho, wo = h // stride, w // stride
    m = ho * wo

    def kernel(x_ref, s1_ref, b1_ref, w1_ref, s2_ref, b2_ref, w2_ref, wsc_ref,
               o_ref, a_pad, b_pad):
        # Halo-only re-zero (see stride-1 kernel for why this is not program_id==0
        # gated); the interiors are fully overwritten every step.
        a_pad[0:1, :, :] = jnp.zeros((1, w + 2, cin), a_pad.dtype)
        a_pad[h + 1:h + 2, :, :] = jnp.zeros((1, w + 2, cin), a_pad.dtype)
        a_pad[:, 0:1, :] = jnp.zeros((h + 2, 1, cin), a_pad.dtype)
        a_pad[:, w + 1:w + 2, :] = jnp.zeros((h + 2, 1, cin), a_pad.dtype)
        b_pad[0:1, :, :] = jnp.zeros((1, wo + 4, cout), b_pad.dtype)
        b_pad[ho + 1:ho + 2, :, :] = jnp.zeros((1, wo + 4, cout), b_pad.dtype)
        b_pad[:, 0:2, :] = jnp.zeros((ho + 2, 2, cout), b_pad.dtype)
        b_pad[:, wo + 2:wo + 4, :] = jnp.zeros((ho + 2, 2, cout), b_pad.dtype)

        # ---- a = relu(bn1(x)) ----
        x = x_ref[0]                                              # (h, w, cin) f32
        a = jnp.maximum(x * s1_ref[...] + b1_ref[...], 0.0)
        a_pad[1:h + 1, 1:w + 1, :] = a

        # ---- conv1: 3x3 / stride s / pad 1 (strided taps do 1/s^2 of dense work) ----
        def tap_a(dy, dx):
            t = a_pad[pl.ds(dy, ho, stride=stride), pl.ds(dx, wo, stride=stride), :]
            return t.astype(jnp.bfloat16).reshape(m, cin)
        h1 = _conv3x3_acc(tap_a, w1_ref, m, cout)

        # ---- b = relu(bn2(h1));  dropout elided (dropRate=0.0 / eval mode) ----
        b = jnp.maximum(h1 * s2_ref[...] + b2_ref[...], 0.0)
        b_pad[1:ho + 1, 2:wo + 2, :] = b.reshape(ho, wo, cout).astype(b_pad.dtype)

        # ---- conv2: 3x3 / stride 1 / pad 1 ----
        def tap_b(dy, dx):
            return b_pad[dy:dy + ho, dx + 1:dx + 1 + wo, :].reshape(m, cout)
        h2 = _conv3x3_acc(tap_b, w2_ref, m, cout)

        # ---- 1x1 / stride s shortcut conv on `a`, fused residual add ----
        a_s = a_pad[pl.ds(1, ho, stride=stride), pl.ds(1, wo, stride=stride), :]
        sc = jnp.dot(a_s.astype(jnp.bfloat16).reshape(m, cin), wsc_ref[...],
                     preferred_element_type=jnp.float32)

        o_ref[0] = (sc + h2).reshape(ho, wo, cout).astype(o_ref.dtype)

    return kernel


# ----------------------------- wrapper -----------------------------------------------

def _fold_bn(bn, eps=_EPS):
    gamma, beta, mean, var = bn
    scale = gamma / jnp.sqrt(var + eps)
    bias = beta - mean * scale
    return (scale.reshape(1, -1).astype(jnp.float32),
            bias.reshape(1, -1).astype(jnp.float32))


def _pick_batch_tile(n, h, w, cin, cout, stride, budget_bytes=24 * 1024 * 1024):
    """Images per grid step.  Strided blocks keep Bt=1 (validated strided-read path).
    Budgeted conservatively against v7x's 64 MiB VMEM; the grid is kept >= 2 steps
    when possible so both v7x TensorCores get work under dimension_semantics=parallel.
    """
    if stride != 1 or n <= 1:
        return 1
    ho, wo = h // stride, w // stride

    def vmem_bytes(bt):
        x_blk = 2 * bt * h * w * cin * 4                    # double-buffered input
        o_blk = 2 * bt * ho * wo * cout * 4                 # double-buffered output
        a_pad = bt * (h + 2) * (w + 4) * cin * 2            # bf16 scratch
        b_pad = bt * (h + 2) * (w + 4) * cout * 2
        interm = 6 * bt * ho * wo * max(cin, cout) * 4      # taps / acc / epilogue
        wgt = (9 * cin + 9 * cout + cin) * cout * 2
        return x_blk + o_blk + a_pad + b_pad + interm + wgt

    for bt in range(n // 2, 0, -1):                         # keep >= 2 grid steps
        if n % bt == 0 and vmem_bytes(bt) <= budget_bytes:
            return bt
    return 1


def basic_block_pallas(x, p, stride, out_dtype=None):
    """One fused WRN BasicBlock.  x: (N, H, W, Cin) NHWC."""
    n, h, w, cin = x.shape
    cout = p['conv1'].shape[-1]
    equal_in_out = (cin == cout)            # same convention as the PyTorch BasicBlock
    if equal_in_out and stride != 1:
        raise ValueError("equal in/out channels requires stride == 1 "
                         "(identity shortcut is only defined there)")
    ho, wo = h // stride, w // stride
    out_dtype = out_dtype or x.dtype

    s1, b1 = _fold_bn(p['bn1'])
    s2, b2 = _fold_bn(p['bn2'])
    # HWIO (3,3,Cin,Cout) -> (9,Cin,Cout); k = dy*3+dx matches _conv3x3_acc ordering.
    w1 = p['conv1'].reshape(9, cin, cout).astype(jnp.bfloat16)
    w2 = p['conv2'].reshape(9, cout, cout).astype(jnp.bfloat16)

    bt = _pick_batch_tile(n, h, w, cin, cout, stride)
    assert n % bt == 0
    grid = (n // bt,)

    in_specs = [
        pl.BlockSpec((bt, h, w, cin), lambda i: (i, 0, 0, 0)),      # Bt images / step
        pl.BlockSpec((1, cin), lambda i: (0, 0)),
        pl.BlockSpec((1, cin), lambda i: (0, 0)),
        pl.BlockSpec((9, cin, cout), lambda i: (0, 0, 0)),
        pl.BlockSpec((1, cout), lambda i: (0, 0)),
        pl.BlockSpec((1, cout), lambda i: (0, 0)),
        pl.BlockSpec((9, cout, cout), lambda i: (0, 0, 0)),
    ]
    args = [x, s1, b1, w1, s2, b2, w2]
    if not equal_in_out:
        in_specs.append(pl.BlockSpec((cin, cout), lambda i: (0, 0)))
        args.append(p['conv_sc'].reshape(cin, cout).astype(jnp.bfloat16))

    if stride == 1:
        kernel = _make_block_kernel_s1(bt, h, w, cin, cout, equal_in_out)
        scratch = [pltpu.VMEM((bt, h + 2, w + 4, cin), jnp.bfloat16),   # padded a
                   pltpu.VMEM((bt, h + 2, w + 4, cout), jnp.bfloat16)]  # padded b
    else:
        kernel = _make_block_kernel_strided(h, w, cin, cout, stride, equal_in_out)
        scratch = [pltpu.VMEM((h + 2, w + 2, cin), jnp.float32),        # padded a
                   pltpu.VMEM((ho + 2, wo + 4, cout), jnp.bfloat16)]    # padded b

    flops = 2 * n * ho * wo * (9 * cin * cout + 9 * cout * cout
                               + (0 if equal_in_out else cin * cout))
    bytes_accessed = (n * h * w * cin * 4 + n * ho * wo * cout * 4
                      + (9 * cin + 9 * cout + (0 if equal_in_out else cin)) * cout * 2
                      + (2 * cin + 2 * cout) * 4)

    return pl.pallas_call(
        kernel,
        grid=grid,
        in_specs=in_specs,
        out_specs=pl.BlockSpec((bt, ho, wo, cout), lambda i: (i, 0, 0, 0)),
        out_shape=jax.ShapeDtypeStruct((n, ho, wo, cout), out_dtype),
        scratch_shapes=scratch,
        compiler_params=pltpu.CompilerParams(
            dimension_semantics=("parallel",),
            vmem_limit_bytes=48 * 1024 * 1024),
        cost_estimate=pl.CostEstimate(flops=flops, transcendentals=0,
                                      bytes_accessed=bytes_accessed),
    )(*args)


# ----------------------------- NetworkBlock (NHWC inside) ---------------------------

def network_block_forward(x_nchw, params, stride, interblock_dtype=None):
    # NCHW only at the module boundary (PyTorch convention); everything inside runs
    # NHWC so channels sit on the 128-lane axis.  Callers that already hold NHWC can
    # use basic_block_pallas directly and skip these two HBM transpose passes.
    # interblock_dtype=jnp.bfloat16 halves inter-block HBM traffic (v5e/v6e lever);
    # default keeps f32 to match the f32 reference tolerance.
    x = jnp.transpose(x_nchw, (0, 2, 3, 1))
    last = len(params) - 1
    for i, p in enumerate(params):
        dt = x_nchw.dtype if i == last else (interblock_dtype or x_nchw.dtype)
        x = basic_block_pallas(x, p, stride if i == 0 else 1, out_dtype=dt)
    return jnp.transpose(x, (0, 3, 1, 2))


# ----------------------------- parameter init ----------------------------------------

def _init_bn(key, c):
    k1, k2, k3, k4 = jax.random.split(key, 4)
    gamma = jax.random.uniform(k1, (c,), jnp.float32, 0.5, 1.5)
    beta = 0.1 * jax.random.normal(k2, (c,), jnp.float32)
    mean = 0.1 * jax.random.normal(k3, (c,), jnp.float32)
    var = jax.random.uniform(k4, (c,), jnp.float32, 0.5, 1.5)
    return (gamma, beta, mean, var)


def _init_conv(key, kh, kw, cin, cout):
    # WRN init: kaiming-normal, n = k*k*out_planes
    std = (2.0 / (kh * kw * cout)) ** 0.5
    return std * jax.random.normal(key, (kh, kw, cin, cout), jnp.float32)   # HWIO


def init_basic_block(key, in_planes, out_planes):
    ks = jax.random.split(key, 5)
    return {
        'bn1': _init_bn(ks[0], in_planes),
        'conv1': _init_conv(ks[1], 3, 3, in_planes, out_planes),
        'bn2': _init_bn(ks[2], out_planes),
        'conv2': _init_conv(ks[3], 3, 3, out_planes, out_planes),
        'conv_sc': (None if in_planes == out_planes
                    else _init_conv(ks[4], 1, 1, in_planes, out_planes)),
    }


def init_network_block(key, nb_layers, in_planes, out_planes):
    keys = jax.random.split(key, nb_layers)
    return [init_basic_block(keys[i], in_planes if i == 0 else out_planes, out_planes)
            for i in range(nb_layers)]


# ----------------------------- pure-JAX reference ------------------------------------

def _ref_bn_relu(v, bn):
    gamma, beta, mean, var = bn
    return jnp.maximum((v - mean) / jnp.sqrt(var + _EPS) * gamma + beta, 0.0)


def _ref_conv(v, w, stride, pad):
    return jax.lax.conv_general_dilated(
        v, w, (stride, stride), [(pad, pad), (pad, pad)],
        dimension_numbers=('NHWC', 'HWIO', 'NHWC'),
        precision=jax.lax.Precision.HIGHEST)


def ref_network_block(x_nchw, params, stride):
    x = jnp.transpose(x_nchw, (0, 2, 3, 1))
    for i, p in enumerate(params):
        s = stride if i == 0 else 1
        equal = x.shape[-1] == p['conv1'].shape[-1]
        a = _ref_bn_relu(x, p['bn1'])
        out = _ref_conv(a, p['conv1'], s, 1)
        out = _ref_bn_relu(out, p['bn2'])
        out = _ref_conv(out, p['conv2'], 1, 1)
        sc = x if equal else _ref_conv(a, p['conv_sc'], s, 0)
        x = sc + out
    return jnp.transpose(x, (0, 3, 1, 2))


# --------------------------------- main -----------------------------------------------

if __name__ == "__main__":
    key = jax.random.PRNGKey(0)
    kx, kp = jax.random.split(key)

    # NetworkBlock(nb_layers=2, in_planes=4, out_planes=8, block=BasicBlock, stride=2)
    # N=4 so the stride-1 block exercises the batched (Bt=2, grid=(2,)) path while the
    # stride-2 block runs the per-image strided path (grid=(4,)).
    N, C, H, W = 4, 4, 16, 16
    nb_layers, in_planes, out_planes, stride = 2, 4, 8, 2

    x = jax.random.normal(kx, (N, C, H, W), jnp.float32)
    params = init_network_block(kp, nb_layers, in_planes, out_planes)

    fwd = jax.jit(network_block_forward, static_argnums=(2,))
    out = jax.block_until_ready(fwd(x, params, stride))

    assert out.shape == (N, out_planes, H // stride, W // stride), out.shape

    # Reference is full-f32 (HIGHEST) conv; kernel uses bf16 MXU inputs w/ f32 accum,
    # hence the slightly relaxed tolerance.
    ref = ref_network_block(x, params, stride)
    np.testing.assert_allclose(np.asarray(out), np.asarray(ref), rtol=5e-2, atol=5e-2)

    print("KERNEL_OK")
</pallas_src>

<mosaic_0001>
module attributes {stable_mosaic.version = 11 : i64} {
  func.func @kernel(%arg0: i32, %arg1: memref<1x16x16x4xf32, #tpu.memory_space<vmem>>, %arg2: memref<1x4xf32, #tpu.memory_space<vmem>>, %arg3: memref<1x4xf32, #tpu.memory_space<vmem>>, %arg4: memref<9x4x8xbf16, #tpu.memory_space<vmem>>, %arg5: memref<1x8xf32, #tpu.memory_space<vmem>>, %arg6: memref<1x8xf32, #tpu.memory_space<vmem>>, %arg7: memref<9x8x8xbf16, #tpu.memory_space<vmem>>, %arg8: memref<4x8xbf16, #tpu.memory_space<vmem>>, %arg9: memref<1x8x8x8xf32, #tpu.memory_space<vmem>>, %arg10: memref<18x18x4xf32, #tpu.memory_space<vmem>>, %arg11: memref<10x12x8xbf16, #tpu.memory_space<vmem>>) attributes {dimension_semantics = [#tpu.dimension_semantics<parallel>], iteration_bounds = array<i64: 4>, scalar_prefetch = 0 : i64, scratch_operands = 2 : i64, tpu.core_type = #tpu.core_type<tc>, window_params = [{transform_indices = @transform_0, window_bounds = array<i64: 1, 16, 16, 4>}, {pipeline_mode = #tpu.pipeline_mode<synchronous>, transform_indices = @transform_1, window_bounds = array<i64: 1, 4>}, {pipeline_mode = #tpu.pipeline_mode<synchronous>, transform_indices = @transform_2, window_bounds = array<i64: 1, 4>}, {pipeline_mode = #tpu.pipeline_mode<synchronous>, transform_indices = @transform_3, window_bounds = array<i64: 9, 4, 8>}, {pipeline_mode = #tpu.pipeline_mode<synchronous>, transform_indices = @transform_4, window_bounds = array<i64: 1, 8>}, {pipeline_mode = #tpu.pipeline_mode<synchronous>, transform_indices = @transform_5, window_bounds = array<i64: 1, 8>}, {pipeline_mode = #tpu.pipeline_mode<synchronous>, transform_indices = @transform_6, window_bounds = array<i64: 9, 8, 8>}, {pipeline_mode = #tpu.pipeline_mode<synchronous>, transform_indices = @transform_7, window_bounds = array<i64: 4, 8>}, {transform_indices = @transform_8, window_bounds = array<i64: 1, 8, 8, 8>}]} {
    %cst = arith.constant 0.000000e+00 : f32
    %0 = vector.broadcast %cst : f32 to vector<1x18x4xf32>
    %c0 = arith.constant 0 : index
    %c0_0 = arith.constant 0 : index
    %c0_1 = arith.constant 0 : index
    %1 = vector.load %arg10[%c0, %c0_0, %c0_1] : memref<18x18x4xf32, #tpu.memory_space<vmem>>, vector<1x18x4xf32>
    tpu.vector_store %arg10[%c0, %c0_0, %c0_1], %0 {strides = array<i32>} : memref<18x18x4xf32, #tpu.memory_space<vmem>>, vector<1x18x4xf32>,
    %cst_2 = arith.constant 0.000000e+00 : f32
    %2 = vector.broadcast %cst_2 : f32 to vector<1x18x4xf32>
    %c17 = arith.constant 17 : index
    %c0_3 = arith.constant 0 : index
    %c0_4 = arith.constant 0 : index
    %3 = vector.load %arg10[%c17, %c0_3, %c0_4] : memref<18x18x4xf32, #tpu.memory_space<vmem>>, vector<1x18x4xf32>
    tpu.vector_store %arg10[%c17, %c0_3, %c0_4], %2 {strides = array<i32>} : memref<18x18x4xf32, #tpu.memory_space<vmem>>, vector<1x18x4xf32>,
    %cst_5 = arith.constant 0.000000e+00 : f32
    %4 = vector.broadcast %cst_5 : f32 to vector<18x1x4xf32>
    %c0_6 = arith.constant 0 : index
    %c0_7 = arith.constant 0 : index
    %c0_8 = arith.constant 0 : index
    %5 = vector.load %arg10[%c0_6, %c0_7, %c0_8] : memref<18x18x4xf32, #tpu.memory_space<vmem>>, vector<18x1x4xf32>
    tpu.vector_store %arg10[%c0_6, %c0_7, %c0_8], %4 {strides = array<i32>} : memref<18x18x4xf32, #tpu.memory_space<vmem>>, vector<18x1x4xf32>,
    %cst_9 = arith.constant 0.000000e+00 : f32
    %6 = vector.broadcast %cst_9 : f32 to vector<18x1x4xf32>
    %c0_10 = arith.constant 0 : index
    %c17_11 = arith.constant 17 : index
    %c0_12 = arith.constant 0 : index
    %7 = vector.load %arg10[%c0_10, %c17_11, %c0_12] : memref<18x18x4xf32, #tpu.memory_space<vmem>>, vector<18x1x4xf32>
    tpu.vector_store %arg10[%c0_10, %c17_11, %c0_12], %6 {strides = array<i32>} : memref<18x18x4xf32, #tpu.memory_space<vmem>>, vector<18x1x4xf32>,
    %cst_13 = arith.constant 0.000000e+00 : bf16
    %8 = vector.broadcast %cst_13 : bf16 to vector<1x12x8xbf16>
    %c0_14 = arith.constant 0 : index
    %c0_15 = arith.constant 0 : index
    %c0_16 = arith.constant 0 : index
    %9 = vector.load %arg11[%c0_14, %c0_15, %c0_16] : memref<10x12x8xbf16, #tpu.memory_space<vmem>>, vector<1x12x8xbf16>
    tpu.vector_store %arg11[%c0_14, %c0_15, %c0_16], %8 {strides = array<i32>} : memref<10x12x8xbf16, #tpu.memory_space<vmem>>, vector<1x12x8xbf16>,
    %cst_17 = arith.constant 0.000000e+00 : bf16
    %10 = vector.broadcast %cst_17 : bf16 to vector<1x12x8xbf16>
    %c9 = arith.constant 9 : index
    %c0_18 = arith.constant 0 : index
    %c0_19 = arith.constant 0 : index
    %11 = vector.load %arg11[%c9, %c0_18, %c0_19] : memref<10x12x8xbf16, #tpu.memory_space<vmem>>, vector<1x12x8xbf16>
    tpu.vector_store %arg11[%c9, %c0_18, %c0_19], %10 {strides = array<i32>} : memref<10x12x8xbf16, #tpu.memory_space<vmem>>, vector<1x12x8xbf16>,
    %cst_20 = arith.constant 0.000000e+00 : bf16
    %12 = vector.broadcast %cst_20 : bf16 to vector<10x2x8xbf16>
    %c0_21 = arith.constant 0 : index
    %c0_22 = arith.constant 0 : index
    %c0_23 = arith.constant 0 : index
    %13 = vector.load %arg11[%c0_21, %c0_22, %c0_23] : memref<10x12x8xbf16, #tpu.memory_space<vmem>>, vector<10x2x8xbf16>
    tpu.vector_store %arg11[%c0_21, %c0_22, %c0_23], %12 {strides = array<i32>} : memref<10x12x8xbf16, #tpu.memory_space<vmem>>, vector<10x2x8xbf16>,
    %cst_24 = arith.constant 0.000000e+00 : bf16
    %14 = vector.broadcast %cst_24 : bf16 to vector<10x2x8xbf16>
    %c0_25 = arith.constant 0 : index
    %c10 = arith.constant 10 : index
    %c0_26 = arith.constant 0 : index
    %15 = vector.load %arg11[%c0_25, %c10, %c0_26] : memref<10x12x8xbf16, #tpu.memory_space<vmem>>, vector<10x2x8xbf16>
    tpu.vector_store %arg11[%c0_25, %c10, %c0_26], %14 {strides = array<i32>} : memref<10x12x8xbf16, #tpu.memory_space<vmem>>, vector<10x2x8xbf16>,
    %c0_27 = arith.constant 0 : index
    %c0_28 = arith.constant 0 : index
    %c0_29 = arith.constant 0 : index
    %c0_30 = arith.constant 0 : index
    %16 = vector.load %arg1[%c0_27, %c0_28, %c0_29, %c0_30] : memref<1x16x16x4xf32, #tpu.memory_space<vmem>>, vector<1x16x16x4xf32>
    %17 = vector.shape_cast %16 : vector<1x16x16x4xf32> to vector<16x16x4xf32>
    %c0_31 = arith.constant 0 : index
    %c0_32 = arith.constant 0 : index
    %18 = vector.load %arg2[%c0_31, %c0_32] : memref<1x4xf32, #tpu.memory_space<vmem>>, vector<1x4xf32>
    %19 = vector.shape_cast %18 : vector<1x4xf32> to vector<1x1x4xf32>
    %20 = vector.broadcast %19 : vector<1x1x4xf32> to vector<16x16x4xf32>
    %21 = arith.mulf %17, %20 : vector<16x16x4xf32>
    %c0_33 = arith.constant 0 : index
    %c0_34 = arith.constant 0 : index
    %22 = vector.load %arg3[%c0_33, %c0_34] : memref<1x4xf32, #tpu.memory_space<vmem>>, vector<1x4xf32>
    %23 = vector.shape_cast %22 : vector<1x4xf32> to vector<1x1x4xf32>
    %24 = vector.broadcast %23 : vector<1x1x4xf32> to vector<16x16x4xf32>
    %25 = arith.addf %21, %24 : vector<16x16x4xf32>
    %cst_35 = arith.constant 0.000000e+00 : f32
    %26 = vector.broadcast %cst_35 : f32 to vector<16x16x4xf32>
    %27 = arith.maximumf %25, %26 : vector<16x16x4xf32>
    %c1 = arith.constant 1 : index
    %c1_36 = arith.constant 1 : index
    %c0_37 = arith.constant 0 : index
    %28 = vector.load %arg10[%c1, %c1_36, %c0_37] : memref<18x18x4xf32, #tpu.memory_space<vmem>>, vector<16x16x4xf32>
    tpu.vector_store %arg10[%c1, %c1_36, %c0_37], %27 {strides = array<i32>} : memref<18x18x4xf32, #tpu.memory_space<vmem>>, vector<16x16x4xf32>,
    %cst_38 = arith.constant 0.000000e+00 : f32
    %29 = vector.broadcast %cst_38 : f32 to vector<64x8xf32>
    %c0_39 = arith.constant 0 : index
    %c0_40 = arith.constant 0 : index
    %c0_41 = arith.constant 0 : index
    %30 = tpu.strided_load %arg10[%c0_39, %c0_40, %c0_41] {strides = array<i32: 2, 2, 1>} : memref<18x18x4xf32, #tpu.memory_space<vmem>>, vector<8x8x4xf32>
    %31 = arith.truncf %30 : vector<8x8x4xf32> to vector<8x8x4xbf16>
    %32 = vector.shape_cast %31 : vector<8x8x4xbf16> to vector<64x4xbf16>
    %c0_42 = arith.constant 0 : index
    %c0_43 = arith.constant 0 : index
    %c0_44 = arith.constant 0 : index
    %33 = vector.load %arg4[%c0_42, %c0_43, %c0_44] : memref<9x4x8xbf16, #tpu.memory_space<vmem>>, vector<1x4x8xbf16>
    %34 = vector.shape_cast %33 : vector<1x4x8xbf16> to vector<4x8xbf16>
    %cst_45 = arith.constant dense<0.000000e+00> : vector<64x8xf32>
    %35 = tpu.matmul %32, %34, %cst_45 {dimension_numbers = #tpu.dot_dimension_numbers<[1], [0], [0], [1], [0, 0, 1, 1], [], []>} : vector<64x4xbf16>, vector<4x8xbf16>, vector<64x8xf32> -> vector<64x8xf32>
    %36 = arith.addf %29, %35 : vector<64x8xf32>
    %c0_46 = arith.constant 0 : index
    %c1_47 = arith.constant 1 : index
    %c0_48 = arith.constant 0 : index
    %37 = tpu.strided_load %arg10[%c0_46, %c1_47, %c0_48] {strides = array<i32: 2, 2, 1>} : memref<18x18x4xf32, #tpu.memory_space<vmem>>, vector<8x8x4xf32>
    %38 = arith.truncf %37 : vector<8x8x4xf32> to vector<8x8x4xbf16>
    %39 = vector.shape_cast %38 : vector<8x8x4xbf16> to vector<64x4xbf16>
    %c1_49 = arith.constant 1 : index
    %c0_50 = arith.constant 0 : index
    %c0_51 = arith.constant 0 : index
    %40 = vector.load %arg4[%c1_49, %c0_50, %c0_51] : memref<9x4x8xbf16, #tpu.memory_space<vmem>>, vector<1x4x8xbf16>
    %41 = vector.shape_cast %40 : vector<1x4x8xbf16> to vector<4x8xbf16>
    %cst_52 = arith.constant dense<0.000000e+00> : vector<64x8xf32>
    %42 = tpu.matmul %39, %41, %cst_52 {dimension_numbers = #tpu.dot_dimension_numbers<[1], [0], [0], [1], [0, 0, 1, 1], [], []>} : vector<64x4xbf16>, vector<4x8xbf16>, vector<64x8xf32> -> vector<64x8xf32>
    %43 = arith.addf %36, %42 : vector<64x8xf32>
    %c0_53 = arith.constant 0 : index
    %c2 = arith.constant 2 : index
    %c0_54 = arith.constant 0 : index
    %44 = tpu.strided_load %arg10[%c0_53, %c2, %c0_54] {strides = array<i32: 2, 2, 1>} : memref<18x18x4xf32, #tpu.memory_space<vmem>>, vector<8x8x4xf32>
    %45 = arith.truncf %44 : vector<8x8x4xf32> to vector<8x8x4xbf16>
    %46 = vector.shape_cast %45 : vector<8x8x4xbf16> to vector<64x4xbf16>
    %c2_55 = arith.constant 2 : index
    %c0_56 = arith.constant 0 : index
    %c0_57 = arith.constant 0 : index
    %47 = vector.load %arg4[%c2_55, %c0_56, %c0_57] : memref<9x4x8xbf16, #tpu.memory_space<vmem>>, vector<1x4x8xbf16>
    %48 = vector.shape_cast %47 : vector<1x4x8xbf16> to vector<4x8xbf16>
    %cst_58 = arith.constant dense<0.000000e+00> : vector<64x8xf32>
    %49 = tpu.matmul %46, %48, %cst_58 {dimension_numbers = #tpu.dot_dimension_numbers<[1], [0], [0], [1], [0, 0, 1, 1], [], []>} : vector<64x4xbf16>, vector<4x8xbf16>, vector<64x8xf32> -> vector<64x8xf32>
    %50 = arith.addf %43, %49 : vector<64x8xf32>
    %c1_59 = arith.constant 1 : index
    %c0_60 = arith.constant 0 : index
    %c0_61 = arith.constant 0 : index
    %51 = tpu.strided_load %arg10[%c1_59, %c0_60, %c0_61] {strides = array<i32: 2, 2, 1>} : memref<18x18x4xf32, #tpu.memory_space<vmem>>, vector<8x8x4xf32>
    %52 = arith.truncf %51 : vector<8x8x4xf32> to vector<8x8x4xbf16>
    %53 = vector.shape_cast %52 : vector<8x8x4xbf16> to vector<64x4xbf16>
    %c3 = arith.constant 3 : index
    %c0_62 = arith.constant 0 : index
    %c0_63 = arith.constant 0 : index
    %54 = vector.load %arg4[%c3, %c0_62, %c0_63] : memref<9x4x8xbf16, #tpu.memory_space<vmem>>, vector<1x4x8xbf16>
    %55 = vector.shape_cast %54 : vector<1x4x8xbf16> to vector<4x8xbf16>
    %cst_64 = arith.constant dense<0.000000e+00> : vector<64x8xf32>
    %56 = tpu.matmul %53, %55, %cst_64 {dimension_numbers = #tpu.dot_dimension_numbers<[1], [0], [0], [1], [0, 0, 1, 1], [], []>} : vector<64x4xbf16>, vector<4x8xbf16>, vector<64x8xf32> -> vector<64x8xf32>
    %57 = arith.addf %50, %56 : vector<64x8xf32>
    %c1_65 = arith.constant 1 : index
    %c1_66 = arith.constant 1 : index
    %c0_67 = arith.constant 0 : index
    %58 = tpu.strided_load %arg10[%c1_65, %c1_66, %c0_67] {strides = array<i32: 2, 2, 1>} : memref<18x18x4xf32, #tpu.memory_space<vmem>>, vector<8x8x4xf32>
    %59 = arith.truncf %58 : vector<8x8x4xf32> to vector<8x8x4xbf16>
    %60 = vector.shape_cast %59 : vector<8x8x4xbf16> to vector<64x4xbf16>
    %c4 = arith.constant 4 : index
    %c0_68 = arith.constant 0 : index
    %c0_69 = arith.constant 0 : index
    %61 = vector.load %arg4[%c4, %c0_68, %c0_69] : memref<9x4x8xbf16, #tpu.memory_space<vmem>>, vector<1x4x8xbf16>
    %62 = vector.shape_cast %61 : vector<1x4x8xbf16> to vector<4x8xbf16>
    %cst_70 = arith.constant dense<0.000000e+00> : vector<64x8xf32>
    %63 = tpu.matmul %60, %62, %cst_70 {dimension_numbers = #tpu.dot_dimension_numbers<[1], [0], [0], [1], [0, 0, 1, 1], [], []>} : vector<64x4xbf16>, vector<4x8xbf16>, vector<64x8xf32> -> vector<64x8xf32>
    %64 = arith.addf %57, %63 : vector<64x8xf32>
    %c1_71 = arith.constant 1 : index
    %c2_72 = arith.constant 2 : index
    %c0_73 = arith.constant 0 : index
    %65 = tpu.strided_load %arg10[%c1_71, %c2_72, %c0_73] {strides = array<i32: 2, 2, 1>} : memref<18x18x4xf32, #tpu.memory_space<vmem>>, vector<8x8x4xf32>
    %66 = arith.truncf %65 : vector<8x8x4xf32> to vector<8x8x4xbf16>
    %67 = vector.shape_cast %66 : vector<8x8x4xbf16> to vector<64x4xbf16>
    %c5 = arith.constant 5 : index
    %c0_74 = arith.constant 0 : index
    %c0_75 = arith.constant 0 : index
    %68 = vector.load %arg4[%c5, %c0_74, %c0_75] : memref<9x4x8xbf16, #tpu.memory_space<vmem>>, vector<1x4x8xbf16>
    %69 = vector.shape_cast %68 : vector<1x4x8xbf16> to vector<4x8xbf16>
    %cst_76 = arith.constant dense<0.000000e+00> : vector<64x8xf32>
    %70 = tpu.matmul %67, %69, %cst_76 {dimension_numbers = #tpu.dot_dimension_numbers<[1], [0], [0], [1], [0, 0, 1, 1], [], []>} : vector<64x4xbf16>, vector<4x8xbf16>, vector<64x8xf32> -> vector<64x8xf32>
    %71 = arith.addf %64, %70 : vector<64x8xf32>
    %c2_77 = arith.constant 2 : index
    %c0_78 = arith.constant 0 : index
    %c0_79 = arith.constant 0 : index
    %72 = tpu.strided_load %arg10[%c2_77, %c0_78, %c0_79] {strides = array<i32: 2, 2, 1>} : memref<18x18x4xf32, #tpu.memory_space<vmem>>, vector<8x8x4xf32>
    %73 = arith.truncf %72 : vector<8x8x4xf32> to vector<8x8x4xbf16>
    %74 = vector.shape_cast %73 : vector<8x8x4xbf16> to vector<64x4xbf16>
    %c6 = arith.constant 6 : index
    %c0_80 = arith.constant 0 : index
    %c0_81 = arith.constant 0 : index
    %75 = vector.load %arg4[%c6, %c0_80, %c0_81] : memref<9x4x8xbf16, #tpu.memory_space<vmem>>, vector<1x4x8xbf16>
    %76 = vector.shape_cast %75 : vector<1x4x8xbf16> to vector<4x8xbf16>
    %cst_82 = arith.constant dense<0.000000e+00> : vector<64x8xf32>
    %77 = tpu.matmul %74, %76, %cst_82 {dimension_numbers = #tpu.dot_dimension_numbers<[1], [0], [0], [1], [0, 0, 1, 1], [], []>} : vector<64x4xbf16>, vector<4x8xbf16>, vector<64x8xf32> -> vector<64x8xf32>
    %78 = arith.addf %71, %77 : vector<64x8xf32>
    %c2_83 = arith.constant 2 : index
    %c1_84 = arith.constant 1 : index
    %c0_85 = arith.constant 0 : index
    %79 = tpu.strided_load %arg10[%c2_83, %c1_84, %c0_85] {strides = array<i32: 2, 2, 1>} : memref<18x18x4xf32, #tpu.memory_space<vmem>>, vector<8x8x4xf32>
    %80 = arith.truncf %79 : vector<8x8x4xf32> to vector<8x8x4xbf16>
    %81 = vector.shape_cast %80 : vector<8x8x4xbf16> to vector<64x4xbf16>
    %c7 = arith.constant 7 : index
    %c0_86 = arith.constant 0 : index
    %c0_87 = arith.constant 0 : index
    %82 = vector.load %arg4[%c7, %c0_86, %c0_87] : memref<9x4x8xbf16, #tpu.memory_space<vmem>>, vector<1x4x8xbf16>
    %83 = vector.shape_cast %82 : vector<1x4x8xbf16> to vector<4x8xbf16>
    %cst_88 = arith.constant dense<0.000000e+00> : vector<64x8xf32>
    %84 = tpu.matmul %81, %83, %cst_88 {dimension_numbers = #tpu.dot_dimension_numbers<[1], [0], [0], [1], [0, 0, 1, 1], [], []>} : vector<64x4xbf16>, vector<4x8xbf16>, vector<64x8xf32> -> vector<64x8xf32>
    %85 = arith.addf %78, %84 : vector<64x8xf32>
    %c2_89 = arith.constant 2 : index
    %c2_90 = arith.constant 2 : index
    %c0_91 = arith.constant 0 : index
    %86 = tpu.strided_load %arg10[%c2_89, %c2_90, %c0_91] {strides = array<i32: 2, 2, 1>} : memref<18x18x4xf32, #tpu.memory_space<vmem>>, vector<8x8x4xf32>
    %87 = arith.truncf %86 : vector<8x8x4xf32> to vector<8x8x4xbf16>
    %88 = vector.shape_cast %87 : vector<8x8x4xbf16> to vector<64x4xbf16>
    %c8 = arith.constant 8 : index
    %c0_92 = arith.constant 0 : index
    %c0_93 = arith.constant 0 : index
    %89 = vector.load %arg4[%c8, %c0_92, %c0_93] : memref<9x4x8xbf16, #tpu.memory_space<vmem>>, vector<1x4x8xbf16>
    %90 = vector.shape_cast %89 : vector<1x4x8xbf16> to vector<4x8xbf16>
    %cst_94 = arith.constant dense<0.000000e+00> : vector<64x8xf32>
    %91 = tpu.matmul %88, %90, %cst_94 {dimension_numbers = #tpu.dot_dimension_numbers<[1], [0], [0], [1], [0, 0, 1, 1], [], []>} : vector<64x4xbf16>, vector<4x8xbf16>, vector<64x8xf32> -> vector<64x8xf32>
    %92 = arith.addf %85, %91 : vector<64x8xf32>
    %c0_95 = arith.constant 0 : index
    %c0_96 = arith.constant 0 : index
    %93 = vector.load %arg5[%c0_95, %c0_96] : memref<1x8xf32, #tpu.memory_space<vmem>>, vector<1x8xf32>
    %94 = vector.broadcast %93 : vector<1x8xf32> to vector<64x8xf32>
    %95 = arith.mulf %92, %94 : vector<64x8xf32>
    %c0_97 = arith.constant 0 : index
    %c0_98 = arith.constant 0 : index
    %96 = vector.load %arg6[%c0_97, %c0_98] : memref<1x8xf32, #tpu.memory_space<vmem>>, vector<1x8xf32>
    %97 = vector.broadcast %96 : vector<1x8xf32> to vector<64x8xf32>
    %98 = arith.addf %95, %97 : vector<64x8xf32>
    %cst_99 = arith.constant 0.000000e+00 : f32
    %99 = vector.broadcast %cst_99 : f32 to vector<64x8xf32>
    %100 = arith.maximumf %98, %99 : vector<64x8xf32>
    %101 = vector.shape_cast %100 : vector<64x8xf32> to vector<8x8x8xf32>
    %102 = arith.truncf %101 : vector<8x8x8xf32> to vector<8x8x8xbf16>
    %c1_100 = arith.constant 1 : index
    %c2_101 = arith.constant 2 : index
    %c0_102 = arith.constant 0 : index
    %103 = vector.load %arg11[%c1_100, %c2_101, %c0_102] : memref<10x12x8xbf16, #tpu.memory_space<vmem>>, vector<8x8x8xbf16>
    tpu.vector_store %arg11[%c1_100, %c2_101, %c0_102], %102 {strides = array<i32>} : memref<10x12x8xbf16, #tpu.memory_space<vmem>>, vector<8x8x8xbf16>,
    %cst_103 = arith.constant 0.000000e+00 : f32
    %104 = vector.broadcast %cst_103 : f32 to vector<64x8xf32>
    %c0_104 = arith.constant 0 : index
    %c1_105 = arith.constant 1 : index
    %c0_106 = arith.constant 0 : index
    %105 = vector.load %arg11[%c0_104, %c1_105, %c0_106] : memref<10x12x8xbf16, #tpu.memory_space<vmem>>, vector<8x8x8xbf16>
    %106 = vector.shape_cast %105 : vector<8x8x8xbf16> to vector<64x8xbf16>
    %c0_107 = arith.constant 0 : index
    %c0_108 = arith.constant 0 : index
    %c0_109 = arith.constant 0 : index
    %107 = vector.load %arg7[%c0_107, %c0_108, %c0_109] : memref<9x8x8xbf16, #tpu.memory_space<vmem>>, vector<1x8x8xbf16>
    %108 = vector.shape_cast %107 : vector<1x8x8xbf16> to vector<8x8xbf16>
    %cst_110 = arith.constant dense<0.000000e+00> : vector<64x8xf32>
    %109 = tpu.matmul %106, %108, %cst_110 {dimension_numbers = #tpu.dot_dimension_numbers<[1], [0], [0], [1], [0, 0, 1, 1], [], []>} : vector<64x8xbf16>, vector<8x8xbf16>, vector<64x8xf32> -> vector<64x8xf32>
    %110 = arith.addf %104, %109 : vector<64x8xf32>
    %c0_111 = arith.constant 0 : index
    %c2_112 = arith.constant 2 : index
    %c0_113 = arith.constant 0 : index
    %111 = vector.load %arg11[%c0_111, %c2_112, %c0_113] : memref<10x12x8xbf16, #tpu.memory_space<vmem>>, vector<8x8x8xbf16>
    %112 = vector.shape_cast %111 : vector<8x8x8xbf16> to vector<64x8xbf16>
    %c1_114 = arith.constant 1 : index
    %c0_115 = arith.constant 0 : index
    %c0_116 = arith.constant 0 : index
    %113 = vector.load %arg7[%c1_114, %c0_115, %c0_116] : memref<9x8x8xbf16, #tpu.memory_space<vmem>>, vector<1x8x8xbf16>
    %114 = vector.shape_cast %113 : vector<1x8x8xbf16> to vector<8x8xbf16>
    %cst_117 = arith.constant dense<0.000000e+00> : vector<64x8xf32>
    %115 = tpu.matmul %112, %114, %cst_117 {dimension_numbers = #tpu.dot_dimension_numbers<[1], [0], [0], [1], [0, 0, 1, 1], [], []>} : vector<64x8xbf16>, vector<8x8xbf16>, vector<64x8xf32> -> vector<64x8xf32>
    %116 = arith.addf %110, %115 : vector<64x8xf32>
    %c0_118 = arith.constant 0 : index
    %c3_119 = arith.constant 3 : index
    %c0_120 = arith.constant 0 : index
    %117 = vector.load %arg11[%c0_118, %c3_119, %c0_120] : memref<10x12x8xbf16, #tpu.memory_space<vmem>>, vector<8x8x8xbf16>
    %118 = vector.shape_cast %117 : vector<8x8x8xbf16> to vector<64x8xbf16>
    %c2_121 = arith.constant 2 : index
    %c0_122 = arith.constant 0 : index
    %c0_123 = arith.constant 0 : index
    %119 = vector.load %arg7[%c2_121, %c0_122, %c0_123] : memref<9x8x8xbf16, #tpu.memory_space<vmem>>, vector<1x8x8xbf16>
    %120 = vector.shape_cast %119 : vector<1x8x8xbf16> to vector<8x8xbf16>
    %cst_124 = arith.constant dense<0.000000e+00> : vector<64x8xf32>
    %121 = tpu.matmul %118, %120, %cst_124 {dimension_numbers = #tpu.dot_dimension_numbers<[1], [0], [0], [1], [0, 0, 1, 1], [], []>} : vector<64x8xbf16>, vector<8x8xbf16>, vector<64x8xf32> -> vector<64x8xf32>
    %122 = arith.addf %116, %121 : vector<64x8xf32>
    %c1_125 = arith.constant 1 : index
    %c1_126 = arith.constant 1 : index
    %c0_127 = arith.constant 0 : index
    %123 = vector.load %arg11[%c1_125, %c1_126, %c0_127] : memref<10x12x8xbf16, #tpu.memory_space<vmem>>, vector<8x8x8xbf16>
    %124 = vector.shape_cast %123 : vector<8x8x8xbf16> to vector<64x8xbf16>
    %c3_128 = arith.constant 3 : index
    %c0_129 = arith.constant 0 : index
    %c0_130 = arith.constant 0 : index
    %125 = vector.load %arg7[%c3_128, %c0_129, %c0_130] : memref<9x8x8xbf16, #tpu.memory_space<vmem>>, vector<1x8x8xbf16>
    %126 = vector.shape_cast %125 : vector<1x8x8xbf16> to vector<8x8xbf16>
    %cst_131 = arith.constant dense<0.000000e+00> : vector<64x8xf32>
    %127 = tpu.matmul %124, %126, %cst_131 {dimension_numbers = #tpu.dot_dimension_numbers<[1], [0], [0], [1], [0, 0, 1, 1], [], []>} : vector<64x8xbf16>, vector<8x8xbf16>, vector<64x8xf32> -> vector<64x8xf32>
    %128 = arith.addf %122, %127 : vector<64x8xf32>
    %c1_132 = arith.constant 1 : index
    %c2_133 = arith.constant 2 : index
    %c0_134 = arith.constant 0 : index
    %129 = vector.load %arg11[%c1_132, %c2_133, %c0_134] : memref<10x12x8xbf16, #tpu.memory_space<vmem>>, vector<8x8x8xbf16>
    %130 = vector.shape_cast %129 : vector<8x8x8xbf16> to vector<64x8xbf16>
    %c4_135 = arith.constant 4 : index
    %c0_136 = arith.constant 0 : index
    %c0_137 = arith.constant 0 : index
    %131 = vector.load %arg7[%c4_135, %c0_136, %c0_137] : memref<9x8x8xbf16, #tpu.memory_space<vmem>>, vector<1x8x8xbf16>
    %132 = vector.shape_cast %131 : vector<1x8x8xbf16> to vector<8x8xbf16>
    %cst_138 = arith.constant dense<0.000000e+00> : vector<64x8xf32>
    %133 = tpu.matmul %130, %132, %cst_138 {dimension_numbers = #tpu.dot_dimension_numbers<[1], [0], [0], [1], [0, 0, 1, 1], [], []>} : vector<64x8xbf16>, vector<8x8xbf16>, vector<64x8xf32> -> vector<64x8xf32>
    %134 = arith.addf %128, %133 : vector<64x8xf32>
    %c1_139 = arith.constant 1 : index
    %c3_140 = arith.constant 3 : index
    %c0_141 = arith.constant 0 : index
    %135 = vector.load %arg11[%c1_139, %c3_140, %c0_141] : memref<10x12x8xbf16, #tpu.memory_space<vmem>>, vector<8x8x8xbf16>
    %136 = vector.shape_cast %135 : vector<8x8x8xbf16> to vector<64x8xbf16>
    %c5_142 = arith.constant 5 : index
    %c0_143 = arith.constant 0 : index
    %c0_144 = arith.constant 0 : index
    %137 = vector.load %arg7[%c5_142, %c0_143, %c0_144] : memref<9x8x8xbf16, #tpu.memory_space<vmem>>, vector<1x8x8xbf16>
    %138 = vector.shape_cast %137 : vector<1x8x8xbf16> to vector<8x8xbf16>
    %cst_145 = arith.constant dense<0.000000e+00> : vector<64x8xf32>
    %139 = tpu.matmul %136, %138, %cst_145 {dimension_numbers = #tpu.dot_dimension_numbers<[1], [0], [0], [1], [0, 0, 1, 1], [], []>} : vector<64x8xbf16>, vector<8x8xbf16>, vector<64x8xf32> -> vector<64x8xf32>
    %140 = arith.addf %134, %139 : vector<64x8xf32>
    %c2_146 = arith.constant 2 : index
    %c1_147 = arith.constant 1 : index
    %c0_148 = arith.constant 0 : index
    %141 = vector.load %arg11[%c2_146, %c1_147, %c0_148] : memref<10x12x8xbf16, #tpu.memory_space<vmem>>, vector<8x8x8xbf16>
    %142 = vector.shape_cast %141 : vector<8x8x8xbf16> to vector<64x8xbf16>
    %c6_149 = arith.constant 6 : index
    %c0_150 = arith.constant 0 : index
    %c0_151 = arith.constant 0 : index
    %143 = vector.load %arg7[%c6_149, %c0_150, %c0_151] : memref<9x8x8xbf16, #tpu.memory_space<vmem>>, vector<1x8x8xbf16>
    %144 = vector.shape_cast %143 : vector<1x8x8xbf16> to vector<8x8xbf16>
    %cst_152 = arith.constant dense<0.000000e+00> : vector<64x8xf32>
    %145 = tpu.matmul %142, %144, %cst_152 {dimension_numbers = #tpu.dot_dimension_numbers<[1], [0], [0], [1], [0, 0, 1, 1], [], []>} : vector<64x8xbf16>, vector<8x8xbf16>, vector<64x8xf32> -> vector<64x8xf32>
    %146 = arith.addf %140, %145 : vector<64x8xf32>
    %c2_153 = arith.constant 2 : index
    %c2_154 = arith.constant 2 : index
    %c0_155 = arith.constant 0 : index
    %147 = vector.load %arg11[%c2_153, %c2_154, %c0_155] : memref<10x12x8xbf16, #tpu.memory_space<vmem>>, vector<8x8x8xbf16>
    %148 = vector.shape_cast %147 : vector<8x8x8xbf16> to vector<64x8xbf16>
    %c7_156 = arith.constant 7 : index
    %c0_157 = arith.constant 0 : index
    %c0_158 = arith.constant 0 : index
    %149 = vector.load %arg7[%c7_156, %c0_157, %c0_158] : memref<9x8x8xbf16, #tpu.memory_space<vmem>>, vector<1x8x8xbf16>
    %150 = vector.shape_cast %149 : vector<1x8x8xbf16> to vector<8x8xbf16>
    %cst_159 = arith.constant dense<0.000000e+00> : vector<64x8xf32>
    %151 = tpu.matmul %148, %150, %cst_159 {dimension_numbers = #tpu.dot_dimension_numbers<[1], [0], [0], [1], [0, 0, 1, 1], [], []>} : vector<64x8xbf16>, vector<8x8xbf16>, vector<64x8xf32> -> vector<64x8xf32>
    %152 = arith.addf %146, %151 : vector<64x8xf32>
    %c2_160 = arith.constant 2 : index
    %c3_161 = arith.constant 3 : index
    %c0_162 = arith.constant 0 : index
    %153 = vector.load %arg11[%c2_160, %c3_161, %c0_162] : memref<10x12x8xbf16, #tpu.memory_space<vmem>>, vector<8x8x8xbf16>
    %154 = vector.shape_cast %153 : vector<8x8x8xbf16> to vector<64x8xbf16>
    %c8_163 = arith.constant 8 : index
    %c0_164 = arith.constant 0 : index
    %c0_165 = arith.constant 0 : index
    %155 = vector.load %arg7[%c8_163, %c0_164, %c0_165] : memref<9x8x8xbf16, #tpu.memory_space<vmem>>, vector<1x8x8xbf16>
    %156 = vector.shape_cast %155 : vector<1x8x8xbf16> to vector<8x8xbf16>
    %cst_166 = arith.constant dense<0.000000e+00> : vector<64x8xf32>
    %157 = tpu.matmul %154, %156, %cst_166 {dimension_numbers = #tpu.dot_dimension_numbers<[1], [0], [0], [1], [0, 0, 1, 1], [], []>} : vector<64x8xbf16>, vector<8x8xbf16>, vector<64x8xf32> -> vector<64x8xf32>
    %158 = arith.addf %152, %157 : vector<64x8xf32>
    %c1_167 = arith.constant 1 : index
    %c1_168 = arith.constant 1 : index
    %c0_169 = arith.constant 0 : index
    %159 = tpu.strided_load %arg10[%c1_167, %c1_168, %c0_169] {strides = array<i32: 2, 2, 1>} : memref<18x18x4xf32, #tpu.memory_space<vmem>>, vector<8x8x4xf32>
    %160 = arith.truncf %159 : vector<8x8x4xf32> to vector<8x8x4xbf16>
    %161 = vector.shape_cast %160 : vector<8x8x4xbf16> to vector<64x4xbf16>
    %c0_170 = arith.constant 0 : index
    %c0_171 = arith.constant 0 : index
    %162 = vector.load %arg8[%c0_170, %c0_171] : memref<4x8xbf16, #tpu.memory_space<vmem>>, vector<4x8xbf16>
    %cst_172 = arith.constant dense<0.000000e+00> : vector<64x8xf32>
    %163 = tpu.matmul %161, %162, %cst_172 {dimension_numbers = #tpu.dot_dimension_numbers<[1], [0], [0], [1], [0, 0, 1, 1], [], []>} : vector<64x4xbf16>, vector<4x8xbf16>, vector<64x8xf32> -> vector<64x8xf32>
    %164 = arith.addf %163, %158 : vector<64x8xf32>
    %165 = vector.shape_cast %164 : vector<64x8xf32> to vector<8x8x8xf32>
    %c0_173 = arith.constant 0 : index
    %c0_174 = arith.constant 0 : index
    %c0_175 = arith.constant 0 : index
    %c0_176 = arith.constant 0 : index
    %166 = vector.load %arg9[%c0_173, %c0_174, %c0_175, %c0_176] : memref<1x8x8x8xf32, #tpu.memory_space<vmem>>, vector<1x8x8x8xf32>
    %167 = vector.shape_cast %166 : vector<1x8x8x8xf32> to vector<8x8x8xf32>
    %168 = vector.shape_cast %165 : vector<8x8x8xf32> to vector<1x8x8x8xf32>
    tpu.vector_store %arg9[%c0_173, %c0_174, %c0_175, %c0_176], %168 {strides = array<i32>} : memref<1x8x8x8xf32, #tpu.memory_space<vmem>>, vector<1x8x8x8xf32>,
    return
  }
  func.func @transform_0(%arg0: i32) -> (i32, i32, i32, i32) {
    %c0_i32 = arith.constant 0 : i32
    %c0_i32_0 = arith.constant 0 : i32
    %c0_i32_1 = arith.constant 0 : i32
    %c0_i32_2 = arith.constant 0 : i32
    return %arg0, %c0_i32, %c0_i32_0, %c0_i32_1 : i32, i32, i32, i32
  }
  func.func @transform_1(%arg0: i32) -> (i32, i32) {
    %c0_i32 = arith.constant 0 : i32
    %c0_i32_0 = arith.constant 0 : i32
    %c0_i32_1 = arith.constant 0 : i32
    return %c0_i32, %c0_i32_0 : i32, i32
  }
  func.func @transform_2(%arg0: i32) -> (i32, i32) {
    %c0_i32 = arith.constant 0 : i32
    %c0_i32_0 = arith.constant 0 : i32
    %c0_i32_1 = arith.constant 0 : i32
    return %c0_i32, %c0_i32_0 : i32, i32
  }
  func.func @transform_3(%arg0: i32) -> (i32, i32, i32) {
    %c0_i32 = arith.constant 0 : i32
    %c0_i32_0 = arith.constant 0 : i32
    %c0_i32_1 = arith.constant 0 : i32
    %c0_i32_2 = arith.constant 0 : i32
    return %c0_i32, %c0_i32_0, %c0_i32_1 : i32, i32, i32
  }
  func.func @transform_4(%arg0: i32) -> (i32, i32) {
    %c0_i32 = arith.constant 0 : i32
    %c0_i32_0 = arith.constant 0 : i32
    %c0_i32_1 = arith.constant 0 : i32
    return %c0_i32, %c0_i32_0 : i32, i32
  }
  func.func @transform_5(%arg0: i32) -> (i32, i32) {
    %c0_i32 = arith.constant 0 : i32
    %c0_i32_0 = arith.constant 0 : i32
    %c0_i32_1 = arith.constant 0 : i32
    return %c0_i32, %c0_i32_0 : i32, i32
  }
  func.func @transform_6(%arg0: i32) -> (i32, i32, i32) {
    %c0_i32 = arith.constant 0 : i32
    %c0_i32_0 = arith.constant 0 : i32
    %c0_i32_1 = arith.constant 0 : i32
    %c0_i32_2 = arith.constant 0 : i32
    return %c0_i32, %c0_i32_0, %c0_i32_1 : i32, i32, i32
  }
  func.func @transform_7(%arg0: i32) -> (i32, i32) {
    %c0_i32 = arith.constant 0 : i32
    %c0_i32_0 = arith.constant 0 : i32
    %c0_i32_1 = arith.constant 0 : i32
    return %c0_i32, %c0_i32_0 : i32, i32
  }
  func.func @transform_8(%arg0: i32) -> (i32, i32, i32, i32) {
    %c0_i32 = arith.constant 0 : i32
    %c0_i32_0 = arith.constant 0 : i32
    %c0_i32_1 = arith.constant 0 : i32
    %c0_i32_2 = arith.constant 0 : i32
    return %arg0, %c0_i32, %c0_i32_0, %c0_i32_1 : i32, i32, i32, i32
  }
}

module attributes {stable_mosaic.version = 11 : i64} {
  func.func @kernel(%arg0: i32, %arg1: memref<2x8x8x8xf32, #tpu.memory_space<vmem>>, %arg2: memref<1x8xf32, #tpu.memory_space<vmem>>, %arg3: memref<1x8xf32, #tpu.memory_space<vmem>>, %arg4: memref<9x8x8xbf16, #tpu.memory_space<vmem>>, %arg5: memref<1x8xf32, #tpu.memory_space<vmem>>, %arg6: memref<1x8xf32, #tpu.memory_space<vmem>>, %arg7: memref<9x8x8xbf16, #tpu.memory_space<vmem>>, %arg8: memref<2x8x8x8xf32, #tpu.memory_space<vmem>>, %arg9: memref<2x10x12x8xbf16, #tpu.memory_space<vmem>>, %arg10: memref<2x10x12x8xbf16, #tpu.memory_space<vmem>>) attributes {dimension_semantics = [#tpu.dimension_semantics<parallel>], iteration_bounds = array<i64: 2>, scalar_prefetch = 0 : i64, scratch_operands = 2 : i64, tpu.core_type = #tpu.core_type<tc>, window_params = [{transform_indices = @transform_0, window_bounds = array<i64: 2, 8, 8, 8>}, {pipeline_mode = #tpu.pipeline_mode<synchronous>, transform_indices = @transform_1, window_bounds = array<i64: 1, 8>}, {pipeline_mode = #tpu.pipeline_mode<synchronous>, transform_indices = @transform_2, window_bounds = array<i64: 1, 8>}, {pipeline_mode = #tpu.pipeline_mode<synchronous>, transform_indices = @transform_3, window_bounds = array<i64: 9, 8, 8>}, {pipeline_mode = #tpu.pipeline_mode<synchronous>, transform_indices = @transform_4, window_bounds = array<i64: 1, 8>}, {pipeline_mode = #tpu.pipeline_mode<synchronous>, transform_indices = @transform_5, window_bounds = array<i64: 1, 8>}, {pipeline_mode = #tpu.pipeline_mode<synchronous>, transform_indices = @transform_6, window_bounds = array<i64: 9, 8, 8>}, {transform_indices = @transform_7, window_bounds = array<i64: 2, 8, 8, 8>}]} {
    %cst = arith.constant 0.000000e+00 : bf16
    %0 = vector.broadcast %cst : bf16 to vector<2x1x12x8xbf16>
    %c0 = arith.constant 0 : index
    %c0_0 = arith.constant 0 : index
    %c0_1 = arith.constant 0 : index
    %c0_2 = arith.constant 0 : index
    %1 = vector.load %arg9[%c0, %c0_0, %c0_1, %c0_2] : memref<2x10x12x8xbf16, #tpu.memory_space<vmem>>, vector<2x1x12x8xbf16>
    tpu.vector_store %arg9[%c0, %c0_0, %c0_1, %c0_2], %0 {strides = array<i32>} : memref<2x10x12x8xbf16, #tpu.memory_space<vmem>>, vector<2x1x12x8xbf16>,
    %cst_3 = arith.constant 0.000000e+00 : bf16
    %2 = vector.broadcast %cst_3 : bf16 to vector<2x1x12x8xbf16>
    %c0_4 = arith.constant 0 : index
    %c9 = arith.constant 9 : index
    %c0_5 = arith.constant 0 : index
    %c0_6 = arith.constant 0 : index
    %3 = vector.load %arg9[%c0_4, %c9, %c0_5, %c0_6] : memref<2x10x12x8xbf16, #tpu.memory_space<vmem>>, vector<2x1x12x8xbf16>
    tpu.vector_store %arg9[%c0_4, %c9, %c0_5, %c0_6], %2 {strides = array<i32>} : memref<2x10x12x8xbf16, #tpu.memory_space<vmem>>, vector<2x1x12x8xbf16>,
    %cst_7 = arith.constant 0.000000e+00 : bf16
    %4 = vector.broadcast %cst_7 : bf16 to vector<2x10x2x8xbf16>
    %c0_8 = arith.constant 0 : index
    %c0_9 = arith.constant 0 : index
    %c0_10 = arith.constant 0 : index
    %c0_11 = arith.constant 0 : index
    %5 = vector.load %arg9[%c0_8, %c0_9, %c0_10, %c0_11] : memref<2x10x12x8xbf16, #tpu.memory_space<vmem>>, vector<2x10x2x8xbf16>
    tpu.vector_store %arg9[%c0_8, %c0_9, %c0_10, %c0_11], %4 {strides = array<i32>} : memref<2x10x12x8xbf16, #tpu.memory_space<vmem>>, vector<2x10x2x8xbf16>,
    %cst_12 = arith.constant 0.000000e+00 : bf16
    %6 = vector.broadcast %cst_12 : bf16 to vector<2x10x2x8xbf16>
    %c0_13 = arith.constant 0 : index
    %c0_14 = arith.constant 0 : index
    %c10 = arith.constant 10 : index
    %c0_15 = arith.constant 0 : index
    %7 = vector.load %arg9[%c0_13, %c0_14, %c10, %c0_15] : memref<2x10x12x8xbf16, #tpu.memory_space<vmem>>, vector<2x10x2x8xbf16>
    tpu.vector_store %arg9[%c0_13, %c0_14, %c10, %c0_15], %6 {strides = array<i32>} : memref<2x10x12x8xbf16, #tpu.memory_space<vmem>>, vector<2x10x2x8xbf16>,
    %cst_16 = arith.constant 0.000000e+00 : bf16
    %8 = vector.broadcast %cst_16 : bf16 to vector<2x1x12x8xbf16>
    %c0_17 = arith.constant 0 : index
    %c0_18 = arith.constant 0 : index
    %c0_19 = arith.constant 0 : index
    %c0_20 = arith.constant 0 : index
    %9 = vector.load %arg10[%c0_17, %c0_18, %c0_19, %c0_20] : memref<2x10x12x8xbf16, #tpu.memory_space<vmem>>, vector<2x1x12x8xbf16>
    tpu.vector_store %arg10[%c0_17, %c0_18, %c0_19, %c0_20], %8 {strides = array<i32>} : memref<2x10x12x8xbf16, #tpu.memory_space<vmem>>, vector<2x1x12x8xbf16>,
    %cst_21 = arith.constant 0.000000e+00 : bf16
    %10 = vector.broadcast %cst_21 : bf16 to vector<2x1x12x8xbf16>
    %c0_22 = arith.constant 0 : index
    %c9_23 = arith.constant 9 : index
    %c0_24 = arith.constant 0 : index
    %c0_25 = arith.constant 0 : index
    %11 = vector.load %arg10[%c0_22, %c9_23, %c0_24, %c0_25] : memref<2x10x12x8xbf16, #tpu.memory_space<vmem>>, vector<2x1x12x8xbf16>
    tpu.vector_store %arg10[%c0_22, %c9_23, %c0_24, %c0_25], %10 {strides = array<i32>} : memref<2x10x12x8xbf16, #tpu.memory_space<vmem>>, vector<2x1x12x8xbf16>,
    %cst_26 = arith.constant 0.000000e+00 : bf16
    %12 = vector.broadcast %cst_26 : bf16 to vector<2x10x2x8xbf16>
    %c0_27 = arith.constant 0 : index
    %c0_28 = arith.constant 0 : index
    %c0_29 = arith.constant 0 : index
    %c0_30 = arith.constant 0 : index
    %13 = vector.load %arg10[%c0_27, %c0_28, %c0_29, %c0_30] : memref<2x10x12x8xbf16, #tpu.memory_space<vmem>>, vector<2x10x2x8xbf16>
    tpu.vector_store %arg10[%c0_27, %c0_28, %c0_29, %c0_30], %12 {strides = array<i32>} : memref<2x10x12x8xbf16, #tpu.memory_space<vmem>>, vector<2x10x2x8xbf16>,
    %cst_31 = arith.constant 0.000000e+00 : bf16
    %14 = vector.broadcast %cst_31 : bf16 to vector<2x10x2x8xbf16>
    %c0_32 = arith.constant 0 : index
    %c0_33 = arith.constant 0 : index
    %c10_34 = arith.constant 10 : index
    %c0_35 = arith.constant 0 : index
    %15 = vector.load %arg10[%c0_32, %c0_33, %c10_34, %c0_35] : memref<2x10x12x8xbf16, #tpu.memory_space<vmem>>, vector<2x10x2x8xbf16>
    tpu.vector_store %arg10[%c0_32, %c0_33, %c10_34, %c0_35], %14 {strides = array<i32>} : memref<2x10x12x8xbf16, #tpu.memory_space<vmem>>, vector<2x10x2x8xbf16>,
    %c0_36 = arith.constant 0 : index
    %c0_37 = arith.constant 0 : index
    %c0_38 = arith.constant 0 : index
    %c0_39 = arith.constant 0 : index
    %16 = vector.load %arg1[%c0_36, %c0_37, %c0_38, %c0_39] : memref<2x8x8x8xf32, #tpu.memory_space<vmem>>, vector<2x8x8x8xf32>
    %c0_40 = arith.constant 0 : index
    %c0_41 = arith.constant 0 : index
    %17 = vector.load %arg2[%c0_40, %c0_41] : memref<1x8xf32, #tpu.memory_space<vmem>>, vector<1x8xf32>
    %18 = vector.shape_cast %17 : vector<1x8xf32> to vector<1x1x1x8xf32>
    %19 = vector.broadcast %18 : vector<1x1x1x8xf32> to vector<2x8x8x8xf32>
    %20 = arith.mulf %16, %19 : vector<2x8x8x8xf32>
    %c0_42 = arith.constant 0 : index
    %c0_43 = arith.constant 0 : index
    %21 = vector.load %arg3[%c0_42, %c0_43] : memref<1x8xf32, #tpu.memory_space<vmem>>, vector<1x8xf32>
    %22 = vector.shape_cast %21 : vector<1x8xf32> to vector<1x1x1x8xf32>
    %23 = vector.broadcast %22 : vector<1x1x1x8xf32> to vector<2x8x8x8xf32>
    %24 = arith.addf %20, %23 : vector<2x8x8x8xf32>
    %cst_44 = arith.constant 0.000000e+00 : f32
    %25 = vector.broadcast %cst_44 : f32 to vector<2x8x8x8xf32>
    %26 = arith.maximumf %24, %25 : vector<2x8x8x8xf32>
    %27 = arith.truncf %26 : vector<2x8x8x8xf32> to vector<2x8x8x8xbf16>
    %c0_45 = arith.constant 0 : index
    %c1 = arith.constant 1 : index
    %c2 = arith.constant 2 : index
    %c0_46 = arith.constant 0 : index
    %28 = vector.load %arg9[%c0_45, %c1, %c2, %c0_46] : memref<2x10x12x8xbf16, #tpu.memory_space<vmem>>, vector<2x8x8x8xbf16>
    tpu.vector_store %arg9[%c0_45, %c1, %c2, %c0_46], %27 {strides = array<i32>} : memref<2x10x12x8xbf16, #tpu.memory_space<vmem>>, vector<2x8x8x8xbf16>,
    %cst_47 = arith.constant 0.000000e+00 : f32
    %29 = vector.broadcast %cst_47 : f32 to vector<128x8xf32>
    %c0_48 = arith.constant 0 : index
    %c0_49 = arith.constant 0 : index
    %c1_50 = arith.constant 1 : index
    %c0_51 = arith.constant 0 : index
    %30 = vector.load %arg9[%c0_48, %c0_49, %c1_50, %c0_51] : memref<2x10x12x8xbf16, #tpu.memory_space<vmem>>, vector<2x8x8x8xbf16>
    %31 = vector.shape_cast %30 : vector<2x8x8x8xbf16> to vector<128x8xbf16>
    %c0_52 = arith.constant 0 : index
    %c0_53 = arith.constant 0 : index
    %c0_54 = arith.constant 0 : index
    %32 = vector.load %arg4[%c0_52, %c0_53, %c0_54] : memref<9x8x8xbf16, #tpu.memory_space<vmem>>, vector<1x8x8xbf16>
    %33 = vector.shape_cast %32 : vector<1x8x8xbf16> to vector<8x8xbf16>
    %cst_55 = arith.constant dense<0.000000e+00> : vector<128x8xf32>
    %34 = tpu.matmul %31, %33, %cst_55 {dimension_numbers = #tpu.dot_dimension_numbers<[1], [0], [0], [1], [0, 0, 1, 1], [], []>} : vector<128x8xbf16>, vector<8x8xbf16>, vector<128x8xf32> -> vector<128x8xf32>
    %35 = arith.addf %29, %34 : vector<128x8xf32>
    %c0_56 = arith.constant 0 : index
    %c0_57 = arith.constant 0 : index
    %c2_58 = arith.constant 2 : index
    %c0_59 = arith.constant 0 : index
    %36 = vector.load %arg9[%c0_56, %c0_57, %c2_58, %c0_59] : memref<2x10x12x8xbf16, #tpu.memory_space<vmem>>, vector<2x8x8x8xbf16>
    %37 = vector.shape_cast %36 : vector<2x8x8x8xbf16> to vector<128x8xbf16>
    %c1_60 = arith.constant 1 : index
    %c0_61 = arith.constant 0 : index
    %c0_62 = arith.constant 0 : index
    %38 = vector.load %arg4[%c1_60, %c0_61, %c0_62] : memref<9x8x8xbf16, #tpu.memory_space<vmem>>, vector<1x8x8xbf16>
    %39 = vector.shape_cast %38 : vector<1x8x8xbf16> to vector<8x8xbf16>
    %cst_63 = arith.constant dense<0.000000e+00> : vector<128x8xf32>
    %40 = tpu.matmul %37, %39, %cst_63 {dimension_numbers = #tpu.dot_dimension_numbers<[1], [0], [0], [1], [0, 0, 1, 1], [], []>} : vector<128x8xbf16>, vector<8x8xbf16>, vector<128x8xf32> -> vector<128x8xf32>
    %41 = arith.addf %35, %40 : vector<128x8xf32>
    %c0_64 = arith.constant 0 : index
    %c0_65 = arith.constant 0 : index
    %c3 = arith.constant 3 : index
    %c0_66 = arith.constant 0 : index
    %42 = vector.load %arg9[%c0_64, %c0_65, %c3, %c0_66] : memref<2x10x12x8xbf16, #tpu.memory_space<vmem>>, vector<2x8x8x8xbf16>
    %43 = vector.shape_cast %42 : vector<2x8x8x8xbf16> to vector<128x8xbf16>
    %c2_67 = arith.constant 2 : index
    %c0_68 = arith.constant 0 : index
    %c0_69 = arith.constant 0 : index
    %44 = vector.load %arg4[%c2_67, %c0_68, %c0_69] : memref<9x8x8xbf16, #tpu.memory_space<vmem>>, vector<1x8x8xbf16>
    %45 = vector.shape_cast %44 : vector<1x8x8xbf16> to vector<8x8xbf16>
    %cst_70 = arith.constant dense<0.000000e+00> : vector<128x8xf32>
    %46 = tpu.matmul %43, %45, %cst_70 {dimension_numbers = #tpu.dot_dimension_numbers<[1], [0], [0], [1], [0, 0, 1, 1], [], []>} : vector<128x8xbf16>, vector<8x8xbf16>, vector<128x8xf32> -> vector<128x8xf32>
    %47 = arith.addf %41, %46 : vector<128x8xf32>
    %c0_71 = arith.constant 0 : index
    %c1_72 = arith.constant 1 : index
    %c1_73 = arith.constant 1 : index
    %c0_74 = arith.constant 0 : index
    %48 = vector.load %arg9[%c0_71, %c1_72, %c1_73, %c0_74] : memref<2x10x12x8xbf16, #tpu.memory_space<vmem>>, vector<2x8x8x8xbf16>
    %49 = vector.shape_cast %48 : vector<2x8x8x8xbf16> to vector<128x8xbf16>
    %c3_75 = arith.constant 3 : index
    %c0_76 = arith.constant 0 : index
    %c0_77 = arith.constant 0 : index
    %50 = vector.load %arg4[%c3_75, %c0_76, %c0_77] : memref<9x8x8xbf16, #tpu.memory_space<vmem>>, vector<1x8x8xbf16>
    %51 = vector.shape_cast %50 : vector<1x8x8xbf16> to vector<8x8xbf16>
    %cst_78 = arith.constant dense<0.000000e+00> : vector<128x8xf32>
    %52 = tpu.matmul %49, %51, %cst_78 {dimension_numbers = #tpu.dot_dimension_numbers<[1], [0], [0], [1], [0, 0, 1, 1], [], []>} : vector<128x8xbf16>, vector<8x8xbf16>, vector<128x8xf32> -> vector<128x8xf32>
    %53 = arith.addf %47, %52 : vector<128x8xf32>
    %c0_79 = arith.constant 0 : index
    %c1_80 = arith.constant 1 : index
    %c2_81 = arith.constant 2 : index
    %c0_82 = arith.constant 0 : index
    %54 = vector.load %arg9[%c0_79, %c1_80, %c2_81, %c0_82] : memref<2x10x12x8xbf16, #tpu.memory_space<vmem>>, vector<2x8x8x8xbf16>
    %55 = vector.shape_cast %54 : vector<2x8x8x8xbf16> to vector<128x8xbf16>
    %c4 = arith.constant 4 : index
    %c0_83 = arith.constant 0 : index
    %c0_84 = arith.constant 0 : index
    %56 = vector.load %arg4[%c4, %c0_83, %c0_84] : memref<9x8x8xbf16, #tpu.memory_space<vmem>>, vector<1x8x8xbf16>
    %57 = vector.shape_cast %56 : vector<1x8x8xbf16> to vector<8x8xbf16>
    %cst_85 = arith.constant dense<0.000000e+00> : vector<128x8xf32>
    %58 = tpu.matmul %55, %57, %cst_85 {dimension_numbers = #tpu.dot_dimension_numbers<[1], [0], [0], [1], [0, 0, 1, 1], [], []>} : vector<128x8xbf16>, vector<8x8xbf16>, vector<128x8xf32> -> vector<128x8xf32>
    %59 = arith.addf %53, %58 : vector<128x8xf32>
    %c0_86 = arith.constant 0 : index
    %c1_87 = arith.constant 1 : index
    %c3_88 = arith.constant 3 : index
    %c0_89 = arith.constant 0 : index
    %60 = vector.load %arg9[%c0_86, %c1_87, %c3_88, %c0_89] : memref<2x10x12x8xbf16, #tpu.memory_space<vmem>>, vector<2x8x8x8xbf16>
    %61 = vector.shape_cast %60 : vector<2x8x8x8xbf16> to vector<128x8xbf16>
    %c5 = arith.constant 5 : index
    %c0_90 = arith.constant 0 : index
    %c0_91 = arith.constant 0 : index
    %62 = vector.load %arg4[%c5, %c0_90, %c0_91] : memref<9x8x8xbf16, #tpu.memory_space<vmem>>, vector<1x8x8xbf16>
    %63 = vector.shape_cast %62 : vector<1x8x8xbf16> to vector<8x8xbf16>
    %cst_92 = arith.constant dense<0.000000e+00> : vector<128x8xf32>
    %64 = tpu.matmul %61, %63, %cst_92 {dimension_numbers = #tpu.dot_dimension_numbers<[1], [0], [0], [1], [0, 0, 1, 1], [], []>} : vector<128x8xbf16>, vector<8x8xbf16>, vector<128x8xf32> -> vector<128x8xf32>
    %65 = arith.addf %59, %64 : vector<128x8xf32>
    %c0_93 = arith.constant 0 : index
    %c2_94 = arith.constant 2 : index
    %c1_95 = arith.constant 1 : index
    %c0_96 = arith.constant 0 : index
    %66 = vector.load %arg9[%c0_93, %c2_94, %c1_95, %c0_96] : memref<2x10x12x8xbf16, #tpu.memory_space<vmem>>, vector<2x8x8x8xbf16>
    %67 = vector.shape_cast %66 : vector<2x8x8x8xbf16> to vector<128x8xbf16>
    %c6 = arith.constant 6 : index
    %c0_97 = arith.constant 0 : index
    %c0_98 = arith.constant 0 : index
    %68 = vector.load %arg4[%c6, %c0_97, %c0_98] : memref<9x8x8xbf16, #tpu.memory_space<vmem>>, vector<1x8x8xbf16>
    %69 = vector.shape_cast %68 : vector<1x8x8xbf16> to vector<8x8xbf16>
    %cst_99 = arith.constant dense<0.000000e+00> : vector<128x8xf32>
    %70 = tpu.matmul %67, %69, %cst_99 {dimension_numbers = #tpu.dot_dimension_numbers<[1], [0], [0], [1], [0, 0, 1, 1], [], []>} : vector<128x8xbf16>, vector<8x8xbf16>, vector<128x8xf32> -> vector<128x8xf32>
    %71 = arith.addf %65, %70 : vector<128x8xf32>
    %c0_100 = arith.constant 0 : index
    %c2_101 = arith.constant 2 : index
    %c2_102 = arith.constant 2 : index
    %c0_103 = arith.constant 0 : index
    %72 = vector.load %arg9[%c0_100, %c2_101, %c2_102, %c0_103] : memref<2x10x12x8xbf16, #tpu.memory_space<vmem>>, vector<2x8x8x8xbf16>
    %73 = vector.shape_cast %72 : vector<2x8x8x8xbf16> to vector<128x8xbf16>
    %c7 = arith.constant 7 : index
    %c0_104 = arith.constant 0 : index
    %c0_105 = arith.constant 0 : index
    %74 = vector.load %arg4[%c7, %c0_104, %c0_105] : memref<9x8x8xbf16, #tpu.memory_space<vmem>>, vector<1x8x8xbf16>
    %75 = vector.shape_cast %74 : vector<1x8x8xbf16> to vector<8x8xbf16>
    %cst_106 = arith.constant dense<0.000000e+00> : vector<128x8xf32>
    %76 = tpu.matmul %73, %75, %cst_106 {dimension_numbers = #tpu.dot_dimension_numbers<[1], [0], [0], [1], [0, 0, 1, 1], [], []>} : vector<128x8xbf16>, vector<8x8xbf16>, vector<128x8xf32> -> vector<128x8xf32>
    %77 = arith.addf %71, %76 : vector<128x8xf32>
    %c0_107 = arith.constant 0 : index
    %c2_108 = arith.constant 2 : index
    %c3_109 = arith.constant 3 : index
    %c0_110 = arith.constant 0 : index
    %78 = vector.load %arg9[%c0_107, %c2_108, %c3_109, %c0_110] : memref<2x10x12x8xbf16, #tpu.memory_space<vmem>>, vector<2x8x8x8xbf16>
    %79 = vector.shape_cast %78 : vector<2x8x8x8xbf16> to vector<128x8xbf16>
    %c8 = arith.constant 8 : index
    %c0_111 = arith.constant 0 : index
    %c0_112 = arith.constant 0 : index
    %80 = vector.load %arg4[%c8, %c0_111, %c0_112] : memref<9x8x8xbf16, #tpu.memory_space<vmem>>, vector<1x8x8xbf16>
    %81 = vector.shape_cast %80 : vector<1x8x8xbf16> to vector<8x8xbf16>
    %cst_113 = arith.constant dense<0.000000e+00> : vector<128x8xf32>
    %82 = tpu.matmul %79, %81, %cst_113 {dimension_numbers = #tpu.dot_dimension_numbers<[1], [0], [0], [1], [0, 0, 1, 1], [], []>} : vector<128x8xbf16>, vector<8x8xbf16>, vector<128x8xf32> -> vector<128x8xf32>
    %83 = arith.addf %77, %82 : vector<128x8xf32>
    %c0_114 = arith.constant 0 : index
    %c0_115 = arith.constant 0 : index
    %84 = vector.load %arg5[%c0_114, %c0_115] : memref<1x8xf32, #tpu.memory_space<vmem>>, vector<1x8xf32>
    %85 = vector.broadcast %84 : vector<1x8xf32> to vector<128x8xf32>
    %86 = arith.mulf %83, %85 : vector<128x8xf32>
    %c0_116 = arith.constant 0 : index
    %c0_117 = arith.constant 0 : index
    %87 = vector.load %arg6[%c0_116, %c0_117] : memref<1x8xf32, #tpu.memory_space<vmem>>, vector<1x8xf32>
    %88 = vector.broadcast %87 : vector<1x8xf32> to vector<128x8xf32>
    %89 = arith.addf %86, %88 : vector<128x8xf32>
    %cst_118 = arith.constant 0.000000e+00 : f32
    %90 = vector.broadcast %cst_118 : f32 to vector<128x8xf32>
    %91 = arith.maximumf %89, %90 : vector<128x8xf32>
    %92 = vector.shape_cast %91 : vector<128x8xf32> to vector<2x8x8x8xf32>
    %93 = arith.truncf %92 : vector<2x8x8x8xf32> to vector<2x8x8x8xbf16>
    %c0_119 = arith.constant 0 : index
    %c1_120 = arith.constant 1 : index
    %c2_121 = arith.constant 2 : index
    %c0_122 = arith.constant 0 : index
    %94 = vector.load %arg10[%c0_119, %c1_120, %c2_121, %c0_122] : memref<2x10x12x8xbf16, #tpu.memory_space<vmem>>, vector<2x8x8x8xbf16>
    tpu.vector_store %arg10[%c0_119, %c1_120, %c2_121, %c0_122], %93 {strides = array<i32>} : memref<2x10x12x8xbf16, #tpu.memory_space<vmem>>, vector<2x8x8x8xbf16>,
    %cst_123 = arith.constant 0.000000e+00 : f32
    %95 = vector.broadcast %cst_123 : f32 to vector<128x8xf32>
    %c0_124 = arith.constant 0 : index
    %c0_125 = arith.constant 0 : index
    %c1_126 = arith.constant 1 : index
    %c0_127 = arith.constant 0 : index
    %96 = vector.load %arg10[%c0_124, %c0_125, %c1_126, %c0_127] : memref<2x10x12x8xbf16, #tpu.memory_space<vmem>>, vector<2x8x8x8xbf16>
    %97 = vector.shape_cast %96 : vector<2x8x8x8xbf16> to vector<128x8xbf16>
    %c0_128 = arith.constant 0 : index
    %c0_129 = arith.constant 0 : index
    %c0_130 = arith.constant 0 : index
    %98 = vector.load %arg7[%c0_128, %c0_129, %c0_130] : memref<9x8x8xbf16, #tpu.memory_space<vmem>>, vector<1x8x8xbf16>
    %99 = vector.shape_cast %98 : vector<1x8x8xbf16> to vector<8x8xbf16>
    %cst_131 = arith.constant dense<0.000000e+00> : vector<128x8xf32>
    %100 = tpu.matmul %97, %99, %cst_131 {dimension_numbers = #tpu.dot_dimension_numbers<[1], [0], [0], [1], [0, 0, 1, 1], [], []>} : vector<128x8xbf16>, vector<8x8xbf16>, vector<128x8xf32> -> vector<128x8xf32>
    %101 = arith.addf %95, %100 : vector<128x8xf32>
    %c0_132 = arith.constant 0 : index
    %c0_133 = arith.constant 0 : index
    %c2_134 = arith.constant 2 : index
    %c0_135 = arith.constant 0 : index
    %102 = vector.load %arg10[%c0_132, %c0_133, %c2_134, %c0_135] : memref<2x10x12x8xbf16, #tpu.memory_space<vmem>>, vector<2x8x8x8xbf16>
    %103 = vector.shape_cast %102 : vector<2x8x8x8xbf16> to vector<128x8xbf16>
    %c1_136 = arith.constant 1 : index
    %c0_137 = arith.constant 0 : index
    %c0_138 = arith.constant 0 : index
    %104 = vector.load %arg7[%c1_136, %c0_137, %c0_138] : memref<9x8x8xbf16, #tpu.memory_space<vmem>>, vector<1x8x8xbf16>
    %105 = vector.shape_cast %104 : vector<1x8x8xbf16> to vector<8x8xbf16>
    %cst_139 = arith.constant dense<0.000000e+00> : vector<128x8xf32>
    %106 = tpu.matmul %103, %105, %cst_139 {dimension_numbers = #tpu.dot_dimension_numbers<[1], [0], [0], [1], [0, 0, 1, 1], [], []>} : vector<128x8xbf16>, vector<8x8xbf16>, vector<128x8xf32> -> vector<128x8xf32>
    %107 = arith.addf %101, %106 : vector<128x8xf32>
    %c0_140 = arith.constant 0 : index
    %c0_141 = arith.constant 0 : index
    %c3_142 = arith.constant 3 : index
    %c0_143 = arith.constant 0 : index
    %108 = vector.load %arg10[%c0_140, %c0_141, %c3_142, %c0_143] : memref<2x10x12x8xbf16, #tpu.memory_space<vmem>>, vector<2x8x8x8xbf16>
    %109 = vector.shape_cast %108 : vector<2x8x8x8xbf16> to vector<128x8xbf16>
    %c2_144 = arith.constant 2 : index
    %c0_145 = arith.constant 0 : index
    %c0_146 = arith.constant 0 : index
    %110 = vector.load %arg7[%c2_144, %c0_145, %c0_146] : memref<9x8x8xbf16, #tpu.memory_space<vmem>>, vector<1x8x8xbf16>
    %111 = vector.shape_cast %110 : vector<1x8x8xbf16> to vector<8x8xbf16>
    %cst_147 = arith.constant dense<0.000000e+00> : vector<128x8xf32>
    %112 = tpu.matmul %109, %111, %cst_147 {dimension_numbers = #tpu.dot_dimension_numbers<[1], [0], [0], [1], [0, 0, 1, 1], [], []>} : vector<128x8xbf16>, vector<8x8xbf16>, vector<128x8xf32> -> vector<128x8xf32>
    %113 = arith.addf %107, %112 : vector<128x8xf32>
    %c0_148 = arith.constant 0 : index
    %c1_149 = arith.constant 1 : index
    %c1_150 = arith.constant 1 : index
    %c0_151 = arith.constant 0 : index
    %114 = vector.load %arg10[%c0_148, %c1_149, %c1_150, %c0_151] : memref<2x10x12x8xbf16, #tpu.memory_space<vmem>>, vector<2x8x8x8xbf16>
    %115 = vector.shape_cast %114 : vector<2x8x8x8xbf16> to vector<128x8xbf16>
    %c3_152 = arith.constant 3 : index
    %c0_153 = arith.constant 0 : index
    %c0_154 = arith.constant 0 : index
    %116 = vector.load %arg7[%c3_152, %c0_153, %c0_154] : memref<9x8x8xbf16, #tpu.memory_space<vmem>>, vector<1x8x8xbf16>
    %117 = vector.shape_cast %116 : vector<1x8x8xbf16> to vector<8x8xbf16>
    %cst_155 = arith.constant dense<0.000000e+00> : vector<128x8xf32>
    %118 = tpu.matmul %115, %117, %cst_155 {dimension_numbers = #tpu.dot_dimension_numbers<[1], [0], [0], [1], [0, 0, 1, 1], [], []>} : vector<128x8xbf16>, vector<8x8xbf16>, vector<128x8xf32> -> vector<128x8xf32>
    %119 = arith.addf %113, %118 : vector<128x8xf32>
    %c0_156 = arith.constant 0 : index
    %c1_157 = arith.constant 1 : index
    %c2_158 = arith.constant 2 : index
    %c0_159 = arith.constant 0 : index
    %120 = vector.load %arg10[%c0_156, %c1_157, %c2_158, %c0_159] : memref<2x10x12x8xbf16, #tpu.memory_space<vmem>>, vector<2x8x8x8xbf16>
    %121 = vector.shape_cast %120 : vector<2x8x8x8xbf16> to vector<128x8xbf16>
    %c4_160 = arith.constant 4 : index
    %c0_161 = arith.constant 0 : index
    %c0_162 = arith.constant 0 : index
    %122 = vector.load %arg7[%c4_160, %c0_161, %c0_162] : memref<9x8x8xbf16, #tpu.memory_space<vmem>>, vector<1x8x8xbf16>
    %123 = vector.shape_cast %122 : vector<1x8x8xbf16> to vector<8x8xbf16>
    %cst_163 = arith.constant dense<0.000000e+00> : vector<128x8xf32>
    %124 = tpu.matmul %121, %123, %cst_163 {dimension_numbers = #tpu.dot_dimension_numbers<[1], [0], [0], [1], [0, 0, 1, 1], [], []>} : vector<128x8xbf16>, vector<8x8xbf16>, vector<128x8xf32> -> vector<128x8xf32>
    %125 = arith.addf %119, %124 : vector<128x8xf32>
    %c0_164 = arith.constant 0 : index
    %c1_165 = arith.constant 1 : index
    %c3_166 = arith.constant 3 : index
    %c0_167 = arith.constant 0 : index
    %126 = vector.load %arg10[%c0_164, %c1_165, %c3_166, %c0_167] : memref<2x10x12x8xbf16, #tpu.memory_space<vmem>>, vector<2x8x8x8xbf16>
    %127 = vector.shape_cast %126 : vector<2x8x8x8xbf16> to vector<128x8xbf16>
    %c5_168 = arith.constant 5 : index
    %c0_169 = arith.constant 0 : index
    %c0_170 = arith.constant 0 : index
    %128 = vector.load %arg7[%c5_168, %c0_169, %c0_170] : memref<9x8x8xbf16, #tpu.memory_space<vmem>>, vector<1x8x8xbf16>
    %129 = vector.shape_cast %128 : vector<1x8x8xbf16> to vector<8x8xbf16>
    %cst_171 = arith.constant dense<0.000000e+00> : vector<128x8xf32>
    %130 = tpu.matmul %127, %129, %cst_171 {dimension_numbers = #tpu.dot_dimension_numbers<[1], [0], [0], [1], [0, 0, 1, 1], [], []>} : vector<128x8xbf16>, vector<8x8xbf16>, vector<128x8xf32> -> vector<128x8xf32>
    %131 = arith.addf %125, %130 : vector<128x8xf32>
    %c0_172 = arith.constant 0 : index
    %c2_173 = arith.constant 2 : index
    %c1_174 = arith.constant 1 : index
    %c0_175 = arith.constant 0 : index
    %132 = vector.load %arg10[%c0_172, %c2_173, %c1_174, %c0_175] : memref<2x10x12x8xbf16, #tpu.memory_space<vmem>>, vector<2x8x8x8xbf16>
    %133 = vector.shape_cast %132 : vector<2x8x8x8xbf16> to vector<128x8xbf16>
    %c6_176 = arith.constant 6 : index
    %c0_177 = arith.constant 0 : index
    %c0_178 = arith.constant 0 : index
    %134 = vector.load %arg7[%c6_176, %c0_177, %c0_178] : memref<9x8x8xbf16, #tpu.memory_space<vmem>>, vector<1x8x8xbf16>
    %135 = vector.shape_cast %134 : vector<1x8x8xbf16> to vector<8x8xbf16>
    %cst_179 = arith.constant dense<0.000000e+00> : vector<128x8xf32>
    %136 = tpu.matmul %133, %135, %cst_179 {dimension_numbers = #tpu.dot_dimension_numbers<[1], [0], [0], [1], [0, 0, 1, 1], [], []>} : vector<128x8xbf16>, vector<8x8xbf16>, vector<128x8xf32> -> vector<128x8xf32>
    %137 = arith.addf %131, %136 : vector<128x8xf32>
    %c0_180 = arith.constant 0 : index
    %c2_181 = arith.constant 2 : index
    %c2_182 = arith.constant 2 : index
    %c0_183 = arith.constant 0 : index
    %138 = vector.load %arg10[%c0_180, %c2_181, %c2_182, %c0_183] : memref<2x10x12x8xbf16, #tpu.memory_space<vmem>>, vector<2x8x8x8xbf16>
    %139 = vector.shape_cast %138 : vector<2x8x8x8xbf16> to vector<128x8xbf16>
    %c7_184 = arith.constant 7 : index
    %c0_185 = arith.constant 0 : index
    %c0_186 = arith.constant 0 : index
    %140 = vector.load %arg7[%c7_184, %c0_185, %c0_186] : memref<9x8x8xbf16, #tpu.memory_space<vmem>>, vector<1x8x8xbf16>
    %141 = vector.shape_cast %140 : vector<1x8x8xbf16> to vector<8x8xbf16>
    %cst_187 = arith.constant dense<0.000000e+00> : vector<128x8xf32>
    %142 = tpu.matmul %139, %141, %cst_187 {dimension_numbers = #tpu.dot_dimension_numbers<[1], [0], [0], [1], [0, 0, 1, 1], [], []>} : vector<128x8xbf16>, vector<8x8xbf16>, vector<128x8xf32> -> vector<128x8xf32>
    %143 = arith.addf %137, %142 : vector<128x8xf32>
    %c0_188 = arith.constant 0 : index
    %c2_189 = arith.constant 2 : index
    %c3_190 = arith.constant 3 : index
    %c0_191 = arith.constant 0 : index
    %144 = vector.load %arg10[%c0_188, %c2_189, %c3_190, %c0_191] : memref<2x10x12x8xbf16, #tpu.memory_space<vmem>>, vector<2x8x8x8xbf16>
    %145 = vector.shape_cast %144 : vector<2x8x8x8xbf16> to vector<128x8xbf16>
    %c8_192 = arith.constant 8 : index
    %c0_193 = arith.constant 0 : index
    %c0_194 = arith.constant 0 : index
    %146 = vector.load %arg7[%c8_192, %c0_193, %c0_194] : memref<9x8x8xbf16, #tpu.memory_space<vmem>>, vector<1x8x8xbf16>
    %147 = vector.shape_cast %146 : vector<1x8x8xbf16> to vector<8x8xbf16>
    %cst_195 = arith.constant dense<0.000000e+00> : vector<128x8xf32>
    %148 = tpu.matmul %145, %147, %cst_195 {dimension_numbers = #tpu.dot_dimension_numbers<[1], [0], [0], [1], [0, 0, 1, 1], [], []>} : vector<128x8xbf16>, vector<8x8xbf16>, vector<128x8xf32> -> vector<128x8xf32>
    %149 = arith.addf %143, %148 : vector<128x8xf32>
    %150 = vector.shape_cast %16 : vector<2x8x8x8xf32> to vector<128x8xf32>
    %151 = arith.addf %150, %149 : vector<128x8xf32>
    %152 = vector.shape_cast %151 : vector<128x8xf32> to vector<2x8x8x8xf32>
    %c0_196 = arith.constant 0 : index
    %c0_197 = arith.constant 0 : index
    %c0_198 = arith.constant 0 : index
    %c0_199 = arith.constant 0 : index
    %153 = vector.load %arg8[%c0_196, %c0_197, %c0_198, %c0_199] : memref<2x8x8x8xf32, #tpu.memory_space<vmem>>, vector<2x8x8x8xf32>
    tpu.vector_store %arg8[%c0_196, %c0_197, %c0_198, %c0_199], %152 {strides = array<i32>} : memref<2x8x8x8xf32, #tpu.memory_space<vmem>>, vector<2x8x8x8xf32>,
    return
  }
  func.func @transform_0(%arg0: i32) -> (i32, i32, i32, i32) {
    %c0_i32 = arith.constant 0 : i32
    %c0_i32_0 = arith.constant 0 : i32
    %c0_i32_1 = arith.constant 0 : i32
    %c0_i32_2 = arith.constant 0 : i32
    return %arg0, %c0_i32, %c0_i32_0, %c0_i32_1 : i32, i32, i32, i32
  }
  func.func @transform_1(%arg0: i32) -> (i32, i32) {
    %c0_i32 = arith.constant 0 : i32
    %c0_i32_0 = arith.constant 0 : i32
    %c0_i32_1 = arith.constant 0 : i32
    return %c0_i32, %c0_i32_0 : i32, i32
  }
  func.func @transform_2(%arg0: i32) -> (i32, i32) {
    %c0_i32 = arith.constant 0 : i32
    %c0_i32_0 = arith.constant 0 : i32
    %c0_i32_1 = arith.constant 0 : i32
    return %c0_i32, %c0_i32_0 : i32, i32
  }
  func.func @transform_3(%arg0: i32) -> (i32, i32, i32) {
    %c0_i32 = arith.constant 0 : i32
    %c0_i32_0 = arith.constant 0 : i32
    %c0_i32_1 = arith.constant 0 : i32
    %c0_i32_2 = arith.constant 0 : i32
    return %c0_i32, %c0_i32_0, %c0_i32_1 : i32, i32, i32
  }
  func.func @transform_4(%arg0: i32) -> (i32, i32) {
    %c0_i32 = arith.constant 0 : i32
    %c0_i32_0 = arith.constant 0 : i32
    %c0_i32_1 = arith.constant 0 : i32
    return %c0_i32, %c0_i32_0 : i32, i32
  }
  func.func @transform_5(%arg0: i32) -> (i32, i32) {
    %c0_i32 = arith.constant 0 : i32
    %c0_i32_0 = arith.constant 0 : i32
    %c0_i32_1 = arith.constant 0 : i32
    return %c0_i32, %c0_i32_0 : i32, i32
  }
  func.func @transform_6(%arg0: i32) -> (i32, i32, i32) {
    %c0_i32 = arith.constant 0 : i32
    %c0_i32_0 = arith.constant 0 : i32
    %c0_i32_1 = arith.constant 0 : i32
    %c0_i32_2 = arith.constant 0 : i32
    return %c0_i32, %c0_i32_0, %c0_i32_1 : i32, i32, i32
  }
  func.func @transform_7(%arg0: i32) -> (i32, i32, i32, i32) {
    %c0_i32 = arith.constant 0 : i32
    %c0_i32_0 = arith.constant 0 : i32
    %c0_i32_1 = arith.constant 0 : i32
    %c0_i32_2 = arith.constant 0 : i32
    return %arg0, %c0_i32, %c0_i32_0, %c0_i32_1 : i32, i32, i32, i32
  }
}

</mosaic_0001>

<llo_original>
// kernel: network_block_forward.2
$region0: #{network_block_forward.2}
  #allocation0 [shape = 'u32[]', space=smem, size = 0x4, offset = 0x4, fixed_abs, tag = 'smem constant byte address 0x4 - core index']
  #allocation1 [shape = 'u32[144,128]{1,0:T(1,128)}', space=vmem, size = 0x12000, scoped, tag = 'internal scratch']
  #allocation2 [shape = 'f32[18,18,4]{2,1,0:T(8,128)}', space=vmem, size = 0x36000, scoped, tag = 'scratch operand']
  #allocation3 [shape = 'bf16[10,12,8]{2,1,0:T(8,128)(2,1)}', space=vmem, size = 0xa000, scoped, tag = 'scratch operand']
  %s0 = inlined_call_operand.vmem [shape: f32[4,16,16,4], index: 0, kind: input, shape index: {}]
  %s1 = inlined_call_operand.vmem [shape: f32[1,4], index: 1, kind: input, shape index: {}]
  %s2 = inlined_call_operand.vmem [shape: f32[1,4], index: 2, kind: input, shape index: {}]
  %s3 = inlined_call_operand.vmem [shape: bf16[9,4,8], index: 3, kind: input, shape index: {}]
  %s4 = inlined_call_operand.vmem [shape: f32[1,8], index: 4, kind: input, shape index: {}]
  %s5 = inlined_call_operand.vmem [shape: f32[1,8], index: 5, kind: input, shape index: {}]
  %s6 = inlined_call_operand.vmem [shape: bf16[9,8,8], index: 6, kind: input, shape index: {}]
  %s7 = inlined_call_operand.vmem [shape: bf16[4,8], index: 7, kind: input, shape index: {}]
  %s8 = inlined_call_operand.vmem [shape: f32[4,8,8,8], index: 8, kind: output, shape index: {}]
  %s9 = sld [smem:[#allocation0]]
  $region65: #{network_block_forward.2} parent=0
    _
  %s11 = ssub.s32 1, %s9
  %s12 = scalar_select 0, %s11, %s9
  loop: start=0, step=1, limit=6
  $region2: #{network_block_forward.2} parent=0 // loop_pre_header
    _
  $region3: #{network_block_forward.2} parent=0 // loop_header
    %s14 = sphi 0, %s18
    %p15 = scmp.ge.s32.totalorder %s14, 6
    %s24 = sphi 0, %s26
    %s27 = sphi 0, %s24
    %s28 = sphi 0, %s27
    %s44 = sphi 0, %s28
    %s48 = sphi 0, %s48
    %s50 = sphi 0, %s48
    %s51 = sphi 0, %s50
    %s65 = sphi 0, %s51
    %s69 = sphi 0, %s69
    %s71 = sphi 0, %s69
    %s72 = sphi 0, %s71
    %s86 = sphi 0, %s72
    %s90 = sphi 0, %s90
    %s92 = sphi 0, %s90
    %s93 = sphi 0, %s92
    %s107 = sphi 0, %s93
    %s111 = sphi 0, %s111
    %s113 = sphi 0, %s111
    %s114 = sphi 0, %s113
    %s128 = sphi 0, %s114
    %s132 = sphi 0, %s132
    %s134 = sphi 0, %s132
    %s135 = sphi 0, %s134
    %s149 = sphi 0, %s135
    %s153 = sphi 0, %s153
    %s155 = sphi 0, %s153
    %s156 = sphi 0, %s155
    %s170 = sphi 0, %s156
    %s174 = sphi 0, %s174
    %s176 = sphi 0, %s174
    %s177 = sphi 0, %s176
    %s191 = sphi 0, %s177
    %s197 = sphi 0, %s199
    %s200 = sphi 0, %s197
    %s201 = sphi 0, %s200
    %s217 = sphi 0, %s201
  $region4: #{network_block_forward.2} parent=0 // loop_header_branch
    %17 = sbr.rel (%p15) target = $region8
  $region5: #{network_block_forward.2} parent=0 // loop_body
    %s19 = ssub.s32 %s14, 1
    %s20 = ssub.s32 %s14, 2
    %s21 = sadd.s32 %s14, 1
    %s22 = ssub.s32 %s14, %s21
    %p23 = scmp.eq.s32.totalorder %s22, 0
    %s25 = sadd.s32 %s24, 1
    %s26 = scalar_select %p23, %s24, %s25
    %p29 = pneg %p23
    %p30 = scmp.eq.s32.totalorder %s14, 3
    %p31 = por %p29, %p30
    %p32 = scmp.ne.s32.totalorder %s24, %s27
    %p33 = scmp.eq.s32.totalorder %s14, 0
    %p34 = por %p32, %p33
    %p35 = scmp.ne.s32.totalorder %s24, %s27
    %p36 = scmp.eq.s32.totalorder %s19, 3
    %p37 = por %p35, %p36
    %p38 = scmp.ne.s32.totalorder %s27, %s28
    %p39 = scmp.eq.s32.totalorder %s19, 0
    %p40 = por %p38, %p39
    %p41 = scmp.ne.s32.totalorder %s27, %s28
    %p42 = scmp.eq.s32.totalorder %s20, 3
    %p43 = por %p41, %p42
    %p45 = scmp.ne.s32.totalorder %s28, %s44
    %p46 = scmp.eq.s32.totalorder %s20, 0
    %p47 = por %p45, %p46
    %s49 = sadd.s32 %s48, 1
    %p52 = scmp.eq.s32.totalorder %s14, 3
    %p53 = scmp.ne.s32.totalorder %s48, %s50
    %p54 = scmp.eq.s32.totalorder %s14, 0
    %p55 = por %p53, %p54
    %p56 = scmp.ne.s32.totalorder %s48, %s50
    %p57 = scmp.eq.s32.totalorder %s19, 3
    %p58 = por %p56, %p57
    %p59 = scmp.ne.s32.totalorder %s50, %s51
    %p60 = scmp.eq.s32.totalorder %s19, 0
    %p61 = por %p59, %p60
    %p62 = scmp.ne.s32.totalorder %s50, %s51
    %p63 = scmp.eq.s32.totalorder %s20, 3
    %p64 = por %p62, %p63
    %p66 = scmp.ne.s32.totalorder %s51, %s65
    %p67 = scmp.eq.s32.totalorder %s20, 0
    %p68 = por %p66, %p67
    %s70 = sadd.s32 %s69, 1
    %p73 = scmp.eq.s32.totalorder %s14, 3
    %p74 = scmp.ne.s32.totalorder %s69, %s71
    %p75 = scmp.eq.s32.totalorder %s14, 0
    %p76 = por %p74, %p75
    %p77 = scmp.ne.s32.totalorder %s69, %s71
    %p78 = scmp.eq.s32.totalorder %s19, 3
    %p79 = por %p77, %p78
    %p80 = scmp.ne.s32.totalorder %s71, %s72
    %p81 = scmp.eq.s32.totalorder %s19, 0
    %p82 = por %p80, %p81
    %p83 = scmp.ne.s32.totalorder %s71, %s72
    %p84 = scmp.eq.s32.totalorder %s20, 3
    %p85 = por %p83, %p84
    %p87 = scmp.ne.s32.totalorder %s72, %s86
    %p88 = scmp.eq.s32.totalorder %s20, 0
    %p89 = por %p87, %p88
    %s91 = sadd.s32 %s90, 1
    %p94 = scmp.eq.s32.totalorder %s14, 3
    %p95 = scmp.ne.s32.totalorder %s90, %s92
    %p96 = scmp.eq.s32.totalorder %s14, 0
    %p97 = por %p95, %p96
    %p98 = scmp.ne.s32.totalorder %s90, %s92
    %p99 = scmp.eq.s32.totalorder %s19, 3
    %p100 = por %p98, %p99
    %p101 = scmp.ne.s32.totalorder %s92, %s93
    %p102 = scmp.eq.s32.totalorder %s19, 0
    %p103 = por %p101, %p102
    %p104 = scmp.ne.s32.totalorder %s92, %s93
    %p105 = scmp.eq.s32.totalorder %s20, 3
    %p106 = por %p104, %p105
    %p108 = scmp.ne.s32.totalorder %s93, %s107
    %p109 = scmp.eq.s32.totalorder %s20, 0
    %p110 = por %p108, %p109
    %s112 = sadd.s32 %s111, 1
    %p115 = scmp.eq.s32.totalorder %s14, 3
    %p116 = scmp.ne.s32.totalorder %s111, %s113
    %p117 = scmp.eq.s32.totalorder %s14, 0
    %p118 = por %p116, %p117
    %p119 = scmp.ne.s32.totalorder %s111, %s113
    %p120 = scmp.eq.s32.totalorder %s19, 3
    %p121 = por %p119, %p120
    %p122 = scmp.ne.s32.totalorder %s113, %s114
    %p123 = scmp.eq.s32.totalorder %s19, 0
    %p124 = por %p122, %p123
    %p125 = scmp.ne.s32.totalorder %s113, %s114
    %p126 = scmp.eq.s32.totalorder %s20, 3
    %p127 = por %p125, %p126
    %p129 = scmp.ne.s32.totalorder %s114, %s128
    %p130 = scmp.eq.s32.totalorder %s20, 0
    %p131 = por %p129, %p130
    %s133 = sadd.s32 %s132, 1
    %p136 = scmp.eq.s32.totalorder %s14, 3
    %p137 = scmp.ne.s32.totalorder %s132, %s134
    %p138 = scmp.eq.s32.totalorder %s14, 0
    %p139 = por %p137, %p138
    %p140 = scmp.ne.s32.totalorder %s132, %s134
    %p141 = scmp.eq.s32.totalorder %s19, 3
    %p142 = por %p140, %p141
    %p143 = scmp.ne.s32.totalorder %s134, %s135
    %p144 = scmp.eq.s32.totalorder %s19, 0
    %p145 = por %p143, %p144
    %p146 = scmp.ne.s32.totalorder %s134, %s135
    %p147 = scmp.eq.s32.totalorder %s20, 3
    %p148 = por %p146, %p147
    %p150 = scmp.ne.s32.totalorder %s135, %s149
    %p151 = scmp.eq.s32.totalorder %s20, 0
    %p152 = por %p150, %p151
    %s154 = sadd.s32 %s153, 1
    %p157 = scmp.eq.s32.totalorder %s14, 3
    %p158 = scmp.ne.s32.totalorder %s153, %s155
    %p159 = scmp.eq.s32.totalorder %s14, 0
    %p160 = por %p158, %p159
    %p161 = scmp.ne.s32.totalorder %s153, %s155
    %p162 = scmp.eq.s32.totalorder %s19, 3
    %p163 = por %p161, %p162
    %p164 = scmp.ne.s32.totalorder %s155, %s156
    %p165 = scmp.eq.s32.totalorder %s19, 0
    %p166 = por %p164, %p165
    %p167 = scmp.ne.s32.totalorder %s155, %s156
    %p168 = scmp.eq.s32.totalorder %s20, 3
    %p169 = por %p167, %p168
    %p171 = scmp.ne.s32.totalorder %s156, %s170
    %p172 = scmp.eq.s32.totalorder %s20, 0
    %p173 = por %p171, %p172
    %s175 = sadd.s32 %s174, 1
    %p178 = scmp.eq.s32.totalorder %s14, 3
    %p179 = scmp.ne.s32.totalorder %s174, %s176
    %p180 = scmp.eq.s32.totalorder %s14, 0
    %p181 = por %p179, %p180
    %p182 = scmp.ne.s32.totalorder %s174, %s176
    %p183 = scmp.eq.s32.totalorder %s19, 3
    %p184 = por %p182, %p183
    %p185 = scmp.ne.s32.totalorder %s176, %s177
    %p186 = scmp.eq.s32.totalorder %s19, 0
    %p187 = por %p185, %p186
    %p188 = scmp.ne.s32.totalorder %s176, %s177
    %p189 = scmp.eq.s32.totalorder %s20, 3
    %p190 = por %p188, %p189
    %p192 = scmp.ne.s32.totalorder %s177, %s191
    %p193 = scmp.eq.s32.totalorder %s20, 0
    %p194 = por %p192, %p193
    %s195 = ssub.s32 %s14, %s21
    %p196 = scmp.eq.s32.totalorder %s195, 0
    %s198 = sadd.s32 %s197, 1
    %s199 = scalar_select %p196, %s197, %s198
    %p202 = pneg %p196
    %p203 = scmp.eq.s32.totalorder %s14, 3
    %p204 = por %p202, %p203
    %p205 = scmp.ne.s32.totalorder %s197, %s200
    %p206 = scmp.eq.s32.totalorder %s14, 0
    %p207 = por %p205, %p206
    %p208 = scmp.ne.s32.totalorder %s197, %s200
    %p209 = scmp.eq.s32.totalorder %s19, 3
    %p210 = por %p208, %p209
    %p211 = scmp.ne.s32.totalorder %s200, %s201
    %p212 = scmp.eq.s32.totalorder %s19, 0
    %p213 = por %p211, %p212
    %p214 = scmp.ne.s32.totalorder %s200, %s201
    %p215 = scmp.eq.s32.totalorder %s20, 3
    %p216 = por %p214, %p215
    %p218 = scmp.ne.s32.totalorder %s201, %s217
    %p219 = scmp.eq.s32.totalorder %s20, 0
    %p220 = por %p218, %p219
    %p221 = scmp.le.s32.totalorder 1, %s14
    %p222 = scmp.lt.s32.totalorder %s14, 5
    %p223 = pnand %p221, %p222
    %p224 = pneg %p223
    // Predicated region
    $region9: #{network_block_forward.2} parent=5 // pred_check
      _
    $region10: #{network_block_forward.2} parent=5 // pred_check_branch
      %226 = sbr.rel (%p223) target = $region12
    $region11: #{network_block_forward.2} parent=5 // pred_region
      %s227 = ssub.s32 %s14, 1
      // Predicated region
      $region13: #{network_block_forward.2} parent=11 // pred_check
        %p228 = pneg %p61
      $region14: #{network_block_forward.2} parent=11 // pred_check_branch
        %230 = sbr.rel (%p228) target = $region16
      $region15: #{network_block_forward.2} parent=11 // pred_region
        _
      $region16: #{network_block_forward.2} parent=11 // pred_fallthru
        _
      // Predicated region
      $region17: #{network_block_forward.2} parent=11 // pred_check
        %p231 = pneg %p82
      $region18: #{network_block_forward.2} parent=11 // pred_check_branch
        %233 = sbr.rel (%p231) target = $region20
      $region19: #{network_block_forward.2} parent=11 // pred_region
        _
      $region20: #{network_block_forward.2} parent=11 // pred_fallthru
        _
      // Predicated region
      $region21: #{network_block_forward.2} parent=11 // pred_check
        %p234 = pneg %p103
      $region22: #{network_block_forward.2} parent=11 // pred_check_branch
        %236 = sbr.rel (%p234) target = $region24
      $region23: #{network_block_forward.2} parent=11 // pred_region
        _
      $region24: #{network_block_forward.2} parent=11 // pred_fallthru
        _
      // Predicated region
      $region25: #{network_block_forward.2} parent=11 // pred_check
        %p237 = pneg %p124
      $region26: #{network_block_forward.2} parent=11 // pred_check_branch
        %239 = sbr.rel (%p237) target = $region28
      $region27: #{network_block_forward.2} parent=11 // pred_region
        _
      $region28: #{network_block_forward.2} parent=11 // pred_fallthru
        _
      // Predicated region
      $region29: #{network_block_forward.2} parent=11 // pred_check
        %p240 = pneg %p145
      $region30: #{network_block_forward.2} parent=11 // pred_check_branch
        %242 = sbr.rel (%p240) target = $region32
      $region31: #{network_block_forward.2} parent=11 // pred_region
        _
      $region32: #{network_block_forward.2} parent=11 // pred_fallthru
        _
      // Predicated region
      $region33: #{network_block_forward.2} parent=11 // pred_check
        %p243 = pneg %p166
      $region34: #{network_block_forward.2} parent=11 // pred_check_branch
        %245 = sbr.rel (%p243) target = $region36
      $region35: #{network_block_forward.2} parent=11 // pred_region
        _
      $region36: #{network_block_forward.2} parent=11 // pred_fallthru
        _
      // Predicated region
      $region37: #{network_block_forward.2} parent=11 // pred_check
        %p246 = pneg %p187
      $region38: #{network_block_forward.2} parent=11 // pred_check_branch
        %248 = sbr.rel (%p246) target = $region40
      $region39: #{network_block_forward.2} parent=11 // pred_region
        _
      $region40: #{network_block_forward.2} parent=11 // pred_fallthru
        _
    $region12: #{network_block_forward.2} parent=5 // pred_fallthru
      _
    %p249 = scmp.lt.s32.totalorder %s14, 4
    // Predicated region
    $region41: #{network_block_forward.2} parent=5 // pred_check
      %p250 = pneg %p249
    $region42: #{network_block_forward.2} parent=5 // pred_check_branch
      %252 = sbr.rel (%p250) target = $region44
    $region43: #{network_block_forward.2} parent=5 // pred_region
      // Predicated region
      $region45: #{network_block_forward.2} parent=43 // pred_check
        %p253 = pneg %p34
      $region46: #{network_block_forward.2} parent=43 // pred_check_branch
        %255 = sbr.rel (%p253) target = $region48
      $region47: #{network_block_forward.2} parent=43 // pred_region
        %p256 = scmp.lt.s32.totalorder %s14, 3
        %s257 = scalar_select %p256, %s14, 3
        %s258 = smul.addr %s257, 32
        %s259 = smul.addr %s258, 8
        %s260 = scalar_lea.vmem %s0, %s259
      $region48: #{network_block_forward.2} parent=43 // pred_fallthru
        _
    $region44: #{network_block_forward.2} parent=5 // pred_fallthru
      _
    %p261 = scmp.le.s32.totalorder 1, %s14
    %p262 = scmp.lt.s32.totalorder %s14, 5
    %p263 = pnand %p261, %p262
    %p264 = pneg %p263
    // Predicated region
    $region49: #{network_block_forward.2} parent=5 // pred_check
      _
    $region50: #{network_block_forward.2} parent=5 // pred_check_branch
      %266 = sbr.rel (%p263) target = $region52
    $region51: #{network_block_forward.2} parent=5 // pred_region
      %s267 = ssub.s32 %s14, 1
      %p268 = scmp.lt.s32.totalorder %s19, 3
      %s269 = scalar_select %p268, %s19, 3
      %s270 = smul.addr %s269, 32
      %s271 = smul.addr %s270, 8
      %s272 = scalar_lea.vmem %s0, %s271
      %p273 = pneg %p40
      %p274 = pneg %p37
      %p275 = pneg %p61
      %p276 = pneg %p58
      %p277 = pneg %p82
      %p278 = pneg %p79
      %p279 = pneg %p103
      %p280 = pneg %p100
      %p281 = pneg %p124
      %p282 = pneg %p121
      %p283 = pneg %p145
      %p284 = pneg %p142
      %p285 = pneg %p166
      %p286 = pneg %p163
      %p287 = pneg %p187
      %p288 = pneg %p184
      %p289 = pneg %p213
      %p290 = pneg %p210
      %p291 = scmp.lt.s32.totalorder %s19, 3
      %s292 = scalar_select %p291, %s19, 3
      %s293 = smul.addr %s292, 8
      %s294 = smul.addr %s293, 8
      %s295 = scalar_lea.vmem %s8, %s294
      %p296 = scmp.lt.s32.totalorder %s19, 3
      %s297 = scalar_select %p296, %s19, 3
      %s298 = smul.addr %s297, 32
      %s299 = smul.addr %s298, 8
      %s300 = scalar_lea.vmem %s0, %s299
      %p301 = scmp.lt.s32.totalorder %s19, 3
      %s302 = scalar_select %p301, %s19, 3
      %s303 = smul.addr %s302, 8
      %s304 = smul.addr %s303, 8
      %s305 = scalar_lea.vmem %s8, %s304
      %vm307 = vcmask 31744
      %308 = vst.msk [vmem:[#allocation2] sm:$0xff] %vm307, 0.0
      %309 = vst.msk [vmem:[#allocation2 + $0x8] sm:$0xff] %vm307, 0.0
      %vm310 = vcmask 25600
      %311 = vst.msk [vmem:[#allocation2 + $0x10] sm:$0x3] %vm310, 0.0
      %s312 = scalar_lea.vmem [#allocation2], 408
      %313 = vst.msk [vmem:[%s312] sm:$0xff] %vm307, 0.0
      %314 = vst.msk [vmem:[%s312 + $0x8] sm:$0xff] %vm307, 0.0
      %315 = vst.msk [vmem:[%s312 + $0x10] sm:$0x3] %vm310, 0.0
      %vm316 = vcmask 24576
      %317 = vst.msk [vmem:[#allocation2] sm:$0x1] %vm316, 0.0
      %318 = vst.msk [vmem:[#allocation2 + $0x18] sm:$0x1] %vm316, 0.0
      %319 = vst.msk [vmem:[#allocation2 + $0x30] sm:$0x1] %vm316, 0.0
      %320 = vst.msk [vmem:[#allocation2 + $0x48] sm:$0x1] %vm316, 0.0
      %321 = vst.msk [vmem:[#allocation2 + $0x60] sm:$0x1] %vm316, 0.0
      %322 = vst.msk [vmem:[#allocation2 + $0x78] sm:$0x1] %vm316, 0.0
      %323 = vst.msk [vmem:[#allocation2 + $0x90] sm:$0x1] %vm316, 0.0
      %324 = vst.msk [vmem:[#allocation2 + $0xa8] sm:$0x1] %vm316, 0.0
      %325 = vst.msk [vmem:[#allocation2 + $0xc0] sm:$0x1] %vm316, 0.0
      %326 = vst.msk [vmem:[#allocation2 + $0xd8] sm:$0x1] %vm316, 0.0
      %327 = vst.msk [vmem:[#allocation2 + $0xf0] sm:$0x1] %vm316, 0.0
      %328 = vst.msk [vmem:[#allocation2 + $0x108] sm:$0x1] %vm316, 0.0
      %329 = vst.msk [vmem:[#allocation2 + $0x120] sm:$0x1] %vm316, 0.0
      %330 = vst.msk [vmem:[#allocation2 + $0x138] sm:$0x1] %vm316, 0.0
      %331 = vst.msk [vmem:[#allocation2 + $0x150] sm:$0x1] %vm316, 0.0
      %332 = vst.msk [vmem:[#allocation2 + $0x168] sm:$0x1] %vm316, 0.0
      %333 = vst.msk [vmem:[#allocation2 + $0x180] sm:$0x1] %vm316, 0.0
      %334 = vst.msk [vmem:[#allocation2 + $0x198] sm:$0x1] %vm316, 0.0
      %335 = vst.msk [vmem:[#allocation2 + $0x11] sm:$0x1] %vm316, 0.0
      %336 = vst.msk [vmem:[#allocation2 + $0x29] sm:$0x1] %vm316, 0.0
      %337 = vst.msk [vmem:[#allocation2 + $0x41] sm:$0x1] %vm316, 0.0
      %338 = vst.msk [vmem:[#allocation2 + $0x59] sm:$0x1] %vm316, 0.0
      %339 = vst.msk [vmem:[#allocation2 + $0x71] sm:$0x1] %vm316, 0.0
      %340 = vst.msk [vmem:[#allocation2 + $0x89] sm:$0x1] %vm316, 0.0
      %341 = vst.msk [vmem:[#allocation2 + $0xa1] sm:$0x1] %vm316, 0.0
      %342 = vst.msk [vmem:[#allocation2 + $0xb9] sm:$0x1] %vm316, 0.0
      %343 = vst.msk [vmem:[#allocation2 + $0xd1] sm:$0x1] %vm316, 0.0
      %344 = vst.msk [vmem:[#allocation2 + $0xe9] sm:$0x1] %vm316, 0.0
      %345 = vst.msk [vmem:[#allocation2 + $0x101] sm:$0x1] %vm316, 0.0
      %346 = vst.msk [vmem:[#allocation2 + $0x119] sm:$0x1] %vm316, 0.0
      %347 = vst.msk [vmem:[#allocation2 + $0x131] sm:$0x1] %vm316, 0.0
      %348 = vst.msk [vmem:[#allocation2 + $0x149] sm:$0x1] %vm316, 0.0
      %349 = vst.msk [vmem:[#allocation2 + $0x161] sm:$0x1] %vm316, 0.0
      %350 = vst.msk [vmem:[#allocation2 + $0x179] sm:$0x1] %vm316, 0.0
      %351 = vst.msk [vmem:[#allocation2 + $0x191] sm:$0x1] %vm316, 0.0
      %352 = vst.msk [vmem:[#allocation2 + $0x1a9] sm:$0x1] %vm316, 0.0
      %vm353 = vcmask 60416
      %354 = vst.msk [vmem:[#allocation3] sm:$0xf] %vm353, 0
      %vm355 = vcmask 58368
      %356 = vst.msk [vmem:[#allocation3 + $0x4] sm:$0x3] %vm355, 0
      %s357 = scalar_lea.vmem [#allocation3], 72
      %358 = vst.msk [vmem:[%s357] sm:$0xf] %vm353, 0
      %359 = vst.msk [vmem:[%s357 + $0x4] sm:$0x3] %vm355, 0
      %vm360 = vcmask 57344
      %361 = vst.msk [vmem:[#allocation3] sm:$0x1] %vm360, 0
      %362 = vst.msk [vmem:[#allocation3 + $0x8] sm:$0x1] %vm360, 0
      %363 = vst.msk [vmem:[#allocation3 + $0x10] sm:$0x1] %vm360, 0
      %364 = vst.msk [vmem:[#allocation3 + $0x18] sm:$0x1] %vm360, 0
      %365 = vst.msk [vmem:[#allocation3 + $0x20] sm:$0x1] %vm360, 0
      %366 = vst.msk [vmem:[#allocation3 + $0x28] sm:$0x1] %vm360, 0
      %367 = vst.msk [vmem:[#allocation3 + $0x30] sm:$0x1] %vm360, 0
      %368 = vst.msk [vmem:[#allocation3 + $0x38] sm:$0x1] %vm360, 0
      %369 = vst.msk [vmem:[#allocation3 + $0x40] sm:$0x1] %vm360, 0
      %370 = vst.msk [vmem:[#allocation3 + $0x48] sm:$0x1] %vm360, 0
      %vm371 = vcmask 58369
      %372 = vst.msk [vmem:[#allocation3 + $0x4] sm:$0x2] %vm371, 0
      %373 = vst.msk [vmem:[#allocation3 + $0xc] sm:$0x2] %vm371, 0
      %374 = vst.msk [vmem:[#allocation3 + $0x14] sm:$0x2] %vm371, 0
      %375 = vst.msk [vmem:[#allocation3 + $0x1c] sm:$0x2] %vm371, 0
      %376 = vst.msk [vmem:[#allocation3 + $0x24] sm:$0x2] %vm371, 0
      %377 = vst.msk [vmem:[#allocation3 + $0x2c] sm:$0x2] %vm371, 0
      %378 = vst.msk [vmem:[#allocation3 + $0x34] sm:$0x2] %vm371, 0
      %379 = vst.msk [vmem:[#allocation3 + $0x3c] sm:$0x2] %vm371, 0
      %380 = vst.msk [vmem:[#allocation3 + $0x44] sm:$0x2] %vm371, 0
      %381 = vst.msk [vmem:[#allocation3 + $0x4c] sm:$0x2] %vm371, 0
      %v382 = vld [vmem:[%s300] sm:$0xff]
      %v383 = vld [vmem:[%s300 + $0x8] sm:$0xff]
      %v384 = vld [vmem:[%s300 + $0x10] sm:$0xff]
      %v385 = vld [vmem:[%s300 + $0x18] sm:$0xff]
      %v386 = vld [vmem:[%s300 + $0x20] sm:$0xff]
      %v387 = vld [vmem:[%s300 + $0x28] sm:$0xff]
      %v388 = vld [vmem:[%s300 + $0x30] sm:$0xff]
      %v389 = vld [vmem:[%s300 + $0x38] sm:$0xff]
      %v390 = vld [vmem:[%s300 + $0x40] sm:$0xff]
      %v391 = vld [vmem:[%s300 + $0x48] sm:$0xff]
      %v392 = vld [vmem:[%s300 + $0x50] sm:$0xff]
      %v393 = vld [vmem:[%s300 + $0x58] sm:$0xff]
      %v394 = vld [vmem:[%s300 + $0x60] sm:$0xff]
      %v395 = vld [vmem:[%s300 + $0x68] sm:$0xff]
      %v396 = vld [vmem:[%s300 + $0x70] sm:$0xff]
      %v397 = vld [vmem:[%s300 + $0x78] sm:$0xff]
      %v398 = vld [vmem:[%s300 + $0x80] sm:$0xff]
      %v399 = vld [vmem:[%s300 + $0x88] sm:$0xff]
      %v400 = vld [vmem:[%s300 + $0x90] sm:$0xff]
      %v401 = vld [vmem:[%s300 + $0x98] sm:$0xff]
      %v402 = vld [vmem:[%s300 + $0xa0] sm:$0xff]
      %v403 = vld [vmem:[%s300 + $0xa8] sm:$0xff]
      %v404 = vld [vmem:[%s300 + $0xb0] sm:$0xff]
      %v405 = vld [vmem:[%s300 + $0xb8] sm:$0xff]
      %v406 = vld [vmem:[%s300 + $0xc0] sm:$0xff]
      %v407 = vld [vmem:[%s300 + $0xc8] sm:$0xff]
      %v408 = vld [vmem:[%s300 + $0xd0] sm:$0xff]
      %v409 = vld [vmem:[%s300 + $0xd8] sm:$0xff]
      %v410 = vld [vmem:[%s300 + $0xe0] sm:$0xff]
      %v411 = vld [vmem:[%s300 + $0xe8] sm:$0xff]
      %v412 = vld [vmem:[%s300 + $0xf0] sm:$0xff]
      %v413 = vld [vmem:[%s300 + $0xf8] sm:$0xff]
      %v414 = vld [vmem:[%s1] sm:$0x1]
      %v416 = vlaneseq
      %v417 = vshrl.u32 %v416, 7
      %v418 = vsub.s32 0, %v417
      %v419 = vrot.slane %v414, %v418
      %v421 = vmul.f32 %v382, %v419
      %v422 = vmul.f32 %v383, %v419
      %v423 = vmul.f32 %v384, %v419
      %v424 = vmul.f32 %v385, %v419
      %v425 = vmul.f32 %v386, %v419
      %v426 = vmul.f32 %v387, %v419
      %v427 = vmul.f32 %v388, %v419
      %v428 = vmul.f32 %v389, %v419
      %v429 = vmul.f32 %v390, %v419
      %v430 = vmul.f32 %v391, %v419
      %v431 = vmul.f32 %v392, %v419
      %v432 = vmul.f32 %v393, %v419
      %v433 = vmul.f32 %v394, %v419
      %v434 = vmul.f32 %v395, %v419
      %v435 = vmul.f32 %v396, %v419
      %v436 = vmul.f32 %v397, %v419
      %v437 = vmul.f32 %v398, %v419
      %v438 = vmul.f32 %v399, %v419
      %v439 = vmul.f32 %v400, %v419
      %v440 = vmul.f32 %v401, %v419
      %v441 = vmul.f32 %v402, %v419
      %v442 = vmul.f32 %v403, %v419
      %v443 = vmul.f32 %v404, %v419
      %v444 = vmul.f32 %v405, %v419
      %v445 = vmul.f32 %v406, %v419
      %v446 = vmul.f32 %v407, %v419
      %v447 = vmul.f32 %v408, %v419
      %v448 = vmul.f32 %v409, %v419
      %v449 = vmul.f32 %v410, %v419
      %v450 = vmul.f32 %v411, %v419
      %v451 = vmul.f32 %v412, %v419
      %v452 = vmul.f32 %v413, %v419
      %v453 = vld [vmem:[%s2] sm:$0x1]
      %v455 = vlaneseq
      %v456 = vshrl.u32 %v455, 7
      %v457 = vsub.s32 0, %v456
      %v458 = vrot.slane %v453, %v457
      %v460 = vadd.f32 %v421, %v458
      %v461 = vadd.f32 %v422, %v458
      %v462 = vadd.f32 %v423, %v458
      %v463 = vadd.f32 %v424, %v458
      %v464 = vadd.f32 %v425, %v458
      %v465 = vadd.f32 %v426, %v458
      %v466 = vadd.f32 %v427, %v458
      %v467 = vadd.f32 %v428, %v458
      %v468 = vadd.f32 %v429, %v458
      %v469 = vadd.f32 %v430, %v458
      %v470 = vadd.f32 %v431, %v458
      %v471 = vadd.f32 %v432, %v458
      %v472 = vadd.f32 %v433, %v458
      %v473 = vadd.f32 %v434, %v458
      %v474 = vadd.f32 %v435, %v458
      %v475 = vadd.f32 %v436, %v458
      %v476 = vadd.f32 %v437, %v458
      %v477 = vadd.f32 %v438, %v458
      %v478 = vadd.f32 %v439, %v458
      %v479 = vadd.f32 %v440, %v458
      %v480 = vadd.f32 %v441, %v458
      %v481 = vadd.f32 %v442, %v458
      %v482 = vadd.f32 %v443, %v458
      %v483 = vadd.f32 %v444, %v458
      %v484 = vadd.f32 %v445, %v458
      %v485 = vadd.f32 %v446, %v458
      %v486 = vadd.f32 %v447, %v458
      %v487 = vadd.f32 %v448, %v458
      %v488 = vadd.f32 %v449, %v458
      %v489 = vadd.f32 %v450, %v458
      %v490 = vadd.f32 %v451, %v458
      %v491 = vadd.f32 %v452, %v458
      %v492 = vmax.f32 %v460, 0.0
      %v493 = vmax.f32 %v461, 0.0
      %v494 = vmax.f32 %v462, 0.0
      %v495 = vmax.f32 %v463, 0.0
      %v496 = vmax.f32 %v464, 0.0
      %v497 = vmax.f32 %v465, 0.0
      %v498 = vmax.f32 %v466, 0.0
      %v499 = vmax.f32 %v467, 0.0
      %v500 = vmax.f32 %v468, 0.0
      %v501 = vmax.f32 %v469, 0.0
      %v502 = vmax.f32 %v470, 0.0
      %v503 = vmax.f32 %v471, 0.0
      %v504 = vmax.f32 %v472, 0.0
      %v505 = vmax.f32 %v473, 0.0
      %v506 = vmax.f32 %v474, 0.0
      %v507 = vmax.f32 %v475, 0.0
      %v508 = vmax.f32 %v476, 0.0
      %v509 = vmax.f32 %v477, 0.0
      %v510 = vmax.f32 %v478, 0.0
      %v511 = vmax.f32 %v479, 0.0
      %v512 = vmax.f32 %v480, 0.0
      %v513 = vmax.f32 %v481, 0.0
      %v514 = vmax.f32 %v482, 0.0
      %v515 = vmax.f32 %v483, 0.0
      %v516 = vmax.f32 %v484, 0.0
      %v517 = vmax.f32 %v485, 0.0
      %v518 = vmax.f32 %v486, 0.0
      %v519 = vmax.f32 %v487, 0.0
      %v520 = vmax.f32 %v488, 0.0
      %v521 = vmax.f32 %v489, 0.0
      %v522 = vmax.f32 %v490, 0.0
      %v523 = vmax.f32 %v491, 0.0
      %s524 = scalar_lea.vmem [#allocation2], 24
      %525 = vst.msk [vmem:[%s524 + $0x1] sm:$0xff] %vm307, %v492
      %526 = vst.msk [vmem:[%s524 + $0x9] sm:$0xff] %vm307, %v493
      %527 = vst.msk [vmem:[%s524 + $0x19] sm:$0xff] %vm307, %v494
      %528 = vst.msk [vmem:[%s524 + $0x21] sm:$0xff] %vm307, %v495
      %529 = vst.msk [vmem:[%s524 + $0x31] sm:$0xff] %vm307, %v496
      %530 = vst.msk [vmem:[%s524 + $0x39] sm:$0xff] %vm307, %v497
      %531 = vst.msk [vmem:[%s524 + $0x49] sm:$0xff] %vm307, %v498
      %532 = vst.msk [vmem:[%s524 + $0x51] sm:$0xff] %vm307, %v499
      %533 = vst.msk [vmem:[%s524 + $0x61] sm:$0xff] %vm307, %v500
      %534 = vst.msk [vmem:[%s524 + $0x69] sm:$0xff] %vm307, %v501
      %535 = vst.msk [vmem:[%s524 + $0x79] sm:$0xff] %vm307, %v502
      %536 = vst.msk [vmem:[%s524 + $0x81] sm:$0xff] %vm307, %v503
      %537 = vst.msk [vmem:[%s524 + $0x91] sm:$0xff] %vm307, %v504
      %538 = vst.msk [vmem:[%s524 + $0x99] sm:$0xff] %vm307, %v505
      %539 = vst.msk [vmem:[%s524 + $0xa9] sm:$0xff] %vm307, %v506
      %540 = vst.msk [vmem:[%s524 + $0xb1] sm:$0xff] %vm307, %v507
      %541 = vst.msk [vmem:[%s524 + $0xc1] sm:$0xff] %vm307, %v508
      %542 = vst.msk [vmem:[%s524 + $0xc9] sm:$0xff] %vm307, %v509
      %543 = vst.msk [vmem:[%s524 + $0xd9] sm:$0xff] %vm307, %v510
      %544 = vst.msk [vmem:[%s524 + $0xe1] sm:$0xff] %vm307, %v511
      %545 = vst.msk [vmem:[%s524 + $0xf1] sm:$0xff] %vm307, %v512
      %546 = vst.msk [vmem:[%s524 + $0xf9] sm:$0xff] %vm307, %v513
      %547 = vst.msk [vmem:[%s524 + $0x109] sm:$0xff] %vm307, %v514
      %548 = vst.msk [vmem:[%s524 + $0x111] sm:$0xff] %vm307, %v515
      %549 = vst.msk [vmem:[%s524 + $0x121] sm:$0xff] %vm307, %v516
      %550 = vst.msk [vmem:[%s524 + $0x129] sm:$0xff] %vm307, %v517
      %551 = vst.msk [vmem:[%s524 + $0x139] sm:$0xff] %vm307, %v518
      %552 = vst.msk [vmem:[%s524 + $0x141] sm:$0xff] %vm307, %v519
      %553 = vst.msk [vmem:[%s524 + $0x151] sm:$0xff] %vm307, %v520
      %554 = vst.msk [vmem:[%s524 + $0x159] sm:$0xff] %vm307, %v521
      %555 = vst.msk [vmem:[%s524 + $0x169] sm:$0xff] %vm307, %v522
      %556 = vst.msk [vmem:[%s524 + $0x171] sm:$0xff] %vm307, %v523
      %v557 = vld [vmem:[#allocation2] ss:$2 sm:$0xff]
      %s558 = scalar_lea.vmem [#allocation2], 48
      %v559 = vld [vmem:[%s558] ss:$2 sm:$0xff]
      %s560 = scalar_lea.vmem [#allocation2], 96
      %v561 = vld [vmem:[%s560] ss:$2 sm:$0xff]
      %s562 = scalar_lea.vmem [#allocation2], 144
      %v563 = vld [vmem:[%s562] ss:$2 sm:$0xff]
      %s564 = scalar_lea.vmem [#allocation2], 192
      %v565 = vld [vmem:[%s564] ss:$2 sm:$0xff]
      %s566 = scalar_lea.vmem [#allocation2], 240
      %v567 = vld [vmem:[%s566] ss:$2 sm:$0xff]
      %s568 = scalar_lea.vmem [#allocation2], 288
      %v569 = vld [vmem:[%s568] ss:$2 sm:$0xff]
      %s570 = scalar_lea.vmem [#allocation2], 336
      %v571 = vld [vmem:[%s570] ss:$2 sm:$0xff]
      %v572 = vpack.c.bf16 %v557, %v557
      %v573 = vpack.c.bf16 %v559, %v559
      %v574 = vpack.c.bf16 %v561, %v561
      %v575 = vpack.c.bf16 %v563, %v563
      %v576 = vpack.c.bf16 %v565, %v565
      %v577 = vpack.c.bf16 %v567, %v567
      %v578 = vpack.c.bf16 %v569, %v569
      %v579 = vpack.c.bf16 %v571, %v571
      %v580 = vld [vmem:[%s3] sm:$0x3]
      %s581 = scalar_lea.vmem [#allocation2], 1
      %v582 = vld [vmem:[%s581] ss:$2 sm:$0xff]
      %s583 = scalar_lea.vmem [#allocation2], 49
      %v584 = vld [vmem:[%s583] ss:$2 sm:$0xff]
      %s585 = scalar_lea.vmem [#allocation2], 97
      %v586 = vld [vmem:[%s585] ss:$2 sm:$0xff]
      %s587 = scalar_lea.vmem [#allocation2], 145
      %v588 = vld [vmem:[%s587] ss:$2 sm:$0xff]
      %s589 = scalar_lea.vmem [#allocation2], 193
      %v590 = vld [vmem:[%s589] ss:$2 sm:$0xff]
      %s591 = scalar_lea.vmem [#allocation2], 241
      %v592 = vld [vmem:[%s591] ss:$2 sm:$0xff]
      %s593 = scalar_lea.vmem [#allocation2], 289
      %v594 = vld [vmem:[%s593] ss:$2 sm:$0xff]
      %s595 = scalar_lea.vmem [#allocation2], 337
      %v596 = vld [vmem:[%s595] ss:$2 sm:$0xff]
      %v597 = vpack.c.bf16 %v582, %v582
      %v598 = vpack.c.bf16 %v584, %v584
      %v599 = vpack.c.bf16 %v586, %v586
      %v600 = vpack.c.bf16 %v588, %v588
      %v601 = vpack.c.bf16 %v590, %v590
      %v602 = vpack.c.bf16 %v592, %v592
      %v603 = vpack.c.bf16 %v594, %v594
      %v604 = vpack.c.bf16 %v596, %v596
      %s605 = scalar_lea.vmem %s3, 2
      %v606 = vld [vmem:[%s605] sm:$0x3]
      %v615 = vunpack.c.l.b16 %v597
      %v616 = vunpack.c.l.b16 %v598
      %v617 = vunpack.c.l.b16 %v599
      %v618 = vunpack.c.l.b16 %v600
      %v619 = vunpack.c.l.b16 %v601
      %v620 = vunpack.c.l.b16 %v602
      %v621 = vunpack.c.l.b16 %v603
      %v622 = vunpack.c.l.b16 %v604
      %v623 = vpack.c.b16 %v616, %v615
      %v624 = vpack.c.b16 %v618, %v617
      %v625 = vpack.c.b16 %v620, %v619
      %v626 = vpack.c.b16 %v622, %v621
      %v628 = vsel %vm307, %v623, 0
      %v631 = vsel %vm307, %v624, 0
      %v634 = vsel %vm307, %v625, 0
      %v637 = vsel %vm307, %v626, 0
      %vm639 = vcmask 1041408
      %v641 = vsel %vm639, %v606, 0
      %643 = vmatprep.subr.bf16.mxu0 0
      %644 = vmatpush1.bf16.msra.mxu0 %v641
      %645 = vmatprep.subr.bf16.mxu0 0
      %646 = vmatpush1.bf16.msra.mxu0 0
      %647 = vmatprep.subr.bf16.mxu0 0
      %648 = vmatpush1.bf16.msra.mxu0 0
      %649 = vmatprep.subr.bf16.mxu0 0
      %650 = vmatpush1.bf16.msra.mxu0 0
      %651 = vmatprep.subr.bf16.mxu0 0
      %652 = vmatpush1.bf16.msra.mxu0 0
      %653 = vmatprep.subr.bf16.mxu0 0
      %654 = vmatpush1.bf16.msra.mxu0 0
      %655 = vmatprep.subr.bf16.mxu0 0
      %656 = vmatpush1.bf16.msra.mxu0 0
      %657 = vmatprep.subr.bf16.mxu0 0
      %658 = vmatpush1.bf16.msra.mxu0 0
      %659 = vmatprep.subr.bf16.mxu0 0
      %660 = vmatpush1.bf16.msra.mxu0 0
      %661 = vmatprep.subr.bf16.mxu0 0
      %662 = vmatpush1.bf16.msra.mxu0 0
      %663 = vmatprep.subr.bf16.mxu0 0
      %664 = vmatpush1.bf16.msra.mxu0 0
      %665 = vmatprep.subr.bf16.mxu0 0
      %666 = vmatpush1.bf16.msra.mxu0 0
      %667 = vmatprep.subr.bf16.mxu0 0
      %668 = vmatpush1.bf16.msra.mxu0 0
      %669 = vmatprep.subr.bf16.mxu0 0
      %670 = vmatpush1.bf16.msra.mxu0 0
      %671 = vmatprep.subr.bf16.mxu0 0
      %672 = vmatpush1.bf16.msra.mxu0 0
      %673 = vmatprep.subr.bf16.mxu0 0
      %674 = vmatpush1.bf16.msra.mxu0 0
      %675 = vmatprep.mubr.bf16.mxu0 0
      %676 = vmatmul.mubr.bf16.gmra.mrb[0].mxu0 %v628
      %v677 = vpop.f32.mrb[0].mxu0
      %v678 = vadd.f32 0.0, %v677
      %v679 = vpop.f32.mrb[0].mxu0
      %v680 = vpop.f32.mrb[0].mxu0
      %v681 = vadd.f32 0.0, %v680
      %v682 = vpop.f32.mrb[0].mxu0
      %683 = vmatprep.mubr.bf16.mxu0 0
      %684 = vmatmul.mubr.bf16.gmra.mrb[0].mxu0 %v631
      %v685 = vpop.f32.mrb[0].mxu0
      %v686 = vadd.f32 0.0, %v685
      %v687 = vpop.f32.mrb[0].mxu0
      %v688 = vpop.f32.mrb[0].mxu0
      %v689 = vadd.f32 0.0, %v688
      %v690 = vpop.f32.mrb[0].mxu0
      %691 = vmatprep.mubr.bf16.mxu0 0
      %692 = vmatmul.mubr.bf16.gmra.mrb[0].mxu0 %v634
      %v693 = vpop.f32.mrb[0].mxu0
      %v694 = vadd.f32 0.0, %v693
      %v695 = vpop.f32.mrb[0].mxu0
      %v696 = vpop.f32.mrb[0].mxu0
      %v697 = vadd.f32 0.0, %v696
      %v698 = vpop.f32.mrb[0].mxu0
      %699 = vmatprep.mubr.bf16.mxu0 0
      %700 = vmatmul.mubr.bf16.gmra.mrb[0].mxu0 %v637
      %v701 = vpop.f32.mrb[0].mxu0
      %v702 = vadd.f32 0.0, %v701
      %v703 = vpop.f32.mrb[0].mxu0
      %v704 = vpop.f32.mrb[0].mxu0
      %v705 = vadd.f32 0.0, %v704
      %v706 = vpop.f32.mrb[0].mxu0
      %707 = vdwg.mxu0
      %v716 = vunpack.c.l.b16 %v572
      %v717 = vunpack.c.l.b16 %v573
      %v718 = vunpack.c.l.b16 %v574
      %v719 = vunpack.c.l.b16 %v575
      %v720 = vunpack.c.l.b16 %v576
      %v721 = vunpack.c.l.b16 %v577
      %v722 = vunpack.c.l.b16 %v578
      %v723 = vunpack.c.l.b16 %v579
      %v724 = vpack.c.b16 %v717, %v716
      %v725 = vpack.c.b16 %v719, %v718
      %v726 = vpack.c.b16 %v721, %v720
      %v727 = vpack.c.b16 %v723, %v722
      %v729 = vsel %vm307, %v724, 0
      %v732 = vsel %vm307, %v725, 0
      %v735 = vsel %vm307, %v726, 0
      %v738 = vsel %vm307, %v727, 0
      %v741 = vsel %vm639, %v580, 0
      %743 = vmatprep.subr.bf16.mxu0 0
      %744 = vmatpush1.bf16.msra.mxu0 %v741
      %745 = vmatprep.subr.bf16.mxu0 0
      %746 = vmatpush1.bf16.msra.mxu0 0
      %747 = vmatprep.subr.bf16.mxu0 0
      %748 = vmatpush1.bf16.msra.mxu0 0
      %749 = vmatprep.subr.bf16.mxu0 0
      %750 = vmatpush1.bf16.msra.mxu0 0
      %751 = vmatprep.subr.bf16.mxu0 0
      %752 = vmatpush1.bf16.msra.mxu0 0
      %753 = vmatprep.subr.bf16.mxu0 0
      %754 = vmatpush1.bf16.msra.mxu0 0
      %755 = vmatprep.subr.bf16.mxu0 0
      %756 = vmatpush1.bf16.msra.mxu0 0
      %757 = vmatprep.subr.bf16.mxu0 0
      %758 = vmatpush1.bf16.msra.mxu0 0
      %759 = vmatprep.subr.bf16.mxu0 0
      %760 = vmatpush1.bf16.msra.mxu0 0
      %761 = vmatprep.subr.bf16.mxu0 0
      %762 = vmatpush1.bf16.msra.mxu0 0
      %763 = vmatprep.subr.bf16.mxu0 0
      %764 = vmatpush1.bf16.msra.mxu0 0
      %765 = vmatprep.subr.bf16.mxu0 0
      %766 = vmatpush1.bf16.msra.mxu0 0
      %767 = vmatprep.subr.bf16.mxu0 0
      %768 = vmatpush1.bf16.msra.mxu0 0
      %769 = vmatprep.subr.bf16.mxu0 0
      %770 = vmatpush1.bf16.msra.mxu0 0
      %771 = vmatprep.subr.bf16.mxu0 0
      %772 = vmatpush1.bf16.msra.mxu0 0
      %773 = vmatprep.subr.bf16.mxu0 0
      %774 = vmatpush1.bf16.msra.mxu0 0
      %775 = vmatprep.mubr.bf16.mxu0 0
      %776 = vmatmul.mubr.bf16.gmra.mrb[0].mxu0 %v729
      %v777 = vpop.f32.mrb[0].mxu0
      %v778 = vadd.f32 %v678, %v777
      %v779 = vpop.f32.mrb[0].mxu0
      %v780 = vpop.f32.mrb[0].mxu0
      %v781 = vadd.f32 %v681, %v780
      %v782 = vpop.f32.mrb[0].mxu0
      %783 = vmatprep.mubr.bf16.mxu0 0
      %784 = vmatmul.mubr.bf16.gmra.mrb[0].mxu0 %v732
      %v785 = vpop.f32.mrb[0].mxu0
      %v786 = vadd.f32 %v686, %v785
      %v787 = vpop.f32.mrb[0].mxu0
      %v788 = vpop.f32.mrb[0].mxu0
      %v789 = vadd.f32 %v689, %v788
      %v790 = vpop.f32.mrb[0].mxu0
      %791 = vmatprep.mubr.bf16.mxu0 0
      %792 = vmatmul.mubr.bf16.gmra.mrb[0].mxu0 %v735
      %v793 = vpop.f32.mrb[0].mxu0
      %v794 = vadd.f32 %v694, %v793
      %v795 = vpop.f32.mrb[0].mxu0
      %v796 = vpop.f32.mrb[0].mxu0
      %v797 = vadd.f32 %v697, %v796
      %v798 = vpop.f32.mrb[0].mxu0
      %799 = vmatprep.mubr.bf16.mxu0 0
      %800 = vmatmul.mubr.bf16.gmra.mrb[0].mxu0 %v738
      %v801 = vpop.f32.mrb[0].mxu0
      %v802 = vadd.f32 %v702, %v801
      %v803 = vpop.f32.mrb[0].mxu0
      %v804 = vpop.f32.mrb[0].mxu0
      %v805 = vadd.f32 %v705, %v804
      %v806 = vpop.f32.mrb[0].mxu0
      %807 = vdwg.mxu0
      %s808 = scalar_lea.vmem [#allocation2], 2
      %v809 = vld [vmem:[%s808] ss:$2 sm:$0xff]
      %s810 = scalar_lea.vmem [#allocation2], 50
      %v811 = vld [vmem:[%s810] ss:$2 sm:$0xff]
      %s812 = scalar_lea.vmem [#allocation2], 98
      %v813 = vld [vmem:[%s812] ss:$2 sm:$0xff]
      %s814 = scalar_lea.vmem [#allocation2], 146
      %v815 = vld [vmem:[%s814] ss:$2 sm:$0xff]
      %s816 = scalar_lea.vmem [#allocation2], 194
      %v817 = vld [vmem:[%s816] ss:$2 sm:$0xff]
      %s818 = scalar_lea.vmem [#allocation2], 242
      %v819 = vld [vmem:[%s818] ss:$2 sm:$0xff]
      %s820 = scalar_lea.vmem [#allocation2], 290
      %v821 = vld [vmem:[%s820] ss:$2 sm:$0xff]
      %s822 = scalar_lea.vmem [#allocation2], 338
      %v823 = vld [vmem:[%s822] ss:$2 sm:$0xff]
      %v824 = vpack.c.bf16 %v809, %v809
      %v825 = vpack.c.bf16 %v811, %v811
      %v826 = vpack.c.bf16 %v813, %v813
      %v827 = vpack.c.bf16 %v815, %v815
      %v828 = vpack.c.bf16 %v817, %v817
      %v829 = vpack.c.bf16 %v819, %v819
      %v830 = vpack.c.bf16 %v821, %v821
      %v831 = vpack.c.bf16 %v823, %v823
      %s832 = scalar_lea.vmem %s3, 4
      %v833 = vld [vmem:[%s832] sm:$0x3]
      %v842 = vunpack.c.l.b16 %v824
      %v843 = vunpack.c.l.b16 %v825
      %v844 = vunpack.c.l.b16 %v826
      %v845 = vunpack.c.l.b16 %v827
      %v846 = vunpack.c.l.b16 %v828
      %v847 = vunpack.c.l.b16 %v829
      %v848 = vunpack.c.l.b16 %v830
      %v849 = vunpack.c.l.b16 %v831
      %v850 = vpack.c.b16 %v843, %v842
      %v851 = vpack.c.b16 %v845, %v844
      %v852 = vpack.c.b16 %v847, %v846
      %v853 = vpack.c.b16 %v849, %v848
      %v855 = vsel %vm307, %v850, 0
      %v858 = vsel %vm307, %v851, 0
      %v861 = vsel %vm307, %v852, 0
      %v864 = vsel %vm307, %v853, 0
      %v867 = vsel %vm639, %v833, 0
      %869 = vmatprep.subr.bf16.mxu0 0
      %870 = vmatpush1.bf16.msra.mxu0 %v867
      %871 = vmatprep.subr.bf16.mxu0 0
      %872 = vmatpush1.bf16.msra.mxu0 0
      %873 = vmatprep.subr.bf16.mxu0 0
      %874 = vmatpush1.bf16.msra.mxu0 0
      %875 = vmatprep.subr.bf16.mxu0 0
      %876 = vmatpush1.bf16.msra.mxu0 0
      %877 = vmatprep.subr.bf16.mxu0 0
      %878 = vmatpush1.bf16.msra.mxu0 0
      %879 = vmatprep.subr.bf16.mxu0 0
      %880 = vmatpush1.bf16.msra.mxu0 0
      %881 = vmatprep.subr.bf16.mxu0 0
      %882 = vmatpush1.bf16.msra.mxu0 0
      %883 = vmatprep.subr.bf16.mxu0 0
      %884 = vmatpush1.bf16.msra.mxu0 0
      %885 = vmatprep.subr.bf16.mxu0 0
      %886 = vmatpush1.bf16.msra.mxu0 0
      %887 = vmatprep.subr.bf16.mxu0 0
      %888 = vmatpush1.bf16.msra.mxu0 0
      %889 = vmatprep.subr.bf16.mxu0 0
      %890 = vmatpush1.bf16.msra.mxu0 0
      %891 = vmatprep.subr.bf16.mxu0 0
      %892 = vmatpush1.bf16.msra.mxu0 0
      %893 = vmatprep.subr.bf16.mxu0 0
      %894 = vmatpush1.bf16.msra.mxu0 0
      %895 = vmatprep.subr.bf16.mxu0 0
      %896 = vmatpush1.bf16.msra.mxu0 0
      %897 = vmatprep.subr.bf16.mxu0 0
      %898 = vmatpush1.bf16.msra.mxu0 0
      %899 = vmatprep.subr.bf16.mxu0 0
      %900 = vmatpush1.bf16.msra.mxu0 0
      %901 = vmatprep.mubr.bf16.mxu0 0
      %902 = vmatmul.mubr.bf16.gmra.mrb[0].mxu0 %v855
      %v903 = vpop.f32.mrb[0].mxu0
      %v904 = vadd.f32 0.0, %v903
      %v905 = vpop.f32.mrb[0].mxu0
      %v906 = vpop.f32.mrb[0].mxu0
      %v907 = vadd.f32 0.0, %v906
      %v908 = vpop.f32.mrb[0].mxu0
      %909 = vmatprep.mubr.bf16.mxu0 0
      %910 = vmatmul.mubr.bf16.gmra.mrb[0].mxu0 %v858
      %v911 = vpop.f32.mrb[0].mxu0
      %v912 = vadd.f32 0.0, %v911
      %v913 = vpop.f32.mrb[0].mxu0
      %v914 = vpop.f32.mrb[0].mxu0
      %v915 = vadd.f32 0.0, %v914
      %v916 = vpop.f32.mrb[0].mxu0
      %917 = vmatprep.mubr.bf16.mxu0 0
      %918 = vmatmul.mubr.bf16.gmra.mrb[0].mxu0 %v861
      %v919 = vpop.f32.mrb[0].mxu0
      %v920 = vadd.f32 0.0, %v919
      %v921 = vpop.f32.mrb[0].mxu0
      %v922 = vpop.f32.mrb[0].mxu0
      %v923 = vadd.f32 0.0, %v922
      %v924 = vpop.f32.mrb[0].mxu0
      %925 = vmatprep.mubr.bf16.mxu0 0
      %926 = vmatmul.mubr.bf16.gmra.mrb[0].mxu0 %v864
      %v927 = vpop.f32.mrb[0].mxu0
      %v928 = vadd.f32 0.0, %v927
      %v929 = vpop.f32.mrb[0].mxu0
      %v930 = vpop.f32.mrb[0].mxu0
      %v931 = vadd.f32 0.0, %v930
      %v932 = vpop.f32.mrb[0].mxu0
      %933 = vdwg.mxu0
      %v934 = vadd.f32 %v778, %v904
      %v935 = vadd.f32 %v781, %v907
      %v936 = vadd.f32 %v786, %v912
      %v937 = vadd.f32 %v789, %v915
      %v938 = vadd.f32 %v794, %v920
      %v939 = vadd.f32 %v797, %v923
      %v940 = vadd.f32 %v802, %v928
      %v941 = vadd.f32 %v805, %v931
      %v942 = vld [vmem:[%s524] ss:$2 sm:$0xff]
      %s943 = scalar_lea.vmem %s524, 48 [#allocation2]
      %v944 = vld [vmem:[%s943] ss:$2 sm:$0xff]
      %s945 = scalar_lea.vmem %s524, 96 [#allocation2]
      %v946 = vld [vmem:[%s945] ss:$2 sm:$0xff]
      %s947 = scalar_lea.vmem %s524, 144 [#allocation2]
      %v948 = vld [vmem:[%s947] ss:$2 sm:$0xff]
      %s949 = scalar_lea.vmem %s524, 192 [#allocation2]
      %v950 = vld [vmem:[%s949] ss:$2 sm:$0xff]
      %s951 = scalar_lea.vmem %s524, 240 [#allocation2]
      %v952 = vld [vmem:[%s951] ss:$2 sm:$0xff]
      %s953 = scalar_lea.vmem %s524, 288 [#allocation2]
      %v954 = vld [vmem:[%s953] ss:$2 sm:$0xff]
      %s955 = scalar_lea.vmem %s524, 336 [#allocation2]
      %v956 = vld [vmem:[%s955] ss:$2 sm:$0xff]
      %v957 = vpack.c.bf16 %v942, %v942
      %v958 = vpack.c.bf16 %v944, %v944
      %v959 = vpack.c.bf16 %v946, %v946
      %v960 = vpack.c.bf16 %v948, %v948
      %v961 = vpack.c.bf16 %v950, %v950
      %v962 = vpack.c.bf16 %v952, %v952
      %v963 = vpack.c.bf16 %v954, %v954
      %v964 = vpack.c.bf16 %v956, %v956
      %s965 = scalar_lea.vmem %s3, 6
      %v966 = vld [vmem:[%s965] sm:$0x3]
      %v975 = vunpack.c.l.b16 %v957
      %v976 = vunpack.c.l.b16 %v958
      %v977 = vunpack.c.l.b16 %v959
      %v978 = vunpack.c.l.b16 %v960
      %v979 = vunpack.c.l.b16 %v961
      %v980 = vunpack.c.l.b16 %v962
      %v981 = vunpack.c.l.b16 %v963
      %v982 = vunpack.c.l.b16 %v964
      %v983 = vpack.c.b16 %v976, %v975
      %v984 = vpack.c.b16 %v978, %v977
      %v985 = vpack.c.b16 %v980, %v979
      %v986 = vpack.c.b16 %v982, %v981
      %v988 = vsel %vm307, %v983, 0
      %v991 = vsel %vm307, %v984, 0
      %v994 = vsel %vm307, %v985, 0
      %v997 = vsel %vm307, %v986, 0
      %v1000 = vsel %vm639, %v966, 0
      %1002 = vmatprep.subr.bf16.mxu0 0
      %1003 = vmatpush1.bf16.msra.mxu0 %v1000
      %1004 = vmatprep.subr.bf16.mxu0 0
      %1005 = vmatpush1.bf16.msra.mxu0 0
      %1006 = vmatprep.subr.bf16.mxu0 0
      %1007 = vmatpush1.bf16.msra.mxu0 0
      %1008 = vmatprep.subr.bf16.mxu0 0
      %1009 = vmatpush1.bf16.msra.mxu0 0
      %1010 = vmatprep.subr.bf16.mxu0 0
      %1011 = vmatpush1.bf16.msra.mxu0 0
      %1012 = vmatprep.subr.bf16.mxu0 0
      %1013 = vmatpush1.bf16.msra.mxu0 0
      %1014 = vmatprep.subr.bf16.mxu0 0
      %1015 = vmatpush1.bf16.msra.mxu0 0
      %1016 = vmatprep.subr.bf16.mxu0 0
      %1017 = vmatpush1.bf16.msra.mxu0 0
      %1018 = vmatprep.subr.bf16.mxu0 0
      %1019 = vmatpush1.bf16.msra.mxu0 0
      %1020 = vmatprep.subr.bf16.mxu0 0
      %1021 = vmatpush1.bf16.msra.mxu0 0
      %1022 = vmatprep.subr.bf16.mxu0 0
      %1023 = vmatpush1.bf16.msra.mxu0 0
      %1024 = vmatprep.subr.bf16.mxu0 0
      %1025 = vmatpush1.bf16.msra.mxu0 0
      %1026 = vmatprep.subr.bf16.mxu0 0
      %1027 = vmatpush1.bf16.msra.mxu0 0
      %1028 = vmatprep.subr.bf16.mxu0 0
      %1029 = vmatpush1.bf16.msra.mxu0 0
      %1030 = vmatprep.subr.bf16.mxu0 0
      %1031 = vmatpush1.bf16.msra.mxu0 0
      %1032 = vmatprep.subr.bf16.mxu0 0
      %1033 = vmatpush1.bf16.msra.mxu0 0
      %1034 = vmatprep.mubr.bf16.mxu0 0
      %1035 = vmatmul.mubr.bf16.gmra.mrb[0].mxu0 %v988
      %v1036 = vpop.f32.mrb[0].mxu0
      %v1037 = vadd.f32 0.0, %v1036
      %v1038 = vpop.f32.mrb[0].mxu0
      %v1039 = vpop.f32.mrb[0].mxu0
      %v1040 = vadd.f32 0.0, %v1039
      %v1041 = vpop.f32.mrb[0].mxu0
      %1042 = vmatprep.mubr.bf16.mxu0 0
      %1043 = vmatmul.mubr.bf16.gmra.mrb[0].mxu0 %v991
      %v1044 = vpop.f32.mrb[0].mxu0
      %v1045 = vadd.f32 0.0, %v1044
      %v1046 = vpop.f32.mrb[0].mxu0
      %v1047 = vpop.f32.mrb[0].mxu0
      %v1048 = vadd.f32 0.0, %v1047
      %v1049 = vpop.f32.mrb[0].mxu0
      %1050 = vmatprep.mubr.bf16.mxu0 0
      %1051 = vmatmul.mubr.bf16.gmra.mrb[0].mxu0 %v994
      %v1052 = vpop.f32.mrb[0].mxu0
      %v1053 = vadd.f32 0.0, %v1052
      %v1054 = vpop.f32.mrb[0].mxu0
      %v1055 = vpop.f32.mrb[0].mxu0
      %v1056 = vadd.f32 0.0, %v1055
      %v1057 = vpop.f32.mrb[0].mxu0
      %1058 = vmatprep.mubr.bf16.mxu0 0
      %1059 = vmatmul.mubr.bf16.gmra.mrb[0].mxu0 %v997
      %v1060 = vpop.f32.mrb[0].mxu0
      %v1061 = vadd.f32 0.0, %v1060
      %v1062 = vpop.f32.mrb[0].mxu0
      %v1063 = vpop.f32.mrb[0].mxu0
      %v1064 = vadd.f32 0.0, %v1063
      %v1065 = vpop.f32.mrb[0].mxu0
      %1066 = vdwg.mxu0
      %v1067 = vadd.f32 %v934, %v1037
      %v1068 = vadd.f32 %v935, %v1040
      %v1069 = vadd.f32 %v936, %v1045
      %v1070 = vadd.f32 %v937, %v1048
      %v1071 = vadd.f32 %v938, %v1053
      %v1072 = vadd.f32 %v939, %v1056
      %v1073 = vadd.f32 %v940, %v1061
      %v1074 = vadd.f32 %v941, %v1064
      %s1075 = scalar_lea.vmem %s524, 1 [#allocation2]
      %v1076 = vld [vmem:[%s1075] ss:$2 sm:$0xff]
      %s1077 = scalar_lea.vmem %s524, 49 [#allocation2]
      %v1078 = vld [vmem:[%s1077] ss:$2 sm:$0xff]
      %s1079 = scalar_lea.vmem %s524, 97 [#allocation2]
      %v1080 = vld [vmem:[%s1079] ss:$2 sm:$0xff]
      %s1081 = scalar_lea.vmem %s524, 145 [#allocation2]
      %v1082 = vld [vmem:[%s1081] ss:$2 sm:$0xff]
      %s1083 = scalar_lea.vmem %s524, 193 [#allocation2]
      %v1084 = vld [vmem:[%s1083] ss:$2 sm:$0xff]
      %s1085 = scalar_lea.vmem %s524, 241 [#allocation2]
      %v1086 = vld [vmem:[%s1085] ss:$2 sm:$0xff]
      %s1087 = scalar_lea.vmem %s524, 289 [#allocation2]
      %v1088 = vld [vmem:[%s1087] ss:$2 sm:$0xff]
      %s1089 = scalar_lea.vmem %s524, 337 [#allocation2]
      %v1090 = vld [vmem:[%s1089] ss:$2 sm:$0xff]
      %v1091 = vpack.c.bf16 %v1076, %v1076
      %v1092 = vpack.c.bf16 %v1078, %v1078
      %v1093 = vpack.c.bf16 %v1080, %v1080
      %v1094 = vpack.c.bf16 %v1082, %v1082
      %v1095 = vpack.c.bf16 %v1084, %v1084
      %v1096 = vpack.c.bf16 %v1086, %v1086
      %v1097 = vpack.c.bf16 %v1088, %v1088
      %v1098 = vpack.c.bf16 %v1090, %v1090
      %s1099 = scalar_lea.vmem %s3, 8
      %v1100 = vld [vmem:[%s1099] sm:$0x3]
      %v1109 = vunpack.c.l.b16 %v1091
      %v1110 = vunpack.c.l.b16 %v1092
      %v1111 = vunpack.c.l.b16 %v1093
      %v1112 = vunpack.c.l.b16 %v1094
      %v1113 = vunpack.c.l.b16 %v1095
      %v1114 = vunpack.c.l.b16 %v1096
      %v1115 = vunpack.c.l.b16 %v1097
      %v1116 = vunpack.c.l.b16 %v1098
      %v1117 = vpack.c.b16 %v1110, %v1109
      %v1118 = vpack.c.b16 %v1112, %v1111
      %v1119 = vpack.c.b16 %v1114, %v1113
      %v1120 = vpack.c.b16 %v1116, %v1115
      %v1122 = vsel %vm307, %v1117, 0
      %v1125 = vsel %vm307, %v1118, 0
      %v1128 = vsel %vm307, %v1119, 0
      %v1131 = vsel %vm307, %v1120, 0
      %v1134 = vsel %vm639, %v1100, 0
      %1136 = vmatprep.subr.bf16.mxu0 0
      %1137 = vmatpush1.bf16.msra.mxu0 %v1134
      %1138 = vmatprep.subr.bf16.mxu0 0
      %1139 = vmatpush1.bf16.msra.mxu0 0
      %1140 = vmatprep.subr.bf16.mxu0 0
      %1141 = vmatpush1.bf16.msra.mxu0 0
      %1142 = vmatprep.subr.bf16.mxu0 0
      %1143 = vmatpush1.bf16.msra.mxu0 0
      %1144 = vmatprep.subr.bf16.mxu0 0
      %1145 = vmatpush1.bf16.msra.mxu0 0
      %1146 = vmatprep.subr.bf16.mxu0 0
      %1147 = vmatpush1.bf16.msra.mxu0 0
      %1148 = vmatprep.subr.bf16.mxu0 0
      %1149 = vmatpush1.bf16.msra.mxu0 0
      %1150 = vmatprep.subr.bf16.mxu0 0
      %1151 = vmatpush1.bf16.msra.mxu0 0
      %1152 = vmatprep.subr.bf16.mxu0 0
      %1153 = vmatpush1.bf16.msra.mxu0 0
      %1154 = vmatprep.subr.bf16.mxu0 0
      %1155 = vmatpush1.bf16.msra.mxu0 0
      %1156 = vmatprep.subr.bf16.mxu0 0
      %1157 = vmatpush1.bf16.msra.mxu0 0
      %1158 = vmatprep.subr.bf16.mxu0 0
      %1159 = vmatpush1.bf16.msra.mxu0 0
      %1160 = vmatprep.subr.bf16.mxu0 0
      %1161 = vmatpush1.bf16.msra.mxu0 0
      %1162 = vmatprep.subr.bf16.mxu0 0
      %1163 = vmatpush1.bf16.msra.mxu0 0
      %1164 = vmatprep.subr.bf16.mxu0 0
      %1165 = vmatpush1.bf16.msra.mxu0 0
      %1166 = vmatprep.subr.bf16.mxu0 0
      %1167 = vmatpush1.bf16.msra.mxu0 0
      %1168 = vmatprep.mubr.bf16.mxu0 0
      %1169 = vmatmul.mubr.bf16.gmra.mrb[0].mxu0 %v1122
      %v1170 = vpop.f32.mrb[0].mxu0
      %v1171 = vadd.f32 0.0, %v1170
      %v1172 = vpop.f32.mrb[0].mxu0
      %v1173 = vpop.f32.mrb[0].mxu0
      %v1174 = vadd.f32 0.0, %v1173
      %v1175 = vpop.f32.mrb[0].mxu0
      %1176 = vmatprep.mubr.bf16.mxu0 0
      %1177 = vmatmul.mubr.bf16.gmra.mrb[0].mxu0 %v1125
      %v1178 = vpop.f32.mrb[0].mxu0
      %v1179 = vadd.f32 0.0, %v1178
      %v1180 = vpop.f32.mrb[0].mxu0
      %v1181 = vpop.f32.mrb[0].mxu0
      %v1182 = vadd.f32 0.0, %v1181
      %v1183 = vpop.f32.mrb[0].mxu0
      %1184 = vmatprep.mubr.bf16.mxu0 0
      %1185 = vmatmul.mubr.bf16.gmra.mrb[0].mxu0 %v1128
      %v1186 = vpop.f32.mrb[0].mxu0
      %v1187 = vadd.f32 0.0, %v1186
      %v1188 = vpop.f32.mrb[0].mxu0
      %v1189 = vpop.f32.mrb[0].mxu0
      %v1190 = vadd.f32 0.0, %v1189
      %v1191 = vpop.f32.mrb[0].mxu0
      %1192 = vmatprep.mubr.bf16.mxu0 0
      %1193 = vmatmul.mubr.bf16.gmra.mrb[0].mxu0 %v1131
      %v1194 = vpop.f32.mrb[0].mxu0
      %v1195 = vadd.f32 0.0, %v1194
      %v1196 = vpop.f32.mrb[0].mxu0
      %v1197 = vpop.f32.mrb[0].mxu0
      %v1198 = vadd.f32 0.0, %v1197
      %v1199 = vpop.f32.mrb[0].mxu0
      %1200 = vdwg.mxu0
      %v1201 = vadd.f32 %v1067, %v1171
      %v1202 = vadd.f32 %v1068, %v1174
      %v1203 = vadd.f32 %v1069, %v1179
      %v1204 = vadd.f32 %v1070, %v1182
      %v1205 = vadd.f32 %v1071, %v1187
      %v1206 = vadd.f32 %v1072, %v1190
      %v1207 = vadd.f32 %v1073, %v1195
      %v1208 = vadd.f32 %v1074, %v1198
      %s1209 = scalar_lea.vmem %s524, 2 [#allocation2]
      %v1210 = vld [vmem:[%s1209] ss:$2 sm:$0xff]
      %s1211 = scalar_lea.vmem %s524, 50 [#allocation2]
      %v1212 = vld [vmem:[%s1211] ss:$2 sm:$0xff]
      %s1213 = scalar_lea.vmem %s524, 98 [#allocation2]
      %v1214 = vld [vmem:[%s1213] ss:$2 sm:$0xff]
      %s1215 = scalar_lea.vmem %s524, 146 [#allocation2]
      %v1216 = vld [vmem:[%s1215] ss:$2 sm:$0xff]
      %s1217 = scalar_lea.vmem %s524, 194 [#allocation2]
      %v1218 = vld [vmem:[%s1217] ss:$2 sm:$0xff]
      %s1219 = scalar_lea.vmem %s524, 242 [#allocation2]
      %v1220 = vld [vmem:[%s1219] ss:$2 sm:$0xff]
      %s1221 = scalar_lea.vmem %s524, 290 [#allocation2]
      %v1222 = vld [vmem:[%s1221] ss:$2 sm:$0xff]
      %s1223 = scalar_lea.vmem %s524, 338 [#allocation2]
      %v1224 = vld [vmem:[%s1223] ss:$2 sm:$0xff]
      %v1225 = vpack.c.bf16 %v1210, %v1210
      %v1226 = vpack.c.bf16 %v1212, %v1212
      %v1227 = vpack.c.bf16 %v1214, %v1214
      %v1228 = vpack.c.bf16 %v1216, %v1216
      %v1229 = vpack.c.bf16 %v1218, %v1218
      %v1230 = vpack.c.bf16 %v1220, %v1220
      %v1231 = vpack.c.bf16 %v1222, %v1222
      %v1232 = vpack.c.bf16 %v1224, %v1224
      %s1233 = scalar_lea.vmem %s3, 10
      %v1234 = vld [vmem:[%s1233] sm:$0x3]
      %v1243 = vunpack.c.l.b16 %v1225
      %v1244 = vunpack.c.l.b16 %v1226
      %v1245 = vunpack.c.l.b16 %v1227
      %v1246 = vunpack.c.l.b16 %v1228
      %v1247 = vunpack.c.l.b16 %v1229
      %v1248 = vunpack.c.l.b16 %v1230
      %v1249 = vunpack.c.l.b16 %v1231
      %v1250 = vunpack.c.l.b16 %v1232
      %v1251 = vpack.c.b16 %v1244, %v1243
      %v1252 = vpack.c.b16 %v1246, %v1245
      %v1253 = vpack.c.b16 %v1248, %v1247
      %v1254 = vpack.c.b16 %v1250, %v1249
      %v1256 = vsel %vm307, %v1251, 0
      %v1259 = vsel %vm307, %v1252, 0
      %v1262 = vsel %vm307, %v1253, 0
      %v1265 = vsel %vm307, %v1254, 0
      %v1268 = vsel %vm639, %v1234, 0
      %1270 = vmatprep.subr.bf16.mxu0 0
      %1271 = vmatpush1.bf16.msra.mxu0 %v1268
      %1272 = vmatprep.subr.bf16.mxu0 0
      %1273 = vmatpush1.bf16.msra.mxu0 0
      %1274 = vmatprep.subr.bf16.mxu0 0
      %1275 = vmatpush1.bf16.msra.mxu0 0
      %1276 = vmatprep.subr.bf16.mxu0 0
      %1277 = vmatpush1.bf16.msra.mxu0 0
      %1278 = vmatprep.subr.bf16.mxu0 0
      %1279 = vmatpush1.bf16.msra.mxu0 0
      %1280 = vmatprep.subr.bf16.mxu0 0
      %1281 = vmatpush1.bf16.msra.mxu0 0
      %1282 = vmatprep.subr.bf16.mxu0 0
      %1283 = vmatpush1.bf16.msra.mxu0 0
      %1284 = vmatprep.subr.bf16.mxu0 0
      %1285 = vmatpush1.bf16.msra.mxu0 0
      %1286 = vmatprep.subr.bf16.mxu0 0
      %1287 = vmatpush1.bf16.msra.mxu0 0
      %1288 = vmatprep.subr.bf16.mxu0 0
      %1289 = vmatpush1.bf16.msra.mxu0 0
      %1290 = vmatprep.subr.bf16.mxu0 0
      %1291 = vmatpush1.bf16.msra.mxu0 0
      %1292 = vmatprep.subr.bf16.mxu0 0
      %1293 = vmatpush1.bf16.msra.mxu0 0
      %1294 = vmatprep.subr.bf16.mxu0 0
      %1295 = vmatpush1.bf16.msra.mxu0 0
      %1296 = vmatprep.subr.bf16.mxu0 0
      %1297 = vmatpush1.bf16.msra.mxu0 0
      %1298 = vmatprep.subr.bf16.mxu0 0
      %1299 = vmatpush1.bf16.msra.mxu0 0
      %1300 = vmatprep.subr.bf16.mxu0 0
      %1301 = vmatpush1.bf16.msra.mxu0 0
      %1302 = vmatprep.mubr.bf16.mxu0 0
      %1303 = vmatmul.mubr.bf16.gmra.mrb[0].mxu0 %v1256
      %v1304 = vpop.f32.mrb[0].mxu0
      %v1305 = vadd.f32 0.0, %v1304
      %v1306 = vpop.f32.mrb[0].mxu0
      %v1307 = vpop.f32.mrb[0].mxu0
      %v1308 = vadd.f32 0.0, %v1307
      %v1309 = vpop.f32.mrb[0].mxu0
      %1310 = vmatprep.mubr.bf16.mxu0 0
      %1311 = vmatmul.mubr.bf16.gmra.mrb[0].mxu0 %v1259
      %v1312 = vpop.f32.mrb[0].mxu0
      %v1313 = vadd.f32 0.0, %v1312
      %v1314 = vpop.f32.mrb[0].mxu0
      %v1315 = vpop.f32.mrb[0].mxu0
      %v1316 = vadd.f32 0.0, %v1315
      %v1317 = vpop.f32.mrb[0].mxu0
      %1318 = vmatprep.mubr.bf16.mxu0 0
      %1319 = vmatmul.mubr.bf16.gmra.mrb[0].mxu0 %v1262
      %v1320 = vpop.f32.mrb[0].mxu0
      %v1321 = vadd.f32 0.0, %v1320
      %v1322 = vpop.f32.mrb[0].mxu0
      %v1323 = vpop.f32.mrb[0].mxu0
      %v1324 = vadd.f32 0.0, %v1323
      %v1325 = vpop.f32.mrb[0].mxu0
      %1326 = vmatprep.mubr.bf16.mxu0 0
      %1327 = vmatmul.mubr.bf16.gmra.mrb[0].mxu0 %v1265
      %v1328 = vpop.f32.mrb[0].mxu0
      %v1329 = vadd.f32 0.0, %v1328
      %v1330 = vpop.f32.mrb[0].mxu0
      %v1331 = vpop.f32.mrb[0].mxu0
      %v1332 = vadd.f32 0.0, %v1331
      %v1333 = vpop.f32.mrb[0].mxu0
      %1334 = vdwg.mxu0
      %v1335 = vadd.f32 %v1201, %v1305
      %v1336 = vadd.f32 %v1202, %v1308
      %v1337 = vadd.f32 %v1203, %v1313
      %v1338 = vadd.f32 %v1204, %v1316
      %v1339 = vadd.f32 %v1205, %v1321
      %v1340 = vadd.f32 %v1206, %v1324
      %v1341 = vadd.f32 %v1207, %v1329
      %v1342 = vadd.f32 %v1208, %v1332
      %s1343 = scalar_lea.vmem [#allocation2], 48
      %v1344 = vld [vmem:[%s1343] ss:$2 sm:$0xff]
      %s1345 = scalar_lea.vmem %s1343, 48 [#allocation2]
      %v1346 = vld [vmem:[%s1345] ss:$2 sm:$0xff]
      %s1347 = scalar_lea.vmem %s1343, 96 [#allocation2]
      %v1348 = vld [vmem:[%s1347] ss:$2 sm:$0xff]
      %s1349 = scalar_lea.vmem %s1343, 144 [#allocation2]
      %v1350 = vld [vmem:[%s1349] ss:$2 sm:$0xff]
      %s1351 = scalar_lea.vmem %s1343, 192 [#allocation2]
      %v1352 = vld [vmem:[%s1351] ss:$2 sm:$0xff]
      %s1353 = scalar_lea.vmem %s1343, 240 [#allocation2]
      %v1354 = vld [vmem:[%s1353] ss:$2 sm:$0xff]
      %s1355 = scalar_lea.vmem %s1343, 288 [#allocation2]
      %v1356 = vld [vmem:[%s1355] ss:$2 sm:$0xff]
      %s1357 = scalar_lea.vmem %s1343, 336 [#allocation2]
      %v1358 = vld [vmem:[%s1357] ss:$2 sm:$0xff]
      %v1359 = vpack.c.bf16 %v1344, %v1344
      %v1360 = vpack.c.bf16 %v1346, %v1346
      %v1361 = vpack.c.bf16 %v1348, %v1348
      %v1362 = vpack.c.bf16 %v1350, %v1350
      %v1363 = vpack.c.bf16 %v1352, %v1352
      %v1364 = vpack.c.bf16 %v1354, %v1354
      %v1365 = vpack.c.bf16 %v1356, %v1356
      %v1366 = vpack.c.bf16 %v1358, %v1358
      %s1367 = scalar_lea.vmem %s3, 12
      %v1368 = vld [vmem:[%s1367] sm:$0x3]
      %v1377 = vunpack.c.l.b16 %v1359
      %v1378 = vunpack.c.l.b16 %v1360
      %v1379 = vunpack.c.l.b16 %v1361
      %v1380 = vunpack.c.l.b16 %v1362
      %v1381 = vunpack.c.l.b16 %v1363
      %v1382 = vunpack.c.l.b16 %v1364
      %v1383 = vunpack.c.l.b16 %v1365
      %v1384 = vunpack.c.l.b16 %v1366
      %v1385 = vpack.c.b16 %v1378, %v1377
      %v1386 = vpack.c.b16 %v1380, %v1379
      %v1387 = vpack.c.b16 %v1382, %v1381
      %v1388 = vpack.c.b16 %v1384, %v1383
      %v1390 = vsel %vm307, %v1385, 0
      %v1393 = vsel %vm307, %v1386, 0
      %v1396 = vsel %vm307, %v1387, 0
      %v1399 = vsel %vm307, %v1388, 0
      %v1402 = vsel %vm639, %v1368, 0
      %1404 = vmatprep.subr.bf16.mxu0 0
      %1405 = vmatpush1.bf16.msra.mxu0 %v1402
      %1406 = vmatprep.subr.bf16.mxu0 0
      %1407 = vmatpush1.bf16.msra.mxu0 0
      %1408 = vmatprep.subr.bf16.mxu0 0
      %1409 = vmatpush1.bf16.msra.mxu0 0
      %1410 = vmatprep.subr.bf16.mxu0 0
      %1411 = vmatpush1.bf16.msra.mxu0 0
      %1412 = vmatprep.subr.bf16.mxu0 0
      %1413 = vmatpush1.bf16.msra.mxu0 0
      %1414 = vmatprep.subr.bf16.mxu0 0
      %1415 = vmatpush1.bf16.msra.mxu0 0
      %1416 = vmatprep.subr.bf16.mxu0 0
      %1417 = vmatpush1.bf16.msra.mxu0 0
      %1418 = vmatprep.subr.bf16.mxu0 0
      %1419 = vmatpush1.bf16.msra.mxu0 0
      %1420 = vmatprep.subr.bf16.mxu0 0
      %1421 = vmatpush1.bf16.msra.mxu0 0
      %1422 = vmatprep.subr.bf16.mxu0 0
      %1423 = vmatpush1.bf16.msra.mxu0 0
      %1424 = vmatprep.subr.bf16.mxu0 0
      %1425 = vmatpush1.bf16.msra.mxu0 0
      %1426 = vmatprep.subr.bf16.mxu0 0
      %1427 = vmatpush1.bf16.msra.mxu0 0
      %1428 = vmatprep.subr.bf16.mxu0 0
      %1429 = vmatpush1.bf16.msra.mxu0 0
      %1430 = vmatprep.subr.bf16.mxu0 0
      %1431 = vmatpush1.bf16.msra.mxu0 0
      %1432 = vmatprep.subr.bf16.mxu0 0
      %1433 = vmatpush1.bf16.msra.mxu0 0
      %1434 = vmatprep.subr.bf16.mxu0 0
      %1435 = vmatpush1.bf16.msra.mxu0 0
      %1436 = vmatprep.mubr.bf16.mxu0 0
      %1437 = vmatmul.mubr.bf16.gmra.mrb[0].mxu0 %v1390
      %v1438 = vpop.f32.mrb[0].mxu0
      %v1439 = vadd.f32 0.0, %v1438
      %v1440 = vpop.f32.mrb[0].mxu0
      %v1441 = vpop.f32.mrb[0].mxu0
      %v1442 = vadd.f32 0.0, %v1441
      %v1443 = vpop.f32.mrb[0].mxu0
      %1444 = vmatprep.mubr.bf16.mxu0 0
      %1445 = vmatmul.mubr.bf16.gmra.mrb[0].mxu0 %v1393
      %v1446 = vpop.f32.mrb[0].mxu0
      %v1447 = vadd.f32 0.0, %v1446
      %v1448 = vpop.f32.mrb[0].mxu0
      %v1449 = vpop.f32.mrb[0].mxu0
      %v1450 = vadd.f32 0.0, %v1449
      %v1451 = vpop.f32.mrb[0].mxu0
      %1452 = vmatprep.mubr.bf16.mxu0 0
      %1453 = vmatmul.mubr.bf16.gmra.mrb[0].mxu0 %v1396
      %v1454 = vpop.f32.mrb[0].mxu0
      %v1455 = vadd.f32 0.0, %v1454
      %v1456 = vpop.f32.mrb[0].mxu0
      %v1457 = vpop.f32.mrb[0].mxu0
      %v1458 = vadd.f32 0.0, %v1457
      %v1459 = vpop.f32.mrb[0].mxu0
      %1460 = vmatprep.mubr.bf16.mxu0 0
      %1461 = vmatmul.mubr.bf16.gmra.mrb[0].mxu0 %v1399
      %v1462 = vpop.f32.mrb[0].mxu0
      %v1463 = vadd.f32 0.0, %v1462
      %v1464 = vpop.f32.mrb[0].mxu0
      %v1465 = vpop.f32.mrb[0].mxu0
      %v1466 = vadd.f32 0.0, %v1465
      %v1467 = vpop.f32.mrb[0].mxu0
      %1468 = vdwg.mxu0
      %v1469 = vadd.f32 %v1335, %v1439
      %v1470 = vadd.f32 %v1336, %v1442
      %v1471 = vadd.f32 %v1337, %v1447
      %v1472 = vadd.f32 %v1338, %v1450
      %v1473 = vadd.f32 %v1339, %v1455
      %v1474 = vadd.f32 %v1340, %v1458
      %v1475 = vadd.f32 %v1341, %v1463
      %v1476 = vadd.f32 %v1342, %v1466
      %s1477 = scalar_lea.vmem %s1343, 1 [#allocation2]
      %v1478 = vld [vmem:[%s1477] ss:$2 sm:$0xff]
      %s1479 = scalar_lea.vmem %s1343, 49 [#allocation2]
      %v1480 = vld [vmem:[%s1479] ss:$2 sm:$0xff]
      %s1481 = scalar_lea.vmem %s1343, 97 [#allocation2]
      %v1482 = vld [vmem:[%s1481] ss:$2 sm:$0xff]
      %s1483 = scalar_lea.vmem %s1343, 145 [#allocation2]
      %v1484 = vld [vmem:[%s1483] ss:$2 sm:$0xff]
      %s1485 = scalar_lea.vmem %s1343, 193 [#allocation2]
      %v1486 = vld [vmem:[%s1485] ss:$2 sm:$0xff]
      %s1487 = scalar_lea.vmem %s1343, 241 [#allocation2]
      %v1488 = vld [vmem:[%s1487] ss:$2 sm:$0xff]
      %s1489 = scalar_lea.vmem %s1343, 289 [#allocation2]
      %v1490 = vld [vmem:[%s1489] ss:$2 sm:$0xff]
      %s1491 = scalar_lea.vmem %s1343, 337 [#allocation2]
      %v1492 = vld [vmem:[%s1491] ss:$2 sm:$0xff]
      %v1493 = vpack.c.bf16 %v1478, %v1478
      %v1494 = vpack.c.bf16 %v1480, %v1480
      %v1495 = vpack.c.bf16 %v1482, %v1482
      %v1496 = vpack.c.bf16 %v1484, %v1484
      %v1497 = vpack.c.bf16 %v1486, %v1486
      %v1498 = vpack.c.bf16 %v1488, %v1488
      %v1499 = vpack.c.bf16 %v1490, %v1490
      %v1500 = vpack.c.bf16 %v1492, %v1492
      %s1501 = scalar_lea.vmem %s3, 14
      %v1502 = vld [vmem:[%s1501] sm:$0x3]
      %v1511 = vunpack.c.l.b16 %v1493
      %v1512 = vunpack.c.l.b16 %v1494
      %v1513 = vunpack.c.l.b16 %v1495
      %v1514 = vunpack.c.l.b16 %v1496
      %v1515 = vunpack.c.l.b16 %v1497
      %v1516 = vunpack.c.l.b16 %v1498
      %v1517 = vunpack.c.l.b16 %v1499
      %v1518 = vunpack.c.l.b16 %v1500
      %v1519 = vpack.c.b16 %v1512, %v1511
      %v1520 = vpack.c.b16 %v1514, %v1513
      %v1521 = vpack.c.b16 %v1516, %v1515
      %v1522 = vpack.c.b16 %v1518, %v1517
      %v1524 = vsel %vm307, %v1519, 0
      %v1527 = vsel %vm307, %v1520, 0
      %v1530 = vsel %vm307, %v1521, 0
      %v1533 = vsel %vm307, %v1522, 0
      %v1536 = vsel %vm639, %v1502, 0
      %1538 = vmatprep.subr.bf16.mxu0 0
      %1539 = vmatpush1.bf16.msra.mxu0 %v1536
      %1540 = vmatprep.subr.bf16.mxu0 0
      %1541 = vmatpush1.bf16.msra.mxu0 0
      %1542 = vmatprep.subr.bf16.mxu0 0
      %1543 = vmatpush1.bf16.msra.mxu0 0
      %1544 = vmatprep.subr.bf16.mxu0 0
      %1545 = vmatpush1.bf16.msra.mxu0 0
      %1546 = vmatprep.subr.bf16.mxu0 0
      %1547 = vmatpush1.bf16.msra.mxu0 0
      %1548 = vmatprep.subr.bf16.mxu0 0
      %1549 = vmatpush1.bf16.msra.mxu0 0
      %1550 = vmatprep.subr.bf16.mxu0 0
      %1551 = vmatpush1.bf16.msra.mxu0 0
      %1552 = vmatprep.subr.bf16.mxu0 0
      %1553 = vmatpush1.bf16.msra.mxu0 0
      %1554 = vmatprep.subr.bf16.mxu0 0
      %1555 = vmatpush1.bf16.msra.mxu0 0
      %1556 = vmatprep.subr.bf16.mxu0 0
      %1557 = vmatpush1.bf16.msra.mxu0 0
      %1558 = vmatprep.subr.bf16.mxu0 0
      %1559 = vmatpush1.bf16.msra.mxu0 0
      %1560 = vmatprep.subr.bf16.mxu0 0
      %1561 = vmatpush1.bf16.msra.mxu0 0
      %1562 = vmatprep.subr.bf16.mxu0 0
      %1563 = vmatpush1.bf16.msra.mxu0 0
      %1564 = vmatprep.subr.bf16.mxu0 0
      %1565 = vmatpush1.bf16.msra.mxu0 0
      %1566 = vmatprep.subr.bf16.mxu0 0
      %1567 = vmatpush1.bf16.msra.mxu0 0
      %1568 = vmatprep.subr.bf16.mxu0 0
      %1569 = vmatpush1.bf16.msra.mxu0 0
      %1570 = vmatprep.mubr.bf16.mxu0 0
      %1571 = vmatmul.mubr.bf16.gmra.mrb[0].mxu0 %v1524
      %v1572 = vpop.f32.mrb[0].mxu0
      %v1573 = vadd.f32 0.0, %v1572
      %v1574 = vpop.f32.mrb[0].mxu0
      %v1575 = vpop.f32.mrb[0].mxu0
      %v1576 = vadd.f32 0.0, %v1575
      %v1577 = vpop.f32.mrb[0].mxu0
      %1578 = vmatprep.mubr.bf16.mxu0 0
      %1579 = vmatmul.mubr.bf16.gmra.mrb[0].mxu0 %v1527
      %v1580 = vpop.f32.mrb[0].mxu0
      %v1581 = vadd.f32 0.0, %v1580
      %v1582 = vpop.f32.mrb[0].mxu0
      %v1583 = vpop.f32.mrb[0].mxu0
      %v1584 = vadd.f32 0.0, %v1583
      %v1585 = vpop.f32.mrb[0].mxu0
      %1586 = vmatprep.mubr.bf16.mxu0 0
      %1587 = vmatmul.mubr.bf16.gmra.mrb[0].mxu0 %v1530
      %v1588 = vpop.f32.mrb[0].mxu0
      %v1589 = vadd.f32 0.0, %v1588
      %v1590 = vpop.f32.mrb[0].mxu0
      %v1591 = vpop.f32.mrb[0].mxu0
      %v1592 = vadd.f32 0.0, %v1591
      %v1593 = vpop.f32.mrb[0].mxu0
      %1594 = vmatprep.mubr.bf16.mxu0 0
      %1595 = vmatmul.mubr.bf16.gmra.mrb[0].mxu0 %v1533
      %v1596 = vpop.f32.mrb[0].mxu0
      %v1597 = vadd.f32 0.0, %v1596
      %v1598 = vpop.f32.mrb[0].mxu0
      %v1599 = vpop.f32.mrb[0].mxu0
      %v1600 = vadd.f32 0.0, %v1599
      %v1601 = vpop.f32.mrb[0].mxu0
      %1602 = vdwg.mxu0
      %v1603 = vadd.f32 %v1469, %v1573
      %v1604 = vadd.f32 %v1470, %v1576
      %v1605 = vadd.f32 %v1471, %v1581
      %v1606 = vadd.f32 %v1472, %v1584
      %v1607 = vadd.f32 %v1473, %v1589
      %v1608 = vadd.f32 %v1474, %v1592
      %v1609 = vadd.f32 %v1475, %v1597
      %v1610 = vadd.f32 %v1476, %v1600
      %s1611 = scalar_lea.vmem %s1343, 2 [#allocation2]
      %v1612 = vld [vmem:[%s1611] ss:$2 sm:$0xff]
      %s1613 = scalar_lea.vmem %s1343, 50 [#allocation2]
      %v1614 = vld [vmem:[%s1613] ss:$2 sm:$0xff]
      %s1615 = scalar_lea.vmem %s1343, 98 [#allocation2]
      %v1616 = vld [vmem:[%s1615] ss:$2 sm:$0xff]
      %s1617 = scalar_lea.vmem %s1343, 146 [#allocation2]
      %v1618 = vld [vmem:[%s1617] ss:$2 sm:$0xff]
      %s1619 = scalar_lea.vmem %s1343, 194 [#allocation2]
      %v1620 = vld [vmem:[%s1619] ss:$2 sm:$0xff]
      %s1621 = scalar_lea.vmem %s1343, 242 [#allocation2]
      %v1622 = vld [vmem:[%s1621] ss:$2 sm:$0xff]
      %s1623 = scalar_lea.vmem %s1343, 290 [#allocation2]
      %v1624 = vld [vmem:[%s1623] ss:$2 sm:$0xff]
      %s1625 = scalar_lea.vmem %s1343, 338 [#allocation2]
      %v1626 = vld [vmem:[%s1625] ss:$2 sm:$0xff]
      %v1627 = vpack.c.bf16 %v1612, %v1612
      %v1628 = vpack.c.bf16 %v1614, %v1614
      %v1629 = vpack.c.bf16 %v1616, %v1616
      %v1630 = vpack.c.bf16 %v1618, %v1618
      %v1631 = vpack.c.bf16 %v1620, %v1620
      %v1632 = vpack.c.bf16 %v1622, %v1622
      %v1633 = vpack.c.bf16 %v1624, %v1624
      %v1634 = vpack.c.bf16 %v1626, %v1626
      %s1635 = scalar_lea.vmem %s3, 16
      %v1636 = vld [vmem:[%s1635] sm:$0x3]
      %v1645 = vunpack.c.l.b16 %v1627
      %v1646 = vunpack.c.l.b16 %v1628
      %v1647 = vunpack.c.l.b16 %v1629
      %v1648 = vunpack.c.l.b16 %v1630
      %v1649 = vunpack.c.l.b16 %v1631
      %v1650 = vunpack.c.l.b16 %v1632
      %v1651 = vunpack.c.l.b16 %v1633
      %v1652 = vunpack.c.l.b16 %v1634
      %v1653 = vpack.c.b16 %v1646, %v1645
      %v1654 = vpack.c.b16 %v1648, %v1647
      %v1655 = vpack.c.b16 %v1650, %v1649
      %v1656 = vpack.c.b16 %v1652, %v1651
      %v1658 = vsel %vm307, %v1653, 0
      %v1661 = vsel %vm307, %v1654, 0
      %v1664 = vsel %vm307, %v1655, 0
      %v1667 = vsel %vm307, %v1656, 0
      %v1670 = vsel %vm639, %v1636, 0
      %1672 = vmatprep.subr.bf16.mxu0 0
      %1673 = vmatpush1.bf16.msra.mxu0 %v1670
      %1674 = vmatprep.subr.bf16.mxu0 0
      %1675 = vmatpush1.bf16.msra.mxu0 0
      %1676 = vmatprep.subr.bf16.mxu0 0
      %1677 = vmatpush1.bf16.msra.mxu0 0
      %1678 = vmatprep.subr.bf16.mxu0 0
      %1679 = vmatpush1.bf16.msra.mxu0 0
      %1680 = vmatprep.subr.bf16.mxu0 0
      %1681 = vmatpush1.bf16.msra.mxu0 0
      %1682 = vmatprep.subr.bf16.mxu0 0
      %1683 = vmatpush1.bf16.msra.mxu0 0
      %1684 = vmatprep.subr.bf16.mxu0 0
      %1685 = vmatpush1.bf16.msra.mxu0 0
      %1686 = vmatprep.subr.bf16.mxu0 0
      %1687 = vmatpush1.bf16.msra.mxu0 0
      %1688 = vmatprep.subr.bf16.mxu0 0
      %1689 = vmatpush1.bf16.msra.mxu0 0
      %1690 = vmatprep.subr.bf16.mxu0 0
      %1691 = vmatpush1.bf16.msra.mxu0 0
      %1692 = vmatprep.subr.bf16.mxu0 0
      %1693 = vmatpush1.bf16.msra.mxu0 0
      %1694 = vmatprep.subr.bf16.mxu0 0
      %1695 = vmatpush1.bf16.msra.mxu0 0
      %1696 = vmatprep.subr.bf16.mxu0 0
      %1697 = vmatpush1.bf16.msra.mxu0 0
      %1698 = vmatprep.subr.bf16.mxu0 0
      %1699 = vmatpush1.bf16.msra.mxu0 0
      %1700 = vmatprep.subr.bf16.mxu0 0
      %1701 = vmatpush1.bf16.msra.mxu0 0
      %1702 = vmatprep.subr.bf16.mxu0 0
      %1703 = vmatpush1.bf16.msra.mxu0 0
      %1704 = vmatprep.mubr.bf16.mxu0 0
      %1705 = vmatmul.mubr.bf16.gmra.mrb[0].mxu0 %v1658
      %v1706 = vpop.f32.mrb[0].mxu0
      %v1707 = vadd.f32 0.0, %v1706
      %v1708 = vpop.f32.mrb[0].mxu0
      %v1709 = vpop.f32.mrb[0].mxu0
      %v1710 = vadd.f32 0.0, %v1709
      %v1711 = vpop.f32.mrb[0].mxu0
      %1712 = vmatprep.mubr.bf16.mxu0 0
      %1713 = vmatmul.mubr.bf16.gmra.mrb[0].mxu0 %v1661
      %v1714 = vpop.f32.mrb[0].mxu0
      %v1715 = vadd.f32 0.0, %v1714
      %v1716 = vpop.f32.mrb[0].mxu0
      %v1717 = vpop.f32.mrb[0].mxu0
      %v1718 = vadd.f32 0.0, %v1717
      %v1719 = vpop.f32.mrb[0].mxu0
      %1720 = vmatprep.mubr.bf16.mxu0 0
      %1721 = vmatmul.mubr.bf16.gmra.mrb[0].mxu0 %v1664
      %v1722 = vpop.f32.mrb[0].mxu0
      %v1723 = vadd.f32 0.0, %v1722
      %v1724 = vpop.f32.mrb[0].mxu0
      %v1725 = vpop.f32.mrb[0].mxu0
      %v1726 = vadd.f32 0.0, %v1725
      %v1727 = vpop.f32.mrb[0].mxu0
      %1728 = vmatprep.mubr.bf16.mxu0 0
      %1729 = vmatmul.mubr.bf16.gmra.mrb[0].mxu0 %v1667
      %v1730 = vpop.f32.mrb[0].mxu0
      %v1731 = vadd.f32 0.0, %v1730
      %v1732 = vpop.f32.mrb[0].mxu0
      %v1733 = vpop.f32.mrb[0].mxu0
      %v1734 = vadd.f32 0.0, %v1733
      %v1735 = vpop.f32.mrb[0].mxu0
      %1736 = vdwg.mxu0
      %v1737 = vadd.f32 %v1603, %v1707
      %v1738 = vadd.f32 %v1604, %v1710
      %v1739 = vadd.f32 %v1605, %v1715
      %v1740 = vadd.f32 %v1606, %v1718
      %v1741 = vadd.f32 %v1607, %v1723
      %v1742 = vadd.f32 %v1608, %v1726
      %v1743 = vadd.f32 %v1609, %v1731
      %v1744 = vadd.f32 %v1610, %v1734
      %v1745 = vld [vmem:[%s4] sm:$0x1]
      %v1747 = vlaneseq
      %v1748 = vshrl.u32 %v1747, 7
      %v1749 = vsub.s32 0, %v1748
      %v1750 = vrot.slane %v1745, %v1749
      %v1752 = vmul.f32 %v1737, %v1750
      %v1753 = vmul.f32 %v1738, %v1750
      %v1754 = vmul.f32 %v1739, %v1750
      %v1755 = vmul.f32 %v1740, %v1750
      %v1756 = vmul.f32 %v1741, %v1750
      %v1757 = vmul.f32 %v1742, %v1750
      %v1758 = vmul.f32 %v1743, %v1750
      %v1759 = vmul.f32 %v1744, %v1750
      %v1760 = vld [vmem:[%s5] sm:$0x1]
      %v1762 = vlaneseq
      %v1763 = vshrl.u32 %v1762, 7
      %v1764 = vsub.s32 0, %v1763
      %v1765 = vrot.slane %v1760, %v1764
      %v1767 = vadd.f32 %v1752, %v1765
      %v1768 = vadd.f32 %v1753, %v1765
      %v1769 = vadd.f32 %v1754, %v1765
      %v1770 = vadd.f32 %v1755, %v1765
      %v1771 = vadd.f32 %v1756, %v1765
      %v1772 = vadd.f32 %v1757, %v1765
      %v1773 = vadd.f32 %v1758, %v1765
      %v1774 = vadd.f32 %v1759, %v1765
      %v1775 = vmax.f32 %v1767, 0.0
      %v1776 = vmax.f32 %v1768, 0.0
      %v1777 = vmax.f32 %v1769, 0.0
      %v1778 = vmax.f32 %v1770, 0.0
      %v1779 = vmax.f32 %v1771, 0.0
      %v1780 = vmax.f32 %v1772, 0.0
      %v1781 = vmax.f32 %v1773, 0.0
      %v1782 = vmax.f32 %v1774, 0.0
      %v1783 = vpack.c.bf16 %v1775, %v1775
      %v1784 = vpack.c.bf16 %v1776, %v1776
      %v1785 = vpack.c.bf16 %v1777, %v1777
      %v1786 = vpack.c.bf16 %v1778, %v1778
      %v1787 = vpack.c.bf16 %v1779, %v1779
      %v1788 = vpack.c.bf16 %v1780, %v1780
      %v1789 = vpack.c.bf16 %v1781, %v1781
      %v1790 = vpack.c.bf16 %v1782, %v1782
      %v1799 = vunpack.c.l.b16 %v1783
      %v1800 = vunpack.c.l.b16 %v1784
      %v1801 = vunpack.c.l.b16 %v1785
      %v1802 = vunpack.c.l.b16 %v1786
      %v1803 = vunpack.c.l.b16 %v1787
      %v1804 = vunpack.c.l.b16 %v1788
      %v1805 = vunpack.c.l.b16 %v1789
      %v1806 = vunpack.c.l.b16 %v1790
      %v1807 = vpack.c.b16 %v1799, %v1799
      %v1808 = vpack.c.b16 %v1800, %v1800
      %v1809 = vpack.c.b16 %v1801, %v1801
      %v1810 = vpack.c.b16 %v1802, %v1802
      %v1811 = vpack.c.b16 %v1803, %v1803
      %v1812 = vpack.c.b16 %v1804, %v1804
      %v1813 = vpack.c.b16 %v1805, %v1805
      %v1814 = vpack.c.b16 %v1806, %v1806
      %v1815 = vrot.slane %v1807, 7
      %v1816 = vrot.slane %v1815, 4
      %v1817 = vrot.slane %v1808, 7
      %v1818 = vrot.slane %v1817, 4
      %v1819 = vrot.slane %v1809, 7
      %v1820 = vrot.slane %v1819, 4
      %v1821 = vrot.slane %v1810, 7
      %v1822 = vrot.slane %v1821, 4
      %v1823 = vrot.slane %v1811, 7
      %v1824 = vrot.slane %v1823, 4
      %v1825 = vrot.slane %v1812, 7
      %v1826 = vrot.slane %v1825, 4
      %v1827 = vrot.slane %v1813, 7
      %v1828 = vrot.slane %v1827, 4
      %v1829 = vrot.slane %v1814, 7
      %v1830 = vrot.slane %v1829, 4
      %s1847 = scalar_lea.vmem [#allocation3], 8
      %vm1848 = vcmask 60417
      %1849 = vst.msk [vmem:[%s1847] sm:$0xe] %vm1848, %v1815
      %1850 = vst.msk [vmem:[%s1847 + $0x4] sm:$0x1] %vm360, %v1816
      %1851 = vst.msk [vmem:[%s1847 + $0x8] sm:$0xe] %vm1848, %v1817
      %1852 = vst.msk [vmem:[%s1847 + $0xc] sm:$0x1] %vm360, %v1818
      %1853 = vst.msk [vmem:[%s1847 + $0x10] sm:$0xe] %vm1848, %v1819
      %1854 = vst.msk [vmem:[%s1847 + $0x14] sm:$0x1] %vm360, %v1820
      %1855 = vst.msk [vmem:[%s1847 + $0x18] sm:$0xe] %vm1848, %v1821
      %1856 = vst.msk [vmem:[%s1847 + $0x1c] sm:$0x1] %vm360, %v1822
      %1857 = vst.msk [vmem:[%s1847 + $0x20] sm:$0xe] %vm1848, %v1823
      %1858 = vst.msk [vmem:[%s1847 + $0x24] sm:$0x1] %vm360, %v1824
      %1859 = vst.msk [vmem:[%s1847 + $0x28] sm:$0xe] %vm1848, %v1825
      %1860 = vst.msk [vmem:[%s1847 + $0x2c] sm:$0x1] %vm360, %v1826
      %1861 = vst.msk [vmem:[%s1847 + $0x30] sm:$0xe] %vm1848, %v1827
      %1862 = vst.msk [vmem:[%s1847 + $0x34] sm:$0x1] %vm360, %v1828
      %1863 = vst.msk [vmem:[%s1847 + $0x38] sm:$0xe] %vm1848, %v1829
      %1864 = vst.msk [vmem:[%s1847 + $0x3c] sm:$0x1] %vm360, %v1830
      %v1865 = vld [vmem:[#allocation3] sm:$0xf]
      %v1866 = vld [vmem:[#allocation3 + $0x4] sm:$0x1]
      %v1867 = vld [vmem:[#allocation3 + $0x8] sm:$0xf]
      %v1868 = vld [vmem:[#allocation3 + $0xc] sm:$0x1]
      %v1869 = vld [vmem:[#allocation3 + $0x10] sm:$0xf]
      %v1870 = vld [vmem:[#allocation3 + $0x14] sm:$0x1]
      %v1871 = vld [vmem:[#allocation3 + $0x18] sm:$0xf]
      %v1872 = vld [vmem:[#allocation3 + $0x1c] sm:$0x1]
      %v1873 = vld [vmem:[#allocation3 + $0x20] sm:$0xf]
      %v1874 = vld [vmem:[#allocation3 + $0x24] sm:$0x1]
      %v1875 = vld [vmem:[#allocation3 + $0x28] sm:$0xf]
      %v1876 = vld [vmem:[#allocation3 + $0x2c] sm:$0x1]
      %v1877 = vld [vmem:[#allocation3 + $0x30] sm:$0xf]
      %v1878 = vld [vmem:[#allocation3 + $0x34] sm:$0x1]
      %v1879 = vld [vmem:[#allocation3 + $0x38] sm:$0xf]
      %v1880 = vld [vmem:[#allocation3 + $0x3c] sm:$0x1]
      %vm1881 = vsmask.f32 3328
      %vm1882 = vsmask.f32 7440
      %vm1883 = vmor %vm1881, %vm1882
      %v1885 = vshrl.u32 %v1865, 16
      %v1887 = vrot.slane %v1885, 4
      %v1888 = vshll.u32 %v1865, 16
      %v1890 = vrot.slane %v1888, 5
      %v1891 = vor.u32 %v1887, %v1890
      %v1892 = vrot.slane %v1891, 4
      %v1894 = vshll.u32 %v1866, 16
      %v1896 = vrot.slane %v1894, 5
      %v1897 = vsel %vm1883, %v1892, %v1896
      %v1899 = vshrl.u32 %v1867, 16
      %v1901 = vrot.slane %v1899, 4
      %v1902 = vshll.u32 %v1867, 16
      %v1904 = vrot.slane %v1902, 5
      %v1905 = vor.u32 %v1901, %v1904
      %v1906 = vrot.slane %v1905, 4
      %v1908 = vshll.u32 %v1868, 16
      %v1910 = vrot.slane %v1908, 5
      %v1911 = vsel %vm1883, %v1906, %v1910
      %v1913 = vshrl.u32 %v1869, 16
      %v1915 = vrot.slane %v1913, 4
      %v1916 = vshll.u32 %v1869, 16
      %v1918 = vrot.slane %v1916, 5
      %v1919 = vor.u32 %v1915, %v1918
      %v1920 = vrot.slane %v1919, 4
      %v1922 = vshll.u32 %v1870, 16
      %v1924 = vrot.slane %v1922, 5
      %v1925 = vsel %vm1883, %v1920, %v1924
      %v1927 = vshrl.u32 %v1871, 16
      %v1929 = vrot.slane %v1927, 4
      %v1930 = vshll.u32 %v1871, 16
      %v1932 = vrot.slane %v1930, 5
      %v1933 = vor.u32 %v1929, %v1932
      %v1934 = vrot.slane %v1933, 4
      %v1936 = vshll.u32 %v1872, 16
      %v1938 = vrot.slane %v1936, 5
      %v1939 = vsel %vm1883, %v1934, %v1938
      %v1941 = vshrl.u32 %v1873, 16
      %v1943 = vrot.slane %v1941, 4
      %v1944 = vshll.u32 %v1873, 16
      %v1946 = vrot.slane %v1944, 5
      %v1947 = vor.u32 %v1943, %v1946
      %v1948 = vrot.slane %v1947, 4
      %v1950 = vshll.u32 %v1874, 16
      %v1952 = vrot.slane %v1950, 5
      %v1953 = vsel %vm1883, %v1948, %v1952
      %v1955 = vshrl.u32 %v1875, 16
      %v1957 = vrot.slane %v1955, 4
      %v1958 = vshll.u32 %v1875, 16
      %v1960 = vrot.slane %v1958, 5
      %v1961 = vor.u32 %v1957, %v1960
      %v1962 = vrot.slane %v1961, 4
      %v1964 = vshll.u32 %v1876, 16
      %v1966 = vrot.slane %v1964, 5
      %v1967 = vsel %vm1883, %v1962, %v1966
      %v1969 = vshrl.u32 %v1877, 16
      %v1971 = vrot.slane %v1969, 4
      %v1972 = vshll.u32 %v1877, 16
      %v1974 = vrot.slane %v1972, 5
      %v1975 = vor.u32 %v1971, %v1974
      %v1976 = vrot.slane %v1975, 4
      %v1978 = vshll.u32 %v1878, 16
      %v1980 = vrot.slane %v1978, 5
      %v1981 = vsel %vm1883, %v1976, %v1980
      %v1983 = vshrl.u32 %v1879, 16
      %v1985 = vrot.slane %v1983, 4
      %v1986 = vshll.u32 %v1879, 16
      %v1988 = vrot.slane %v1986, 5
      %v1989 = vor.u32 %v1985, %v1988
      %v1990 = vrot.slane %v1989, 4
      %v1992 = vshll.u32 %v1880, 16
      %v1994 = vrot.slane %v1992, 5
      %v1995 = vsel %vm1883, %v1990, %v1994
      %v1996 = vld [vmem:[%s6] sm:$0xf]
      %v1997 = vld [vmem:[#allocation3] sm:$0xe]
      %v1998 = vld [vmem:[#allocation3 + $0x8] sm:$0xe]
      %v1999 = vld [vmem:[#allocation3 + $0x10] sm:$0xe]
      %v2000 = vld [vmem:[#allocation3 + $0x18] sm:$0xe]
      %v2001 = vld [vmem:[#allocation3 + $0x20] sm:$0xe]
      %v2002 = vld [vmem:[#allocation3 + $0x28] sm:$0xe]
      %v2003 = vld [vmem:[#allocation3 + $0x30] sm:$0xe]
      %v2004 = vld [vmem:[#allocation3 + $0x38] sm:$0xe]
      %vm2021 = vcmask 1042432
      %vm2022 = vcmask 1046532
      %vm2023 = vmor %vm2021, %vm2022
      %v2024 = vrot.slane %v1997, 5
      %v2025 = vrot.slane %v2024, 4
      %v2026 = vrot.slane %v1866, 5
      %v2027 = vsel %vm2023, %v2025, %v2026
      %v2028 = vrot.slane %v1998, 5
      %v2029 = vrot.slane %v2028, 4
      %v2030 = vrot.slane %v1868, 5
      %v2031 = vsel %vm2023, %v2029, %v2030
      %v2032 = vrot.slane %v1999, 5
      %v2033 = vrot.slane %v2032, 4
      %v2034 = vrot.slane %v1870, 5
      %v2035 = vsel %vm2023, %v2033, %v2034
      %v2036 = vrot.slane %v2000, 5
      %v2037 = vrot.slane %v2036, 4
      %v2038 = vrot.slane %v1872, 5
      %v2039 = vsel %vm2023, %v2037, %v2038
      %v2040 = vrot.slane %v2001, 5
      %v2041 = vrot.slane %v2040, 4
      %v2042 = vrot.slane %v1874, 5
      %v2043 = vsel %vm2023, %v2041, %v2042
      %v2044 = vrot.slane %v2002, 5
      %v2045 = vrot.slane %v2044, 4
      %v2046 = vrot.slane %v1876, 5
      %v2047 = vsel %vm2023, %v2045, %v2046
      %v2048 = vrot.slane %v2003, 5
      %v2049 = vrot.slane %v2048, 4
      %v2050 = vrot.slane %v1878, 5
      %v2051 = vsel %vm2023, %v2049, %v2050
      %v2052 = vrot.slane %v2004, 5
      %v2053 = vrot.slane %v2052, 4
      %v2054 = vrot.slane %v1880, 5
      %v2055 = vsel %vm2023, %v2053, %v2054
      %s2056 = scalar_lea.vmem %s6, 4
      %v2057 = vld [vmem:[%s2056] sm:$0xf]
      %v2058 = vunpack.c.l.b16 %v2027
      %v2059 = vunpack.c.l.b16 %v2031
      %v2060 = vunpack.c.l.b16 %v2035
      %v2061 = vunpack.c.l.b16 %v2039
      %v2062 = vunpack.c.l.b16 %v2043
      %v2063 = vunpack.c.l.b16 %v2047
      %v2064 = vunpack.c.l.b16 %v2051
      %v2065 = vunpack.c.l.b16 %v2055
      %v2066 = vpack.c.b16 %v2059, %v2058
      %v2067 = vpack.c.b16 %v2061, %v2060
      %v2068 = vpack.c.b16 %v2063, %v2062
      %v2069 = vpack.c.b16 %v2065, %v2064
      %vm2070 = vcmask 64512
      %v2072 = vsel %vm2070, %v2066, 0
      %v2075 = vsel %vm2070, %v2067, 0
      %v2078 = vsel %vm2070, %v2068, 0
      %v2081 = vsel %vm2070, %v2069, 0
      %vm2083 = vcmask 1043456
      %v2085 = vsel %vm2083, %v2057, 0
      %2087 = vmatprep.subr.bf16.mxu0 0
      %2088 = vmatpush1.bf16.msra.mxu0 %v2085
      %2089 = vmatprep.subr.bf16.mxu0 0
      %2090 = vmatpush1.bf16.msra.mxu0 0
      %2091 = vmatprep.subr.bf16.mxu0 0
      %2092 = vmatpush1.bf16.msra.mxu0 0
      %2093 = vmatprep.subr.bf16.mxu0 0
      %2094 = vmatpush1.bf16.msra.mxu0 0
      %2095 = vmatprep.subr.bf16.mxu0 0
      %2096 = vmatpush1.bf16.msra.mxu0 0
      %2097 = vmatprep.subr.bf16.mxu0 0
      %2098 = vmatpush1.bf16.msra.mxu0 0
      %2099 = vmatprep.subr.bf16.mxu0 0
      %2100 = vmatpush1.bf16.msra.mxu0 0
      %2101 = vmatprep.subr.bf16.mxu0 0
      %2102 = vmatpush1.bf16.msra.mxu0 0
      %2103 = vmatprep.subr.bf16.mxu0 0
      %2104 = vmatpush1.bf16.msra.mxu0 0
      %2105 = vmatprep.subr.bf16.mxu0 0
      %2106 = vmatpush1.bf16.msra.mxu0 0
      %2107 = vmatprep.subr.bf16.mxu0 0
      %2108 = vmatpush1.bf16.msra.mxu0 0
      %2109 = vmatprep.subr.bf16.mxu0 0
      %2110 = vmatpush1.bf16.msra.mxu0 0
      %2111 = vmatprep.subr.bf16.mxu0 0
      %2112 = vmatpush1.bf16.msra.mxu0 0
      %2113 = vmatprep.subr.bf16.mxu0 0
      %2114 = vmatpush1.bf16.msra.mxu0 0
      %2115 = vmatprep.subr.bf16.mxu0 0
      %2116 = vmatpush1.bf16.msra.mxu0 0
      %2117 = vmatprep.subr.bf16.mxu0 0
      %2118 = vmatpush1.bf16.msra.mxu0 0
      %2119 = vmatprep.mubr.bf16.mxu0 0
      %2120 = vmatmul.mubr.bf16.gmra.mrb[0].mxu0 %v2072
      %v2121 = vpop.f32.mrb[0].mxu0
      %v2122 = vadd.f32 0.0, %v2121
      %v2123 = vpop.f32.mrb[0].mxu0
      %v2124 = vpop.f32.mrb[0].mxu0
      %v2125 = vadd.f32 0.0, %v2124
      %v2126 = vpop.f32.mrb[0].mxu0
      %2127 = vmatprep.mubr.bf16.mxu0 0
      %2128 = vmatmul.mubr.bf16.gmra.mrb[0].mxu0 %v2075
      %v2129 = vpop.f32.mrb[0].mxu0
      %v2130 = vadd.f32 0.0, %v2129
      %v2131 = vpop.f32.mrb[0].mxu0
      %v2132 = vpop.f32.mrb[0].mxu0
      %v2133 = vadd.f32 0.0, %v2132
      %v2134 = vpop.f32.mrb[0].mxu0
      %2135 = vmatprep.mubr.bf16.mxu0 0
      %2136 = vmatmul.mubr.bf16.gmra.mrb[0].mxu0 %v2078
      %v2137 = vpop.f32.mrb[0].mxu0
      %v2138 = vadd.f32 0.0, %v2137
      %v2139 = vpop.f32.mrb[0].mxu0
      %v2140 = vpop.f32.mrb[0].mxu0
      %v2141 = vadd.f32 0.0, %v2140
      %v2142 = vpop.f32.mrb[0].mxu0
      %2143 = vmatprep.mubr.bf16.mxu0 0
      %2144 = vmatmul.mubr.bf16.gmra.mrb[0].mxu0 %v2081
      %v2145 = vpop.f32.mrb[0].mxu0
      %v2146 = vadd.f32 0.0, %v2145
      %v2147 = vpop.f32.mrb[0].mxu0
      %v2148 = vpop.f32.mrb[0].mxu0
      %v2149 = vadd.f32 0.0, %v2148
      %v2150 = vpop.f32.mrb[0].mxu0
      %2151 = vdwg.mxu0
      %v2152 = vunpack.c.l.b16 %v1897
      %v2153 = vunpack.c.l.b16 %v1911
      %v2154 = vunpack.c.l.b16 %v1925
      %v2155 = vunpack.c.l.b16 %v1939
      %v2156 = vunpack.c.l.b16 %v1953
      %v2157 = vunpack.c.l.b16 %v1967
      %v2158 = vunpack.c.l.b16 %v1981
      %v2159 = vunpack.c.l.b16 %v1995
      %v2160 = vpack.c.b16 %v2153, %v2152
      %v2161 = vpack.c.b16 %v2155, %v2154
      %v2162 = vpack.c.b16 %v2157, %v2156
      %v2163 = vpack.c.b16 %v2159, %v2158
      %v2165 = vsel %vm2070, %v2160, 0
      %v2168 = vsel %vm2070, %v2161, 0
      %v2171 = vsel %vm2070, %v2162, 0
      %v2174 = vsel %vm2070, %v2163, 0
      %v2177 = vsel %vm2083, %v1996, 0
      %2179 = vmatprep.subr.bf16.mxu0 0
      %2180 = vmatpush1.bf16.msra.mxu0 %v2177
      %2181 = vmatprep.subr.bf16.mxu0 0
      %2182 = vmatpush1.bf16.msra.mxu0 0
      %2183 = vmatprep.subr.bf16.mxu0 0
      %2184 = vmatpush1.bf16.msra.mxu0 0
      %2185 = vmatprep.subr.bf16.mxu0 0
      %2186 = vmatpush1.bf16.msra.mxu0 0
      %2187 = vmatprep.subr.bf16.mxu0 0
      %2188 = vmatpush1.bf16.msra.mxu0 0
      %2189 = vmatprep.subr.bf16.mxu0 0
      %2190 = vmatpush1.bf16.msra.mxu0 0
      %2191 = vmatprep.subr.bf16.mxu0 0
      %2192 = vmatpush1.bf16.msra.mxu0 0
      %2193 = vmatprep.subr.bf16.mxu0 0
      %2194 = vmatpush1.bf16.msra.mxu0 0
      %2195 = vmatprep.subr.bf16.mxu0 0
      %2196 = vmatpush1.bf16.msra.mxu0 0
      %2197 = vmatprep.subr.bf16.mxu0 0
      %2198 = vmatpush1.bf16.msra.mxu0 0
      %2199 = vmatprep.subr.bf16.mxu0 0
      %2200 = vmatpush1.bf16.msra.mxu0 0
      %2201 = vmatprep.subr.bf16.mxu0 0
      %2202 = vmatpush1.bf16.msra.mxu0 0
      %2203 = vmatprep.subr.bf16.mxu0 0
      %2204 = vmatpush1.bf16.msra.mxu0 0
      %2205 = vmatprep.subr.bf16.mxu0 0
      %2206 = vmatpush1.bf16.msra.mxu0 0
      %2207 = vmatprep.subr.bf16.mxu0 0
      %2208 = vmatpush1.bf16.msra.mxu0 0
      %2209 = vmatprep.subr.bf16.mxu0 0
      %2210 = vmatpush1.bf16.msra.mxu0 0
      %2211 = vmatprep.mubr.bf16.mxu0 0
      %2212 = vmatmul.mubr.bf16.gmra.mrb[0].mxu0 %v2165
      %v2213 = vpop.f32.mrb[0].mxu0
      %v2214 = vadd.f32 %v2122, %v2213
      %v2215 = vpop.f32.mrb[0].mxu0
      %v2216 = vpop.f32.mrb[0].mxu0
      %v2217 = vadd.f32 %v2125, %v2216
      %v2218 = vpop.f32.mrb[0].mxu0
      %2219 = vmatprep.mubr.bf16.mxu0 0
      %2220 = vmatmul.mubr.bf16.gmra.mrb[0].mxu0 %v2168
      %v2221 = vpop.f32.mrb[0].mxu0
      %v2222 = vadd.f32 %v2130, %v2221
      %v2223 = vpop.f32.mrb[0].mxu0
      %v2224 = vpop.f32.mrb[0].mxu0
      %v2225 = vadd.f32 %v2133, %v2224
      %v2226 = vpop.f32.mrb[0].mxu0
      %2227 = vmatprep.mubr.bf16.mxu0 0
      %2228 = vmatmul.mubr.bf16.gmra.mrb[0].mxu0 %v2171
      %v2229 = vpop.f32.mrb[0].mxu0
      %v2230 = vadd.f32 %v2138, %v2229
      %v2231 = vpop.f32.mrb[0].mxu0
      %v2232 = vpop.f32.mrb[0].mxu0
      %v2233 = vadd.f32 %v2141, %v2232
      %v2234 = vpop.f32.mrb[0].mxu0
      %2235 = vmatprep.mubr.bf16.mxu0 0
      %2236 = vmatmul.mubr.bf16.gmra.mrb[0].mxu0 %v2174
      %v2237 = vpop.f32.mrb[0].mxu0
      %v2238 = vadd.f32 %v2146, %v2237
      %v2239 = vpop.f32.mrb[0].mxu0
      %v2240 = vpop.f32.mrb[0].mxu0
      %v2241 = vadd.f32 %v2149, %v2240
      %v2242 = vpop.f32.mrb[0].mxu0
      %2243 = vdwg.mxu0
      %v2244 = vld [vmem:[#allocation3 + $0x4] sm:$0x3]
      %v2245 = vld [vmem:[#allocation3 + $0xc] sm:$0x3]
      %v2246 = vld [vmem:[#allocation3 + $0x14] sm:$0x3]
      %v2247 = vld [vmem:[#allocation3 + $0x1c] sm:$0x3]
      %v2248 = vld [vmem:[#allocation3 + $0x24] sm:$0x3]
      %v2249 = vld [vmem:[#allocation3 + $0x2c] sm:$0x3]
      %v2250 = vld [vmem:[#allocation3 + $0x34] sm:$0x3]
      %v2251 = vld [vmem:[#allocation3 + $0x3c] sm:$0x3]
      %vm2252 = vsmask.f32 2304
      %vm2253 = vsmask.f32 6416
      %vm2254 = vmor %vm2252, %vm2253
      %v2256 = vshrl.u32 %v1997, 16
      %v2258 = vrot.slane %v2256, 5
      %v2259 = vshll.u32 %v1997, 16
      %v2261 = vrot.slane %v2259, 6
      %v2262 = vor.u32 %v2258, %v2261
      %v2263 = vrot.slane %v2262, 4
      %v2265 = vshrl.u32 %v2244, 16
      %v2267 = vrot.slane %v2265, 5
      %v2268 = vshll.u32 %v2244, 16
      %v2270 = vrot.slane %v2268, 6
      %v2271 = vor.u32 %v2267, %v2270
      %v2272 = vsel %vm2254, %v2263, %v2271
      %v2274 = vshrl.u32 %v1998, 16
      %v2276 = vrot.slane %v2274, 5
      %v2277 = vshll.u32 %v1998, 16
      %v2279 = vrot.slane %v2277, 6
      %v2280 = vor.u32 %v2276, %v2279
      %v2281 = vrot.slane %v2280, 4
      %v2283 = vshrl.u32 %v2245, 16
      %v2285 = vrot.slane %v2283, 5
      %v2286 = vshll.u32 %v2245, 16
      %v2288 = vrot.slane %v2286, 6
      %v2289 = vor.u32 %v2285, %v2288
      %v2290 = vsel %vm2254, %v2281, %v2289
      %v2292 = vshrl.u32 %v1999, 16
      %v2294 = vrot.slane %v2292, 5
      %v2295 = vshll.u32 %v1999, 16
      %v2297 = vrot.slane %v2295, 6
      %v2298 = vor.u32 %v2294, %v2297
      %v2299 = vrot.slane %v2298, 4
      %v2301 = vshrl.u32 %v2246, 16
      %v2303 = vrot.slane %v2301, 5
      %v2304 = vshll.u32 %v2246, 16
      %v2306 = vrot.slane %v2304, 6
      %v2307 = vor.u32 %v2303, %v2306
      %v2308 = vsel %vm2254, %v2299, %v2307
      %v2310 = vshrl.u32 %v2000, 16
      %v2312 = vrot.slane %v2310, 5
      %v2313 = vshll.u32 %v2000, 16
      %v2315 = vrot.slane %v2313, 6
      %v2316 = vor.u32 %v2312, %v2315
      %v2317 = vrot.slane %v2316, 4
      %v2319 = vshrl.u32 %v2247, 16
      %v2321 = vrot.slane %v2319, 5
      %v2322 = vshll.u32 %v2247, 16
      %v2324 = vrot.slane %v2322, 6
      %v2325 = vor.u32 %v2321, %v2324
      %v2326 = vsel %vm2254, %v2317, %v2325
      %v2328 = vshrl.u32 %v2001, 16
      %v2330 = vrot.slane %v2328, 5
      %v2331 = vshll.u32 %v2001, 16
      %v2333 = vrot.slane %v2331, 6
      %v2334 = vor.u32 %v2330, %v2333
      %v2335 = vrot.slane %v2334, 4
      %v2337 = vshrl.u32 %v2248, 16
      %v2339 = vrot.slane %v2337, 5
      %v2340 = vshll.u32 %v2248, 16
      %v2342 = vrot.slane %v2340, 6
      %v2343 = vor.u32 %v2339, %v2342
      %v2344 = vsel %vm2254, %v2335, %v2343
      %v2346 = vshrl.u32 %v2002, 16
      %v2348 = vrot.slane %v2346, 5
      %v2349 = vshll.u32 %v2002, 16
      %v2351 = vrot.slane %v2349, 6
      %v2352 = vor.u32 %v2348, %v2351
      %v2353 = vrot.slane %v2352, 4
      %v2355 = vshrl.u32 %v2249, 16
      %v2357 = vrot.slane %v2355, 5
      %v2358 = vshll.u32 %v2249, 16
      %v2360 = vrot.slane %v2358, 6
      %v2361 = vor.u32 %v2357, %v2360
      %v2362 = vsel %vm2254, %v2353, %v2361
      %v2364 = vshrl.u32 %v2003, 16
      %v2366 = vrot.slane %v2364, 5
      %v2367 = vshll.u32 %v2003, 16
      %v2369 = vrot.slane %v2367, 6
      %v2370 = vor.u32 %v2366, %v2369
      %v2371 = vrot.slane %v2370, 4
      %v2373 = vshrl.u32 %v2250, 16
      %v2375 = vrot.slane %v2373, 5
      %v2376 = vshll.u32 %v2250, 16
      %v2378 = vrot.slane %v2376, 6
      %v2379 = vor.u32 %v2375, %v2378
      %v2380 = vsel %vm2254, %v2371, %v2379
      %v2382 = vshrl.u32 %v2004, 16
      %v2384 = vrot.slane %v2382, 5
      %v2385 = vshll.u32 %v2004, 16
      %v2387 = vrot.slane %v2385, 6
      %v2388 = vor.u32 %v2384, %v2387
      %v2389 = vrot.slane %v2388, 4
      %v2391 = vshrl.u32 %v2251, 16
      %v2393 = vrot.slane %v2391, 5
      %v2394 = vshll.u32 %v2251, 16
      %v2396 = vrot.slane %v2394, 6
      %v2397 = vor.u32 %v2393, %v2396
      %v2398 = vsel %vm2254, %v2389, %v2397
      %s2399 = scalar_lea.vmem %s6, 8
      %v2400 = vld [vmem:[%s2399] sm:$0xf]
      %v2401 = vunpack.c.l.b16 %v2272
      %v2402 = vunpack.c.l.b16 %v2290
      %v2403 = vunpack.c.l.b16 %v2308
      %v2404 = vunpack.c.l.b16 %v2326
      %v2405 = vunpack.c.l.b16 %v2344
      %v2406 = vunpack.c.l.b16 %v2362
      %v2407 = vunpack.c.l.b16 %v2380
      %v2408 = vunpack.c.l.b16 %v2398
      %v2409 = vpack.c.b16 %v2402, %v2401
      %v2410 = vpack.c.b16 %v2404, %v2403
      %v2411 = vpack.c.b16 %v2406, %v2405
      %v2412 = vpack.c.b16 %v2408, %v2407
      %v2414 = vsel %vm2070, %v2409, 0
      %v2417 = vsel %vm2070, %v2410, 0
      %v2420 = vsel %vm2070, %v2411, 0
      %v2423 = vsel %vm2070, %v2412, 0
      %v2426 = vsel %vm2083, %v2400, 0
      %2428 = vmatprep.subr.bf16.mxu0 0
      %2429 = vmatpush1.bf16.msra.mxu0 %v2426
      %2430 = vmatprep.subr.bf16.mxu0 0
      %2431 = vmatpush1.bf16.msra.mxu0 0
      %2432 = vmatprep.subr.bf16.mxu0 0
      %2433 = vmatpush1.bf16.msra.mxu0 0
      %2434 = vmatprep.subr.bf16.mxu0 0
      %2435 = vmatpush1.bf16.msra.mxu0 0
      %2436 = vmatprep.subr.bf16.mxu0 0
      %2437 = vmatpush1.bf16.msra.mxu0 0
      %2438 = vmatprep.subr.bf16.mxu0 0
      %2439 = vmatpush1.bf16.msra.mxu0 0
      %2440 = vmatprep.subr.bf16.mxu0 0
      %2441 = vmatpush1.bf16.msra.mxu0 0
      %2442 = vmatprep.subr.bf16.mxu0 0
      %2443 = vmatpush1.bf16.msra.mxu0 0
      %2444 = vmatprep.subr.bf16.mxu0 0
      %2445 = vmatpush1.bf16.msra.mxu0 0
      %2446 = vmatprep.subr.bf16.mxu0 0
      %2447 = vmatpush1.bf16.msra.mxu0 0
      %2448 = vmatprep.subr.bf16.mxu0 0
      %2449 = vmatpush1.bf16.msra.mxu0 0
      %2450 = vmatprep.subr.bf16.mxu0 0
      %2451 = vmatpush1.bf16.msra.mxu0 0
      %2452 = vmatprep.subr.bf16.mxu0 0
      %2453 = vmatpush1.bf16.msra.mxu0 0
      %2454 = vmatprep.subr.bf16.mxu0 0
      %2455 = vmatpush1.bf16.msra.mxu0 0
      %2456 = vmatprep.subr.bf16.mxu0 0
      %2457 = vmatpush1.bf16.msra.mxu0 0
      %2458 = vmatprep.subr.bf16.mxu0 0
      %2459 = vmatpush1.bf16.msra.mxu0 0
      %2460 = vmatprep.mubr.bf16.mxu0 0
      %2461 = vmatmul.mubr.bf16.gmra.mrb[0].mxu0 %v2414
      %v2462 = vpop.f32.mrb[0].mxu0
      %v2463 = vadd.f32 0.0, %v2462
      %v2464 = vpop.f32.mrb[0].mxu0
      %v2465 = vpop.f32.mrb[0].mxu0
      %v2466 = vadd.f32 0.0, %v2465
      %v2467 = vpop.f32.mrb[0].mxu0
      %2468 = vmatprep.mubr.bf16.mxu0 0
      %2469 = vmatmul.mubr.bf16.gmra.mrb[0].mxu0 %v2417
      %v2470 = vpop.f32.mrb[0].mxu0
      %v2471 = vadd.f32 0.0, %v2470
      %v2472 = vpop.f32.mrb[0].mxu0
      %v2473 = vpop.f32.mrb[0].mxu0
      %v2474 = vadd.f32 0.0, %v2473
      %v2475 = vpop.f32.mrb[0].mxu0
      %2476 = vmatprep.mubr.bf16.mxu0 0
      %2477 = vmatmul.mubr.bf16.gmra.mrb[0].mxu0 %v2420
      %v2478 = vpop.f32.mrb[0].mxu0
      %v2479 = vadd.f32 0.0, %v2478
      %v2480 = vpop.f32.mrb[0].mxu0
      %v2481 = vpop.f32.mrb[0].mxu0
      %v2482 = vadd.f32 0.0, %v2481
      %v2483 = vpop.f32.mrb[0].mxu0
      %2484 = vmatprep.mubr.bf16.mxu0 0
      %2485 = vmatmul.mubr.bf16.gmra.mrb[0].mxu0 %v2423
      %v2486 = vpop.f32.mrb[0].mxu0
      %v2487 = vadd.f32 0.0, %v2486
      %v2488 = vpop.f32.mrb[0].mxu0
      %v2489 = vpop.f32.mrb[0].mxu0
      %v2490 = vadd.f32 0.0, %v2489
      %v2491 = vpop.f32.mrb[0].mxu0
      %2492 = vdwg.mxu0
      %v2493 = vadd.f32 %v2214, %v2463
      %v2494 = vadd.f32 %v2217, %v2466
      %v2495 = vadd.f32 %v2222, %v2471
      %v2496 = vadd.f32 %v2225, %v2474
      %v2497 = vadd.f32 %v2230, %v2479
      %v2498 = vadd.f32 %v2233, %v2482
      %v2499 = vadd.f32 %v2238, %v2487
      %v2500 = vadd.f32 %v2241, %v2490
      %v2501 = vld [vmem:[%s1847] sm:$0xf]
      %v2502 = vld [vmem:[%s1847 + $0x4] sm:$0x1]
      %v2503 = vld [vmem:[%s1847 + $0x8] sm:$0xf]
      %v2504 = vld [vmem:[%s1847 + $0xc] sm:$0x1]
      %v2505 = vld [vmem:[%s1847 + $0x10] sm:$0xf]
      %v2506 = vld [vmem:[%s1847 + $0x14] sm:$0x1]
      %v2507 = vld [vmem:[%s1847 + $0x18] sm:$0xf]
      %v2508 = vld [vmem:[%s1847 + $0x1c] sm:$0x1]
      %v2509 = vld [vmem:[%s1847 + $0x20] sm:$0xf]
      %v2510 = vld [vmem:[%s1847 + $0x24] sm:$0x1]
      %v2511 = vld [vmem:[%s1847 + $0x28] sm:$0xf]
      %v2512 = vld [vmem:[%s1847 + $0x2c] sm:$0x1]
      %v2513 = vld [vmem:[%s1847 + $0x30] sm:$0xf]
      %v2514 = vld [vmem:[%s1847 + $0x34] sm:$0x1]
      %v2515 = vld [vmem:[%s1847 + $0x38] sm:$0xf]
      %v2516 = vld [vmem:[%s1847 + $0x3c] sm:$0x1]
      %v2518 = vshrl.u32 %v2501, 16
      %v2520 = vrot.slane %v2518, 4
      %v2521 = vshll.u32 %v2501, 16
      %v2523 = vrot.slane %v2521, 5
      %v2524 = vor.u32 %v2520, %v2523
      %v2525 = vrot.slane %v2524, 4
      %v2527 = vshll.u32 %v2502, 16
      %v2529 = vrot.slane %v2527, 5
      %v2530 = vsel %vm1883, %v2525, %v2529
      %v2532 = vshrl.u32 %v2503, 16
      %v2534 = vrot.slane %v2532, 4
      %v2535 = vshll.u32 %v2503, 16
      %v2537 = vrot.slane %v2535, 5
      %v2538 = vor.u32 %v2534, %v2537
      %v2539 = vrot.slane %v2538, 4
      %v2541 = vshll.u32 %v2504, 16
      %v2543 = vrot.slane %v2541, 5
      %v2544 = vsel %vm1883, %v2539, %v2543
      %v2546 = vshrl.u32 %v2505, 16
      %v2548 = vrot.slane %v2546, 4
      %v2549 = vshll.u32 %v2505, 16
      %v2551 = vrot.slane %v2549, 5
      %v2552 = vor.u32 %v2548, %v2551
      %v2553 = vrot.slane %v2552, 4
      %v2555 = vshll.u32 %v2506, 16
      %v2557 = vrot.slane %v2555, 5
      %v2558 = vsel %vm1883, %v2553, %v2557
      %v2560 = vshrl.u32 %v2507, 16
      %v2562 = vrot.slane %v2560, 4
      %v2563 = vshll.u32 %v2507, 16
      %v2565 = vrot.slane %v2563, 5
      %v2566 = vor.u32 %v2562, %v2565
      %v2567 = vrot.slane %v2566, 4
      %v2569 = vshll.u32 %v2508, 16
      %v2571 = vrot.slane %v2569, 5
      %v2572 = vsel %vm1883, %v2567, %v2571
      %v2574 = vshrl.u32 %v2509, 16
      %v2576 = vrot.slane %v2574, 4
      %v2577 = vshll.u32 %v2509, 16
      %v2579 = vrot.slane %v2577, 5
      %v2580 = vor.u32 %v2576, %v2579
      %v2581 = vrot.slane %v2580, 4
      %v2583 = vshll.u32 %v2510, 16
      %v2585 = vrot.slane %v2583, 5
      %v2586 = vsel %vm1883, %v2581, %v2585
      %v2588 = vshrl.u32 %v2511, 16
      %v2590 = vrot.slane %v2588, 4
      %v2591 = vshll.u32 %v2511, 16
      %v2593 = vrot.slane %v2591, 5
      %v2594 = vor.u32 %v2590, %v2593
      %v2595 = vrot.slane %v2594, 4
      %v2597 = vshll.u32 %v2512, 16
      %v2599 = vrot.slane %v2597, 5
      %v2600 = vsel %vm1883, %v2595, %v2599
      %v2602 = vshrl.u32 %v2513, 16
      %v2604 = vrot.slane %v2602, 4
      %v2605 = vshll.u32 %v2513, 16
      %v2607 = vrot.slane %v2605, 5
      %v2608 = vor.u32 %v2604, %v2607
      %v2609 = vrot.slane %v2608, 4
      %v2611 = vshll.u32 %v2514, 16
      %v2613 = vrot.slane %v2611, 5
      %v2614 = vsel %vm1883, %v2609, %v2613
      %v2616 = vshrl.u32 %v2515, 16
      %v2618 = vrot.slane %v2616, 4
      %v2619 = vshll.u32 %v2515, 16
      %v2621 = vrot.slane %v2619, 5
      %v2622 = vor.u32 %v2618, %v2621
      %v2623 = vrot.slane %v2622, 4
      %v2625 = vshll.u32 %v2516, 16
      %v2627 = vrot.slane %v2625, 5
      %v2628 = vsel %vm1883, %v2623, %v2627
      %s2629 = scalar_lea.vmem %s6, 12
      %v2630 = vld [vmem:[%s2629] sm:$0xf]
      %v2631 = vunpack.c.l.b16 %v2530
      %v2632 = vunpack.c.l.b16 %v2544
      %v2633 = vunpack.c.l.b16 %v2558
      %v2634 = vunpack.c.l.b16 %v2572
      %v2635 = vunpack.c.l.b16 %v2586
      %v2636 = vunpack.c.l.b16 %v2600
      %v2637 = vunpack.c.l.b16 %v2614
      %v2638 = vunpack.c.l.b16 %v2628
      %v2639 = vpack.c.b16 %v2632, %v2631
      %v2640 = vpack.c.b16 %v2634, %v2633
      %v2641 = vpack.c.b16 %v2636, %v2635
      %v2642 = vpack.c.b16 %v2638, %v2637
      %v2644 = vsel %vm2070, %v2639, 0
      %v2647 = vsel %vm2070, %v2640, 0
      %v2650 = vsel %vm2070, %v2641, 0
      %v2653 = vsel %vm2070, %v2642, 0
      %v2656 = vsel %vm2083, %v2630, 0
      %2658 = vmatprep.subr.bf16.mxu0 0
      %2659 = vmatpush1.bf16.msra.mxu0 %v2656
      %2660 = vmatprep.subr.bf16.mxu0 0
      %2661 = vmatpush1.bf16.msra.mxu0 0
      %2662 = vmatprep.subr.bf16.mxu0 0
      %2663 = vmatpush1.bf16.msra.mxu0 0
      %2664 = vmatprep.subr.bf16.mxu0 0
      %2665 = vmatpush1.bf16.msra.mxu0 0
      %2666 = vmatprep.subr.bf16.mxu0 0
      %2667 = vmatpush1.bf16.msra.mxu0 0
      %2668 = vmatprep.subr.bf16.mxu0 0
      %2669 = vmatpush1.bf16.msra.mxu0 0
      %2670 = vmatprep.subr.bf16.mxu0 0
      %2671 = vmatpush1.bf16.msra.mxu0 0
      %2672 = vmatprep.subr.bf16.mxu0 0
      %2673 = vmatpush1.bf16.msra.mxu0 0
      %2674 = vmatprep.subr.bf16.mxu0 0
      %2675 = vmatpush1.bf16.msra.mxu0 0
      %2676 = vmatprep.subr.bf16.mxu0 0
      %2677 = vmatpush1.bf16.msra.mxu0 0
      %2678 = vmatprep.subr.bf16.mxu0 0
      %2679 = vmatpush1.bf16.msra.mxu0 0
      %2680 = vmatprep.subr.bf16.mxu0 0
      %2681 = vmatpush1.bf16.msra.mxu0 0
      %2682 = vmatprep.subr.bf16.mxu0 0
      %2683 = vmatpush1.bf16.msra.mxu0 0
      %2684 = vmatprep.subr.bf16.mxu0 0
      %2685 = vmatpush1.bf16.msra.mxu0 0
      %2686 = vmatprep.subr.bf16.mxu0 0
      %2687 = vmatpush1.bf16.msra.mxu0 0
      %2688 = vmatprep.subr.bf16.mxu0 0
      %2689 = vmatpush1.bf16.msra.mxu0 0
      %2690 = vmatprep.mubr.bf16.mxu0 0
      %2691 = vmatmul.mubr.bf16.gmra.mrb[0].mxu0 %v2644
      %v2692 = vpop.f32.mrb[0].mxu0
      %v2693 = vadd.f32 0.0, %v2692
      %v2694 = vpop.f32.mrb[0].mxu0
      %v2695 = vpop.f32.mrb[0].mxu0
      %v2696 = vadd.f32 0.0, %v2695
      %v2697 = vpop.f32.mrb[0].mxu0
      %2698 = vmatprep.mubr.bf16.mxu0 0
      %2699 = vmatmul.mubr.bf16.gmra.mrb[0].mxu0 %v2647
      %v2700 = vpop.f32.mrb[0].mxu0
      %v2701 = vadd.f32 0.0, %v2700
      %v2702 = vpop.f32.mrb[0].mxu0
      %v2703 = vpop.f32.mrb[0].mxu0
      %v2704 = vadd.f32 0.0, %v2703
      %v2705 = vpop.f32.mrb[0].mxu0
      %2706 = vmatprep.mubr.bf16.mxu0 0
      %2707 = vmatmul.mubr.bf16.gmra.mrb[0].mxu0 %v2650
      %v2708 = vpop.f32.mrb[0].mxu0
      %v2709 = vadd.f32 0.0, %v2708
      %v2710 = vpop.f32.mrb[0].mxu0
      %v2711 = vpop.f32.mrb[0].mxu0
      %v2712 = vadd.f32 0.0, %v2711
      %v2713 = vpop.f32.mrb[0].mxu0
      %2714 = vmatprep.mubr.bf16.mxu0 0
      %2715 = vmatmul.mubr.bf16.gmra.mrb[0].mxu0 %v2653
      %v2716 = vpop.f32.mrb[0].mxu0
      %v2717 = vadd.f32 0.0, %v2716
      %v2718 = vpop.f32.mrb[0].mxu0
      %v2719 = vpop.f32.mrb[0].mxu0
      %v2720 = vadd.f32 0.0, %v2719
      %v2721 = vpop.f32.mrb[0].mxu0
      %2722 = vdwg.mxu0
      %v2723 = vadd.f32 %v2493, %v2693
      %v2724 = vadd.f32 %v2494, %v2696
      %v2725 = vadd.f32 %v2495, %v2701
      %v2726 = vadd.f32 %v2496, %v2704
      %v2727 = vadd.f32 %v2497, %v2709
      %v2728 = vadd.f32 %v2498, %v2712
      %v2729 = vadd.f32 %v2499, %v2717
      %v2730 = vadd.f32 %v2500, %v2720
      %v2731 = vld [vmem:[%s1847] sm:$0xe]
      %v2732 = vld [vmem:[%s1847 + $0x8] sm:$0xe]
      %v2733 = vld [vmem:[%s1847 + $0x10] sm:$0xe]
      %v2734 = vld [vmem:[%s1847 + $0x18] sm:$0xe]
      %v2735 = vld [vmem:[%s1847 + $0x20] sm:$0xe]
      %v2736 = vld [vmem:[%s1847 + $0x28] sm:$0xe]
      %v2737 = vld [vmem:[%s1847 + $0x30] sm:$0xe]
      %v2738 = vld [vmem:[%s1847 + $0x38] sm:$0xe]
      %v2755 = vrot.slane %v2731, 5
      %v2756 = vrot.slane %v2755, 4
      %v2757 = vrot.slane %v2502, 5
      %v2758 = vsel %vm2023, %v2756, %v2757
      %v2759 = vrot.slane %v2732, 5
      %v2760 = vrot.slane %v2759, 4
      %v2761 = vrot.slane %v2504, 5
      %v2762 = vsel %vm2023, %v2760, %v2761
      %v2763 = vrot.slane %v2733, 5
      %v2764 = vrot.slane %v2763, 4
      %v2765 = vrot.slane %v2506, 5
      %v2766 = vsel %vm2023, %v2764, %v2765
      %v2767 = vrot.slane %v2734, 5
      %v2768 = vrot.slane %v2767, 4
      %v2769 = vrot.slane %v2508, 5
      %v2770 = vsel %vm2023, %v2768, %v2769
      %v2771 = vrot.slane %v2735, 5
      %v2772 = vrot.slane %v2771, 4
      %v2773 = vrot.slane %v2510, 5
      %v2774 = vsel %vm2023, %v2772, %v2773
      %v2775 = vrot.slane %v2736, 5
      %v2776 = vrot.slane %v2775, 4
      %v2777 = vrot.slane %v2512, 5
      %v2778 = vsel %vm2023, %v2776, %v2777
      %v2779 = vrot.slane %v2737, 5
      %v2780 = vrot.slane %v2779, 4
      %v2781 = vrot.slane %v2514, 5
      %v2782 = vsel %vm2023, %v2780, %v2781
      %v2783 = vrot.slane %v2738, 5
      %v2784 = vrot.slane %v2783, 4
      %v2785 = vrot.slane %v2516, 5
      %v2786 = vsel %vm2023, %v2784, %v2785
      %s2787 = scalar_lea.vmem %s6, 16
      %v2788 = vld [vmem:[%s2787] sm:$0xf]
      %v2789 = vunpack.c.l.b16 %v2758
      %v2790 = vunpack.c.l.b16 %v2762
      %v2791 = vunpack.c.l.b16 %v2766
      %v2792 = vunpack.c.l.b16 %v2770
      %v2793 = vunpack.c.l.b16 %v2774
      %v2794 = vunpack.c.l.b16 %v2778
      %v2795 = vunpack.c.l.b16 %v2782
      %v2796 = vunpack.c.l.b16 %v2786
      %v2797 = vpack.c.b16 %v2790, %v2789
      %v2798 = vpack.c.b16 %v2792, %v2791
      %v2799 = vpack.c.b16 %v2794, %v2793
      %v2800 = vpack.c.b16 %v2796, %v2795
      %v2802 = vsel %vm2070, %v2797, 0
      %v2805 = vsel %vm2070, %v2798, 0
      %v2808 = vsel %vm2070, %v2799, 0
      %v2811 = vsel %vm2070, %v2800, 0
      %v2814 = vsel %vm2083, %v2788, 0
      %2816 = vmatprep.subr.bf16.mxu0 0
      %2817 = vmatpush1.bf16.msra.mxu0 %v2814
      %2818 = vmatprep.subr.bf16.mxu0 0
      %2819 = vmatpush1.bf16.msra.mxu0 0
      %2820 = vmatprep.subr.bf16.mxu0 0
      %2821 = vmatpush1.bf16.msra.mxu0 0
      %2822 = vmatprep.subr.bf16.mxu0 0
      %2823 = vmatpush1.bf16.msra.mxu0 0
      %2824 = vmatprep.subr.bf16.mxu0 0
      %2825 = vmatpush1.bf16.msra.mxu0 0
      %2826 = vmatprep.subr.bf16.mxu0 0
      %2827 = vmatpush1.bf16.msra.mxu0 0
      %2828 = vmatprep.subr.bf16.mxu0 0
      %2829 = vmatpush1.bf16.msra.mxu0 0
      %2830 = vmatprep.subr.bf16.mxu0 0
      %2831 = vmatpush1.bf16.msra.mxu0 0
      %2832 = vmatprep.subr.bf16.mxu0 0
      %2833 = vmatpush1.bf16.msra.mxu0 0
      %2834 = vmatprep.subr.bf16.mxu0 0
      %2835 = vmatpush1.bf16.msra.mxu0 0
      %2836 = vmatprep.subr.bf16.mxu0 0
      %2837 = vmatpush1.bf16.msra.mxu0 0
      %2838 = vmatprep.subr.bf16.mxu0 0
      %2839 = vmatpush1.bf16.msra.mxu0 0
      %2840 = vmatprep.subr.bf16.mxu0 0
      %2841 = vmatpush1.bf16.msra.mxu0 0
      %2842 = vmatprep.subr.bf16.mxu0 0
      %2843 = vmatpush1.bf16.msra.mxu0 0
      %2844 = vmatprep.subr.bf16.mxu0 0
      %2845 = vmatpush1.bf16.msra.mxu0 0
      %2846 = vmatprep.subr.bf16.mxu0 0
      %2847 = vmatpush1.bf16.msra.mxu0 0
      %2848 = vmatprep.mubr.bf16.mxu0 0
      %2849 = vmatmul.mubr.bf16.gmra.mrb[0].mxu0 %v2802
      %v2850 = vpop.f32.mrb[0].mxu0
      %v2851 = vadd.f32 0.0, %v2850
      %v2852 = vpop.f32.mrb[0].mxu0
      %v2853 = vpop.f32.mrb[0].mxu0
      %v2854 = vadd.f32 0.0, %v2853
      %v2855 = vpop.f32.mrb[0].mxu0
      %2856 = vmatprep.mubr.bf16.mxu0 0
      %2857 = vmatmul.mubr.bf16.gmra.mrb[0].mxu0 %v2805
      %v2858 = vpop.f32.mrb[0].mxu0
      %v2859 = vadd.f32 0.0, %v2858
      %v2860 = vpop.f32.mrb[0].mxu0
      %v2861 = vpop.f32.mrb[0].mxu0
      %v2862 = vadd.f32 0.0, %v2861
      %v2863 = vpop.f32.mrb[0].mxu0
      %2864 = vmatprep.mubr.bf16.mxu0 0
      %2865 = vmatmul.mubr.bf16.gmra.mrb[0].mxu0 %v2808
      %v2866 = vpop.f32.mrb[0].mxu0
      %v2867 = vadd.f32 0.0, %v2866
      %v2868 = vpop.f32.mrb[0].mxu0
      %v2869 = vpop.f32.mrb[0].mxu0
      %v2870 = vadd.f32 0.0, %v2869
      %v2871 = vpop.f32.mrb[0].mxu0
      %2872 = vmatprep.mubr.bf16.mxu0 0
      %2873 = vmatmul.mubr.bf16.gmra.mrb[0].mxu0 %v2811
      %v2874 = vpop.f32.mrb[0].mxu0
      %v2875 = vadd.f32 0.0, %v2874
      %v2876 = vpop.f32.mrb[0].mxu0
      %v2877 = vpop.f32.mrb[0].mxu0
      %v2878 = vadd.f32 0.0, %v2877
      %v2879 = vpop.f32.mrb[0].mxu0
      %2880 = vdwg.mxu0
      %v2881 = vadd.f32 %v2723, %v2851
      %v2882 = vadd.f32 %v2724, %v2854
      %v2883 = vadd.f32 %v2725, %v2859
      %v2884 = vadd.f32 %v2726, %v2862
      %v2885 = vadd.f32 %v2727, %v2867
      %v2886 = vadd.f32 %v2728, %v2870
      %v2887 = vadd.f32 %v2729, %v2875
      %v2888 = vadd.f32 %v2730, %v2878
      %v2889 = vld [vmem:[%s1847 + $0x4] sm:$0x3]
      %v2890 = vld [vmem:[%s1847 + $0xc] sm:$0x3]
      %v2891 = vld [vmem:[%s1847 + $0x14] sm:$0x3]
      %v2892 = vld [vmem:[%s1847 + $0x1c] sm:$0x3]
      %v2893 = vld [vmem:[%s1847 + $0x24] sm:$0x3]
      %v2894 = vld [vmem:[%s1847 + $0x2c] sm:$0x3]
      %v2895 = vld [vmem:[%s1847 + $0x34] sm:$0x3]
      %v2896 = vld [vmem:[%s1847 + $0x3c] sm:$0x3]
      %v2898 = vshrl.u32 %v2731, 16
      %v2900 = vrot.slane %v2898, 5
      %v2901 = vshll.u32 %v2731, 16
      %v2903 = vrot.slane %v2901, 6
      %v2904 = vor.u32 %v2900, %v2903
      %v2905 = vrot.slane %v2904, 4
      %v2907 = vshrl.u32 %v2889, 16
      %v2909 = vrot.slane %v2907, 5
      %v2910 = vshll.u32 %v2889, 16
      %v2912 = vrot.slane %v2910, 6
      %v2913 = vor.u32 %v2909, %v2912
      %v2914 = vsel %vm2254, %v2905, %v2913
      %v2916 = vshrl.u32 %v2732, 16
      %v2918 = vrot.slane %v2916, 5
      %v2919 = vshll.u32 %v2732, 16
      %v2921 = vrot.slane %v2919, 6
      %v2922 = vor.u32 %v2918, %v2921
      %v2923 = vrot.slane %v2922, 4
      %v2925 = vshrl.u32 %v2890, 16
      %v2927 = vrot.slane %v2925, 5
      %v2928 = vshll.u32 %v2890, 16
      %v2930 = vrot.slane %v2928, 6
      %v2931 = vor.u32 %v2927, %v2930
      %v2932 = vsel %vm2254, %v2923, %v2931
      %v2934 = vshrl.u32 %v2733, 16
      %v2936 = vrot.slane %v2934, 5
      %v2937 = vshll.u32 %v2733, 16
      %v2939 = vrot.slane %v2937, 6
      %v2940 = vor.u32 %v2936, %v2939
      %v2941 = vrot.slane %v2940, 4
      %v2943 = vshrl.u32 %v2891, 16
      %v2945 = vrot.slane %v2943, 5
      %v2946 = vshll.u32 %v2891, 16
      %v2948 = vrot.slane %v2946, 6
      %v2949 = vor.u32 %v2945, %v2948
      %v2950 = vsel %vm2254, %v2941, %v2949
      %v2952 = vshrl.u32 %v2734, 16
      %v2954 = vrot.slane %v2952, 5
      %v2955 = vshll.u32 %v2734, 16
      %v2957 = vrot.slane %v2955, 6
      %v2958 = vor.u32 %v2954, %v2957
      %v2959 = vrot.slane %v2958, 4
      %v2961 = vshrl.u32 %v2892, 16
      %v2963 = vrot.slane %v2961, 5
      %v2964 = vshll.u32 %v2892, 16
      %v2966 = vrot.slane %v2964, 6
      %v2967 = vor.u32 %v2963, %v2966
      %v2968 = vsel %vm2254, %v2959, %v2967
      %v2970 = vshrl.u32 %v2735, 16
      %v2972 = vrot.slane %v2970, 5
      %v2973 = vshll.u32 %v2735, 16
      %v2975 = vrot.slane %v2973, 6
      %v2976 = vor.u32 %v2972, %v2975
      %v2977 = vrot.slane %v2976, 4
      %v2979 = vshrl.u32 %v2893, 16
      %v2981 = vrot.slane %v2979, 5
      %v2982 = vshll.u32 %v2893, 16
      %v2984 = vrot.slane %v2982, 6
      %v2985 = vor.u32 %v2981, %v2984
      %v2986 = vsel %vm2254, %v2977, %v2985
      %v2988 = vshrl.u32 %v2736, 16
      %v2990 = vrot.slane %v2988, 5
      %v2991 = vshll.u32 %v2736, 16
      %v2993 = vrot.slane %v2991, 6
      %v2994 = vor.u32 %v2990, %v2993
      %v2995 = vrot.slane %v2994, 4
      %v2997 = vshrl.u32 %v2894, 16
      %v2999 = vrot.slane %v2997, 5
      %v3000 = vshll.u32 %v2894, 16
      %v3002 = vrot.slane %v3000, 6
      %v3003 = vor.u32 %v2999, %v3002
      %v3004 = vsel %vm2254, %v2995, %v3003
      %v3006 = vshrl.u32 %v2737, 16
      %v3008 = vrot.slane %v3006, 5
      %v3009 = vshll.u32 %v2737, 16
      %v3011 = vrot.slane %v3009, 6
      %v3012 = vor.u32 %v3008, %v3011
      %v3013 = vrot.slane %v3012, 4
      %v3015 = vshrl.u32 %v2895, 16
      %v3017 = vrot.slane %v3015, 5
      %v3018 = vshll.u32 %v2895, 16
      %v3020 = vrot.slane %v3018, 6
      %v3021 = vor.u32 %v3017, %v3020
      %v3022 = vsel %vm2254, %v3013, %v3021
      %v3024 = vshrl.u32 %v2738, 16
      %v3026 = vrot.slane %v3024, 5
      %v3027 = vshll.u32 %v2738, 16
      %v3029 = vrot.slane %v3027, 6
      %v3030 = vor.u32 %v3026, %v3029
      %v3031 = vrot.slane %v3030, 4
      %v3033 = vshrl.u32 %v2896, 16
      %v3035 = vrot.slane %v3033, 5
      %v3036 = vshll.u32 %v2896, 16
      %v3038 = vrot.slane %v3036, 6
      %v3039 = vor.u32 %v3035, %v3038
      %v3040 = vsel %vm2254, %v3031, %v3039
      %s3041 = scalar_lea.vmem %s6, 20
      %v3042 = vld [vmem:[%s3041] sm:$0xf]
      %v3043 = vunpack.c.l.b16 %v2914
      %v3044 = vunpack.c.l.b16 %v2932
      %v3045 = vunpack.c.l.b16 %v2950
      %v3046 = vunpack.c.l.b16 %v2968
      %v3047 = vunpack.c.l.b16 %v2986
      %v3048 = vunpack.c.l.b16 %v3004
      %v3049 = vunpack.c.l.b16 %v3022
      %v3050 = vunpack.c.l.b16 %v3040
      %v3051 = vpack.c.b16 %v3044, %v3043
      %v3052 = vpack.c.b16 %v3046, %v3045
      %v3053 = vpack.c.b16 %v3048, %v3047
      %v3054 = vpack.c.b16 %v3050, %v3049
      %v3056 = vsel %vm2070, %v3051, 0
      %v3059 = vsel %vm2070, %v3052, 0
      %v3062 = vsel %vm2070, %v3053, 0
      %v3065 = vsel %vm2070, %v3054, 0
      %v3068 = vsel %vm2083, %v3042, 0
      %3070 = vmatprep.subr.bf16.mxu0 0
      %3071 = vmatpush1.bf16.msra.mxu0 %v3068
      %3072 = vmatprep.subr.bf16.mxu0 0
      %3073 = vmatpush1.bf16.msra.mxu0 0
      %3074 = vmatprep.subr.bf16.mxu0 0
      %3075 = vmatpush1.bf16.msra.mxu0 0
      %3076 = vmatprep.subr.bf16.mxu0 0
      %3077 = vmatpush1.bf16.msra.mxu0 0
      %3078 = vmatprep.subr.bf16.mxu0 0
      %3079 = vmatpush1.bf16.msra.mxu0 0
      %3080 = vmatprep.subr.bf16.mxu0 0
      %3081 = vmatpush1.bf16.msra.mxu0 0
      %3082 = vmatprep.subr.bf16.mxu0 0
      %3083 = vmatpush1.bf16.msra.mxu0 0
      %3084 = vmatprep.subr.bf16.mxu0 0
      %3085 = vmatpush1.bf16.msra.mxu0 0
      %3086 = vmatprep.subr.bf16.mxu0 0
      %3087 = vmatpush1.bf16.msra.mxu0 0
      %3088 = vmatprep.subr.bf16.mxu0 0
      %3089 = vmatpush1.bf16.msra.mxu0 0
      %3090 = vmatprep.subr.bf16.mxu0 0
      %3091 = vmatpush1.bf16.msra.mxu0 0
      %3092 = vmatprep.subr.bf16.mxu0 0
      %3093 = vmatpush1.bf16.msra.mxu0 0
      %3094 = vmatprep.subr.bf16.mxu0 0
      %3095 = vmatpush1.bf16.msra.mxu0 0
      %3096 = vmatprep.subr.bf16.mxu0 0
      %3097 = vmatpush1.bf16.msra.mxu0 0
      %3098 = vmatprep.subr.bf16.mxu0 0
      %3099 = vmatpush1.bf16.msra.mxu0 0
      %3100 = vmatprep.subr.bf16.mxu0 0
      %3101 = vmatpush1.bf16.msra.mxu0 0
      %3102 = vmatprep.mubr.bf16.mxu0 0
      %3103 = vmatmul.mubr.bf16.gmra.mrb[0].mxu0 %v3056
      %v3104 = vpop.f32.mrb[0].mxu0
      %v3105 = vadd.f32 0.0, %v3104
      %v3106 = vpop.f32.mrb[0].mxu0
      %v3107 = vpop.f32.mrb[0].mxu0
      %v3108 = vadd.f32 0.0, %v3107
      %v3109 = vpop.f32.mrb[0].mxu0
      %3110 = vmatprep.mubr.bf16.mxu0 0
      %3111 = vmatmul.mubr.bf16.gmra.mrb[0].mxu0 %v3059
      %v3112 = vpop.f32.mrb[0].mxu0
      %v3113 = vadd.f32 0.0, %v3112
      %v3114 = vpop.f32.mrb[0].mxu0
      %v3115 = vpop.f32.mrb[0].mxu0
      %v3116 = vadd.f32 0.0, %v3115
      %v3117 = vpop.f32.mrb[0].mxu0
      %3118 = vmatprep.mubr.bf16.mxu0 0
      %3119 = vmatmul.mubr.bf16.gmra.mrb[0].mxu0 %v3062
      %v3120 = vpop.f32.mrb[0].mxu0
      %v3121 = vadd.f32 0.0, %v3120
      %v3122 = vpop.f32.mrb[0].mxu0
      %v3123 = vpop.f32.mrb[0].mxu0
      %v3124 = vadd.f32 0.0, %v3123
      %v3125 = vpop.f32.mrb[0].mxu0
      %3126 = vmatprep.mubr.bf16.mxu0 0
      %3127 = vmatmul.mubr.bf16.gmra.mrb[0].mxu0 %v3065
      %v3128 = vpop.f32.mrb[0].mxu0
      %v3129 = vadd.f32 0.0, %v3128
      %v3130 = vpop.f32.mrb[0].mxu0
      %v3131 = vpop.f32.mrb[0].mxu0
      %v3132 = vadd.f32 0.0, %v3131
      %v3133 = vpop.f32.mrb[0].mxu0
      %3134 = vdwg.mxu0
      %v3135 = vadd.f32 %v2881, %v3105
      %v3136 = vadd.f32 %v2882, %v3108
      %v3137 = vadd.f32 %v2883, %v3113
      %v3138 = vadd.f32 %v2884, %v3116
      %v3139 = vadd.f32 %v2885, %v3121
      %v3140 = vadd.f32 %v2886, %v3124
      %v3141 = vadd.f32 %v2887, %v3129
      %v3142 = vadd.f32 %v2888, %v3132
      %s3143 = scalar_lea.vmem [#allocation3], 16
      %v3144 = vld [vmem:[%s3143] sm:$0xf]
      %v3145 = vld [vmem:[%s3143 + $0x4] sm:$0x1]
      %v3146 = vld [vmem:[%s3143 + $0x8] sm:$0xf]
      %v3147 = vld [vmem:[%s3143 + $0xc] sm:$0x1]
      %v3148 = vld [vmem:[%s3143 + $0x10] sm:$0xf]
      %v3149 = vld [vmem:[%s3143 + $0x14] sm:$0x1]
      %v3150 = vld [vmem:[%s3143 + $0x18] sm:$0xf]
      %v3151 = vld [vmem:[%s3143 + $0x1c] sm:$0x1]
      %v3152 = vld [vmem:[%s3143 + $0x20] sm:$0xf]
      %v3153 = vld [vmem:[%s3143 + $0x24] sm:$0x1]
      %v3154 = vld [vmem:[%s3143 + $0x28] sm:$0xf]
      %v3155 = vld [vmem:[%s3143 + $0x2c] sm:$0x1]
      %v3156 = vld [vmem:[%s3143 + $0x30] sm:$0xf]
      %v3157 = vld [vmem:[%s3143 + $0x34] sm:$0x1]
      %v3158 = vld [vmem:[%s3143 + $0x38] sm:$0xf]
      %v3159 = vld [vmem:[%s3143 + $0x3c] sm:$0x1]
      %v3161 = vshrl.u32 %v3144, 16
      %v3163 = vrot.slane %v3161, 4
      %v3164 = vshll.u32 %v3144, 16
      %v3166 = vrot.slane %v3164, 5
      %v3167 = vor.u32 %v3163, %v3166
      %v3168 = vrot.slane %v3167, 4
      %v3170 = vshll.u32 %v3145, 16
      %v3172 = vrot.slane %v3170, 5
      %v3173 = vsel %vm1883, %v3168, %v3172
      %v3175 = vshrl.u32 %v3146, 16
      %v3177 = vrot.slane %v3175, 4
      %v3178 = vshll.u32 %v3146, 16
      %v3180 = vrot.slane %v3178, 5
      %v3181 = vor.u32 %v3177, %v3180
      %v3182 = vrot.slane %v3181, 4
      %v3184 = vshll.u32 %v3147, 16
      %v3186 = vrot.slane %v3184, 5
      %v3187 = vsel %vm1883, %v3182, %v3186
      %v3189 = vshrl.u32 %v3148, 16
      %v3191 = vrot.slane %v3189, 4
      %v3192 = vshll.u32 %v3148, 16
      %v3194 = vrot.slane %v3192, 5
      %v3195 = vor.u32 %v3191, %v3194
      %v3196 = vrot.slane %v3195, 4
      %v3198 = vshll.u32 %v3149, 16
      %v3200 = vrot.slane %v3198, 5
      %v3201 = vsel %vm1883, %v3196, %v3200
      %v3203 = vshrl.u32 %v3150, 16
      %v3205 = vrot.slane %v3203, 4
      %v3206 = vshll.u32 %v3150, 16
      %v3208 = vrot.slane %v3206, 5
      %v3209 = vor.u32 %v3205, %v3208
      %v3210 = vrot.slane %v3209, 4
      %v3212 = vshll.u32 %v3151, 16
      %v3214 = vrot.slane %v3212, 5
      %v3215 = vsel %vm1883, %v3210, %v3214
      %v3217 = vshrl.u32 %v3152, 16
      %v3219 = vrot.slane %v3217, 4
      %v3220 = vshll.u32 %v3152, 16
      %v3222 = vrot.slane %v3220, 5
      %v3223 = vor.u32 %v3219, %v3222
      %v3224 = vrot.slane %v3223, 4
      %v3226 = vshll.u32 %v3153, 16
      %v3228 = vrot.slane %v3226, 5
      %v3229 = vsel %vm1883, %v3224, %v3228
      %v3231 = vshrl.u32 %v3154, 16
      %v3233 = vrot.slane %v3231, 4
      %v3234 = vshll.u32 %v3154, 16
      %v3236 = vrot.slane %v3234, 5
      %v3237 = vor.u32 %v3233, %v3236
      %v3238 = vrot.slane %v3237, 4
      %v3240 = vshll.u32 %v3155, 16
      %v3242 = vrot.slane %v3240, 5
      %v3243 = vsel %vm1883, %v3238, %v3242
      %v3245 = vshrl.u32 %v3156, 16
      %v3247 = vrot.slane %v3245, 4
      %v3248 = vshll.u32 %v3156, 16
      %v3250 = vrot.slane %v3248, 5
      %v3251 = vor.u32 %v3247, %v3250
      %v3252 = vrot.slane %v3251, 4
      %v3254 = vshll.u32 %v3157, 16
      %v3256 = vrot.slane %v3254, 5
      %v3257 = vsel %vm1883, %v3252, %v3256
      %v3259 = vshrl.u32 %v3158, 16
      %v3261 = vrot.slane %v3259, 4
      %v3262 = vshll.u32 %v3158, 16
      %v3264 = vrot.slane %v3262, 5
      %v3265 = vor.u32 %v3261, %v3264
      %v3266 = vrot.slane %v3265, 4
      %v3268 = vshll.u32 %v3159, 16
      %v3270 = vrot.slane %v3268, 5
      %v3271 = vsel %vm1883, %v3266, %v3270
      %s3272 = scalar_lea.vmem %s6, 24
      %v3273 = vld [vmem:[%s3272] sm:$0xf]
      %v3274 = vunpack.c.l.b16 %v3173
      %v3275 = vunpack.c.l.b16 %v3187
      %v3276 = vunpack.c.l.b16 %v3201
      %v3277 = vunpack.c.l.b16 %v3215
      %v3278 = vunpack.c.l.b16 %v3229
      %v3279 = vunpack.c.l.b16 %v3243
      %v3280 = vunpack.c.l.b16 %v3257
      %v3281 = vunpack.c.l.b16 %v3271
      %v3282 = vpack.c.b16 %v3275, %v3274
      %v3283 = vpack.c.b16 %v3277, %v3276
      %v3284 = vpack.c.b16 %v3279, %v3278
      %v3285 = vpack.c.b16 %v3281, %v3280
      %v3287 = vsel %vm2070, %v3282, 0
      %v3290 = vsel %vm2070, %v3283, 0
      %v3293 = vsel %vm2070, %v3284, 0
      %v3296 = vsel %vm2070, %v3285, 0
      %v3299 = vsel %vm2083, %v3273, 0
      %3301 = vmatprep.subr.bf16.mxu0 0
      %3302 = vmatpush1.bf16.msra.mxu0 %v3299
      %3303 = vmatprep.subr.bf16.mxu0 0
      %3304 = vmatpush1.bf16.msra.mxu0 0
      %3305 = vmatprep.subr.bf16.mxu0 0
      %3306 = vmatpush1.bf16.msra.mxu0 0
      %3307 = vmatprep.subr.bf16.mxu0 0
      %3308 = vmatpush1.bf16.msra.mxu0 0
      %3309 = vmatprep.subr.bf16.mxu0 0
      %3310 = vmatpush1.bf16.msra.mxu0 0
      %3311 = vmatprep.subr.bf16.mxu0 0
      %3312 = vmatpush1.bf16.msra.mxu0 0
      %3313 = vmatprep.subr.bf16.mxu0 0
      %3314 = vmatpush1.bf16.msra.mxu0 0
      %3315 = vmatprep.subr.bf16.mxu0 0
      %3316 = vmatpush1.bf16.msra.mxu0 0
      %3317 = vmatprep.subr.bf16.mxu0 0
      %3318 = vmatpush1.bf16.msra.mxu0 0
      %3319 = vmatprep.subr.bf16.mxu0 0
      %3320 = vmatpush1.bf16.msra.mxu0 0
      %3321 = vmatprep.subr.bf16.mxu0 0
      %3322 = vmatpush1.bf16.msra.mxu0 0
      %3323 = vmatprep.subr.bf16.mxu0 0
      %3324 = vmatpush1.bf16.msra.mxu0 0
      %3325 = vmatprep.subr.bf16.mxu0 0
      %3326 = vmatpush1.bf16.msra.mxu0 0
      %3327 = vmatprep.subr.bf16.mxu0 0
      %3328 = vmatpush1.bf16.msra.mxu0 0
      %3329 = vmatprep.subr.bf16.mxu0 0
      %3330 = vmatpush1.bf16.msra.mxu0 0
      %3331 = vmatprep.subr.bf16.mxu0 0
      %3332 = vmatpush1.bf16.msra.mxu0 0
      %3333 = vmatprep.mubr.bf16.mxu0 0
      %3334 = vmatmul.mubr.bf16.gmra.mrb[0].mxu0 %v3287
      %v3335 = vpop.f32.mrb[0].mxu0
      %v3336 = vadd.f32 0.0, %v3335
      %v3337 = vpop.f32.mrb[0].mxu0
      %v3338 = vpop.f32.mrb[0].mxu0
      %v3339 = vadd.f32 0.0, %v3338
      %v3340 = vpop.f32.mrb[0].mxu0
      %3341 = vmatprep.mubr.bf16.mxu0 0
      %3342 = vmatmul.mubr.bf16.gmra.mrb[0].mxu0 %v3290
      %v3343 = vpop.f32.mrb[0].mxu0
      %v3344 = vadd.f32 0.0, %v3343
      %v3345 = vpop.f32.mrb[0].mxu0
      %v3346 = vpop.f32.mrb[0].mxu0
      %v3347 = vadd.f32 0.0, %v3346
      %v3348 = vpop.f32.mrb[0].mxu0
      %3349 = vmatprep.mubr.bf16.mxu0 0
      %3350 = vmatmul.mubr.bf16.gmra.mrb[0].mxu0 %v3293
      %v3351 = vpop.f32.mrb[0].mxu0
      %v3352 = vadd.f32 0.0, %v3351
      %v3353 = vpop.f32.mrb[0].mxu0
      %v3354 = vpop.f32.mrb[0].mxu0
      %v3355 = vadd.f32 0.0, %v3354
      %v3356 = vpop.f32.mrb[0].mxu0
      %3357 = vmatprep.mubr.bf16.mxu0 0
      %3358 = vmatmul.mubr.bf16.gmra.mrb[0].mxu0 %v3296
      %v3359 = vpop.f32.mrb[0].mxu0
      %v3360 = vadd.f32 0.0, %v3359
      %v3361 = vpop.f32.mrb[0].mxu0
      %v3362 = vpop.f32.mrb[0].mxu0
      %v3363 = vadd.f32 0.0, %v3362
      %v3364 = vpop.f32.mrb[0].mxu0
      %3365 = vdwg.mxu0
      %v3366 = vadd.f32 %v3135, %v3336
      %v3367 = vadd.f32 %v3136, %v3339
      %v3368 = vadd.f32 %v3137, %v3344
      %v3369 = vadd.f32 %v3138, %v3347
      %v3370 = vadd.f32 %v3139, %v3352
      %v3371 = vadd.f32 %v3140, %v3355
      %v3372 = vadd.f32 %v3141, %v3360
      %v3373 = vadd.f32 %v3142, %v3363
      %v3374 = vld [vmem:[%s3143] sm:$0xe]
      %v3375 = vld [vmem:[%s3143 + $0x8] sm:$0xe]
      %v3376 = vld [vmem:[%s3143 + $0x10] sm:$0xe]
      %v3377 = vld [vmem:[%s3143 + $0x18] sm:$0xe]
      %v3378 = vld [vmem:[%s3143 + $0x20] sm:$0xe]
      %v3379 = vld [vmem:[%s3143 + $0x28] sm:$0xe]
      %v3380 = vld [vmem:[%s3143 + $0x30] sm:$0xe]
      %v3381 = vld [vmem:[%s3143 + $0x38] sm:$0xe]
      %v3398 = vrot.slane %v3374, 5
      %v3399 = vrot.slane %v3398, 4
      %v3400 = vrot.slane %v3145, 5
      %v3401 = vsel %vm2023, %v3399, %v3400
      %v3402 = vrot.slane %v3375, 5
      %v3403 = vrot.slane %v3402, 4
      %v3404 = vrot.slane %v3147, 5
      %v3405 = vsel %vm2023, %v3403, %v3404
      %v3406 = vrot.slane %v3376, 5
      %v3407 = vrot.slane %v3406, 4
      %v3408 = vrot.slane %v3149, 5
      %v3409 = vsel %vm2023, %v3407, %v3408
      %v3410 = vrot.slane %v3377, 5
      %v3411 = vrot.slane %v3410, 4
      %v3412 = vrot.slane %v3151, 5
      %v3413 = vsel %vm2023, %v3411, %v3412
      %v3414 = vrot.slane %v3378, 5
      %v3415 = vrot.slane %v3414, 4
      %v3416 = vrot.slane %v3153, 5
      %v3417 = vsel %vm2023, %v3415, %v3416
      %v3418 = vrot.slane %v3379, 5
      %v3419 = vrot.slane %v3418, 4
      %v3420 = vrot.slane %v3155, 5
      %v3421 = vsel %vm2023, %v3419, %v3420
      %v3422 = vrot.slane %v3380, 5
      %v3423 = vrot.slane %v3422, 4
      %v3424 = vrot.slane %v3157, 5
      %v3425 = vsel %vm2023, %v3423, %v3424
      %v3426 = vrot.slane %v3381, 5
      %v3427 = vrot.slane %v3426, 4
      %v3428 = vrot.slane %v3159, 5
      %v3429 = vsel %vm2023, %v3427, %v3428
      %s3430 = scalar_lea.vmem %s6, 28
      %v3431 = vld [vmem:[%s3430] sm:$0xf]
      %v3432 = vunpack.c.l.b16 %v3401
      %v3433 = vunpack.c.l.b16 %v3405
      %v3434 = vunpack.c.l.b16 %v3409
      %v3435 = vunpack.c.l.b16 %v3413
      %v3436 = vunpack.c.l.b16 %v3417
      %v3437 = vunpack.c.l.b16 %v3421
      %v3438 = vunpack.c.l.b16 %v3425
      %v3439 = vunpack.c.l.b16 %v3429
      %v3440 = vpack.c.b16 %v3433, %v3432
      %v3441 = vpack.c.b16 %v3435, %v3434
      %v3442 = vpack.c.b16 %v3437, %v3436
      %v3443 = vpack.c.b16 %v3439, %v3438
      %v3445 = vsel %vm2070, %v3440, 0
      %v3448 = vsel %vm2070, %v3441, 0
      %v3451 = vsel %vm2070, %v3442, 0
      %v3454 = vsel %vm2070, %v3443, 0
      %v3457 = vsel %vm2083, %v3431, 0
      %3459 = vmatprep.subr.bf16.mxu0 0
      %3460 = vmatpush1.bf16.msra.mxu0 %v3457
      %3461 = vmatprep.subr.bf16.mxu0 0
      %3462 = vmatpush1.bf16.msra.mxu0 0
      %3463 = vmatprep.subr.bf16.mxu0 0
      %3464 = vmatpush1.bf16.msra.mxu0 0
      %3465 = vmatprep.subr.bf16.mxu0 0
      %3466 = vmatpush1.bf16.msra.mxu0 0
      %3467 = vmatprep.subr.bf16.mxu0 0
      %3468 = vmatpush1.bf16.msra.mxu0 0
      %3469 = vmatprep.subr.bf16.mxu0 0
      %3470 = vmatpush1.bf16.msra.mxu0 0
      %3471 = vmatprep.subr.bf16.mxu0 0
      %3472 = vmatpush1.bf16.msra.mxu0 0
      %3473 = vmatprep.subr.bf16.mxu0 0
      %3474 = vmatpush1.bf16.msra.mxu0 0
      %3475 = vmatprep.subr.bf16.mxu0 0
      %3476 = vmatpush1.bf16.msra.mxu0 0
      %3477 = vmatprep.subr.bf16.mxu0 0
      %3478 = vmatpush1.bf16.msra.mxu0 0
      %3479 = vmatprep.subr.bf16.mxu0 0
      %3480 = vmatpush1.bf16.msra.mxu0 0
      %3481 = vmatprep.subr.bf16.mxu0 0
      %3482 = vmatpush1.bf16.msra.mxu0 0
      %3483 = vmatprep.subr.bf16.mxu0 0
      %3484 = vmatpush1.bf16.msra.mxu0 0
      %3485 = vmatprep.subr.bf16.mxu0 0
      %3486 = vmatpush1.bf16.msra.mxu0 0
      %3487 = vmatprep.subr.bf16.mxu0 0
      %3488 = vmatpush1.bf16.msra.mxu0 0
      %3489 = vmatprep.subr.bf16.mxu0 0
      %3490 = vmatpush1.bf16.msra.mxu0 0
      %3491 = vmatprep.mubr.bf16.mxu0 0
      %3492 = vmatmul.mubr.bf16.gmra.mrb[0].mxu0 %v3445
      %v3493 = vpop.f32.mrb[0].mxu0
      %v3494 = vadd.f32 0.0, %v3493
      %v3495 = vpop.f32.mrb[0].mxu0
      %v3496 = vpop.f32.mrb[0].mxu0
      %v3497 = vadd.f32 0.0, %v3496
      %v3498 = vpop.f32.mrb[0].mxu0
      %3499 = vmatprep.mubr.bf16.mxu0 0
      %3500 = vmatmul.mubr.bf16.gmra.mrb[0].mxu0 %v3448
      %v3501 = vpop.f32.mrb[0].mxu0
      %v3502 = vadd.f32 0.0, %v3501
      %v3503 = vpop.f32.mrb[0].mxu0
      %v3504 = vpop.f32.mrb[0].mxu0
      %v3505 = vadd.f32 0.0, %v3504
      %v3506 = vpop.f32.mrb[0].mxu0
      %3507 = vmatprep.mubr.bf16.mxu0 0
      %3508 = vmatmul.mubr.bf16.gmra.mrb[0].mxu0 %v3451
      %v3509 = vpop.f32.mrb[0].mxu0
      %v3510 = vadd.f32 0.0, %v3509
      %v3511 = vpop.f32.mrb[0].mxu0
      %v3512 = vpop.f32.mrb[0].mxu0
      %v3513 = vadd.f32 0.0, %v3512
      %v3514 = vpop.f32.mrb[0].mxu0
      %3515 = vmatprep.mubr.bf16.mxu0 0
      %3516 = vmatmul.mubr.bf16.gmra.mrb[0].mxu0 %v3454
      %v3517 = vpop.f32.mrb[0].mxu0
      %v3518 = vadd.f32 0.0, %v3517
      %v3519 = vpop.f32.mrb[0].mxu0
      %v3520 = vpop.f32.mrb[0].mxu0
      %v3521 = vadd.f32 0.0, %v3520
      %v3522 = vpop.f32.mrb[0].mxu0
      %3523 = vdwg.mxu0
      %v3524 = vadd.f32 %v3366, %v3494
      %v3525 = vadd.f32 %v3367, %v3497
      %v3526 = vadd.f32 %v3368, %v3502
      %v3527 = vadd.f32 %v3369, %v3505
      %v3528 = vadd.f32 %v3370, %v3510
      %v3529 = vadd.f32 %v3371, %v3513
      %v3530 = vadd.f32 %v3372, %v3518
      %v3531 = vadd.f32 %v3373, %v3521
      %v3532 = vld [vmem:[%s3143 + $0x4] sm:$0x3]
      %v3533 = vld [vmem:[%s3143 + $0xc] sm:$0x3]
      %v3534 = vld [vmem:[%s3143 + $0x14] sm:$0x3]
      %v3535 = vld [vmem:[%s3143 + $0x1c] sm:$0x3]
      %v3536 = vld [vmem:[%s3143 + $0x24] sm:$0x3]
      %v3537 = vld [vmem:[%s3143 + $0x2c] sm:$0x3]
      %v3538 = vld [vmem:[%s3143 + $0x34] sm:$0x3]
      %v3539 = vld [vmem:[%s3143 + $0x3c] sm:$0x3]
      %v3541 = vshrl.u32 %v3374, 16
      %v3543 = vrot.slane %v3541, 5
      %v3544 = vshll.u32 %v3374, 16
      %v3546 = vrot.slane %v3544, 6
      %v3547 = vor.u32 %v3543, %v3546
      %v3548 = vrot.slane %v3547, 4
      %v3550 = vshrl.u32 %v3532, 16
      %v3552 = vrot.slane %v3550, 5
      %v3553 = vshll.u32 %v3532, 16
      %v3555 = vrot.slane %v3553, 6
      %v3556 = vor.u32 %v3552, %v3555
      %v3557 = vsel %vm2254, %v3548, %v3556
      %v3559 = vshrl.u32 %v3375, 16
      %v3561 = vrot.slane %v3559, 5
      %v3562 = vshll.u32 %v3375, 16
      %v3564 = vrot.slane %v3562, 6
      %v3565 = vor.u32 %v3561, %v3564
      %v3566 = vrot.slane %v3565, 4
      %v3568 = vshrl.u32 %v3533, 16
      %v3570 = vrot.slane %v3568, 5
      %v3571 = vshll.u32 %v3533, 16
      %v3573 = vrot.slane %v3571, 6
      %v3574 = vor.u32 %v3570, %v3573
      %v3575 = vsel %vm2254, %v3566, %v3574
      %v3577 = vshrl.u32 %v3376, 16
      %v3579 = vrot.slane %v3577, 5
      %v3580 = vshll.u32 %v3376, 16
      %v3582 = vrot.slane %v3580, 6
      %v3583 = vor.u32 %v3579, %v3582
      %v3584 = vrot.slane %v3583, 4
      %v3586 = vshrl.u32 %v3534, 16
      %v3588 = vrot.slane %v3586, 5
      %v3589 = vshll.u32 %v3534, 16
      %v3591 = vrot.slane %v3589, 6
      %v3592 = vor.u32 %v3588, %v3591
      %v3593 = vsel %vm2254, %v3584, %v3592
      %v3595 = vshrl.u32 %v3377, 16
      %v3597 = vrot.slane %v3595, 5
      %v3598 = vshll.u32 %v3377, 16
      %v3600 = vrot.slane %v3598, 6
      %v3601 = vor.u32 %v3597, %v3600
      %v3602 = vrot.slane %v3601, 4
      %v3604 = vshrl.u32 %v3535, 16
      %v3606 = vrot.slane %v3604, 5
      %v3607 = vshll.u32 %v3535, 16
      %v3609 = vrot.slane %v3607, 6
      %v3610 = vor.u32 %v3606, %v3609
      %v3611 = vsel %vm2254, %v3602, %v3610
      %v3613 = vshrl.u32 %v3378, 16
      %v3615 = vrot.slane %v3613, 5
      %v3616 = vshll.u32 %v3378, 16
      %v3618 = vrot.slane %v3616, 6
      %v3619 = vor.u32 %v3615, %v3618
      %v3620 = vrot.slane %v3619, 4
      %v3622 = vshrl.u32 %v3536, 16
      %v3624 = vrot.slane %v3622, 5
      %v3625 = vshll.u32 %v3536, 16
      %v3627 = vrot.slane %v3625, 6
      %v3628 = vor.u32 %v3624, %v3627
      %v3629 = vsel %vm2254, %v3620, %v3628
      %v3631 = vshrl.u32 %v3379, 16
      %v3633 = vrot.slane %v3631, 5
      %v3634 = vshll.u32 %v3379, 16
      %v3636 = vrot.slane %v3634, 6
      %v3637 = vor.u32 %v3633, %v3636
      %v3638 = vrot.slane %v3637, 4
      %v3640 = vshrl.u32 %v3537, 16
      %v3642 = vrot.slane %v3640, 5
      %v3643 = vshll.u32 %v3537, 16
      %v3645 = vrot.slane %v3643, 6
      %v3646 = vor.u32 %v3642, %v3645
      %v3647 = vsel %vm2254, %v3638, %v3646
      %v3649 = vshrl.u32 %v3380, 16
      %v3651 = vrot.slane %v3649, 5
      %v3652 = vshll.u32 %v3380, 16
      %v3654 = vrot.slane %v3652, 6
      %v3655 = vor.u32 %v3651, %v3654
      %v3656 = vrot.slane %v3655, 4
      %v3658 = vshrl.u32 %v3538, 16
      %v3660 = vrot.slane %v3658, 5
      %v3661 = vshll.u32 %v3538, 16
      %v3663 = vrot.slane %v3661, 6
      %v3664 = vor.u32 %v3660, %v3663
      %v3665 = vsel %vm2254, %v3656, %v3664
      %v3667 = vshrl.u32 %v3381, 16
      %v3669 = vrot.slane %v3667, 5
      %v3670 = vshll.u32 %v3381, 16
      %v3672 = vrot.slane %v3670, 6
      %v3673 = vor.u32 %v3669, %v3672
      %v3674 = vrot.slane %v3673, 4
      %v3676 = vshrl.u32 %v3539, 16
      %v3678 = vrot.slane %v3676, 5
      %v3679 = vshll.u32 %v3539, 16
      %v3681 = vrot.slane %v3679, 6
      %v3682 = vor.u32 %v3678, %v3681
      %v3683 = vsel %vm2254, %v3674, %v3682
      %s3684 = scalar_lea.vmem %s6, 32
      %v3685 = vld [vmem:[%s3684] sm:$0xf]
      %v3686 = vunpack.c.l.b16 %v3557
      %v3687 = vunpack.c.l.b16 %v3575
      %v3688 = vunpack.c.l.b16 %v3593
      %v3689 = vunpack.c.l.b16 %v3611
      %v3690 = vunpack.c.l.b16 %v3629
      %v3691 = vunpack.c.l.b16 %v3647
      %v3692 = vunpack.c.l.b16 %v3665
      %v3693 = vunpack.c.l.b16 %v3683
      %v3694 = vpack.c.b16 %v3687, %v3686
      %v3695 = vpack.c.b16 %v3689, %v3688
      %v3696 = vpack.c.b16 %v3691, %v3690
      %v3697 = vpack.c.b16 %v3693, %v3692
      %v3699 = vsel %vm2070, %v3694, 0
      %v3702 = vsel %vm2070, %v3695, 0
      %v3705 = vsel %vm2070, %v3696, 0
      %v3708 = vsel %vm2070, %v3697, 0
      %v3711 = vsel %vm2083, %v3685, 0
      %3713 = vmatprep.subr.bf16.mxu0 0
      %3714 = vmatpush1.bf16.msra.mxu0 %v3711
      %3715 = vmatprep.subr.bf16.mxu0 0
      %3716 = vmatpush1.bf16.msra.mxu0 0
      %3717 = vmatprep.subr.bf16.mxu0 0
      %3718 = vmatpush1.bf16.msra.mxu0 0
      %3719 = vmatprep.subr.bf16.mxu0 0
      %3720 = vmatpush1.bf16.msra.mxu0 0
      %3721 = vmatprep.subr.bf16.mxu0 0
      %3722 = vmatpush1.bf16.msra.mxu0 0
      %3723 = vmatprep.subr.bf16.mxu0 0
      %3724 = vmatpush1.bf16.msra.mxu0 0
      %3725 = vmatprep.subr.bf16.mxu0 0
      %3726 = vmatpush1.bf16.msra.mxu0 0
      %3727 = vmatprep.subr.bf16.mxu0 0
      %3728 = vmatpush1.bf16.msra.mxu0 0
      %3729 = vmatprep.subr.bf16.mxu0 0
      %3730 = vmatpush1.bf16.msra.mxu0 0
      %3731 = vmatprep.subr.bf16.mxu0 0
      %3732 = vmatpush1.bf16.msra.mxu0 0
      %3733 = vmatprep.subr.bf16.mxu0 0
      %3734 = vmatpush1.bf16.msra.mxu0 0
      %3735 = vmatprep.subr.bf16.mxu0 0
      %3736 = vmatpush1.bf16.msra.mxu0 0
      %3737 = vmatprep.subr.bf16.mxu0 0
      %3738 = vmatpush1.bf16.msra.mxu0 0
      %3739 = vmatprep.subr.bf16.mxu0 0
      %3740 = vmatpush1.bf16.msra.mxu0 0
      %3741 = vmatprep.subr.bf16.mxu0 0
      %3742 = vmatpush1.bf16.msra.mxu0 0
      %3743 = vmatprep.subr.bf16.mxu0 0
      %3744 = vmatpush1.bf16.msra.mxu0 0
      %3745 = vmatprep.mubr.bf16.mxu0 0
      %3746 = vmatmul.mubr.bf16.gmra.mrb[0].mxu0 %v3699
      %v3747 = vpop.f32.mrb[0].mxu0
      %v3748 = vadd.f32 0.0, %v3747
      %v3749 = vpop.f32.mrb[0].mxu0
      %v3750 = vpop.f32.mrb[0].mxu0
      %v3751 = vadd.f32 0.0, %v3750
      %v3752 = vpop.f32.mrb[0].mxu0
      %3753 = vmatprep.mubr.bf16.mxu0 0
      %3754 = vmatmul.mubr.bf16.gmra.mrb[0].mxu0 %v3702
      %v3755 = vpop.f32.mrb[0].mxu0
      %v3756 = vadd.f32 0.0, %v3755
      %v3757 = vpop.f32.mrb[0].mxu0
      %v3758 = vpop.f32.mrb[0].mxu0
      %v3759 = vadd.f32 0.0, %v3758
      %v3760 = vpop.f32.mrb[0].mxu0
      %3761 = vmatprep.mubr.bf16.mxu0 0
      %3762 = vmatmul.mubr.bf16.gmra.mrb[0].mxu0 %v3705
      %v3763 = vpop.f32.mrb[0].mxu0
      %v3764 = vadd.f32 0.0, %v3763
      %v3765 = vpop.f32.mrb[0].mxu0
      %v3766 = vpop.f32.mrb[0].mxu0
      %v3767 = vadd.f32 0.0, %v3766
      %v3768 = vpop.f32.mrb[0].mxu0
      %3769 = vmatprep.mubr.bf16.mxu0 0
      %3770 = vmatmul.mubr.bf16.gmra.mrb[0].mxu0 %v3708
      %v3771 = vpop.f32.mrb[0].mxu0
      %v3772 = vadd.f32 0.0, %v3771
      %v3773 = vpop.f32.mrb[0].mxu0
      %v3774 = vpop.f32.mrb[0].mxu0
      %v3775 = vadd.f32 0.0, %v3774
      %v3776 = vpop.f32.mrb[0].mxu0
      %3777 = vdwg.mxu0
      %v3778 = vadd.f32 %v3524, %v3748
      %v3779 = vadd.f32 %v3525, %v3751
      %v3780 = vadd.f32 %v3526, %v3756
      %v3781 = vadd.f32 %v3527, %v3759
      %v3782 = vadd.f32 %v3528, %v3764
      %v3783 = vadd.f32 %v3529, %v3767
      %v3784 = vadd.f32 %v3530, %v3772
      %v3785 = vadd.f32 %v3531, %v3775
      %v3786 = vld [vmem:[%s1075] ss:$2 sm:$0xff]
      %v3787 = vld [vmem:[%s1077] ss:$2 sm:$0xff]
      %v3788 = vld [vmem:[%s1079] ss:$2 sm:$0xff]
      %v3789 = vld [vmem:[%s1081] ss:$2 sm:$0xff]
      %v3790 = vld [vmem:[%s1083] ss:$2 sm:$0xff]
      %v3791 = vld [vmem:[%s1085] ss:$2 sm:$0xff]
      %v3792 = vld [vmem:[%s1087] ss:$2 sm:$0xff]
      %v3793 = vld [vmem:[%s1089] ss:$2 sm:$0xff]
      %v3794 = vpack.c.bf16 %v3786, %v3786
      %v3795 = vpack.c.bf16 %v3787, %v3787
      %v3796 = vpack.c.bf16 %v3788, %v3788
      %v3797 = vpack.c.bf16 %v3789, %v3789
      %v3798 = vpack.c.bf16 %v3790, %v3790
      %v3799 = vpack.c.bf16 %v3791, %v3791
      %v3800 = vpack.c.bf16 %v3792, %v3792
      %v3801 = vpack.c.bf16 %v3793, %v3793
      %v3802 = vld [vmem:[%s7] sm:$0x3]
      %v3811 = vunpack.c.l.b16 %v3794
      %v3812 = vunpack.c.l.b16 %v3795
      %v3813 = vunpack.c.l.b16 %v3796
      %v3814 = vunpack.c.l.b16 %v3797
      %v3815 = vunpack.c.l.b16 %v3798
      %v3816 = vunpack.c.l.b16 %v3799
      %v3817 = vunpack.c.l.b16 %v3800
      %v3818 = vunpack.c.l.b16 %v3801
      %v3819 = vpack.c.b16 %v3812, %v3811
      %v3820 = vpack.c.b16 %v3814, %v3813
      %v3821 = vpack.c.b16 %v3816, %v3815
      %v3822 = vpack.c.b16 %v3818, %v3817
      %v3824 = vsel %vm307, %v3819, 0
      %v3827 = vsel %vm307, %v3820, 0
      %v3830 = vsel %vm307, %v3821, 0
      %v3833 = vsel %vm307, %v3822, 0
      %v3836 = vsel %vm639, %v3802, 0
      %3838 = vmatprep.subr.bf16.mxu0 0
      %3839 = vmatpush1.bf16.msra.mxu0 %v3836
      %3840 = vmatprep.subr.bf16.mxu0 0
      %3841 = vmatpush1.bf16.msra.mxu0 0
      %3842 = vmatprep.subr.bf16.mxu0 0
      %3843 = vmatpush1.bf16.msra.mxu0 0
      %3844 = vmatprep.subr.bf16.mxu0 0
      %3845 = vmatpush1.bf16.msra.mxu0 0
      %3846 = vmatprep.subr.bf16.mxu0 0
      %3847 = vmatpush1.bf16.msra.mxu0 0
      %3848 = vmatprep.subr.bf16.mxu0 0
      %3849 = vmatpush1.bf16.msra.mxu0 0
      %3850 = vmatprep.subr.bf16.mxu0 0
      %3851 = vmatpush1.bf16.msra.mxu0 0
      %3852 = vmatprep.subr.bf16.mxu0 0
      %3853 = vmatpush1.bf16.msra.mxu0 0
      %3854 = vmatprep.subr.bf16.mxu0 0
      %3855 = vmatpush1.bf16.msra.mxu0 0
      %3856 = vmatprep.subr.bf16.mxu0 0
      %3857 = vmatpush1.bf16.msra.mxu0 0
      %3858 = vmatprep.subr.bf16.mxu0 0
      %3859 = vmatpush1.bf16.msra.mxu0 0
      %3860 = vmatprep.subr.bf16.mxu0 0
      %3861 = vmatpush1.bf16.msra.mxu0 0
      %3862 = vmatprep.subr.bf16.mxu0 0
      %3863 = vmatpush1.bf16.msra.mxu0 0
      %3864 = vmatprep.subr.bf16.mxu0 0
      %3865 = vmatpush1.bf16.msra.mxu0 0
      %3866 = vmatprep.subr.bf16.mxu0 0
      %3867 = vmatpush1.bf16.msra.mxu0 0
      %3868 = vmatprep.subr.bf16.mxu0 0
      %3869 = vmatpush1.bf16.msra.mxu0 0
      %3870 = vmatprep.mubr.bf16.mxu0 0
      %3871 = vmatmul.mubr.bf16.gmra.mrb[0].mxu0 %v3824
      %v3872 = vpop.f32.mrb[0].mxu0
      %v3873 = vadd.f32 %v3778, %v3872
      %v3874 = vpop.f32.mrb[0].mxu0
      %v3875 = vpop.f32.mrb[0].mxu0
      %v3876 = vadd.f32 %v3779, %v3875
      %v3877 = vpop.f32.mrb[0].mxu0
      %3878 = vmatprep.mubr.bf16.mxu0 0
      %3879 = vmatmul.mubr.bf16.gmra.mrb[0].mxu0 %v3827
      %v3880 = vpop.f32.mrb[0].mxu0
      %v3881 = vadd.f32 %v3780, %v3880
      %v3882 = vpop.f32.mrb[0].mxu0
      %v3883 = vpop.f32.mrb[0].mxu0
      %v3884 = vadd.f32 %v3781, %v3883
      %v3885 = vpop.f32.mrb[0].mxu0
      %3886 = vmatprep.mubr.bf16.mxu0 0
      %3887 = vmatmul.mubr.bf16.gmra.mrb[0].mxu0 %v3830
      %v3888 = vpop.f32.mrb[0].mxu0
      %v3889 = vadd.f32 %v3782, %v3888
      %v3890 = vpop.f32.mrb[0].mxu0
      %v3891 = vpop.f32.mrb[0].mxu0
      %v3892 = vadd.f32 %v3783, %v3891
      %v3893 = vpop.f32.mrb[0].mxu0
      %3894 = vmatprep.mubr.bf16.mxu0 0
      %3895 = vmatmul.mubr.bf16.gmra.mrb[0].mxu0 %v3833
      %v3896 = vpop.f32.mrb[0].mxu0
      %v3897 = vadd.f32 %v3784, %v3896
      %v3898 = vpop.f32.mrb[0].mxu0
      %v3899 = vpop.f32.mrb[0].mxu0
      %v3900 = vadd.f32 %v3785, %v3899
      %v3901 = vpop.f32.mrb[0].mxu0
      %3902 = vdwg.mxu0
      %3903 = vst.msk [vmem:[%s305] sm:$0xff] %vm2070, %v3873
      %3904 = vst.msk [vmem:[%s305 + $0x8] sm:$0xff] %vm2070, %v3876
      %3905 = vst.msk [vmem:[%s305 + $0x10] sm:$0xff] %vm2070, %v3881
      %3906 = vst.msk [vmem:[%s305 + $0x18] sm:$0xff] %vm2070, %v3884
      %3907 = vst.msk [vmem:[%s305 + $0x20] sm:$0xff] %vm2070, %v3889
      %3908 = vst.msk [vmem:[%s305 + $0x28] sm:$0xff] %vm2070, %v3892
      %3909 = vst.msk [vmem:[%s305 + $0x30] sm:$0xff] %vm2070, %v3897
      %3910 = vst.msk [vmem:[%s305 + $0x38] sm:$0xff] %vm2070, %v3900
      %p3911 = scmp.lt.s32.totalorder %s19, 3
      %s3912 = scalar_select %p3911, %s19, 3
      %s3913 = smul.addr %s3912, 8
      %s3914 = smul.addr %s3913, 8
      %s3915 = scalar_lea.vmem %s8, %s3914
      // Predicated region
      $region53: #{network_block_forward.2} parent=51 // pred_check
        %p3916 = pneg %p210
      $region54: #{network_block_forward.2} parent=51 // pred_check_branch
        %3918 = sbr.rel (%p3916) target = $region56
      $region55: #{network_block_forward.2} parent=51 // pred_region
        _
      $region56: #{network_block_forward.2} parent=51 // pred_fallthru
        _
    $region52: #{network_block_forward.2} parent=5 // pred_fallthru
      _
    %p3919 = scmp.le.s32.totalorder 2, %s14
    // Predicated region
    $region57: #{network_block_forward.2} parent=5 // pred_check
      %p3920 = pneg %p3919
    $region58: #{network_block_forward.2} parent=5 // pred_check_branch
      %3922 = sbr.rel (%p3920) target = $region60
    $region59: #{network_block_forward.2} parent=5 // pred_region
      %s3923 = ssub.s32 %s14, 2
      // Predicated region
      $region61: #{network_block_forward.2} parent=59 // pred_check
        %p3924 = pneg %p216
      $region62: #{network_block_forward.2} parent=59 // pred_check_branch
        %3926 = sbr.rel (%p3924) target = $region64
      $region63: #{network_block_forward.2} parent=59 // pred_region
        %p3927 = scmp.lt.s32.totalorder %s20, 3
        %s3928 = scalar_select %p3927, %s20, 3
        %s3929 = smul.addr %s3928, 8
        %s3930 = smul.addr %s3929, 8
        %s3931 = scalar_lea.vmem %s8, %s3930
      $region64: #{network_block_forward.2} parent=59 // pred_fallthru
        _
    $region60: #{network_block_forward.2} parent=5 // pred_fallthru
      _
  $region6: #{network_block_forward.2} parent=0 // loop_footer
    %s18 = sadd.s32 1, %s14
  $region7: #{network_block_forward.2} parent=0 // loop_footer_branch
    %13 = sbr.rel target = $region3
  $region8: #{network_block_forward.2} parent=0 // loop_exit
    _

// kernel: network_block_forward.3
$region0: #{network_block_forward.3}
  #allocation0 [shape = 'u32[]', space=smem, size = 0x4, offset = 0x4, fixed_abs, tag = 'smem constant byte address 0x4 - core index']
  #allocation1 [shape = 'u32[144,128]{1,0:T(1,128)}', space=vmem, size = 0x12000, scoped, tag = 'internal scratch']
  #allocation2 [shape = 'bf16[2,10,12,8]{3,2,1,0:T(8,128)(2,1)}', space=vmem, size = 0x14000, scoped, tag = 'scratch operand']
  #allocation3 [shape = 'bf16[2,10,12,8]{3,2,1,0:T(8,128)(2,1)}', space=vmem, size = 0x14000, scoped, tag = 'scratch operand']
  %s0 = inlined_call_operand.vmem [shape: f32[4,8,8,8], index: 0, kind: input, shape index: {}]
  %s1 = inlined_call_operand.vmem [shape: f32[1,8], index: 1, kind: input, shape index: {}]
  %s2 = inlined_call_operand.vmem [shape: f32[1,8], index: 2, kind: input, shape index: {}]
  %s3 = inlined_call_operand.vmem [shape: bf16[9,8,8], index: 3, kind: input, shape index: {}]
  %s4 = inlined_call_operand.vmem [shape: f32[1,8], index: 4, kind: input, shape index: {}]
  %s5 = inlined_call_operand.vmem [shape: f32[1,8], index: 5, kind: input, shape index: {}]
  %s6 = inlined_call_operand.vmem [shape: bf16[9,8,8], index: 6, kind: input, shape index: {}]
  %s7 = inlined_call_operand.vmem [shape: f32[4,8,8,8], index: 7, kind: output, shape index: {}]
  %s8 = sld [smem:[#allocation0]]
  $region61: #{network_block_forward.3} parent=0
    _
  %s10 = ssub.s32 1, %s8
  %s11 = scalar_select 0, %s10, %s8
  loop: start=0, step=1, limit=4
  $region2: #{network_block_forward.3} parent=0 // loop_pre_header
    _
  $region3: #{network_block_forward.3} parent=0 // loop_header
    %s13 = sphi 0, %s17
    %p14 = scmp.ge.s32.totalorder %s13, 4
    %s23 = sphi 0, %s25
    %s26 = sphi 0, %s23
    %s27 = sphi 0, %s26
    %s43 = sphi 0, %s27
    %s47 = sphi 0, %s47
    %s49 = sphi 0, %s47
    %s50 = sphi 0, %s49
    %s64 = sphi 0, %s50
    %s68 = sphi 0, %s68
    %s70 = sphi 0, %s68
    %s71 = sphi 0, %s70
    %s85 = sphi 0, %s71
    %s89 = sphi 0, %s89
    %s91 = sphi 0, %s89
    %s92 = sphi 0, %s91
    %s106 = sphi 0, %s92
    %s110 = sphi 0, %s110
    %s112 = sphi 0, %s110
    %s113 = sphi 0, %s112
    %s127 = sphi 0, %s113
    %s131 = sphi 0, %s131
    %s133 = sphi 0, %s131
    %s134 = sphi 0, %s133
    %s148 = sphi 0, %s134
    %s152 = sphi 0, %s152
    %s154 = sphi 0, %s152
    %s155 = sphi 0, %s154
    %s169 = sphi 0, %s155
    %s175 = sphi 0, %s177
    %s178 = sphi 0, %s175
    %s179 = sphi 0, %s178
    %s195 = sphi 0, %s179
  $region4: #{network_block_forward.3} parent=0 // loop_header_branch
    %16 = sbr.rel (%p14) target = $region8
  $region5: #{network_block_forward.3} parent=0 // loop_body
    %s18 = ssub.s32 %s13, 1
    %s19 = ssub.s32 %s13, 2
    %s20 = sadd.s32 %s13, 1
    %s21 = ssub.s32 %s13, %s20
    %p22 = scmp.eq.s32.totalorder %s21, 0
    %s24 = sadd.s32 %s23, 1
    %s25 = scalar_select %p22, %s23, %s24
    %p28 = pneg %p22
    %p29 = scmp.eq.s32.totalorder %s13, 1
    %p30 = por %p28, %p29
    %p31 = scmp.ne.s32.totalorder %s23, %s26
    %p32 = scmp.eq.s32.totalorder %s13, 0
    %p33 = por %p31, %p32
    %p34 = scmp.ne.s32.totalorder %s23, %s26
    %p35 = scmp.eq.s32.totalorder %s18, 1
    %p36 = por %p34, %p35
    %p37 = scmp.ne.s32.totalorder %s26, %s27
    %p38 = scmp.eq.s32.totalorder %s18, 0
    %p39 = por %p37, %p38
    %p40 = scmp.ne.s32.totalorder %s26, %s27
    %p41 = scmp.eq.s32.totalorder %s19, 1
    %p42 = por %p40, %p41
    %p44 = scmp.ne.s32.totalorder %s27, %s43
    %p45 = scmp.eq.s32.totalorder %s19, 0
    %p46 = por %p44, %p45
    %s48 = sadd.s32 %s47, 1
    %p51 = scmp.eq.s32.totalorder %s13, 1
    %p52 = scmp.ne.s32.totalorder %s47, %s49
    %p53 = scmp.eq.s32.totalorder %s13, 0
    %p54 = por %p52, %p53
    %p55 = scmp.ne.s32.totalorder %s47, %s49
    %p56 = scmp.eq.s32.totalorder %s18, 1
    %p57 = por %p55, %p56
    %p58 = scmp.ne.s32.totalorder %s49, %s50
    %p59 = scmp.eq.s32.totalorder %s18, 0
    %p60 = por %p58, %p59
    %p61 = scmp.ne.s32.totalorder %s49, %s50
    %p62 = scmp.eq.s32.totalorder %s19, 1
    %p63 = por %p61, %p62
    %p65 = scmp.ne.s32.totalorder %s50, %s64
    %p66 = scmp.eq.s32.totalorder %s19, 0
    %p67 = por %p65, %p66
    %s69 = sadd.s32 %s68, 1
    %p72 = scmp.eq.s32.totalorder %s13, 1
    %p73 = scmp.ne.s32.totalorder %s68, %s70
    %p74 = scmp.eq.s32.totalorder %s13, 0
    %p75 = por %p73, %p74
    %p76 = scmp.ne.s32.totalorder %s68, %s70
    %p77 = scmp.eq.s32.totalorder %s18, 1
    %p78 = por %p76, %p77
    %p79 = scmp.ne.s32.totalorder %s70, %s71
    %p80 = scmp.eq.s32.totalorder %s18, 0
    %p81 = por %p79, %p80
    %p82 = scmp.ne.s32.totalorder %s70, %s71
    %p83 = scmp.eq.s32.totalorder %s19, 1
    %p84 = por %p82, %p83
    %p86 = scmp.ne.s32.totalorder %s71, %s85
    %p87 = scmp.eq.s32.totalorder %s19, 0
    %p88 = por %p86, %p87
    %s90 = sadd.s32 %s89, 1
    %p93 = scmp.eq.s32.totalorder %s13, 1
    %p94 = scmp.ne.s32.totalorder %s89, %s91
    %p95 = scmp.eq.s32.totalorder %s13, 0
    %p96 = por %p94, %p95
    %p97 = scmp.ne.s32.totalorder %s89, %s91
    %p98 = scmp.eq.s32.totalorder %s18, 1
    %p99 = por %p97, %p98
    %p100 = scmp.ne.s32.totalorder %s91, %s92
    %p101 = scmp.eq.s32.totalorder %s18, 0
    %p102 = por %p100, %p101
    %p103 = scmp.ne.s32.totalorder %s91, %s92
    %p104 = scmp.eq.s32.totalorder %s19, 1
    %p105 = por %p103, %p104
    %p107 = scmp.ne.s32.totalorder %s92, %s106
    %p108 = scmp.eq.s32.totalorder %s19, 0
    %p109 = por %p107, %p108
    %s111 = sadd.s32 %s110, 1
    %p114 = scmp.eq.s32.totalorder %s13, 1
    %p115 = scmp.ne.s32.totalorder %s110, %s112
    %p116 = scmp.eq.s32.totalorder %s13, 0
    %p117 = por %p115, %p116
    %p118 = scmp.ne.s32.totalorder %s110, %s112
    %p119 = scmp.eq.s32.totalorder %s18, 1
    %p120 = por %p118, %p119
    %p121 = scmp.ne.s32.totalorder %s112, %s113
    %p122 = scmp.eq.s32.totalorder %s18, 0
    %p123 = por %p121, %p122
    %p124 = scmp.ne.s32.totalorder %s112, %s113
    %p125 = scmp.eq.s32.totalorder %s19, 1
    %p126 = por %p124, %p125
    %p128 = scmp.ne.s32.totalorder %s113, %s127
    %p129 = scmp.eq.s32.totalorder %s19, 0
    %p130 = por %p128, %p129
    %s132 = sadd.s32 %s131, 1
    %p135 = scmp.eq.s32.totalorder %s13, 1
    %p136 = scmp.ne.s32.totalorder %s131, %s133
    %p137 = scmp.eq.s32.totalorder %s13, 0
    %p138 = por %p136, %p137
    %p139 = scmp.ne.s32.totalorder %s131, %s133
    %p140 = scmp.eq.s32.totalorder %s18, 1
    %p141 = por %p139, %p140
    %p142 = scmp.ne.s32.totalorder %s133, %s134
    %p143 = scmp.eq.s32.totalorder %s18, 0
    %p144 = por %p142, %p143
    %p145 = scmp.ne.s32.totalorder %s133, %s134
    %p146 = scmp.eq.s32.totalorder %s19, 1
    %p147 = por %p145, %p146
    %p149 = scmp.ne.s32.totalorder %s134, %s148
    %p150 = scmp.eq.s32.totalorder %s19, 0
    %p151 = por %p149, %p150
    %s153 = sadd.s32 %s152, 1
    %p156 = scmp.eq.s32.totalorder %s13, 1
    %p157 = scmp.ne.s32.totalorder %s152, %s154
    %p158 = scmp.eq.s32.totalorder %s13, 0
    %p159 = por %p157, %p158
    %p160 = scmp.ne.s32.totalorder %s152, %s154
    %p161 = scmp.eq.s32.totalorder %s18, 1
    %p162 = por %p160, %p161
    %p163 = scmp.ne.s32.totalorder %s154, %s155
    %p164 = scmp.eq.s32.totalorder %s18, 0
    %p165 = por %p163, %p164
    %p166 = scmp.ne.s32.totalorder %s154, %s155
    %p167 = scmp.eq.s32.totalorder %s19, 1
    %p168 = por %p166, %p167
    %p170 = scmp.ne.s32.totalorder %s155, %s169
    %p171 = scmp.eq.s32.totalorder %s19, 0
    %p172 = por %p170, %p171
    %s173 = ssub.s32 %s13, %s20
    %p174 = scmp.eq.s32.totalorder %s173, 0
    %s176 = sadd.s32 %s175, 1
    %s177 = scalar_select %p174, %s175, %s176
    %p180 = pneg %p174
    %p181 = scmp.eq.s32.totalorder %s13, 1
    %p182 = por %p180, %p181
    %p183 = scmp.ne.s32.totalorder %s175, %s178
    %p184 = scmp.eq.s32.totalorder %s13, 0
    %p185 = por %p183, %p184
    %p186 = scmp.ne.s32.totalorder %s175, %s178
    %p187 = scmp.eq.s32.totalorder %s18, 1
    %p188 = por %p186, %p187
    %p189 = scmp.ne.s32.totalorder %s178, %s179
    %p190 = scmp.eq.s32.totalorder %s18, 0
    %p191 = por %p189, %p190
    %p192 = scmp.ne.s32.totalorder %s178, %s179
    %p193 = scmp.eq.s32.totalorder %s19, 1
    %p194 = por %p192, %p193
    %p196 = scmp.ne.s32.totalorder %s179, %s195
    %p197 = scmp.eq.s32.totalorder %s19, 0
    %p198 = por %p196, %p197
    %p199 = scmp.le.s32.totalorder 1, %s13
    %p200 = scmp.lt.s32.totalorder %s13, 3
    %p201 = pnand %p199, %p200
    %p202 = pneg %p201
    // Predicated region
    $region9: #{network_block_forward.3} parent=5 // pred_check
      _
    $region10: #{network_block_forward.3} parent=5 // pred_check_branch
      %204 = sbr.rel (%p201) target = $region12
    $region11: #{network_block_forward.3} parent=5 // pred_region
      %s205 = ssub.s32 %s13, 1
      // Predicated region
      $region13: #{network_block_forward.3} parent=11 // pred_check
        %p206 = pneg %p60
      $region14: #{network_block_forward.3} parent=11 // pred_check_branch
        %208 = sbr.rel (%p206) target = $region16
      $region15: #{network_block_forward.3} parent=11 // pred_region
        _
      $region16: #{network_block_forward.3} parent=11 // pred_fallthru
        _
      // Predicated region
      $region17: #{network_block_forward.3} parent=11 // pred_check
        %p209 = pneg %p81
      $region18: #{network_block_forward.3} parent=11 // pred_check_branch
        %211 = sbr.rel (%p209) target = $region20
      $region19: #{network_block_forward.3} parent=11 // pred_region
        _
      $region20: #{network_block_forward.3} parent=11 // pred_fallthru
        _
      // Predicated region
      $region21: #{network_block_forward.3} parent=11 // pred_check
        %p212 = pneg %p102
      $region22: #{network_block_forward.3} parent=11 // pred_check_branch
        %214 = sbr.rel (%p212) target = $region24
      $region23: #{network_block_forward.3} parent=11 // pred_region
        _
      $region24: #{network_block_forward.3} parent=11 // pred_fallthru
        _
      // Predicated region
      $region25: #{network_block_forward.3} parent=11 // pred_check
        %p215 = pneg %p123
      $region26: #{network_block_forward.3} parent=11 // pred_check_branch
        %217 = sbr.rel (%p215) target = $region28
      $region27: #{network_block_forward.3} parent=11 // pred_region
        _
      $region28: #{network_block_forward.3} parent=11 // pred_fallthru
        _
      // Predicated region
      $region29: #{network_block_forward.3} parent=11 // pred_check
        %p218 = pneg %p144
      $region30: #{network_block_forward.3} parent=11 // pred_check_branch
        %220 = sbr.rel (%p218) target = $region32
      $region31: #{network_block_forward.3} parent=11 // pred_region
        _
      $region32: #{network_block_forward.3} parent=11 // pred_fallthru
        _
      // Predicated region
      $region33: #{network_block_forward.3} parent=11 // pred_check
        %p221 = pneg %p165
      $region34: #{network_block_forward.3} parent=11 // pred_check_branch
        %223 = sbr.rel (%p221) target = $region36
      $region35: #{network_block_forward.3} parent=11 // pred_region
        _
      $region36: #{network_block_forward.3} parent=11 // pred_fallthru
        _
    $region12: #{network_block_forward.3} parent=5 // pred_fallthru
      _
    %p224 = scmp.lt.s32.totalorder %s13, 2
    // Predicated region
    $region37: #{network_block_forward.3} parent=5 // pred_check
      %p225 = pneg %p224
    $region38: #{network_block_forward.3} parent=5 // pred_check_branch
      %227 = sbr.rel (%p225) target = $region40
    $region39: #{network_block_forward.3} parent=5 // pred_region
      // Predicated region
      $region41: #{network_block_forward.3} parent=39 // pred_check
        %p228 = pneg %p33
      $region42: #{network_block_forward.3} parent=39 // pred_check_branch
        %230 = sbr.rel (%p228) target = $region44
      $region43: #{network_block_forward.3} parent=39 // pred_region
        %s231 = smul.u32 2, %s13
        %p232 = scmp.lt.s32.totalorder %s231, 3
        %s233 = scalar_select %p232, %s231, 3
        %s234 = smul.addr %s233, 8
        %s235 = smul.addr %s234, 8
        %s236 = scalar_lea.vmem %s0, %s235
        %s237 = smul.u32 2, %s13
      $region44: #{network_block_forward.3} parent=39 // pred_fallthru
        _
    $region40: #{network_block_forward.3} parent=5 // pred_fallthru
      _
    %p238 = scmp.le.s32.totalorder 1, %s13
    %p239 = scmp.lt.s32.totalorder %s13, 3
    %p240 = pnand %p238, %p239
    %p241 = pneg %p240
    // Predicated region
    $region45: #{network_block_forward.3} parent=5 // pred_check
      _
    $region46: #{network_block_forward.3} parent=5 // pred_check_branch
      %243 = sbr.rel (%p240) target = $region48
    $region47: #{network_block_forward.3} parent=5 // pred_region
      %s244 = ssub.s32 %s13, 1
      %s245 = smul.u32 2, %s18
      %p246 = scmp.lt.s32.totalorder %s245, 3
      %s247 = scalar_select %p246, %s245, 3
      %s248 = smul.addr %s247, 8
      %s249 = smul.addr %s248, 8
      %s250 = scalar_lea.vmem %s0, %s249
      %p251 = pneg %p39
      %p252 = pneg %p36
      %p253 = pneg %p60
      %p254 = pneg %p57
      %p255 = pneg %p81
      %p256 = pneg %p78
      %p257 = pneg %p102
      %p258 = pneg %p99
      %p259 = pneg %p123
      %p260 = pneg %p120
      %p261 = pneg %p144
      %p262 = pneg %p141
      %p263 = pneg %p165
      %p264 = pneg %p162
      %p265 = pneg %p191
      %p266 = pneg %p188
      %s267 = smul.u32 2, %s18
      %p268 = scmp.lt.s32.totalorder %s267, 3
      %s269 = scalar_select %p268, %s267, 3
      %s270 = smul.addr %s269, 8
      %s271 = smul.addr %s270, 8
      %s272 = scalar_lea.vmem %s7, %s271
      %s273 = smul.u32 2, %s18
      %p274 = scmp.lt.s32.totalorder %s273, 3
      %s275 = scalar_select %p274, %s273, 3
      %s276 = smul.addr %s275, 8
      %s277 = smul.addr %s276, 8
      %s278 = scalar_lea.vmem %s0, %s277
      %s279 = smul.u32 2, %s18
      %s280 = smul.u32 2, %s18
      %p281 = scmp.lt.s32.totalorder %s280, 3
      %s282 = scalar_select %p281, %s280, 3
      %s283 = smul.addr %s282, 8
      %s284 = smul.addr %s283, 8
      %s285 = scalar_lea.vmem %s7, %s284
      %s286 = smul.u32 2, %s18
      %vm288 = vcmask 60416
      %289 = vst.msk [vmem:[#allocation2] sm:$0xf] %vm288, 0
      %vm290 = vcmask 58368
      %291 = vst.msk [vmem:[#allocation2 + $0x4] sm:$0x3] %vm290, 0
      %292 = vst.msk [vmem:[#allocation2 + $0x50] sm:$0xf] %vm288, 0
      %293 = vst.msk [vmem:[#allocation2 + $0x54] sm:$0x3] %vm290, 0
      %s294 = scalar_lea.vmem [#allocation2], 72
      %295 = vst.msk [vmem:[%s294] sm:$0xf] %vm288, 0
      %296 = vst.msk [vmem:[%s294 + $0x4] sm:$0x3] %vm290, 0
      %297 = vst.msk [vmem:[%s294 + $0x50] sm:$0xf] %vm288, 0
      %298 = vst.msk [vmem:[%s294 + $0x54] sm:$0x3] %vm290, 0
      %vm299 = vcmask 57344
      %300 = vst.msk [vmem:[#allocation2] sm:$0x1] %vm299, 0
      %301 = vst.msk [vmem:[#allocation2 + $0x8] sm:$0x1] %vm299, 0
      %302 = vst.msk [vmem:[#allocation2 + $0x10] sm:$0x1] %vm299, 0
      %303 = vst.msk [vmem:[#allocation2 + $0x18] sm:$0x1] %vm299, 0
      %304 = vst.msk [vmem:[#allocation2 + $0x20] sm:$0x1] %vm299, 0
      %305 = vst.msk [vmem:[#allocation2 + $0x28] sm:$0x1] %vm299, 0
      %306 = vst.msk [vmem:[#allocation2 + $0x30] sm:$0x1] %vm299, 0
      %307 = vst.msk [vmem:[#allocation2 + $0x38] sm:$0x1] %vm299, 0
      %308 = vst.msk [vmem:[#allocation2 + $0x40] sm:$0x1] %vm299, 0
      %309 = vst.msk [vmem:[#allocation2 + $0x48] sm:$0x1] %vm299, 0
      %310 = vst.msk [vmem:[#allocation2 + $0x50] sm:$0x1] %vm299, 0
      %311 = vst.msk [vmem:[#allocation2 + $0x58] sm:$0x1] %vm299, 0
      %312 = vst.msk [vmem:[#allocation2 + $0x60] sm:$0x1] %vm299, 0
      %313 = vst.msk [vmem:[#allocation2 + $0x68] sm:$0x1] %vm299, 0
      %314 = vst.msk [vmem:[#allocation2 + $0x70] sm:$0x1] %vm299, 0
      %315 = vst.msk [vmem:[#allocation2 + $0x78] sm:$0x1] %vm299, 0
      %316 = vst.msk [vmem:[#allocation2 + $0x80] sm:$0x1] %vm299, 0
      %317 = vst.msk [vmem:[#allocation2 + $0x88] sm:$0x1] %vm299, 0
      %318 = vst.msk [vmem:[#allocation2 + $0x90] sm:$0x1] %vm299, 0
      %319 = vst.msk [vmem:[#allocation2 + $0x98] sm:$0x1] %vm299, 0
      %vm320 = vcmask 58369
      %321 = vst.msk [vmem:[#allocation2 + $0x4] sm:$0x2] %vm320, 0
      %322 = vst.msk [vmem:[#allocation2 + $0xc] sm:$0x2] %vm320, 0
      %323 = vst.msk [vmem:[#allocation2 + $0x14] sm:$0x2] %vm320, 0
      %324 = vst.msk [vmem:[#allocation2 + $0x1c] sm:$0x2] %vm320, 0
      %325 = vst.msk [vmem:[#allocation2 + $0x24] sm:$0x2] %vm320, 0
      %326 = vst.msk [vmem:[#allocation2 + $0x2c] sm:$0x2] %vm320, 0
      %327 = vst.msk [vmem:[#allocation2 + $0x34] sm:$0x2] %vm320, 0
      %328 = vst.msk [vmem:[#allocation2 + $0x3c] sm:$0x2] %vm320, 0
      %329 = vst.msk [vmem:[#allocation2 + $0x44] sm:$0x2] %vm320, 0
      %330 = vst.msk [vmem:[#allocation2 + $0x4c] sm:$0x2] %vm320, 0
      %331 = vst.msk [vmem:[#allocation2 + $0x54] sm:$0x2] %vm320, 0
      %332 = vst.msk [vmem:[#allocation2 + $0x5c] sm:$0x2] %vm320, 0
      %333 = vst.msk [vmem:[#allocation2 + $0x64] sm:$0x2] %vm320, 0
      %334 = vst.msk [vmem:[#allocation2 + $0x6c] sm:$0x2] %vm320, 0
      %335 = vst.msk [vmem:[#allocation2 + $0x74] sm:$0x2] %vm320, 0
      %336 = vst.msk [vmem:[#allocation2 + $0x7c] sm:$0x2] %vm320, 0
      %337 = vst.msk [vmem:[#allocation2 + $0x84] sm:$0x2] %vm320, 0
      %338 = vst.msk [vmem:[#allocation2 + $0x8c] sm:$0x2] %vm320, 0
      %339 = vst.msk [vmem:[#allocation2 + $0x94] sm:$0x2] %vm320, 0
      %340 = vst.msk [vmem:[#allocation2 + $0x9c] sm:$0x2] %vm320, 0
      %341 = vst.msk [vmem:[#allocation3] sm:$0xf] %vm288, 0
      %342 = vst.msk [vmem:[#allocation3 + $0x4] sm:$0x3] %vm290, 0
      %343 = vst.msk [vmem:[#allocation3 + $0x50] sm:$0xf] %vm288, 0
      %344 = vst.msk [vmem:[#allocation3 + $0x54] sm:$0x3] %vm290, 0
      %s345 = scalar_lea.vmem [#allocation3], 72
      %346 = vst.msk [vmem:[%s345] sm:$0xf] %vm288, 0
      %347 = vst.msk [vmem:[%s345 + $0x4] sm:$0x3] %vm290, 0
      %348 = vst.msk [vmem:[%s345 + $0x50] sm:$0xf] %vm288, 0
      %349 = vst.msk [vmem:[%s345 + $0x54] sm:$0x3] %vm290, 0
      %350 = vst.msk [vmem:[#allocation3] sm:$0x1] %vm299, 0
      %351 = vst.msk [vmem:[#allocation3 + $0x8] sm:$0x1] %vm299, 0
      %352 = vst.msk [vmem:[#allocation3 + $0x10] sm:$0x1] %vm299, 0
      %353 = vst.msk [vmem:[#allocation3 + $0x18] sm:$0x1] %vm299, 0
      %354 = vst.msk [vmem:[#allocation3 + $0x20] sm:$0x1] %vm299, 0
      %355 = vst.msk [vmem:[#allocation3 + $0x28] sm:$0x1] %vm299, 0
      %356 = vst.msk [vmem:[#allocation3 + $0x30] sm:$0x1] %vm299, 0
      %357 = vst.msk [vmem:[#allocation3 + $0x38] sm:$0x1] %vm299, 0
      %358 = vst.msk [vmem:[#allocation3 + $0x40] sm:$0x1] %vm299, 0
      %359 = vst.msk [vmem:[#allocation3 + $0x48] sm:$0x1] %vm299, 0
      %360 = vst.msk [vmem:[#allocation3 + $0x50] sm:$0x1] %vm299, 0
      %361 = vst.msk [vmem:[#allocation3 + $0x58] sm:$0x1] %vm299, 0
      %362 = vst.msk [vmem:[#allocation3 + $0x60] sm:$0x1] %vm299, 0
      %363 = vst.msk [vmem:[#allocation3 + $0x68] sm:$0x1] %vm299, 0
      %364 = vst.msk [vmem:[#allocation3 + $0x70] sm:$0x1] %vm299, 0
      %365 = vst.msk [vmem:[#allocation3 + $0x78] sm:$0x1] %vm299, 0
      %366 = vst.msk [vmem:[#allocation3 + $0x80] sm:$0x1] %vm299, 0
      %367 = vst.msk [vmem:[#allocation3 + $0x88] sm:$0x1] %vm299, 0
      %368 = vst.msk [vmem:[#allocation3 + $0x90] sm:$0x1] %vm299, 0
      %369 = vst.msk [vmem:[#allocation3 + $0x98] sm:$0x1] %vm299, 0
      %370 = vst.msk [vmem:[#allocation3 + $0x4] sm:$0x2] %vm320, 0
      %371 = vst.msk [vmem:[#allocation3 + $0xc] sm:$0x2] %vm320, 0
      %372 = vst.msk [vmem:[#allocation3 + $0x14] sm:$0x2] %vm320, 0
      %373 = vst.msk [vmem:[#allocation3 + $0x1c] sm:$0x2] %vm320, 0
      %374 = vst.msk [vmem:[#allocation3 + $0x24] sm:$0x2] %vm320, 0
      %375 = vst.msk [vmem:[#allocation3 + $0x2c] sm:$0x2] %vm320, 0
      %376 = vst.msk [vmem:[#allocation3 + $0x34] sm:$0x2] %vm320, 0
      %377 = vst.msk [vmem:[#allocation3 + $0x3c] sm:$0x2] %vm320, 0
      %378 = vst.msk [vmem:[#allocation3 + $0x44] sm:$0x2] %vm320, 0
      %379 = vst.msk [vmem:[#allocation3 + $0x4c] sm:$0x2] %vm320, 0
      %380 = vst.msk [vmem:[#allocation3 + $0x54] sm:$0x2] %vm320, 0
      %381 = vst.msk [vmem:[#allocation3 + $0x5c] sm:$0x2] %vm320, 0
      %382 = vst.msk [vmem:[#allocation3 + $0x64] sm:$0x2] %vm320, 0
      %383 = vst.msk [vmem:[#allocation3 + $0x6c] sm:$0x2] %vm320, 0
      %384 = vst.msk [vmem:[#allocation3 + $0x74] sm:$0x2] %vm320, 0
      %385 = vst.msk [vmem:[#allocation3 + $0x7c] sm:$0x2] %vm320, 0
      %386 = vst.msk [vmem:[#allocation3 + $0x84] sm:$0x2] %vm320, 0
      %387 = vst.msk [vmem:[#allocation3 + $0x8c] sm:$0x2] %vm320, 0
      %388 = vst.msk [vmem:[#allocation3 + $0x94] sm:$0x2] %vm320, 0
      %389 = vst.msk [vmem:[#allocation3 + $0x9c] sm:$0x2] %vm320, 0
      %v390 = vld [vmem:[%s278] sm:$0xff]
      %v391 = vld [vmem:[%s278 + $0x8] sm:$0xff]
      %v392 = vld [vmem:[%s278 + $0x10] sm:$0xff]
      %v393 = vld [vmem:[%s278 + $0x18] sm:$0xff]
      %v394 = vld [vmem:[%s278 + $0x20] sm:$0xff]
      %v395 = vld [vmem:[%s278 + $0x28] sm:$0xff]
      %v396 = vld [vmem:[%s278 + $0x30] sm:$0xff]
      %v397 = vld [vmem:[%s278 + $0x38] sm:$0xff]
      %v398 = vld [vmem:[%s278 + $0x40] sm:$0xff]
      %v399 = vld [vmem:[%s278 + $0x48] sm:$0xff]
      %v400 = vld [vmem:[%s278 + $0x50] sm:$0xff]
      %v401 = vld [vmem:[%s278 + $0x58] sm:$0xff]
      %v402 = vld [vmem:[%s278 + $0x60] sm:$0xff]
      %v403 = vld [vmem:[%s278 + $0x68] sm:$0xff]
      %v404 = vld [vmem:[%s278 + $0x70] sm:$0xff]
      %v405 = vld [vmem:[%s278 + $0x78] sm:$0xff]
      %v406 = vld [vmem:[%s1] sm:$0x1]
      %v408 = vlaneseq
      %v409 = vshrl.u32 %v408, 7
      %v410 = vsub.s32 0, %v409
      %v411 = vrot.slane %v406, %v410
      %v413 = vmul.f32 %v390, %v411
      %v414 = vmul.f32 %v391, %v411
      %v415 = vmul.f32 %v392, %v411
      %v416 = vmul.f32 %v393, %v411
      %v417 = vmul.f32 %v394, %v411
      %v418 = vmul.f32 %v395, %v411
      %v419 = vmul.f32 %v396, %v411
      %v420 = vmul.f32 %v397, %v411
      %v421 = vmul.f32 %v398, %v411
      %v422 = vmul.f32 %v399, %v411
      %v423 = vmul.f32 %v400, %v411
      %v424 = vmul.f32 %v401, %v411
      %v425 = vmul.f32 %v402, %v411
      %v426 = vmul.f32 %v403, %v411
      %v427 = vmul.f32 %v404, %v411
      %v428 = vmul.f32 %v405, %v411
      %v429 = vld [vmem:[%s2] sm:$0x1]
      %v431 = vlaneseq
      %v432 = vshrl.u32 %v431, 7
      %v433 = vsub.s32 0, %v432
      %v434 = vrot.slane %v429, %v433
      %v436 = vadd.f32 %v413, %v434
      %v437 = vadd.f32 %v414, %v434
      %v438 = vadd.f32 %v415, %v434
      %v439 = vadd.f32 %v416, %v434
      %v440 = vadd.f32 %v417, %v434
      %v441 = vadd.f32 %v418, %v434
      %v442 = vadd.f32 %v419, %v434
      %v443 = vadd.f32 %v420, %v434
      %v444 = vadd.f32 %v421, %v434
      %v445 = vadd.f32 %v422, %v434
      %v446 = vadd.f32 %v423, %v434
      %v447 = vadd.f32 %v424, %v434
      %v448 = vadd.f32 %v425, %v434
      %v449 = vadd.f32 %v426, %v434
      %v450 = vadd.f32 %v427, %v434
      %v451 = vadd.f32 %v428, %v434
      %v452 = vmax.f32 %v436, 0.0
      %v453 = vmax.f32 %v437, 0.0
      %v454 = vmax.f32 %v438, 0.0
      %v455 = vmax.f32 %v439, 0.0
      %v456 = vmax.f32 %v440, 0.0
      %v457 = vmax.f32 %v441, 0.0
      %v458 = vmax.f32 %v442, 0.0
      %v459 = vmax.f32 %v443, 0.0
      %v460 = vmax.f32 %v444, 0.0
      %v461 = vmax.f32 %v445, 0.0
      %v462 = vmax.f32 %v446, 0.0
      %v463 = vmax.f32 %v447, 0.0
      %v464 = vmax.f32 %v448, 0.0
      %v465 = vmax.f32 %v449, 0.0
      %v466 = vmax.f32 %v450, 0.0
      %v467 = vmax.f32 %v451, 0.0
      %v468 = vpack.c.bf16 %v452, %v452
      %v469 = vpack.c.bf16 %v453, %v453
      %v470 = vpack.c.bf16 %v454, %v454
      %v471 = vpack.c.bf16 %v455, %v455
      %v472 = vpack.c.bf16 %v456, %v456
      %v473 = vpack.c.bf16 %v457, %v457
      %v474 = vpack.c.bf16 %v458, %v458
      %v475 = vpack.c.bf16 %v459, %v459
      %v476 = vpack.c.bf16 %v460, %v460
      %v477 = vpack.c.bf16 %v461, %v461
      %v478 = vpack.c.bf16 %v462, %v462
      %v479 = vpack.c.bf16 %v463, %v463
      %v480 = vpack.c.bf16 %v464, %v464
      %v481 = vpack.c.bf16 %v465, %v465
      %v482 = vpack.c.bf16 %v466, %v466
      %v483 = vpack.c.bf16 %v467, %v467
      %v500 = vunpack.c.l.b16 %v468
      %v501 = vunpack.c.l.b16 %v469
      %v502 = vunpack.c.l.b16 %v470
      %v503 = vunpack.c.l.b16 %v471
      %v504 = vunpack.c.l.b16 %v472
      %v505 = vunpack.c.l.b16 %v473
      %v506 = vunpack.c.l.b16 %v474
      %v507 = vunpack.c.l.b16 %v475
      %v508 = vunpack.c.l.b16 %v476
      %v509 = vunpack.c.l.b16 %v477
      %v510 = vunpack.c.l.b16 %v478
      %v511 = vunpack.c.l.b16 %v479
      %v512 = vunpack.c.l.b16 %v480
      %v513 = vunpack.c.l.b16 %v481
      %v514 = vunpack.c.l.b16 %v482
      %v515 = vunpack.c.l.b16 %v483
      %v516 = vpack.c.b16 %v500, %v500
      %v517 = vpack.c.b16 %v501, %v501
      %v518 = vpack.c.b16 %v502, %v502
      %v519 = vpack.c.b16 %v503, %v503
      %v520 = vpack.c.b16 %v504, %v504
      %v521 = vpack.c.b16 %v505, %v505
      %v522 = vpack.c.b16 %v506, %v506
      %v523 = vpack.c.b16 %v507, %v507
      %v524 = vpack.c.b16 %v508, %v508
      %v525 = vpack.c.b16 %v509, %v509
      %v526 = vpack.c.b16 %v510, %v510
      %v527 = vpack.c.b16 %v511, %v511
      %v528 = vpack.c.b16 %v512, %v512
      %v529 = vpack.c.b16 %v513, %v513
      %v530 = vpack.c.b16 %v514, %v514
      %v531 = vpack.c.b16 %v515, %v515
      %v532 = vrot.slane %v516, 7
      %v533 = vrot.slane %v532, 4
      %v534 = vrot.slane %v517, 7
      %v535 = vrot.slane %v534, 4
      %v536 = vrot.slane %v518, 7
      %v537 = vrot.slane %v536, 4
      %v538 = vrot.slane %v519, 7
      %v539 = vrot.slane %v538, 4
      %v540 = vrot.slane %v520, 7
      %v541 = vrot.slane %v540, 4
      %v542 = vrot.slane %v521, 7
      %v543 = vrot.slane %v542, 4
      %v544 = vrot.slane %v522, 7
      %v545 = vrot.slane %v544, 4
      %v546 = vrot.slane %v523, 7
      %v547 = vrot.slane %v546, 4
      %v548 = vrot.slane %v524, 7
      %v549 = vrot.slane %v548, 4
      %v550 = vrot.slane %v525, 7
      %v551 = vrot.slane %v550, 4
      %v552 = vrot.slane %v526, 7
      %v553 = vrot.slane %v552, 4
      %v554 = vrot.slane %v527, 7
      %v555 = vrot.slane %v554, 4
      %v556 = vrot.slane %v528, 7
      %v557 = vrot.slane %v556, 4
      %v558 = vrot.slane %v529, 7
      %v559 = vrot.slane %v558, 4
      %v560 = vrot.slane %v530, 7
      %v561 = vrot.slane %v560, 4
      %v562 = vrot.slane %v531, 7
      %v563 = vrot.slane %v562, 4
      %s596 = scalar_lea.vmem [#allocation2], 8
      %vm597 = vcmask 60417
      %598 = vst.msk [vmem:[%s596] sm:$0xe] %vm597, %v532
      %599 = vst.msk [vmem:[%s596 + $0x4] sm:$0x1] %vm299, %v533
      %600 = vst.msk [vmem:[%s596 + $0x8] sm:$0xe] %vm597, %v534
      %601 = vst.msk [vmem:[%s596 + $0xc] sm:$0x1] %vm299, %v535
      %602 = vst.msk [vmem:[%s596 + $0x10] sm:$0xe] %vm597, %v536
      %603 = vst.msk [vmem:[%s596 + $0x14] sm:$0x1] %vm299, %v537
      %604 = vst.msk [vmem:[%s596 + $0x18] sm:$0xe] %vm597, %v538
      %605 = vst.msk [vmem:[%s596 + $0x1c] sm:$0x1] %vm299, %v539
      %606 = vst.msk [vmem:[%s596 + $0x20] sm:$0xe] %vm597, %v540
      %607 = vst.msk [vmem:[%s596 + $0x24] sm:$0x1] %vm299, %v541
      %608 = vst.msk [vmem:[%s596 + $0x28] sm:$0xe] %vm597, %v542
      %609 = vst.msk [vmem:[%s596 + $0x2c] sm:$0x1] %vm299, %v543
      %610 = vst.msk [vmem:[%s596 + $0x30] sm:$0xe] %vm597, %v544
      %611 = vst.msk [vmem:[%s596 + $0x34] sm:$0x1] %vm299, %v545
      %612 = vst.msk [vmem:[%s596 + $0x38] sm:$0xe] %vm597, %v546
      %613 = vst.msk [vmem:[%s596 + $0x3c] sm:$0x1] %vm299, %v547
      %614 = vst.msk [vmem:[%s596 + $0x50] sm:$0xe] %vm597, %v548
      %615 = vst.msk [vmem:[%s596 + $0x54] sm:$0x1] %vm299, %v549
      %616 = vst.msk [vmem:[%s596 + $0x58] sm:$0xe] %vm597, %v550
      %617 = vst.msk [vmem:[%s596 + $0x5c] sm:$0x1] %vm299, %v551
      %618 = vst.msk [vmem:[%s596 + $0x60] sm:$0xe] %vm597, %v552
      %619 = vst.msk [vmem:[%s596 + $0x64] sm:$0x1] %vm299, %v553
      %620 = vst.msk [vmem:[%s596 + $0x68] sm:$0xe] %vm597, %v554
      %621 = vst.msk [vmem:[%s596 + $0x6c] sm:$0x1] %vm299, %v555
      %622 = vst.msk [vmem:[%s596 + $0x70] sm:$0xe] %vm597, %v556
      %623 = vst.msk [vmem:[%s596 + $0x74] sm:$0x1] %vm299, %v557
      %624 = vst.msk [vmem:[%s596 + $0x78] sm:$0xe] %vm597, %v558
      %625 = vst.msk [vmem:[%s596 + $0x7c] sm:$0x1] %vm299, %v559
      %626 = vst.msk [vmem:[%s596 + $0x80] sm:$0xe] %vm597, %v560
      %627 = vst.msk [vmem:[%s596 + $0x84] sm:$0x1] %vm299, %v561
      %628 = vst.msk [vmem:[%s596 + $0x88] sm:$0xe] %vm597, %v562
      %629 = vst.msk [vmem:[%s596 + $0x8c] sm:$0x1] %vm299, %v563
      %v630 = vld [vmem:[#allocation2] sm:$0xf]
      %v631 = vld [vmem:[#allocation2 + $0x4] sm:$0x1]
      %v632 = vld [vmem:[#allocation2 + $0x8] sm:$0xf]
      %v633 = vld [vmem:[#allocation2 + $0xc] sm:$0x1]
      %v634 = vld [vmem:[#allocation2 + $0x10] sm:$0xf]
      %v635 = vld [vmem:[#allocation2 + $0x14] sm:$0x1]
      %v636 = vld [vmem:[#allocation2 + $0x18] sm:$0xf]
      %v637 = vld [vmem:[#allocation2 + $0x1c] sm:$0x1]
      %v638 = vld [vmem:[#allocation2 + $0x20] sm:$0xf]
      %v639 = vld [vmem:[#allocation2 + $0x24] sm:$0x1]
      %v640 = vld [vmem:[#allocation2 + $0x28] sm:$0xf]
      %v641 = vld [vmem:[#allocation2 + $0x2c] sm:$0x1]
      %v642 = vld [vmem:[#allocation2 + $0x30] sm:$0xf]
      %v643 = vld [vmem:[#allocation2 + $0x34] sm:$0x1]
      %v644 = vld [vmem:[#allocation2 + $0x38] sm:$0xf]
      %v645 = vld [vmem:[#allocation2 + $0x3c] sm:$0x1]
      %v646 = vld [vmem:[#allocation2 + $0x50] sm:$0xf]
      %v647 = vld [vmem:[#allocation2 + $0x54] sm:$0x1]
      %v648 = vld [vmem:[#allocation2 + $0x58] sm:$0xf]
      %v649 = vld [vmem:[#allocation2 + $0x5c] sm:$0x1]
      %v650 = vld [vmem:[#allocation2 + $0x60] sm:$0xf]
      %v651 = vld [vmem:[#allocation2 + $0x64] sm:$0x1]
      %v652 = vld [vmem:[#allocation2 + $0x68] sm:$0xf]
      %v653 = vld [vmem:[#allocation2 + $0x6c] sm:$0x1]
      %v654 = vld [vmem:[#allocation2 + $0x70] sm:$0xf]
      %v655 = vld [vmem:[#allocation2 + $0x74] sm:$0x1]
      %v656 = vld [vmem:[#allocation2 + $0x78] sm:$0xf]
      %v657 = vld [vmem:[#allocation2 + $0x7c] sm:$0x1]
      %v658 = vld [vmem:[#allocation2 + $0x80] sm:$0xf]
      %v659 = vld [vmem:[#allocation2 + $0x84] sm:$0x1]
      %v660 = vld [vmem:[#allocation2 + $0x88] sm:$0xf]
      %v661 = vld [vmem:[#allocation2 + $0x8c] sm:$0x1]
      %vm662 = vsmask.f32 3328
      %vm663 = vsmask.f32 7440
      %vm664 = vmor %vm662, %vm663
      %v666 = vshrl.u32 %v630, 16
      %v668 = vrot.slane %v666, 4
      %v669 = vshll.u32 %v630, 16
      %v671 = vrot.slane %v669, 5
      %v672 = vor.u32 %v668, %v671
      %v673 = vrot.slane %v672, 4
      %v675 = vshll.u32 %v631, 16
      %v677 = vrot.slane %v675, 5
      %v678 = vsel %vm664, %v673, %v677
      %v680 = vshrl.u32 %v632, 16
      %v682 = vrot.slane %v680, 4
      %v683 = vshll.u32 %v632, 16
      %v685 = vrot.slane %v683, 5
      %v686 = vor.u32 %v682, %v685
      %v687 = vrot.slane %v686, 4
      %v689 = vshll.u32 %v633, 16
      %v691 = vrot.slane %v689, 5
      %v692 = vsel %vm664, %v687, %v691
      %v694 = vshrl.u32 %v634, 16
      %v696 = vrot.slane %v694, 4
      %v697 = vshll.u32 %v634, 16
      %v699 = vrot.slane %v697, 5
      %v700 = vor.u32 %v696, %v699
      %v701 = vrot.slane %v700, 4
      %v703 = vshll.u32 %v635, 16
      %v705 = vrot.slane %v703, 5
      %v706 = vsel %vm664, %v701, %v705
      %v708 = vshrl.u32 %v636, 16
      %v710 = vrot.slane %v708, 4
      %v711 = vshll.u32 %v636, 16
      %v713 = vrot.slane %v711, 5
      %v714 = vor.u32 %v710, %v713
      %v715 = vrot.slane %v714, 4
      %v717 = vshll.u32 %v637, 16
      %v719 = vrot.slane %v717, 5
      %v720 = vsel %vm664, %v715, %v719
      %v722 = vshrl.u32 %v638, 16
      %v724 = vrot.slane %v722, 4
      %v725 = vshll.u32 %v638, 16
      %v727 = vrot.slane %v725, 5
      %v728 = vor.u32 %v724, %v727
      %v729 = vrot.slane %v728, 4
      %v731 = vshll.u32 %v639, 16
      %v733 = vrot.slane %v731, 5
      %v734 = vsel %vm664, %v729, %v733
      %v736 = vshrl.u32 %v640, 16
      %v738 = vrot.slane %v736, 4
      %v739 = vshll.u32 %v640, 16
      %v741 = vrot.slane %v739, 5
      %v742 = vor.u32 %v738, %v741
      %v743 = vrot.slane %v742, 4
      %v745 = vshll.u32 %v641, 16
      %v747 = vrot.slane %v745, 5
      %v748 = vsel %vm664, %v743, %v747
      %v750 = vshrl.u32 %v642, 16
      %v752 = vrot.slane %v750, 4
      %v753 = vshll.u32 %v642, 16
      %v755 = vrot.slane %v753, 5
      %v756 = vor.u32 %v752, %v755
      %v757 = vrot.slane %v756, 4
      %v759 = vshll.u32 %v643, 16
      %v761 = vrot.slane %v759, 5
      %v762 = vsel %vm664, %v757, %v761
      %v764 = vshrl.u32 %v644, 16
      %v766 = vrot.slane %v764, 4
      %v767 = vshll.u32 %v644, 16
      %v769 = vrot.slane %v767, 5
      %v770 = vor.u32 %v766, %v769
      %v771 = vrot.slane %v770, 4
      %v773 = vshll.u32 %v645, 16
      %v775 = vrot.slane %v773, 5
      %v776 = vsel %vm664, %v771, %v775
      %v778 = vshrl.u32 %v646, 16
      %v780 = vrot.slane %v778, 4
      %v781 = vshll.u32 %v646, 16
      %v783 = vrot.slane %v781, 5
      %v784 = vor.u32 %v780, %v783
      %v785 = vrot.slane %v784, 4
      %v787 = vshll.u32 %v647, 16
      %v789 = vrot.slane %v787, 5
      %v790 = vsel %vm664, %v785, %v789
      %v792 = vshrl.u32 %v648, 16
      %v794 = vrot.slane %v792, 4
      %v795 = vshll.u32 %v648, 16
      %v797 = vrot.slane %v795, 5
      %v798 = vor.u32 %v794, %v797
      %v799 = vrot.slane %v798, 4
      %v801 = vshll.u32 %v649, 16
      %v803 = vrot.slane %v801, 5
      %v804 = vsel %vm664, %v799, %v803
      %v806 = vshrl.u32 %v650, 16
      %v808 = vrot.slane %v806, 4
      %v809 = vshll.u32 %v650, 16
      %v811 = vrot.slane %v809, 5
      %v812 = vor.u32 %v808, %v811
      %v813 = vrot.slane %v812, 4
      %v815 = vshll.u32 %v651, 16
      %v817 = vrot.slane %v815, 5
      %v818 = vsel %vm664, %v813, %v817
      %v820 = vshrl.u32 %v652, 16
      %v822 = vrot.slane %v820, 4
      %v823 = vshll.u32 %v652, 16
      %v825 = vrot.slane %v823, 5
      %v826 = vor.u32 %v822, %v825
      %v827 = vrot.slane %v826, 4
      %v829 = vshll.u32 %v653, 16
      %v831 = vrot.slane %v829, 5
      %v832 = vsel %vm664, %v827, %v831
      %v834 = vshrl.u32 %v654, 16
      %v836 = vrot.slane %v834, 4
      %v837 = vshll.u32 %v654, 16
      %v839 = vrot.slane %v837, 5
      %v840 = vor.u32 %v836, %v839
      %v841 = vrot.slane %v840, 4
      %v843 = vshll.u32 %v655, 16
      %v845 = vrot.slane %v843, 5
      %v846 = vsel %vm664, %v841, %v845
      %v848 = vshrl.u32 %v656, 16
      %v850 = vrot.slane %v848, 4
      %v851 = vshll.u32 %v656, 16
      %v853 = vrot.slane %v851, 5
      %v854 = vor.u32 %v850, %v853
      %v855 = vrot.slane %v854, 4
      %v857 = vshll.u32 %v657, 16
      %v859 = vrot.slane %v857, 5
      %v860 = vsel %vm664, %v855, %v859
      %v862 = vshrl.u32 %v658, 16
      %v864 = vrot.slane %v862, 4
      %v865 = vshll.u32 %v658, 16
      %v867 = vrot.slane %v865, 5
      %v868 = vor.u32 %v864, %v867
      %v869 = vrot.slane %v868, 4
      %v871 = vshll.u32 %v659, 16
      %v873 = vrot.slane %v871, 5
      %v874 = vsel %vm664, %v869, %v873
      %v876 = vshrl.u32 %v660, 16
      %v878 = vrot.slane %v876, 4
      %v879 = vshll.u32 %v660, 16
      %v881 = vrot.slane %v879, 5
      %v882 = vor.u32 %v878, %v881
      %v883 = vrot.slane %v882, 4
      %v885 = vshll.u32 %v661, 16
      %v887 = vrot.slane %v885, 5
      %v888 = vsel %vm664, %v883, %v887
      %v889 = vld [vmem:[%s3] sm:$0xf]
      %v890 = vld [vmem:[#allocation2] sm:$0xe]
      %v891 = vld [vmem:[#allocation2 + $0x8] sm:$0xe]
      %v892 = vld [vmem:[#allocation2 + $0x10] sm:$0xe]
      %v893 = vld [vmem:[#allocation2 + $0x18] sm:$0xe]
      %v894 = vld [vmem:[#allocation2 + $0x20] sm:$0xe]
      %v895 = vld [vmem:[#allocation2 + $0x28] sm:$0xe]
      %v896 = vld [vmem:[#allocation2 + $0x30] sm:$0xe]
      %v897 = vld [vmem:[#allocation2 + $0x38] sm:$0xe]
      %v898 = vld [vmem:[#allocation2 + $0x50] sm:$0xe]
      %v899 = vld [vmem:[#allocation2 + $0x58] sm:$0xe]
      %v900 = vld [vmem:[#allocation2 + $0x60] sm:$0xe]
      %v901 = vld [vmem:[#allocation2 + $0x68] sm:$0xe]
      %v902 = vld [vmem:[#allocation2 + $0x70] sm:$0xe]
      %v903 = vld [vmem:[#allocation2 + $0x78] sm:$0xe]
      %v904 = vld [vmem:[#allocation2 + $0x80] sm:$0xe]
      %v905 = vld [vmem:[#allocation2 + $0x88] sm:$0xe]
      %vm938 = vcmask 1042432
      %vm939 = vcmask 1046532
      %vm940 = vmor %vm938, %vm939
      %v941 = vrot.slane %v890, 5
      %v942 = vrot.slane %v941, 4
      %v943 = vrot.slane %v631, 5
      %v944 = vsel %vm940, %v942, %v943
      %v945 = vrot.slane %v891, 5
      %v946 = vrot.slane %v945, 4
      %v947 = vrot.slane %v633, 5
      %v948 = vsel %vm940, %v946, %v947
      %v949 = vrot.slane %v892, 5
      %v950 = vrot.slane %v949, 4
      %v951 = vrot.slane %v635, 5
      %v952 = vsel %vm940, %v950, %v951
      %v953 = vrot.slane %v893, 5
      %v954 = vrot.slane %v953, 4
      %v955 = vrot.slane %v637, 5
      %v956 = vsel %vm940, %v954, %v955
      %v957 = vrot.slane %v894, 5
      %v958 = vrot.slane %v957, 4
      %v959 = vrot.slane %v639, 5
      %v960 = vsel %vm940, %v958, %v959
      %v961 = vrot.slane %v895, 5
      %v962 = vrot.slane %v961, 4
      %v963 = vrot.slane %v641, 5
      %v964 = vsel %vm940, %v962, %v963
      %v965 = vrot.slane %v896, 5
      %v966 = vrot.slane %v965, 4
      %v967 = vrot.slane %v643, 5
      %v968 = vsel %vm940, %v966, %v967
      %v969 = vrot.slane %v897, 5
      %v970 = vrot.slane %v969, 4
      %v971 = vrot.slane %v645, 5
      %v972 = vsel %vm940, %v970, %v971
      %v973 = vrot.slane %v898, 5
      %v974 = vrot.slane %v973, 4
      %v975 = vrot.slane %v647, 5
      %v976 = vsel %vm940, %v974, %v975
      %v977 = vrot.slane %v899, 5
      %v978 = vrot.slane %v977, 4
      %v979 = vrot.slane %v649, 5
      %v980 = vsel %vm940, %v978, %v979
      %v981 = vrot.slane %v900, 5
      %v982 = vrot.slane %v981, 4
      %v983 = vrot.slane %v651, 5
      %v984 = vsel %vm940, %v982, %v983
      %v985 = vrot.slane %v901, 5
      %v986 = vrot.slane %v985, 4
      %v987 = vrot.slane %v653, 5
      %v988 = vsel %vm940, %v986, %v987
      %v989 = vrot.slane %v902, 5
      %v990 = vrot.slane %v989, 4
      %v991 = vrot.slane %v655, 5
      %v992 = vsel %vm940, %v990, %v991
      %v993 = vrot.slane %v903, 5
      %v994 = vrot.slane %v993, 4
      %v995 = vrot.slane %v657, 5
      %v996 = vsel %vm940, %v994, %v995
      %v997 = vrot.slane %v904, 5
      %v998 = vrot.slane %v997, 4
      %v999 = vrot.slane %v659, 5
      %v1000 = vsel %vm940, %v998, %v999
      %v1001 = vrot.slane %v905, 5
      %v1002 = vrot.slane %v1001, 4
      %v1003 = vrot.slane %v661, 5
      %v1004 = vsel %vm940, %v1002, %v1003
      %s1005 = scalar_lea.vmem %s3, 4
      %v1006 = vld [vmem:[%s1005] sm:$0xf]
      %v1007 = vunpack.c.l.b16 %v944
      %v1008 = vunpack.c.l.b16 %v948
      %v1009 = vunpack.c.l.b16 %v952
      %v1010 = vunpack.c.l.b16 %v956
      %v1011 = vunpack.c.l.b16 %v960
      %v1012 = vunpack.c.l.b16 %v964
      %v1013 = vunpack.c.l.b16 %v968
      %v1014 = vunpack.c.l.b16 %v972
      %v1015 = vunpack.c.l.b16 %v976
      %v1016 = vunpack.c.l.b16 %v980
      %v1017 = vunpack.c.l.b16 %v984
      %v1018 = vunpack.c.l.b16 %v988
      %v1019 = vunpack.c.l.b16 %v992
      %v1020 = vunpack.c.l.b16 %v996
      %v1021 = vunpack.c.l.b16 %v1000
      %v1022 = vunpack.c.l.b16 %v1004
      %v1023 = vpack.c.b16 %v1008, %v1007
      %v1024 = vpack.c.b16 %v1010, %v1009
      %v1025 = vpack.c.b16 %v1012, %v1011
      %v1026 = vpack.c.b16 %v1014, %v1013
      %v1027 = vpack.c.b16 %v1016, %v1015
      %v1028 = vpack.c.b16 %v1018, %v1017
      %v1029 = vpack.c.b16 %v1020, %v1019
      %v1030 = vpack.c.b16 %v1022, %v1021
      %vm1031 = vcmask 64512
      %v1033 = vsel %vm1031, %v1023, 0
      %v1036 = vsel %vm1031, %v1024, 0
      %v1039 = vsel %vm1031, %v1025, 0
      %v1042 = vsel %vm1031, %v1026, 0
      %v1045 = vsel %vm1031, %v1027, 0
      %v1048 = vsel %vm1031, %v1028, 0
      %v1051 = vsel %vm1031, %v1029, 0
      %v1054 = vsel %vm1031, %v1030, 0
      %vm1056 = vcmask 1043456
      %v1058 = vsel %vm1056, %v1006, 0
      %1060 = vmatprep.subr.bf16.mxu0 0
      %1061 = vmatpush1.bf16.msra.mxu0 %v1058
      %1062 = vmatprep.subr.bf16.mxu0 0
      %1063 = vmatpush1.bf16.msra.mxu0 0
      %1064 = vmatprep.subr.bf16.mxu0 0
      %1065 = vmatpush1.bf16.msra.mxu0 0
      %1066 = vmatprep.subr.bf16.mxu0 0
      %1067 = vmatpush1.bf16.msra.mxu0 0
      %1068 = vmatprep.subr.bf16.mxu0 0
      %1069 = vmatpush1.bf16.msra.mxu0 0
      %1070 = vmatprep.subr.bf16.mxu0 0
      %1071 = vmatpush1.bf16.msra.mxu0 0
      %1072 = vmatprep.subr.bf16.mxu0 0
      %1073 = vmatpush1.bf16.msra.mxu0 0
      %1074 = vmatprep.subr.bf16.mxu0 0
      %1075 = vmatpush1.bf16.msra.mxu0 0
      %1076 = vmatprep.subr.bf16.mxu0 0
      %1077 = vmatpush1.bf16.msra.mxu0 0
      %1078 = vmatprep.subr.bf16.mxu0 0
      %1079 = vmatpush1.bf16.msra.mxu0 0
      %1080 = vmatprep.subr.bf16.mxu0 0
      %1081 = vmatpush1.bf16.msra.mxu0 0
      %1082 = vmatprep.subr.bf16.mxu0 0
      %1083 = vmatpush1.bf16.msra.mxu0 0
      %1084 = vmatprep.subr.bf16.mxu0 0
      %1085 = vmatpush1.bf16.msra.mxu0 0
      %1086 = vmatprep.subr.bf16.mxu0 0
      %1087 = vmatpush1.bf16.msra.mxu0 0
      %1088 = vmatprep.subr.bf16.mxu0 0
      %1089 = vmatpush1.bf16.msra.mxu0 0
      %1090 = vmatprep.subr.bf16.mxu0 0
      %1091 = vmatpush1.bf16.msra.mxu0 0
      %1092 = vmatprep.mubr.bf16.mxu0 0
      %1093 = vmatmul.mubr.bf16.gmra.mrb[0].mxu0 %v1033
      %v1094 = vpop.f32.mrb[0].mxu0
      %v1095 = vadd.f32 0.0, %v1094
      %v1096 = vpop.f32.mrb[0].mxu0
      %v1097 = vpop.f32.mrb[0].mxu0
      %v1098 = vadd.f32 0.0, %v1097
      %v1099 = vpop.f32.mrb[0].mxu0
      %1100 = vmatprep.mubr.bf16.mxu0 0
      %1101 = vmatmul.mubr.bf16.gmra.mrb[0].mxu0 %v1036
      %v1102 = vpop.f32.mrb[0].mxu0
      %v1103 = vadd.f32 0.0, %v1102
      %v1104 = vpop.f32.mrb[0].mxu0
      %v1105 = vpop.f32.mrb[0].mxu0
      %v1106 = vadd.f32 0.0, %v1105
      %v1107 = vpop.f32.mrb[0].mxu0
      %1108 = vmatprep.mubr.bf16.mxu0 0
      %1109 = vmatmul.mubr.bf16.gmra.mrb[0].mxu0 %v1039
      %v1110 = vpop.f32.mrb[0].mxu0
      %v1111 = vadd.f32 0.0, %v1110
      %v1112 = vpop.f32.mrb[0].mxu0
      %v1113 = vpop.f32.mrb[0].mxu0
      %v1114 = vadd.f32 0.0, %v1113
      %v1115 = vpop.f32.mrb[0].mxu0
      %1116 = vmatprep.mubr.bf16.mxu0 0
      %1117 = vmatmul.mubr.bf16.gmra.mrb[0].mxu0 %v1042
      %v1118 = vpop.f32.mrb[0].mxu0
      %v1119 = vadd.f32 0.0, %v1118
      %v1120 = vpop.f32.mrb[0].mxu0
      %v1121 = vpop.f32.mrb[0].mxu0
      %v1122 = vadd.f32 0.0, %v1121
      %v1123 = vpop.f32.mrb[0].mxu0
      %1124 = vmatprep.mubr.bf16.mxu0 0
      %1125 = vmatmul.mubr.bf16.gmra.mrb[0].mxu0 %v1045
      %v1126 = vpop.f32.mrb[0].mxu0
      %v1127 = vadd.f32 0.0, %v1126
      %v1128 = vpop.f32.mrb[0].mxu0
      %v1129 = vpop.f32.mrb[0].mxu0
      %v1130 = vadd.f32 0.0, %v1129
      %v1131 = vpop.f32.mrb[0].mxu0
      %1132 = vmatprep.mubr.bf16.mxu0 0
      %1133 = vmatmul.mubr.bf16.gmra.mrb[0].mxu0 %v1048
      %v1134 = vpop.f32.mrb[0].mxu0
      %v1135 = vadd.f32 0.0, %v1134
      %v1136 = vpop.f32.mrb[0].mxu0
      %v1137 = vpop.f32.mrb[0].mxu0
      %v1138 = vadd.f32 0.0, %v1137
      %v1139 = vpop.f32.mrb[0].mxu0
      %1140 = vmatprep.mubr.bf16.mxu0 0
      %1141 = vmatmul.mubr.bf16.gmra.mrb[0].mxu0 %v1051
      %v1142 = vpop.f32.mrb[0].mxu0
      %v1143 = vadd.f32 0.0, %v1142
      %v1144 = vpop.f32.mrb[0].mxu0
      %v1145 = vpop.f32.mrb[0].mxu0
      %v1146 = vadd.f32 0.0, %v1145
      %v1147 = vpop.f32.mrb[0].mxu0
      %1148 = vmatprep.mubr.bf16.mxu0 0
      %1149 = vmatmul.mubr.bf16.gmra.mrb[0].mxu0 %v1054
      %v1150 = vpop.f32.mrb[0].mxu0
      %v1151 = vadd.f32 0.0, %v1150
      %v1152 = vpop.f32.mrb[0].mxu0
      %v1153 = vpop.f32.mrb[0].mxu0
      %v1154 = vadd.f32 0.0, %v1153
      %v1155 = vpop.f32.mrb[0].mxu0
      %1156 = vdwg.mxu0
      %v1157 = vunpack.c.l.b16 %v678
      %v1158 = vunpack.c.l.b16 %v692
      %v1159 = vunpack.c.l.b16 %v706
      %v1160 = vunpack.c.l.b16 %v720
      %v1161 = vunpack.c.l.b16 %v734
      %v1162 = vunpack.c.l.b16 %v748
      %v1163 = vunpack.c.l.b16 %v762
      %v1164 = vunpack.c.l.b16 %v776
      %v1165 = vunpack.c.l.b16 %v790
      %v1166 = vunpack.c.l.b16 %v804
      %v1167 = vunpack.c.l.b16 %v818
      %v1168 = vunpack.c.l.b16 %v832
      %v1169 = vunpack.c.l.b16 %v846
      %v1170 = vunpack.c.l.b16 %v860
      %v1171 = vunpack.c.l.b16 %v874
      %v1172 = vunpack.c.l.b16 %v888
      %v1173 = vpack.c.b16 %v1158, %v1157
      %v1174 = vpack.c.b16 %v1160, %v1159
      %v1175 = vpack.c.b16 %v1162, %v1161
      %v1176 = vpack.c.b16 %v1164, %v1163
      %v1177 = vpack.c.b16 %v1166, %v1165
      %v1178 = vpack.c.b16 %v1168, %v1167
      %v1179 = vpack.c.b16 %v1170, %v1169
      %v1180 = vpack.c.b16 %v1172, %v1171
      %v1182 = vsel %vm1031, %v1173, 0
      %v1185 = vsel %vm1031, %v1174, 0
      %v1188 = vsel %vm1031, %v1175, 0
      %v1191 = vsel %vm1031, %v1176, 0
      %v1194 = vsel %vm1031, %v1177, 0
      %v1197 = vsel %vm1031, %v1178, 0
      %v1200 = vsel %vm1031, %v1179, 0
      %v1203 = vsel %vm1031, %v1180, 0
      %v1206 = vsel %vm1056, %v889, 0
      %1208 = vmatprep.subr.bf16.mxu0 0
      %1209 = vmatpush1.bf16.msra.mxu0 %v1206
      %1210 = vmatprep.subr.bf16.mxu0 0
      %1211 = vmatpush1.bf16.msra.mxu0 0
      %1212 = vmatprep.subr.bf16.mxu0 0
      %1213 = vmatpush1.bf16.msra.mxu0 0
      %1214 = vmatprep.subr.bf16.mxu0 0
      %1215 = vmatpush1.bf16.msra.mxu0 0
      %1216 = vmatprep.subr.bf16.mxu0 0
      %1217 = vmatpush1.bf16.msra.mxu0 0
      %1218 = vmatprep.subr.bf16.mxu0 0
      %1219 = vmatpush1.bf16.msra.mxu0 0
      %1220 = vmatprep.subr.bf16.mxu0 0
      %1221 = vmatpush1.bf16.msra.mxu0 0
      %1222 = vmatprep.subr.bf16.mxu0 0
      %1223 = vmatpush1.bf16.msra.mxu0 0
      %1224 = vmatprep.subr.bf16.mxu0 0
      %1225 = vmatpush1.bf16.msra.mxu0 0
      %1226 = vmatprep.subr.bf16.mxu0 0
      %1227 = vmatpush1.bf16.msra.mxu0 0
      %1228 = vmatprep.subr.bf16.mxu0 0
      %1229 = vmatpush1.bf16.msra.mxu0 0
      %1230 = vmatprep.subr.bf16.mxu0 0
      %1231 = vmatpush1.bf16.msra.mxu0 0
      %1232 = vmatprep.subr.bf16.mxu0 0
      %1233 = vmatpush1.bf16.msra.mxu0 0
      %1234 = vmatprep.subr.bf16.mxu0 0
      %1235 = vmatpush1.bf16.msra.mxu0 0
      %1236 = vmatprep.subr.bf16.mxu0 0
      %1237 = vmatpush1.bf16.msra.mxu0 0
      %1238 = vmatprep.subr.bf16.mxu0 0
      %1239 = vmatpush1.bf16.msra.mxu0 0
      %1240 = vmatprep.mubr.bf16.mxu0 0
      %1241 = vmatmul.mubr.bf16.gmra.mrb[0].mxu0 %v1182
      %v1242 = vpop.f32.mrb[0].mxu0
      %v1243 = vadd.f32 %v1095, %v1242
      %v1244 = vpop.f32.mrb[0].mxu0
      %v1245 = vpop.f32.mrb[0].mxu0
      %v1246 = vadd.f32 %v1098, %v1245
      %v1247 = vpop.f32.mrb[0].mxu0
      %1248 = vmatprep.mubr.bf16.mxu0 0
      %1249 = vmatmul.mubr.bf16.gmra.mrb[0].mxu0 %v1185
      %v1250 = vpop.f32.mrb[0].mxu0
      %v1251 = vadd.f32 %v1103, %v1250
      %v1252 = vpop.f32.mrb[0].mxu0
      %v1253 = vpop.f32.mrb[0].mxu0
      %v1254 = vadd.f32 %v1106, %v1253
      %v1255 = vpop.f32.mrb[0].mxu0
      %1256 = vmatprep.mubr.bf16.mxu0 0
      %1257 = vmatmul.mubr.bf16.gmra.mrb[0].mxu0 %v1188
      %v1258 = vpop.f32.mrb[0].mxu0
      %v1259 = vadd.f32 %v1111, %v1258
      %v1260 = vpop.f32.mrb[0].mxu0
      %v1261 = vpop.f32.mrb[0].mxu0
      %v1262 = vadd.f32 %v1114, %v1261
      %v1263 = vpop.f32.mrb[0].mxu0
      %1264 = vmatprep.mubr.bf16.mxu0 0
      %1265 = vmatmul.mubr.bf16.gmra.mrb[0].mxu0 %v1191
      %v1266 = vpop.f32.mrb[0].mxu0
      %v1267 = vadd.f32 %v1119, %v1266
      %v1268 = vpop.f32.mrb[0].mxu0
      %v1269 = vpop.f32.mrb[0].mxu0
      %v1270 = vadd.f32 %v1122, %v1269
      %v1271 = vpop.f32.mrb[0].mxu0
      %1272 = vmatprep.mubr.bf16.mxu0 0
      %1273 = vmatmul.mubr.bf16.gmra.mrb[0].mxu0 %v1194
      %v1274 = vpop.f32.mrb[0].mxu0
      %v1275 = vadd.f32 %v1127, %v1274
      %v1276 = vpop.f32.mrb[0].mxu0
      %v1277 = vpop.f32.mrb[0].mxu0
      %v1278 = vadd.f32 %v1130, %v1277
      %v1279 = vpop.f32.mrb[0].mxu0
      %1280 = vmatprep.mubr.bf16.mxu0 0
      %1281 = vmatmul.mubr.bf16.gmra.mrb[0].mxu0 %v1197
      %v1282 = vpop.f32.mrb[0].mxu0
      %v1283 = vadd.f32 %v1135, %v1282
      %v1284 = vpop.f32.mrb[0].mxu0
      %v1285 = vpop.f32.mrb[0].mxu0
      %v1286 = vadd.f32 %v1138, %v1285
      %v1287 = vpop.f32.mrb[0].mxu0
      %1288 = vmatprep.mubr.bf16.mxu0 0
      %1289 = vmatmul.mubr.bf16.gmra.mrb[0].mxu0 %v1200
      %v1290 = vpop.f32.mrb[0].mxu0
      %v1291 = vadd.f32 %v1143, %v1290
      %v1292 = vpop.f32.mrb[0].mxu0
      %v1293 = vpop.f32.mrb[0].mxu0
      %v1294 = vadd.f32 %v1146, %v1293
      %v1295 = vpop.f32.mrb[0].mxu0
      %1296 = vmatprep.mubr.bf16.mxu0 0
      %1297 = vmatmul.mubr.bf16.gmra.mrb[0].mxu0 %v1203
      %v1298 = vpop.f32.mrb[0].mxu0
      %v1299 = vadd.f32 %v1151, %v1298
      %v1300 = vpop.f32.mrb[0].mxu0
      %v1301 = vpop.f32.mrb[0].mxu0
      %v1302 = vadd.f32 %v1154, %v1301
      %v1303 = vpop.f32.mrb[0].mxu0
      %1304 = vdwg.mxu0
      %v1305 = vld [vmem:[#allocation2 + $0x4] sm:$0x3]
      %v1306 = vld [vmem:[#allocation2 + $0xc] sm:$0x3]
      %v1307 = vld [vmem:[#allocation2 + $0x14] sm:$0x3]
      %v1308 = vld [vmem:[#allocation2 + $0x1c] sm:$0x3]
      %v1309 = vld [vmem:[#allocation2 + $0x24] sm:$0x3]
      %v1310 = vld [vmem:[#allocation2 + $0x2c] sm:$0x3]
      %v1311 = vld [vmem:[#allocation2 + $0x34] sm:$0x3]
      %v1312 = vld [vmem:[#allocation2 + $0x3c] sm:$0x3]
      %v1313 = vld [vmem:[#allocation2 + $0x54] sm:$0x3]
      %v1314 = vld [vmem:[#allocation2 + $0x5c] sm:$0x3]
      %v1315 = vld [vmem:[#allocation2 + $0x64] sm:$0x3]
      %v1316 = vld [vmem:[#allocation2 + $0x6c] sm:$0x3]
      %v1317 = vld [vmem:[#allocation2 + $0x74] sm:$0x3]
      %v1318 = vld [vmem:[#allocation2 + $0x7c] sm:$0x3]
      %v1319 = vld [vmem:[#allocation2 + $0x84] sm:$0x3]
      %v1320 = vld [vmem:[#allocation2 + $0x8c] sm:$0x3]
      %vm1321 = vsmask.f32 2304
      %vm1322 = vsmask.f32 6416
      %vm1323 = vmor %vm1321, %vm1322
      %v1325 = vshrl.u32 %v890, 16
      %v1327 = vrot.slane %v1325, 5
      %v1328 = vshll.u32 %v890, 16
      %v1330 = vrot.slane %v1328, 6
      %v1331 = vor.u32 %v1327, %v1330
      %v1332 = vrot.slane %v1331, 4
      %v1334 = vshrl.u32 %v1305, 16
      %v1336 = vrot.slane %v1334, 5
      %v1337 = vshll.u32 %v1305, 16
      %v1339 = vrot.slane %v1337, 6
      %v1340 = vor.u32 %v1336, %v1339
      %v1341 = vsel %vm1323, %v1332, %v1340
      %v1343 = vshrl.u32 %v891, 16
      %v1345 = vrot.slane %v1343, 5
      %v1346 = vshll.u32 %v891, 16
      %v1348 = vrot.slane %v1346, 6
      %v1349 = vor.u32 %v1345, %v1348
      %v1350 = vrot.slane %v1349, 4
      %v1352 = vshrl.u32 %v1306, 16
      %v1354 = vrot.slane %v1352, 5
      %v1355 = vshll.u32 %v1306, 16
      %v1357 = vrot.slane %v1355, 6
      %v1358 = vor.u32 %v1354, %v1357
      %v1359 = vsel %vm1323, %v1350, %v1358
      %v1361 = vshrl.u32 %v892, 16
      %v1363 = vrot.slane %v1361, 5
      %v1364 = vshll.u32 %v892, 16
      %v1366 = vrot.slane %v1364, 6
      %v1367 = vor.u32 %v1363, %v1366
      %v1368 = vrot.slane %v1367, 4
      %v1370 = vshrl.u32 %v1307, 16
      %v1372 = vrot.slane %v1370, 5
      %v1373 = vshll.u32 %v1307, 16
      %v1375 = vrot.slane %v1373, 6
      %v1376 = vor.u32 %v1372, %v1375
      %v1377 = vsel %vm1323, %v1368, %v1376
      %v1379 = vshrl.u32 %v893, 16
      %v1381 = vrot.slane %v1379, 5
      %v1382 = vshll.u32 %v893, 16
      %v1384 = vrot.slane %v1382, 6
      %v1385 = vor.u32 %v1381, %v1384
      %v1386 = vrot.slane %v1385, 4
      %v1388 = vshrl.u32 %v1308, 16
      %v1390 = vrot.slane %v1388, 5
      %v1391 = vshll.u32 %v1308, 16
      %v1393 = vrot.slane %v1391, 6
      %v1394 = vor.u32 %v1390, %v1393
      %v1395 = vsel %vm1323, %v1386, %v1394
      %v1397 = vshrl.u32 %v894, 16
      %v1399 = vrot.slane %v1397, 5
      %v1400 = vshll.u32 %v894, 16
      %v1402 = vrot.slane %v1400, 6
      %v1403 = vor.u32 %v1399, %v1402
      %v1404 = vrot.slane %v1403, 4
      %v1406 = vshrl.u32 %v1309, 16
      %v1408 = vrot.slane %v1406, 5
      %v1409 = vshll.u32 %v1309, 16
      %v1411 = vrot.slane %v1409, 6
      %v1412 = vor.u32 %v1408, %v1411
      %v1413 = vsel %vm1323, %v1404, %v1412
      %v1415 = vshrl.u32 %v895, 16
      %v1417 = vrot.slane %v1415, 5
      %v1418 = vshll.u32 %v895, 16
      %v1420 = vrot.slane %v1418, 6
      %v1421 = vor.u32 %v1417, %v1420
      %v1422 = vrot.slane %v1421, 4
      %v1424 = vshrl.u32 %v1310, 16
      %v1426 = vrot.slane %v1424, 5
      %v1427 = vshll.u32 %v1310, 16
      %v1429 = vrot.slane %v1427, 6
      %v1430 = vor.u32 %v1426, %v1429
      %v1431 = vsel %vm1323, %v1422, %v1430
      %v1433 = vshrl.u32 %v896, 16
      %v1435 = vrot.slane %v1433, 5
      %v1436 = vshll.u32 %v896, 16
      %v1438 = vrot.slane %v1436, 6
      %v1439 = vor.u32 %v1435, %v1438
      %v1440 = vrot.slane %v1439, 4
      %v1442 = vshrl.u32 %v1311, 16
      %v1444 = vrot.slane %v1442, 5
      %v1445 = vshll.u32 %v1311, 16
      %v1447 = vrot.slane %v1445, 6
      %v1448 = vor.u32 %v1444, %v1447
      %v1449 = vsel %vm1323, %v1440, %v1448
      %v1451 = vshrl.u32 %v897, 16
      %v1453 = vrot.slane %v1451, 5
      %v1454 = vshll.u32 %v897, 16
      %v1456 = vrot.slane %v1454, 6
      %v1457 = vor.u32 %v1453, %v1456
      %v1458 = vrot.slane %v1457, 4
      %v1460 = vshrl.u32 %v1312, 16
      %v1462 = vrot.slane %v1460, 5
      %v1463 = vshll.u32 %v1312, 16
      %v1465 = vrot.slane %v1463, 6
      %v1466 = vor.u32 %v1462, %v1465
      %v1467 = vsel %vm1323, %v1458, %v1466
      %v1469 = vshrl.u32 %v898, 16
      %v1471 = vrot.slane %v1469, 5
      %v1472 = vshll.u32 %v898, 16
      %v1474 = vrot.slane %v1472, 6
      %v1475 = vor.u32 %v1471, %v1474
      %v1476 = vrot.slane %v1475, 4
      %v1478 = vshrl.u32 %v1313, 16
      %v1480 = vrot.slane %v1478, 5
      %v1481 = vshll.u32 %v1313, 16
      %v1483 = vrot.slane %v1481, 6
      %v1484 = vor.u32 %v1480, %v1483
      %v1485 = vsel %vm1323, %v1476, %v1484
      %v1487 = vshrl.u32 %v899, 16
      %v1489 = vrot.slane %v1487, 5
      %v1490 = vshll.u32 %v899, 16
      %v1492 = vrot.slane %v1490, 6
      %v1493 = vor.u32 %v1489, %v1492
      %v1494 = vrot.slane %v1493, 4
      %v1496 = vshrl.u32 %v1314, 16
      %v1498 = vrot.slane %v1496, 5
      %v1499 = vshll.u32 %v1314, 16
      %v1501 = vrot.slane %v1499, 6
      %v1502 = vor.u32 %v1498, %v1501
      %v1503 = vsel %vm1323, %v1494, %v1502
      %v1505 = vshrl.u32 %v900, 16
      %v1507 = vrot.slane %v1505, 5
      %v1508 = vshll.u32 %v900, 16
      %v1510 = vrot.slane %v1508, 6
      %v1511 = vor.u32 %v1507, %v1510
      %v1512 = vrot.slane %v1511, 4
      %v1514 = vshrl.u32 %v1315, 16
      %v1516 = vrot.slane %v1514, 5
      %v1517 = vshll.u32 %v1315, 16
      %v1519 = vrot.slane %v1517, 6
      %v1520 = vor.u32 %v1516, %v1519
      %v1521 = vsel %vm1323, %v1512, %v1520
      %v1523 = vshrl.u32 %v901, 16
      %v1525 = vrot.slane %v1523, 5
      %v1526 = vshll.u32 %v901, 16
      %v1528 = vrot.slane %v1526, 6
      %v1529 = vor.u32 %v1525, %v1528
      %v1530 = vrot.slane %v1529, 4
      %v1532 = vshrl.u32 %v1316, 16
      %v1534 = vrot.slane %v1532, 5
      %v1535 = vshll.u32 %v1316, 16
      %v1537 = vrot.slane %v1535, 6
      %v1538 = vor.u32 %v1534, %v1537
      %v1539 = vsel %vm1323, %v1530, %v1538
      %v1541 = vshrl.u32 %v902, 16
      %v1543 = vrot.slane %v1541, 5
      %v1544 = vshll.u32 %v902, 16
      %v1546 = vrot.slane %v1544, 6
      %v1547 = vor.u32 %v1543, %v1546
      %v1548 = vrot.slane %v1547, 4
      %v1550 = vshrl.u32 %v1317, 16
      %v1552 = vrot.slane %v1550, 5
      %v1553 = vshll.u32 %v1317, 16
      %v1555 = vrot.slane %v1553, 6
      %v1556 = vor.u32 %v1552, %v1555
      %v1557 = vsel %vm1323, %v1548, %v1556
      %v1559 = vshrl.u32 %v903, 16
      %v1561 = vrot.slane %v1559, 5
      %v1562 = vshll.u32 %v903, 16
      %v1564 = vrot.slane %v1562, 6
      %v1565 = vor.u32 %v1561, %v1564
      %v1566 = vrot.slane %v1565, 4
      %v1568 = vshrl.u32 %v1318, 16
      %v1570 = vrot.slane %v1568, 5
      %v1571 = vshll.u32 %v1318, 16
      %v1573 = vrot.slane %v1571, 6
      %v1574 = vor.u32 %v1570, %v1573
      %v1575 = vsel %vm1323, %v1566, %v1574
      %v1577 = vshrl.u32 %v904, 16
      %v1579 = vrot.slane %v1577, 5
      %v1580 = vshll.u32 %v904, 16
      %v1582 = vrot.slane %v1580, 6
      %v1583 = vor.u32 %v1579, %v1582
      %v1584 = vrot.slane %v1583, 4
      %v1586 = vshrl.u32 %v1319, 16
      %v1588 = vrot.slane %v1586, 5
      %v1589 = vshll.u32 %v1319, 16
      %v1591 = vrot.slane %v1589, 6
      %v1592 = vor.u32 %v1588, %v1591
      %v1593 = vsel %vm1323, %v1584, %v1592
      %v1595 = vshrl.u32 %v905, 16
      %v1597 = vrot.slane %v1595, 5
      %v1598 = vshll.u32 %v905, 16
      %v1600 = vrot.slane %v1598, 6
      %v1601 = vor.u32 %v1597, %v1600
      %v1602 = vrot.slane %v1601, 4
      %v1604 = vshrl.u32 %v1320, 16
      %v1606 = vrot.slane %v1604, 5
      %v1607 = vshll.u32 %v1320, 16
      %v1609 = vrot.slane %v1607, 6
      %v1610 = vor.u32 %v1606, %v1609
      %v1611 = vsel %vm1323, %v1602, %v1610
      %s1612 = scalar_lea.vmem %s3, 8
      %v1613 = vld [vmem:[%s1612] sm:$0xf]
      %v1614 = vunpack.c.l.b16 %v1341
      %v1615 = vunpack.c.l.b16 %v1359
      %v1616 = vunpack.c.l.b16 %v1377
      %v1617 = vunpack.c.l.b16 %v1395
      %v1618 = vunpack.c.l.b16 %v1413
      %v1619 = vunpack.c.l.b16 %v1431
      %v1620 = vunpack.c.l.b16 %v1449
      %v1621 = vunpack.c.l.b16 %v1467
      %v1622 = vunpack.c.l.b16 %v1485
      %v1623 = vunpack.c.l.b16 %v1503
      %v1624 = vunpack.c.l.b16 %v1521
      %v1625 = vunpack.c.l.b16 %v1539
      %v1626 = vunpack.c.l.b16 %v1557
      %v1627 = vunpack.c.l.b16 %v1575
      %v1628 = vunpack.c.l.b16 %v1593
      %v1629 = vunpack.c.l.b16 %v1611
      %v1630 = vpack.c.b16 %v1615, %v1614
      %v1631 = vpack.c.b16 %v1617, %v1616
      %v1632 = vpack.c.b16 %v1619, %v1618
      %v1633 = vpack.c.b16 %v1621, %v1620
      %v1634 = vpack.c.b16 %v1623, %v1622
      %v1635 = vpack.c.b16 %v1625, %v1624
      %v1636 = vpack.c.b16 %v1627, %v1626
      %v1637 = vpack.c.b16 %v1629, %v1628
      %v1639 = vsel %vm1031, %v1630, 0
      %v1642 = vsel %vm1031, %v1631, 0
      %v1645 = vsel %vm1031, %v1632, 0
      %v1648 = vsel %vm1031, %v1633, 0
      %v1651 = vsel %vm1031, %v1634, 0
      %v1654 = vsel %vm1031, %v1635, 0
      %v1657 = vsel %vm1031, %v1636, 0
      %v1660 = vsel %vm1031, %v1637, 0
      %v1663 = vsel %vm1056, %v1613, 0
      %1665 = vmatprep.subr.bf16.mxu0 0
      %1666 = vmatpush1.bf16.msra.mxu0 %v1663
      %1667 = vmatprep.subr.bf16.mxu0 0
      %1668 = vmatpush1.bf16.msra.mxu0 0
      %1669 = vmatprep.subr.bf16.mxu0 0
      %1670 = vmatpush1.bf16.msra.mxu0 0
      %1671 = vmatprep.subr.bf16.mxu0 0
      %1672 = vmatpush1.bf16.msra.mxu0 0
      %1673 = vmatprep.subr.bf16.mxu0 0
      %1674 = vmatpush1.bf16.msra.mxu0 0
      %1675 = vmatprep.subr.bf16.mxu0 0
      %1676 = vmatpush1.bf16.msra.mxu0 0
      %1677 = vmatprep.subr.bf16.mxu0 0
      %1678 = vmatpush1.bf16.msra.mxu0 0
      %1679 = vmatprep.subr.bf16.mxu0 0
      %1680 = vmatpush1.bf16.msra.mxu0 0
      %1681 = vmatprep.subr.bf16.mxu0 0
      %1682 = vmatpush1.bf16.msra.mxu0 0
      %1683 = vmatprep.subr.bf16.mxu0 0
      %1684 = vmatpush1.bf16.msra.mxu0 0
      %1685 = vmatprep.subr.bf16.mxu0 0
      %1686 = vmatpush1.bf16.msra.mxu0 0
      %1687 = vmatprep.subr.bf16.mxu0 0
      %1688 = vmatpush1.bf16.msra.mxu0 0
      %1689 = vmatprep.subr.bf16.mxu0 0
      %1690 = vmatpush1.bf16.msra.mxu0 0
      %1691 = vmatprep.subr.bf16.mxu0 0
      %1692 = vmatpush1.bf16.msra.mxu0 0
      %1693 = vmatprep.subr.bf16.mxu0 0
      %1694 = vmatpush1.bf16.msra.mxu0 0
      %1695 = vmatprep.subr.bf16.mxu0 0
      %1696 = vmatpush1.bf16.msra.mxu0 0
      %1697 = vmatprep.mubr.bf16.mxu0 0
      %1698 = vmatmul.mubr.bf16.gmra.mrb[0].mxu0 %v1639
      %v1699 = vpop.f32.mrb[0].mxu0
      %v1700 = vadd.f32 0.0, %v1699
      %v1701 = vpop.f32.mrb[0].mxu0
      %v1702 = vpop.f32.mrb[0].mxu0
      %v1703 = vadd.f32 0.0, %v1702
      %v1704 = vpop.f32.mrb[0].mxu0
      %1705 = vmatprep.mubr.bf16.mxu0 0
      %1706 = vmatmul.mubr.bf16.gmra.mrb[0].mxu0 %v1642
      %v1707 = vpop.f32.mrb[0].mxu0
      %v1708 = vadd.f32 0.0, %v1707
      %v1709 = vpop.f32.mrb[0].mxu0
      %v1710 = vpop.f32.mrb[0].mxu0
      %v1711 = vadd.f32 0.0, %v1710
      %v1712 = vpop.f32.mrb[0].mxu0
      %1713 = vmatprep.mubr.bf16.mxu0 0
      %1714 = vmatmul.mubr.bf16.gmra.mrb[0].mxu0 %v1645
      %v1715 = vpop.f32.mrb[0].mxu0
      %v1716 = vadd.f32 0.0, %v1715
      %v1717 = vpop.f32.mrb[0].mxu0
      %v1718 = vpop.f32.mrb[0].mxu0
      %v1719 = vadd.f32 0.0, %v1718
      %v1720 = vpop.f32.mrb[0].mxu0
      %1721 = vmatprep.mubr.bf16.mxu0 0
      %1722 = vmatmul.mubr.bf16.gmra.mrb[0].mxu0 %v1648
      %v1723 = vpop.f32.mrb[0].mxu0
      %v1724 = vadd.f32 0.0, %v1723
      %v1725 = vpop.f32.mrb[0].mxu0
      %v1726 = vpop.f32.mrb[0].mxu0
      %v1727 = vadd.f32 0.0, %v1726
      %v1728 = vpop.f32.mrb[0].mxu0
      %1729 = vmatprep.mubr.bf16.mxu0 0
      %1730 = vmatmul.mubr.bf16.gmra.mrb[0].mxu0 %v1651
      %v1731 = vpop.f32.mrb[0].mxu0
      %v1732 = vadd.f32 0.0, %v1731
      %v1733 = vpop.f32.mrb[0].mxu0
      %v1734 = vpop.f32.mrb[0].mxu0
      %v1735 = vadd.f32 0.0, %v1734
      %v1736 = vpop.f32.mrb[0].mxu0
      %1737 = vmatprep.mubr.bf16.mxu0 0
      %1738 = vmatmul.mubr.bf16.gmra.mrb[0].mxu0 %v1654
      %v1739 = vpop.f32.mrb[0].mxu0
      %v1740 = vadd.f32 0.0, %v1739
      %v1741 = vpop.f32.mrb[0].mxu0
      %v1742 = vpop.f32.mrb[0].mxu0
      %v1743 = vadd.f32 0.0, %v1742
      %v1744 = vpop.f32.mrb[0].mxu0
      %1745 = vmatprep.mubr.bf16.mxu0 0
      %1746 = vmatmul.mubr.bf16.gmra.mrb[0].mxu0 %v1657
      %v1747 = vpop.f32.mrb[0].mxu0
      %v1748 = vadd.f32 0.0, %v1747
      %v1749 = vpop.f32.mrb[0].mxu0
      %v1750 = vpop.f32.mrb[0].mxu0
      %v1751 = vadd.f32 0.0, %v1750
      %v1752 = vpop.f32.mrb[0].mxu0
      %1753 = vmatprep.mubr.bf16.mxu0 0
      %1754 = vmatmul.mubr.bf16.gmra.mrb[0].mxu0 %v1660
      %v1755 = vpop.f32.mrb[0].mxu0
      %v1756 = vadd.f32 0.0, %v1755
      %v1757 = vpop.f32.mrb[0].mxu0
      %v1758 = vpop.f32.mrb[0].mxu0
      %v1759 = vadd.f32 0.0, %v1758
      %v1760 = vpop.f32.mrb[0].mxu0
      %1761 = vdwg.mxu0
      %v1762 = vadd.f32 %v1243, %v1700
      %v1763 = vadd.f32 %v1246, %v1703
      %v1764 = vadd.f32 %v1251, %v1708
      %v1765 = vadd.f32 %v1254, %v1711
      %v1766 = vadd.f32 %v1259, %v1716
      %v1767 = vadd.f32 %v1262, %v1719
      %v1768 = vadd.f32 %v1267, %v1724
      %v1769 = vadd.f32 %v1270, %v1727
      %v1770 = vadd.f32 %v1275, %v1732
      %v1771 = vadd.f32 %v1278, %v1735
      %v1772 = vadd.f32 %v1283, %v1740
      %v1773 = vadd.f32 %v1286, %v1743
      %v1774 = vadd.f32 %v1291, %v1748
      %v1775 = vadd.f32 %v1294, %v1751
      %v1776 = vadd.f32 %v1299, %v1756
      %v1777 = vadd.f32 %v1302, %v1759
      %v1778 = vld [vmem:[%s596] sm:$0xf]
      %v1779 = vld [vmem:[%s596 + $0x4] sm:$0x1]
      %v1780 = vld [vmem:[%s596 + $0x8] sm:$0xf]
      %v1781 = vld [vmem:[%s596 + $0xc] sm:$0x1]
      %v1782 = vld [vmem:[%s596 + $0x10] sm:$0xf]
      %v1783 = vld [vmem:[%s596 + $0x14] sm:$0x1]
      %v1784 = vld [vmem:[%s596 + $0x18] sm:$0xf]
      %v1785 = vld [vmem:[%s596 + $0x1c] sm:$0x1]
      %v1786 = vld [vmem:[%s596 + $0x20] sm:$0xf]
      %v1787 = vld [vmem:[%s596 + $0x24] sm:$0x1]
      %v1788 = vld [vmem:[%s596 + $0x28] sm:$0xf]
      %v1789 = vld [vmem:[%s596 + $0x2c] sm:$0x1]
      %v1790 = vld [vmem:[%s596 + $0x30] sm:$0xf]
      %v1791 = vld [vmem:[%s596 + $0x34] sm:$0x1]
      %v1792 = vld [vmem:[%s596 + $0x38] sm:$0xf]
      %v1793 = vld [vmem:[%s596 + $0x3c] sm:$0x1]
      %v1794 = vld [vmem:[%s596 + $0x50] sm:$0xf]
      %v1795 = vld [vmem:[%s596 + $0x54] sm:$0x1]
      %v1796 = vld [vmem:[%s596 + $0x58] sm:$0xf]
      %v1797 = vld [vmem:[%s596 + $0x5c] sm:$0x1]
      %v1798 = vld [vmem:[%s596 + $0x60] sm:$0xf]
      %v1799 = vld [vmem:[%s596 + $0x64] sm:$0x1]
      %v1800 = vld [vmem:[%s596 + $0x68] sm:$0xf]
      %v1801 = vld [vmem:[%s596 + $0x6c] sm:$0x1]
      %v1802 = vld [vmem:[%s596 + $0x70] sm:$0xf]
      %v1803 = vld [vmem:[%s596 + $0x74] sm:$0x1]
      %v1804 = vld [vmem:[%s596 + $0x78] sm:$0xf]
      %v1805 = vld [vmem:[%s596 + $0x7c] sm:$0x1]
      %v1806 = vld [vmem:[%s596 + $0x80] sm:$0xf]
      %v1807 = vld [vmem:[%s596 + $0x84] sm:$0x1]
      %v1808 = vld [vmem:[%s596 + $0x88] sm:$0xf]
      %v1809 = vld [vmem:[%s596 + $0x8c] sm:$0x1]
      %v1811 = vshrl.u32 %v1778, 16
      %v1813 = vrot.slane %v1811, 4
      %v1814 = vshll.u32 %v1778, 16
      %v1816 = vrot.slane %v1814, 5
      %v1817 = vor.u32 %v1813, %v1816
      %v1818 = vrot.slane %v1817, 4
      %v1820 = vshll.u32 %v1779, 16
      %v1822 = vrot.slane %v1820, 5
      %v1823 = vsel %vm664, %v1818, %v1822
      %v1825 = vshrl.u32 %v1780, 16
      %v1827 = vrot.slane %v1825, 4
      %v1828 = vshll.u32 %v1780, 16
      %v1830 = vrot.slane %v1828, 5
      %v1831 = vor.u32 %v1827, %v1830
      %v1832 = vrot.slane %v1831, 4
      %v1834 = vshll.u32 %v1781, 16
      %v1836 = vrot.slane %v1834, 5
      %v1837 = vsel %vm664, %v1832, %v1836
      %v1839 = vshrl.u32 %v1782, 16
      %v1841 = vrot.slane %v1839, 4
      %v1842 = vshll.u32 %v1782, 16
      %v1844 = vrot.slane %v1842, 5
      %v1845 = vor.u32 %v1841, %v1844
      %v1846 = vrot.slane %v1845, 4
      %v1848 = vshll.u32 %v1783, 16
      %v1850 = vrot.slane %v1848, 5
      %v1851 = vsel %vm664, %v1846, %v1850
      %v1853 = vshrl.u32 %v1784, 16
      %v1855 = vrot.slane %v1853, 4
      %v1856 = vshll.u32 %v1784, 16
      %v1858 = vrot.slane %v1856, 5
      %v1859 = vor.u32 %v1855, %v1858
      %v1860 = vrot.slane %v1859, 4
      %v1862 = vshll.u32 %v1785, 16
      %v1864 = vrot.slane %v1862, 5
      %v1865 = vsel %vm664, %v1860, %v1864
      %v1867 = vshrl.u32 %v1786, 16
      %v1869 = vrot.slane %v1867, 4
      %v1870 = vshll.u32 %v1786, 16
      %v1872 = vrot.slane %v1870, 5
      %v1873 = vor.u32 %v1869, %v1872
      %v1874 = vrot.slane %v1873, 4
      %v1876 = vshll.u32 %v1787, 16
      %v1878 = vrot.slane %v1876, 5
      %v1879 = vsel %vm664, %v1874, %v1878
      %v1881 = vshrl.u32 %v1788, 16
      %v1883 = vrot.slane %v1881, 4
      %v1884 = vshll.u32 %v1788, 16
      %v1886 = vrot.slane %v1884, 5
      %v1887 = vor.u32 %v1883, %v1886
      %v1888 = vrot.slane %v1887, 4
      %v1890 = vshll.u32 %v1789, 16
      %v1892 = vrot.slane %v1890, 5
      %v1893 = vsel %vm664, %v1888, %v1892
      %v1895 = vshrl.u32 %v1790, 16
      %v1897 = vrot.slane %v1895, 4
      %v1898 = vshll.u32 %v1790, 16
      %v1900 = vrot.slane %v1898, 5
      %v1901 = vor.u32 %v1897, %v1900
      %v1902 = vrot.slane %v1901, 4
      %v1904 = vshll.u32 %v1791, 16
      %v1906 = vrot.slane %v1904, 5
      %v1907 = vsel %vm664, %v1902, %v1906
      %v1909 = vshrl.u32 %v1792, 16
      %v1911 = vrot.slane %v1909, 4
      %v1912 = vshll.u32 %v1792, 16
      %v1914 = vrot.slane %v1912, 5
      %v1915 = vor.u32 %v1911, %v1914
      %v1916 = vrot.slane %v1915, 4
      %v1918 = vshll.u32 %v1793, 16
      %v1920 = vrot.slane %v1918, 5
      %v1921 = vsel %vm664, %v1916, %v1920
      %v1923 = vshrl.u32 %v1794, 16
      %v1925 = vrot.slane %v1923, 4
      %v1926 = vshll.u32 %v1794, 16
      %v1928 = vrot.slane %v1926, 5
      %v1929 = vor.u32 %v1925, %v1928
      %v1930 = vrot.slane %v1929, 4
      %v1932 = vshll.u32 %v1795, 16
      %v1934 = vrot.slane %v1932, 5
      %v1935 = vsel %vm664, %v1930, %v1934
      %v1937 = vshrl.u32 %v1796, 16
      %v1939 = vrot.slane %v1937, 4
      %v1940 = vshll.u32 %v1796, 16
      %v1942 = vrot.slane %v1940, 5
      %v1943 = vor.u32 %v1939, %v1942
      %v1944 = vrot.slane %v1943, 4
      %v1946 = vshll.u32 %v1797, 16
      %v1948 = vrot.slane %v1946, 5
      %v1949 = vsel %vm664, %v1944, %v1948
      %v1951 = vshrl.u32 %v1798, 16
      %v1953 = vrot.slane %v1951, 4
      %v1954 = vshll.u32 %v1798, 16
      %v1956 = vrot.slane %v1954, 5
      %v1957 = vor.u32 %v1953, %v1956
      %v1958 = vrot.slane %v1957, 4
      %v1960 = vshll.u32 %v1799, 16
      %v1962 = vrot.slane %v1960, 5
      %v1963 = vsel %vm664, %v1958, %v1962
      %v1965 = vshrl.u32 %v1800, 16
      %v1967 = vrot.slane %v1965, 4
      %v1968 = vshll.u32 %v1800, 16
      %v1970 = vrot.slane %v1968, 5
      %v1971 = vor.u32 %v1967, %v1970
      %v1972 = vrot.slane %v1971, 4
      %v1974 = vshll.u32 %v1801, 16
      %v1976 = vrot.slane %v1974, 5
      %v1977 = vsel %vm664, %v1972, %v1976
      %v1979 = vshrl.u32 %v1802, 16
      %v1981 = vrot.slane %v1979, 4
      %v1982 = vshll.u32 %v1802, 16
      %v1984 = vrot.slane %v1982, 5
      %v1985 = vor.u32 %v1981, %v1984
      %v1986 = vrot.slane %v1985, 4
      %v1988 = vshll.u32 %v1803, 16
      %v1990 = vrot.slane %v1988, 5
      %v1991 = vsel %vm664, %v1986, %v1990
      %v1993 = vshrl.u32 %v1804, 16
      %v1995 = vrot.slane %v1993, 4
      %v1996 = vshll.u32 %v1804, 16
      %v1998 = vrot.slane %v1996, 5
      %v1999 = vor.u32 %v1995, %v1998
      %v2000 = vrot.slane %v1999, 4
      %v2002 = vshll.u32 %v1805, 16
      %v2004 = vrot.slane %v2002, 5
      %v2005 = vsel %vm664, %v2000, %v2004
      %v2007 = vshrl.u32 %v1806, 16
      %v2009 = vrot.slane %v2007, 4
      %v2010 = vshll.u32 %v1806, 16
      %v2012 = vrot.slane %v2010, 5
      %v2013 = vor.u32 %v2009, %v2012
      %v2014 = vrot.slane %v2013, 4
      %v2016 = vshll.u32 %v1807, 16
      %v2018 = vrot.slane %v2016, 5
      %v2019 = vsel %vm664, %v2014, %v2018
      %v2021 = vshrl.u32 %v1808, 16
      %v2023 = vrot.slane %v2021, 4
      %v2024 = vshll.u32 %v1808, 16
      %v2026 = vrot.slane %v2024, 5
      %v2027 = vor.u32 %v2023, %v2026
      %v2028 = vrot.slane %v2027, 4
      %v2030 = vshll.u32 %v1809, 16
      %v2032 = vrot.slane %v2030, 5
      %v2033 = vsel %vm664, %v2028, %v2032
      %s2034 = scalar_lea.vmem %s3, 12
      %v2035 = vld [vmem:[%s2034] sm:$0xf]
      %v2036 = vunpack.c.l.b16 %v1823
      %v2037 = vunpack.c.l.b16 %v1837
      %v2038 = vunpack.c.l.b16 %v1851
      %v2039 = vunpack.c.l.b16 %v1865
      %v2040 = vunpack.c.l.b16 %v1879
      %v2041 = vunpack.c.l.b16 %v1893
      %v2042 = vunpack.c.l.b16 %v1907
      %v2043 = vunpack.c.l.b16 %v1921
      %v2044 = vunpack.c.l.b16 %v1935
      %v2045 = vunpack.c.l.b16 %v1949
      %v2046 = vunpack.c.l.b16 %v1963
      %v2047 = vunpack.c.l.b16 %v1977
      %v2048 = vunpack.c.l.b16 %v1991
      %v2049 = vunpack.c.l.b16 %v2005
      %v2050 = vunpack.c.l.b16 %v2019
      %v2051 = vunpack.c.l.b16 %v2033
      %v2052 = vpack.c.b16 %v2037, %v2036
      %v2053 = vpack.c.b16 %v2039, %v2038
      %v2054 = vpack.c.b16 %v2041, %v2040
      %v2055 = vpack.c.b16 %v2043, %v2042
      %v2056 = vpack.c.b16 %v2045, %v2044
      %v2057 = vpack.c.b16 %v2047, %v2046
      %v2058 = vpack.c.b16 %v2049, %v2048
      %v2059 = vpack.c.b16 %v2051, %v2050
      %v2061 = vsel %vm1031, %v2052, 0
      %v2064 = vsel %vm1031, %v2053, 0
      %v2067 = vsel %vm1031, %v2054, 0
      %v2070 = vsel %vm1031, %v2055, 0
      %v2073 = vsel %vm1031, %v2056, 0
      %v2076 = vsel %vm1031, %v2057, 0
      %v2079 = vsel %vm1031, %v2058, 0
      %v2082 = vsel %vm1031, %v2059, 0
      %v2085 = vsel %vm1056, %v2035, 0
      %2087 = vmatprep.subr.bf16.mxu0 0
      %2088 = vmatpush1.bf16.msra.mxu0 %v2085
      %2089 = vmatprep.subr.bf16.mxu0 0
      %2090 = vmatpush1.bf16.msra.mxu0 0
      %2091 = vmatprep.subr.bf16.mxu0 0
      %2092 = vmatpush1.bf16.msra.mxu0 0
      %2093 = vmatprep.subr.bf16.mxu0 0
      %2094 = vmatpush1.bf16.msra.mxu0 0
      %2095 = vmatprep.subr.bf16.mxu0 0
      %2096 = vmatpush1.bf16.msra.mxu0 0
      %2097 = vmatprep.subr.bf16.mxu0 0
      %2098 = vmatpush1.bf16.msra.mxu0 0
      %2099 = vmatprep.subr.bf16.mxu0 0
      %2100 = vmatpush1.bf16.msra.mxu0 0
      %2101 = vmatprep.subr.bf16.mxu0 0
      %2102 = vmatpush1.bf16.msra.mxu0 0
      %2103 = vmatprep.subr.bf16.mxu0 0
      %2104 = vmatpush1.bf16.msra.mxu0 0
      %2105 = vmatprep.subr.bf16.mxu0 0
      %2106 = vmatpush1.bf16.msra.mxu0 0
      %2107 = vmatprep.subr.bf16.mxu0 0
      %2108 = vmatpush1.bf16.msra.mxu0 0
      %2109 = vmatprep.subr.bf16.mxu0 0
      %2110 = vmatpush1.bf16.msra.mxu0 0
      %2111 = vmatprep.subr.bf16.mxu0 0
      %2112 = vmatpush1.bf16.msra.mxu0 0
      %2113 = vmatprep.subr.bf16.mxu0 0
      %2114 = vmatpush1.bf16.msra.mxu0 0
      %2115 = vmatprep.subr.bf16.mxu0 0
      %2116 = vmatpush1.bf16.msra.mxu0 0
      %2117 = vmatprep.subr.bf16.mxu0 0
      %2118 = vmatpush1.bf16.msra.mxu0 0
      %2119 = vmatprep.mubr.bf16.mxu0 0
      %2120 = vmatmul.mubr.bf16.gmra.mrb[0].mxu0 %v2061
      %v2121 = vpop.f32.mrb[0].mxu0
      %v2122 = vadd.f32 0.0, %v2121
      %v2123 = vpop.f32.mrb[0].mxu0
      %v2124 = vpop.f32.mrb[0].mxu0
      %v2125 = vadd.f32 0.0, %v2124
      %v2126 = vpop.f32.mrb[0].mxu0
      %2127 = vmatprep.mubr.bf16.mxu0 0
      %2128 = vmatmul.mubr.bf16.gmra.mrb[0].mxu0 %v2064
      %v2129 = vpop.f32.mrb[0].mxu0
      %v2130 = vadd.f32 0.0, %v2129
      %v2131 = vpop.f32.mrb[0].mxu0
      %v2132 = vpop.f32.mrb[0].mxu0
      %v2133 = vadd.f32 0.0, %v2132
      %v2134 = vpop.f32.mrb[0].mxu0
      %2135 = vmatprep.mubr.bf16.mxu0 0
      %2136 = vmatmul.mubr.bf16.gmra.mrb[0].mxu0 %v2067
      %v2137 = vpop.f32.mrb[0].mxu0
      %v2138 = vadd.f32 0.0, %v2137
      %v2139 = vpop.f32.mrb[0].mxu0
      %v2140 = vpop.f32.mrb[0].mxu0
      %v2141 = vadd.f32 0.0, %v2140
      %v2142 = vpop.f32.mrb[0].mxu0
      %2143 = vmatprep.mubr.bf16.mxu0 0
      %2144 = vmatmul.mubr.bf16.gmra.mrb[0].mxu0 %v2070
      %v2145 = vpop.f32.mrb[0].mxu0
      %v2146 = vadd.f32 0.0, %v2145
      %v2147 = vpop.f32.mrb[0].mxu0
      %v2148 = vpop.f32.mrb[0].mxu0
      %v2149 = vadd.f32 0.0, %v2148
      %v2150 = vpop.f32.mrb[0].mxu0
      %2151 = vmatprep.mubr.bf16.mxu0 0
      %2152 = vmatmul.mubr.bf16.gmra.mrb[0].mxu0 %v2073
      %v2153 = vpop.f32.mrb[0].mxu0
      %v2154 = vadd.f32 0.0, %v2153
      %v2155 = vpop.f32.mrb[0].mxu0
      %v2156 = vpop.f32.mrb[0].mxu0
      %v2157 = vadd.f32 0.0, %v2156
      %v2158 = vpop.f32.mrb[0].mxu0
      %2159 = vmatprep.mubr.bf16.mxu0 0
      %2160 = vmatmul.mubr.bf16.gmra.mrb[0].mxu0 %v2076
      %v2161 = vpop.f32.mrb[0].mxu0
      %v2162 = vadd.f32 0.0, %v2161
      %v2163 = vpop.f32.mrb[0].mxu0
      %v2164 = vpop.f32.mrb[0].mxu0
      %v2165 = vadd.f32 0.0, %v2164
      %v2166 = vpop.f32.mrb[0].mxu0
      %2167 = vmatprep.mubr.bf16.mxu0 0
      %2168 = vmatmul.mubr.bf16.gmra.mrb[0].mxu0 %v2079
      %v2169 = vpop.f32.mrb[0].mxu0
      %v2170 = vadd.f32 0.0, %v2169
      %v2171 = vpop.f32.mrb[0].mxu0
      %v2172 = vpop.f32.mrb[0].mxu0
      %v2173 = vadd.f32 0.0, %v2172
      %v2174 = vpop.f32.mrb[0].mxu0
      %2175 = vmatprep.mubr.bf16.mxu0 0
      %2176 = vmatmul.mubr.bf16.gmra.mrb[0].mxu0 %v2082
      %v2177 = vpop.f32.mrb[0].mxu0
      %v2178 = vadd.f32 0.0, %v2177
      %v2179 = vpop.f32.mrb[0].mxu0
      %v2180 = vpop.f32.mrb[0].mxu0
      %v2181 = vadd.f32 0.0, %v2180
      %v2182 = vpop.f32.mrb[0].mxu0
      %2183 = vdwg.mxu0
      %v2184 = vadd.f32 %v1762, %v2122
      %v2185 = vadd.f32 %v1763, %v2125
      %v2186 = vadd.f32 %v1764, %v2130
      %v2187 = vadd.f32 %v1765, %v2133
      %v2188 = vadd.f32 %v1766, %v2138
      %v2189 = vadd.f32 %v1767, %v2141
      %v2190 = vadd.f32 %v1768, %v2146
      %v2191 = vadd.f32 %v1769, %v2149
      %v2192 = vadd.f32 %v1770, %v2154
      %v2193 = vadd.f32 %v1771, %v2157
      %v2194 = vadd.f32 %v1772, %v2162
      %v2195 = vadd.f32 %v1773, %v2165
      %v2196 = vadd.f32 %v1774, %v2170
      %v2197 = vadd.f32 %v1775, %v2173
      %v2198 = vadd.f32 %v1776, %v2178
      %v2199 = vadd.f32 %v1777, %v2181
      %v2200 = vld [vmem:[%s596] sm:$0xe]
      %v2201 = vld [vmem:[%s596 + $0x8] sm:$0xe]
      %v2202 = vld [vmem:[%s596 + $0x10] sm:$0xe]
      %v2203 = vld [vmem:[%s596 + $0x18] sm:$0xe]
      %v2204 = vld [vmem:[%s596 + $0x20] sm:$0xe]
      %v2205 = vld [vmem:[%s596 + $0x28] sm:$0xe]
      %v2206 = vld [vmem:[%s596 + $0x30] sm:$0xe]
      %v2207 = vld [vmem:[%s596 + $0x38] sm:$0xe]
      %v2208 = vld [vmem:[%s596 + $0x50] sm:$0xe]
      %v2209 = vld [vmem:[%s596 + $0x58] sm:$0xe]
      %v2210 = vld [vmem:[%s596 + $0x60] sm:$0xe]
      %v2211 = vld [vmem:[%s596 + $0x68] sm:$0xe]
      %v2212 = vld [vmem:[%s596 + $0x70] sm:$0xe]
      %v2213 = vld [vmem:[%s596 + $0x78] sm:$0xe]
      %v2214 = vld [vmem:[%s596 + $0x80] sm:$0xe]
      %v2215 = vld [vmem:[%s596 + $0x88] sm:$0xe]
      %v2248 = vrot.slane %v2200, 5
      %v2249 = vrot.slane %v2248, 4
      %v2250 = vrot.slane %v1779, 5
      %v2251 = vsel %vm940, %v2249, %v2250
      %v2252 = vrot.slane %v2201, 5
      %v2253 = vrot.slane %v2252, 4
      %v2254 = vrot.slane %v1781, 5
      %v2255 = vsel %vm940, %v2253, %v2254
      %v2256 = vrot.slane %v2202, 5
      %v2257 = vrot.slane %v2256, 4
      %v2258 = vrot.slane %v1783, 5
      %v2259 = vsel %vm940, %v2257, %v2258
      %v2260 = vrot.slane %v2203, 5
      %v2261 = vrot.slane %v2260, 4
      %v2262 = vrot.slane %v1785, 5
      %v2263 = vsel %vm940, %v2261, %v2262
      %v2264 = vrot.slane %v2204, 5
      %v2265 = vrot.slane %v2264, 4
      %v2266 = vrot.slane %v1787, 5
      %v2267 = vsel %vm940, %v2265, %v2266
      %v2268 = vrot.slane %v2205, 5
      %v2269 = vrot.slane %v2268, 4
      %v2270 = vrot.slane %v1789, 5
      %v2271 = vsel %vm940, %v2269, %v2270
      %v2272 = vrot.slane %v2206, 5
      %v2273 = vrot.slane %v2272, 4
      %v2274 = vrot.slane %v1791, 5
      %v2275 = vsel %vm940, %v2273, %v2274
      %v2276 = vrot.slane %v2207, 5
      %v2277 = vrot.slane %v2276, 4
      %v2278 = vrot.slane %v1793, 5
      %v2279 = vsel %vm940, %v2277, %v2278
      %v2280 = vrot.slane %v2208, 5
      %v2281 = vrot.slane %v2280, 4
      %v2282 = vrot.slane %v1795, 5
      %v2283 = vsel %vm940, %v2281, %v2282
      %v2284 = vrot.slane %v2209, 5
      %v2285 = vrot.slane %v2284, 4
      %v2286 = vrot.slane %v1797, 5
      %v2287 = vsel %vm940, %v2285, %v2286
      %v2288 = vrot.slane %v2210, 5
      %v2289 = vrot.slane %v2288, 4
      %v2290 = vrot.slane %v1799, 5
      %v2291 = vsel %vm940, %v2289, %v2290
      %v2292 = vrot.slane %v2211, 5
      %v2293 = vrot.slane %v2292, 4
      %v2294 = vrot.slane %v1801, 5
      %v2295 = vsel %vm940, %v2293, %v2294
      %v2296 = vrot.slane %v2212, 5
      %v2297 = vrot.slane %v2296, 4
      %v2298 = vrot.slane %v1803, 5
      %v2299 = vsel %vm940, %v2297, %v2298
      %v2300 = vrot.slane %v2213, 5
      %v2301 = vrot.slane %v2300, 4
      %v2302 = vrot.slane %v1805, 5
      %v2303 = vsel %vm940, %v2301, %v2302
      %v2304 = vrot.slane %v2214, 5
      %v2305 = vrot.slane %v2304, 4
      %v2306 = vrot.slane %v1807, 5
      %v2307 = vsel %vm940, %v2305, %v2306
      %v2308 = vrot.slane %v2215, 5
      %v2309 = vrot.slane %v2308, 4
      %v2310 = vrot.slane %v1809, 5
      %v2311 = vsel %vm940, %v2309, %v2310
      %s2312 = scalar_lea.vmem %s3, 16
      %v2313 = vld [vmem:[%s2312] sm:$0xf]
      %v2314 = vunpack.c.l.b16 %v2251
      %v2315 = vunpack.c.l.b16 %v2255
      %v2316 = vunpack.c.l.b16 %v2259
      %v2317 = vunpack.c.l.b16 %v2263
      %v2318 = vunpack.c.l.b16 %v2267
      %v2319 = vunpack.c.l.b16 %v2271
      %v2320 = vunpack.c.l.b16 %v2275
      %v2321 = vunpack.c.l.b16 %v2279
      %v2322 = vunpack.c.l.b16 %v2283
      %v2323 = vunpack.c.l.b16 %v2287
      %v2324 = vunpack.c.l.b16 %v2291
      %v2325 = vunpack.c.l.b16 %v2295
      %v2326 = vunpack.c.l.b16 %v2299
      %v2327 = vunpack.c.l.b16 %v2303
      %v2328 = vunpack.c.l.b16 %v2307
      %v2329 = vunpack.c.l.b16 %v2311
      %v2330 = vpack.c.b16 %v2315, %v2314
      %v2331 = vpack.c.b16 %v2317, %v2316
      %v2332 = vpack.c.b16 %v2319, %v2318
      %v2333 = vpack.c.b16 %v2321, %v2320
      %v2334 = vpack.c.b16 %v2323, %v2322
      %v2335 = vpack.c.b16 %v2325, %v2324
      %v2336 = vpack.c.b16 %v2327, %v2326
      %v2337 = vpack.c.b16 %v2329, %v2328
      %v2339 = vsel %vm1031, %v2330, 0
      %v2342 = vsel %vm1031, %v2331, 0
      %v2345 = vsel %vm1031, %v2332, 0
      %v2348 = vsel %vm1031, %v2333, 0
      %v2351 = vsel %vm1031, %v2334, 0
      %v2354 = vsel %vm1031, %v2335, 0
      %v2357 = vsel %vm1031, %v2336, 0
      %v2360 = vsel %vm1031, %v2337, 0
      %v2363 = vsel %vm1056, %v2313, 0
      %2365 = vmatprep.subr.bf16.mxu0 0
      %2366 = vmatpush1.bf16.msra.mxu0 %v2363
      %2367 = vmatprep.subr.bf16.mxu0 0
      %2368 = vmatpush1.bf16.msra.mxu0 0
      %2369 = vmatprep.subr.bf16.mxu0 0
      %2370 = vmatpush1.bf16.msra.mxu0 0
      %2371 = vmatprep.subr.bf16.mxu0 0
      %2372 = vmatpush1.bf16.msra.mxu0 0
      %2373 = vmatprep.subr.bf16.mxu0 0
      %2374 = vmatpush1.bf16.msra.mxu0 0
      %2375 = vmatprep.subr.bf16.mxu0 0
      %2376 = vmatpush1.bf16.msra.mxu0 0
      %2377 = vmatprep.subr.bf16.mxu0 0
      %2378 = vmatpush1.bf16.msra.mxu0 0
      %2379 = vmatprep.subr.bf16.mxu0 0
      %2380 = vmatpush1.bf16.msra.mxu0 0
      %2381 = vmatprep.subr.bf16.mxu0 0
      %2382 = vmatpush1.bf16.msra.mxu0 0
      %2383 = vmatprep.subr.bf16.mxu0 0
      %2384 = vmatpush1.bf16.msra.mxu0 0
      %2385 = vmatprep.subr.bf16.mxu0 0
      %2386 = vmatpush1.bf16.msra.mxu0 0
      %2387 = vmatprep.subr.bf16.mxu0 0
      %2388 = vmatpush1.bf16.msra.mxu0 0
      %2389 = vmatprep.subr.bf16.mxu0 0
      %2390 = vmatpush1.bf16.msra.mxu0 0
      %2391 = vmatprep.subr.bf16.mxu0 0
      %2392 = vmatpush1.bf16.msra.mxu0 0
      %2393 = vmatprep.subr.bf16.mxu0 0
      %2394 = vmatpush1.bf16.msra.mxu0 0
      %2395 = vmatprep.subr.bf16.mxu0 0
      %2396 = vmatpush1.bf16.msra.mxu0 0
      %2397 = vmatprep.mubr.bf16.mxu0 0
      %2398 = vmatmul.mubr.bf16.gmra.mrb[0].mxu0 %v2339
      %v2399 = vpop.f32.mrb[0].mxu0
      %v2400 = vadd.f32 0.0, %v2399
      %v2401 = vpop.f32.mrb[0].mxu0
      %v2402 = vpop.f32.mrb[0].mxu0
      %v2403 = vadd.f32 0.0, %v2402
      %v2404 = vpop.f32.mrb[0].mxu0
      %2405 = vmatprep.mubr.bf16.mxu0 0
      %2406 = vmatmul.mubr.bf16.gmra.mrb[0].mxu0 %v2342
      %v2407 = vpop.f32.mrb[0].mxu0
      %v2408 = vadd.f32 0.0, %v2407
      %v2409 = vpop.f32.mrb[0].mxu0
      %v2410 = vpop.f32.mrb[0].mxu0
      %v2411 = vadd.f32 0.0, %v2410
      %v2412 = vpop.f32.mrb[0].mxu0
      %2413 = vmatprep.mubr.bf16.mxu0 0
      %2414 = vmatmul.mubr.bf16.gmra.mrb[0].mxu0 %v2345
      %v2415 = vpop.f32.mrb[0].mxu0
      %v2416 = vadd.f32 0.0, %v2415
      %v2417 = vpop.f32.mrb[0].mxu0
      %v2418 = vpop.f32.mrb[0].mxu0
      %v2419 = vadd.f32 0.0, %v2418
      %v2420 = vpop.f32.mrb[0].mxu0
      %2421 = vmatprep.mubr.bf16.mxu0 0
      %2422 = vmatmul.mubr.bf16.gmra.mrb[0].mxu0 %v2348
      %v2423 = vpop.f32.mrb[0].mxu0
      %v2424 = vadd.f32 0.0, %v2423
      %v2425 = vpop.f32.mrb[0].mxu0
      %v2426 = vpop.f32.mrb[0].mxu0
      %v2427 = vadd.f32 0.0, %v2426
      %v2428 = vpop.f32.mrb[0].mxu0
      %2429 = vmatprep.mubr.bf16.mxu0 0
      %2430 = vmatmul.mubr.bf16.gmra.mrb[0].mxu0 %v2351
      %v2431 = vpop.f32.mrb[0].mxu0
      %v2432 = vadd.f32 0.0, %v2431
      %v2433 = vpop.f32.mrb[0].mxu0
      %v2434 = vpop.f32.mrb[0].mxu0
      %v2435 = vadd.f32 0.0, %v2434
      %v2436 = vpop.f32.mrb[0].mxu0
      %2437 = vmatprep.mubr.bf16.mxu0 0
      %2438 = vmatmul.mubr.bf16.gmra.mrb[0].mxu0 %v2354
      %v2439 = vpop.f32.mrb[0].mxu0
      %v2440 = vadd.f32 0.0, %v2439
      %v2441 = vpop.f32.mrb[0].mxu0
      %v2442 = vpop.f32.mrb[0].mxu0
      %v2443 = vadd.f32 0.0, %v2442
      %v2444 = vpop.f32.mrb[0].mxu0
      %2445 = vmatprep.mubr.bf16.mxu0 0
      %2446 = vmatmul.mubr.bf16.gmra.mrb[0].mxu0 %v2357
      %v2447 = vpop.f32.mrb[0].mxu0
      %v2448 = vadd.f32 0.0, %v2447
      %v2449 = vpop.f32.mrb[0].mxu0
      %v2450 = vpop.f32.mrb[0].mxu0
      %v2451 = vadd.f32 0.0, %v2450
      %v2452 = vpop.f32.mrb[0].mxu0
      %2453 = vmatprep.mubr.bf16.mxu0 0
      %2454 = vmatmul.mubr.bf16.gmra.mrb[0].mxu0 %v2360
      %v2455 = vpop.f32.mrb[0].mxu0
      %v2456 = vadd.f32 0.0, %v2455
      %v2457 = vpop.f32.mrb[0].mxu0
      %v2458 = vpop.f32.mrb[0].mxu0
      %v2459 = vadd.f32 0.0, %v2458
      %v2460 = vpop.f32.mrb[0].mxu0
      %2461 = vdwg.mxu0
      %v2462 = vadd.f32 %v2184, %v2400
      %v2463 = vadd.f32 %v2185, %v2403
      %v2464 = vadd.f32 %v2186, %v2408
      %v2465 = vadd.f32 %v2187, %v2411
      %v2466 = vadd.f32 %v2188, %v2416
      %v2467 = vadd.f32 %v2189, %v2419
      %v2468 = vadd.f32 %v2190, %v2424
      %v2469 = vadd.f32 %v2191, %v2427
      %v2470 = vadd.f32 %v2192, %v2432
      %v2471 = vadd.f32 %v2193, %v2435
      %v2472 = vadd.f32 %v2194, %v2440
      %v2473 = vadd.f32 %v2195, %v2443
      %v2474 = vadd.f32 %v2196, %v2448
      %v2475 = vadd.f32 %v2197, %v2451
      %v2476 = vadd.f32 %v2198, %v2456
      %v2477 = vadd.f32 %v2199, %v2459
      %v2478 = vld [vmem:[%s596 + $0x4] sm:$0x3]
      %v2479 = vld [vmem:[%s596 + $0xc] sm:$0x3]
      %v2480 = vld [vmem:[%s596 + $0x14] sm:$0x3]
      %v2481 = vld [vmem:[%s596 + $0x1c] sm:$0x3]
      %v2482 = vld [vmem:[%s596 + $0x24] sm:$0x3]
      %v2483 = vld [vmem:[%s596 + $0x2c] sm:$0x3]
      %v2484 = vld [vmem:[%s596 + $0x34] sm:$0x3]
      %v2485 = vld [vmem:[%s596 + $0x3c] sm:$0x3]
      %v2486 = vld [vmem:[%s596 + $0x54] sm:$0x3]
      %v2487 = vld [vmem:[%s596 + $0x5c] sm:$0x3]
      %v2488 = vld [vmem:[%s596 + $0x64] sm:$0x3]
      %v2489 = vld [vmem:[%s596 + $0x6c] sm:$0x3]
      %v2490 = vld [vmem:[%s596 + $0x74] sm:$0x3]
      %v2491 = vld [vmem:[%s596 + $0x7c] sm:$0x3]
      %v2492 = vld [vmem:[%s596 + $0x84] sm:$0x3]
      %v2493 = vld [vmem:[%s596 + $0x8c] sm:$0x3]
      %v2495 = vshrl.u32 %v2200, 16
      %v2497 = vrot.slane %v2495, 5
      %v2498 = vshll.u32 %v2200, 16
      %v2500 = vrot.slane %v2498, 6
      %v2501 = vor.u32 %v2497, %v2500
      %v2502 = vrot.slane %v2501, 4
      %v2504 = vshrl.u32 %v2478, 16
      %v2506 = vrot.slane %v2504, 5
      %v2507 = vshll.u32 %v2478, 16
      %v2509 = vrot.slane %v2507, 6
      %v2510 = vor.u32 %v2506, %v2509
      %v2511 = vsel %vm1323, %v2502, %v2510
      %v2513 = vshrl.u32 %v2201, 16
      %v2515 = vrot.slane %v2513, 5
      %v2516 = vshll.u32 %v2201, 16
      %v2518 = vrot.slane %v2516, 6
      %v2519 = vor.u32 %v2515, %v2518
      %v2520 = vrot.slane %v2519, 4
      %v2522 = vshrl.u32 %v2479, 16
      %v2524 = vrot.slane %v2522, 5
      %v2525 = vshll.u32 %v2479, 16
      %v2527 = vrot.slane %v2525, 6
      %v2528 = vor.u32 %v2524, %v2527
      %v2529 = vsel %vm1323, %v2520, %v2528
      %v2531 = vshrl.u32 %v2202, 16
      %v2533 = vrot.slane %v2531, 5
      %v2534 = vshll.u32 %v2202, 16
      %v2536 = vrot.slane %v2534, 6
      %v2537 = vor.u32 %v2533, %v2536
      %v2538 = vrot.slane %v2537, 4
      %v2540 = vshrl.u32 %v2480, 16
      %v2542 = vrot.slane %v2540, 5
      %v2543 = vshll.u32 %v2480, 16
      %v2545 = vrot.slane %v2543, 6
      %v2546 = vor.u32 %v2542, %v2545
      %v2547 = vsel %vm1323, %v2538, %v2546
      %v2549 = vshrl.u32 %v2203, 16
      %v2551 = vrot.slane %v2549, 5
      %v2552 = vshll.u32 %v2203, 16
      %v2554 = vrot.slane %v2552, 6
      %v2555 = vor.u32 %v2551, %v2554
      %v2556 = vrot.slane %v2555, 4
      %v2558 = vshrl.u32 %v2481, 16
      %v2560 = vrot.slane %v2558, 5
      %v2561 = vshll.u32 %v2481, 16
      %v2563 = vrot.slane %v2561, 6
      %v2564 = vor.u32 %v2560, %v2563
      %v2565 = vsel %vm1323, %v2556, %v2564
      %v2567 = vshrl.u32 %v2204, 16
      %v2569 = vrot.slane %v2567, 5
      %v2570 = vshll.u32 %v2204, 16
      %v2572 = vrot.slane %v2570, 6
      %v2573 = vor.u32 %v2569, %v2572
      %v2574 = vrot.slane %v2573, 4
      %v2576 = vshrl.u32 %v2482, 16
      %v2578 = vrot.slane %v2576, 5
      %v2579 = vshll.u32 %v2482, 16
      %v2581 = vrot.slane %v2579, 6
      %v2582 = vor.u32 %v2578, %v2581
      %v2583 = vsel %vm1323, %v2574, %v2582
      %v2585 = vshrl.u32 %v2205, 16
      %v2587 = vrot.slane %v2585, 5
      %v2588 = vshll.u32 %v2205, 16
      %v2590 = vrot.slane %v2588, 6
      %v2591 = vor.u32 %v2587, %v2590
      %v2592 = vrot.slane %v2591, 4
      %v2594 = vshrl.u32 %v2483, 16
      %v2596 = vrot.slane %v2594, 5
      %v2597 = vshll.u32 %v2483, 16
      %v2599 = vrot.slane %v2597, 6
      %v2600 = vor.u32 %v2596, %v2599
      %v2601 = vsel %vm1323, %v2592, %v2600
      %v2603 = vshrl.u32 %v2206, 16
      %v2605 = vrot.slane %v2603, 5
      %v2606 = vshll.u32 %v2206, 16
      %v2608 = vrot.slane %v2606, 6
      %v2609 = vor.u32 %v2605, %v2608
      %v2610 = vrot.slane %v2609, 4
      %v2612 = vshrl.u32 %v2484, 16
      %v2614 = vrot.slane %v2612, 5
      %v2615 = vshll.u32 %v2484, 16
      %v2617 = vrot.slane %v2615, 6
      %v2618 = vor.u32 %v2614, %v2617
      %v2619 = vsel %vm1323, %v2610, %v2618
      %v2621 = vshrl.u32 %v2207, 16
      %v2623 = vrot.slane %v2621, 5
      %v2624 = vshll.u32 %v2207, 16
      %v2626 = vrot.slane %v2624, 6
      %v2627 = vor.u32 %v2623, %v2626
      %v2628 = vrot.slane %v2627, 4
      %v2630 = vshrl.u32 %v2485, 16
      %v2632 = vrot.slane %v2630, 5
      %v2633 = vshll.u32 %v2485, 16
      %v2635 = vrot.slane %v2633, 6
      %v2636 = vor.u32 %v2632, %v2635
      %v2637 = vsel %vm1323, %v2628, %v2636
      %v2639 = vshrl.u32 %v2208, 16
      %v2641 = vrot.slane %v2639, 5
      %v2642 = vshll.u32 %v2208, 16
      %v2644 = vrot.slane %v2642, 6
      %v2645 = vor.u32 %v2641, %v2644
      %v2646 = vrot.slane %v2645, 4
      %v2648 = vshrl.u32 %v2486, 16
      %v2650 = vrot.slane %v2648, 5
      %v2651 = vshll.u32 %v2486, 16
      %v2653 = vrot.slane %v2651, 6
      %v2654 = vor.u32 %v2650, %v2653
      %v2655 = vsel %vm1323, %v2646, %v2654
      %v2657 = vshrl.u32 %v2209, 16
      %v2659 = vrot.slane %v2657, 5
      %v2660 = vshll.u32 %v2209, 16
      %v2662 = vrot.slane %v2660, 6
      %v2663 = vor.u32 %v2659, %v2662
      %v2664 = vrot.slane %v2663, 4
      %v2666 = vshrl.u32 %v2487, 16
      %v2668 = vrot.slane %v2666, 5
      %v2669 = vshll.u32 %v2487, 16
      %v2671 = vrot.slane %v2669, 6
      %v2672 = vor.u32 %v2668, %v2671
      %v2673 = vsel %vm1323, %v2664, %v2672
      %v2675 = vshrl.u32 %v2210, 16
      %v2677 = vrot.slane %v2675, 5
      %v2678 = vshll.u32 %v2210, 16
      %v2680 = vrot.slane %v2678, 6
      %v2681 = vor.u32 %v2677, %v2680
      %v2682 = vrot.slane %v2681, 4
      %v2684 = vshrl.u32 %v2488, 16
      %v2686 = vrot.slane %v2684, 5
      %v2687 = vshll.u32 %v2488, 16
      %v2689 = vrot.slane %v2687, 6
      %v2690 = vor.u32 %v2686, %v2689
      %v2691 = vsel %vm1323, %v2682, %v2690
      %v2693 = vshrl.u32 %v2211, 16
      %v2695 = vrot.slane %v2693, 5
      %v2696 = vshll.u32 %v2211, 16
      %v2698 = vrot.slane %v2696, 6
      %v2699 = vor.u32 %v2695, %v2698
      %v2700 = vrot.slane %v2699, 4
      %v2702 = vshrl.u32 %v2489, 16
      %v2704 = vrot.slane %v2702, 5
      %v2705 = vshll.u32 %v2489, 16
      %v2707 = vrot.slane %v2705, 6
      %v2708 = vor.u32 %v2704, %v2707
      %v2709 = vsel %vm1323, %v2700, %v2708
      %v2711 = vshrl.u32 %v2212, 16
      %v2713 = vrot.slane %v2711, 5
      %v2714 = vshll.u32 %v2212, 16
      %v2716 = vrot.slane %v2714, 6
      %v2717 = vor.u32 %v2713, %v2716
      %v2718 = vrot.slane %v2717, 4
      %v2720 = vshrl.u32 %v2490, 16
      %v2722 = vrot.slane %v2720, 5
      %v2723 = vshll.u32 %v2490, 16
      %v2725 = vrot.slane %v2723, 6
      %v2726 = vor.u32 %v2722, %v2725
      %v2727 = vsel %vm1323, %v2718, %v2726
      %v2729 = vshrl.u32 %v2213, 16
      %v2731 = vrot.slane %v2729, 5
      %v2732 = vshll.u32 %v2213, 16
      %v2734 = vrot.slane %v2732, 6
      %v2735 = vor.u32 %v2731, %v2734
      %v2736 = vrot.slane %v2735, 4
      %v2738 = vshrl.u32 %v2491, 16
      %v2740 = vrot.slane %v2738, 5
      %v2741 = vshll.u32 %v2491, 16
      %v2743 = vrot.slane %v2741, 6
      %v2744 = vor.u32 %v2740, %v2743
      %v2745 = vsel %vm1323, %v2736, %v2744
      %v2747 = vshrl.u32 %v2214, 16
      %v2749 = vrot.slane %v2747, 5
      %v2750 = vshll.u32 %v2214, 16
      %v2752 = vrot.slane %v2750, 6
      %v2753 = vor.u32 %v2749, %v2752
      %v2754 = vrot.slane %v2753, 4
      %v2756 = vshrl.u32 %v2492, 16
      %v2758 = vrot.slane %v2756, 5
      %v2759 = vshll.u32 %v2492, 16
      %v2761 = vrot.slane %v2759, 6
      %v2762 = vor.u32 %v2758, %v2761
      %v2763 = vsel %vm1323, %v2754, %v2762
      %v2765 = vshrl.u32 %v2215, 16
      %v2767 = vrot.slane %v2765, 5
      %v2768 = vshll.u32 %v2215, 16
      %v2770 = vrot.slane %v2768, 6
      %v2771 = vor.u32 %v2767, %v2770
      %v2772 = vrot.slane %v2771, 4
      %v2774 = vshrl.u32 %v2493, 16
      %v2776 = vrot.slane %v2774, 5
      %v2777 = vshll.u32 %v2493, 16
      %v2779 = vrot.slane %v2777, 6
      %v2780 = vor.u32 %v2776, %v2779
      %v2781 = vsel %vm1323, %v2772, %v2780
      %s2782 = scalar_lea.vmem %s3, 20
      %v2783 = vld [vmem:[%s2782] sm:$0xf]
      %v2784 = vunpack.c.l.b16 %v2511
      %v2785 = vunpack.c.l.b16 %v2529
      %v2786 = vunpack.c.l.b16 %v2547
      %v2787 = vunpack.c.l.b16 %v2565
      %v2788 = vunpack.c.l.b16 %v2583
      %v2789 = vunpack.c.l.b16 %v2601
      %v2790 = vunpack.c.l.b16 %v2619
      %v2791 = vunpack.c.l.b16 %v2637
      %v2792 = vunpack.c.l.b16 %v2655
      %v2793 = vunpack.c.l.b16 %v2673
      %v2794 = vunpack.c.l.b16 %v2691
      %v2795 = vunpack.c.l.b16 %v2709
      %v2796 = vunpack.c.l.b16 %v2727
      %v2797 = vunpack.c.l.b16 %v2745
      %v2798 = vunpack.c.l.b16 %v2763
      %v2799 = vunpack.c.l.b16 %v2781
      %v2800 = vpack.c.b16 %v2785, %v2784
      %v2801 = vpack.c.b16 %v2787, %v2786
      %v2802 = vpack.c.b16 %v2789, %v2788
      %v2803 = vpack.c.b16 %v2791, %v2790
      %v2804 = vpack.c.b16 %v2793, %v2792
      %v2805 = vpack.c.b16 %v2795, %v2794
      %v2806 = vpack.c.b16 %v2797, %v2796
      %v2807 = vpack.c.b16 %v2799, %v2798
      %v2809 = vsel %vm1031, %v2800, 0
      %v2812 = vsel %vm1031, %v2801, 0
      %v2815 = vsel %vm1031, %v2802, 0
      %v2818 = vsel %vm1031, %v2803, 0
      %v2821 = vsel %vm1031, %v2804, 0
      %v2824 = vsel %vm1031, %v2805, 0
      %v2827 = vsel %vm1031, %v2806, 0
      %v2830 = vsel %vm1031, %v2807, 0
      %v2833 = vsel %vm1056, %v2783, 0
      %2835 = vmatprep.subr.bf16.mxu0 0
      %2836 = vmatpush1.bf16.msra.mxu0 %v2833
      %2837 = vmatprep.subr.bf16.mxu0 0
      %2838 = vmatpush1.bf16.msra.mxu0 0
      %2839 = vmatprep.subr.bf16.mxu0 0
      %2840 = vmatpush1.bf16.msra.mxu0 0
      %2841 = vmatprep.subr.bf16.mxu0 0
      %2842 = vmatpush1.bf16.msra.mxu0 0
      %2843 = vmatprep.subr.bf16.mxu0 0
      %2844 = vmatpush1.bf16.msra.mxu0 0
      %2845 = vmatprep.subr.bf16.mxu0 0
      %2846 = vmatpush1.bf16.msra.mxu0 0
      %2847 = vmatprep.subr.bf16.mxu0 0
      %2848 = vmatpush1.bf16.msra.mxu0 0
      %2849 = vmatprep.subr.bf16.mxu0 0
      %2850 = vmatpush1.bf16.msra.mxu0 0
      %2851 = vmatprep.subr.bf16.mxu0 0
      %2852 = vmatpush1.bf16.msra.mxu0 0
      %2853 = vmatprep.subr.bf16.mxu0 0
      %2854 = vmatpush1.bf16.msra.mxu0 0
      %2855 = vmatprep.subr.bf16.mxu0 0
      %2856 = vmatpush1.bf16.msra.mxu0 0
      %2857 = vmatprep.subr.bf16.mxu0 0
      %2858 = vmatpush1.bf16.msra.mxu0 0
      %2859 = vmatprep.subr.bf16.mxu0 0
      %2860 = vmatpush1.bf16.msra.mxu0 0
      %2861 = vmatprep.subr.bf16.mxu0 0
      %2862 = vmatpush1.bf16.msra.mxu0 0
      %2863 = vmatprep.subr.bf16.mxu0 0
      %2864 = vmatpush1.bf16.msra.mxu0 0
      %2865 = vmatprep.subr.bf16.mxu0 0
      %2866 = vmatpush1.bf16.msra.mxu0 0
      %2867 = vmatprep.mubr.bf16.mxu0 0
      %2868 = vmatmul.mubr.bf16.gmra.mrb[0].mxu0 %v2809
      %v2869 = vpop.f32.mrb[0].mxu0
      %v2870 = vadd.f32 0.0, %v2869
      %v2871 = vpop.f32.mrb[0].mxu0
      %v2872 = vpop.f32.mrb[0].mxu0
      %v2873 = vadd.f32 0.0, %v2872
      %v2874 = vpop.f32.mrb[0].mxu0
      %2875 = vmatprep.mubr.bf16.mxu0 0
      %2876 = vmatmul.mubr.bf16.gmra.mrb[0].mxu0 %v2812
      %v2877 = vpop.f32.mrb[0].mxu0
      %v2878 = vadd.f32 0.0, %v2877
      %v2879 = vpop.f32.mrb[0].mxu0
      %v2880 = vpop.f32.mrb[0].mxu0
      %v2881 = vadd.f32 0.0, %v2880
      %v2882 = vpop.f32.mrb[0].mxu0
      %2883 = vmatprep.mubr.bf16.mxu0 0
      %2884 = vmatmul.mubr.bf16.gmra.mrb[0].mxu0 %v2815
      %v2885 = vpop.f32.mrb[0].mxu0
      %v2886 = vadd.f32 0.0, %v2885
      %v2887 = vpop.f32.mrb[0].mxu0
      %v2888 = vpop.f32.mrb[0].mxu0
      %v2889 = vadd.f32 0.0, %v2888
      %v2890 = vpop.f32.mrb[0].mxu0
      %2891 = vmatprep.mubr.bf16.mxu0 0
      %2892 = vmatmul.mubr.bf16.gmra.mrb[0].mxu0 %v2818
      %v2893 = vpop.f32.mrb[0].mxu0
      %v2894 = vadd.f32 0.0, %v2893
      %v2895 = vpop.f32.mrb[0].mxu0
      %v2896 = vpop.f32.mrb[0].mxu0
      %v2897 = vadd.f32 0.0, %v2896
      %v2898 = vpop.f32.mrb[0].mxu0
      %2899 = vmatprep.mubr.bf16.mxu0 0
      %2900 = vmatmul.mubr.bf16.gmra.mrb[0].mxu0 %v2821
      %v2901 = vpop.f32.mrb[0].mxu0
      %v2902 = vadd.f32 0.0, %v2901
      %v2903 = vpop.f32.mrb[0].mxu0
      %v2904 = vpop.f32.mrb[0].mxu0
      %v2905 = vadd.f32 0.0, %v2904
      %v2906 = vpop.f32.mrb[0].mxu0
      %2907 = vmatprep.mubr.bf16.mxu0 0
      %2908 = vmatmul.mubr.bf16.gmra.mrb[0].mxu0 %v2824
      %v2909 = vpop.f32.mrb[0].mxu0
      %v2910 = vadd.f32 0.0, %v2909
      %v2911 = vpop.f32.mrb[0].mxu0
      %v2912 = vpop.f32.mrb[0].mxu0
      %v2913 = vadd.f32 0.0, %v2912
      %v2914 = vpop.f32.mrb[0].mxu0
      %2915 = vmatprep.mubr.bf16.mxu0 0
      %2916 = vmatmul.mubr.bf16.gmra.mrb[0].mxu0 %v2827
      %v2917 = vpop.f32.mrb[0].mxu0
      %v2918 = vadd.f32 0.0, %v2917
      %v2919 = vpop.f32.mrb[0].mxu0
      %v2920 = vpop.f32.mrb[0].mxu0
      %v2921 = vadd.f32 0.0, %v2920
      %v2922 = vpop.f32.mrb[0].mxu0
      %2923 = vmatprep.mubr.bf16.mxu0 0
      %2924 = vmatmul.mubr.bf16.gmra.mrb[0].mxu0 %v2830
      %v2925 = vpop.f32.mrb[0].mxu0
      %v2926 = vadd.f32 0.0, %v2925
      %v2927 = vpop.f32.mrb[0].mxu0
      %v2928 = vpop.f32.mrb[0].mxu0
      %v2929 = vadd.f32 0.0, %v2928
      %v2930 = vpop.f32.mrb[0].mxu0
      %2931 = vdwg.mxu0
      %v2932 = vadd.f32 %v2462, %v2870
      %v2933 = vadd.f32 %v2463, %v2873
      %v2934 = vadd.f32 %v2464, %v2878
      %v2935 = vadd.f32 %v2465, %v2881
      %v2936 = vadd.f32 %v2466, %v2886
      %v2937 = vadd.f32 %v2467, %v2889
      %v2938 = vadd.f32 %v2468, %v2894
      %v2939 = vadd.f32 %v2469, %v2897
      %v2940 = vadd.f32 %v2470, %v2902
      %v2941 = vadd.f32 %v2471, %v2905
      %v2942 = vadd.f32 %v2472, %v2910
      %v2943 = vadd.f32 %v2473, %v2913
      %v2944 = vadd.f32 %v2474, %v2918
      %v2945 = vadd.f32 %v2475, %v2921
      %v2946 = vadd.f32 %v2476, %v2926
      %v2947 = vadd.f32 %v2477, %v2929
      %s2948 = scalar_lea.vmem [#allocation2], 16
      %v2949 = vld [vmem:[%s2948] sm:$0xf]
      %v2950 = vld [vmem:[%s2948 + $0x4] sm:$0x1]
      %v2951 = vld [vmem:[%s2948 + $0x8] sm:$0xf]
      %v2952 = vld [vmem:[%s2948 + $0xc] sm:$0x1]
      %v2953 = vld [vmem:[%s2948 + $0x10] sm:$0xf]
      %v2954 = vld [vmem:[%s2948 + $0x14] sm:$0x1]
      %v2955 = vld [vmem:[%s2948 + $0x18] sm:$0xf]
      %v2956 = vld [vmem:[%s2948 + $0x1c] sm:$0x1]
      %v2957 = vld [vmem:[%s2948 + $0x20] sm:$0xf]
      %v2958 = vld [vmem:[%s2948 + $0x24] sm:$0x1]
      %v2959 = vld [vmem:[%s2948 + $0x28] sm:$0xf]
      %v2960 = vld [vmem:[%s2948 + $0x2c] sm:$0x1]
      %v2961 = vld [vmem:[%s2948 + $0x30] sm:$0xf]
      %v2962 = vld [vmem:[%s2948 + $0x34] sm:$0x1]
      %v2963 = vld [vmem:[%s2948 + $0x38] sm:$0xf]
      %v2964 = vld [vmem:[%s2948 + $0x3c] sm:$0x1]
      %v2965 = vld [vmem:[%s2948 + $0x50] sm:$0xf]
      %v2966 = vld [vmem:[%s2948 + $0x54] sm:$0x1]
      %v2967 = vld [vmem:[%s2948 + $0x58] sm:$0xf]
      %v2968 = vld [vmem:[%s2948 + $0x5c] sm:$0x1]
      %v2969 = vld [vmem:[%s2948 + $0x60] sm:$0xf]
      %v2970 = vld [vmem:[%s2948 + $0x64] sm:$0x1]
      %v2971 = vld [vmem:[%s2948 + $0x68] sm:$0xf]
      %v2972 = vld [vmem:[%s2948 + $0x6c] sm:$0x1]
      %v2973 = vld [vmem:[%s2948 + $0x70] sm:$0xf]
      %v2974 = vld [vmem:[%s2948 + $0x74] sm:$0x1]
      %v2975 = vld [vmem:[%s2948 + $0x78] sm:$0xf]
      %v2976 = vld [vmem:[%s2948 + $0x7c] sm:$0x1]
      %v2977 = vld [vmem:[%s2948 + $0x80] sm:$0xf]
      %v2978 = vld [vmem:[%s2948 + $0x84] sm:$0x1]
      %v2979 = vld [vmem:[%s2948 + $0x88] sm:$0xf]
      %v2980 = vld [vmem:[%s2948 + $0x8c] sm:$0x1]
      %v2982 = vshrl.u32 %v2949, 16
      %v2984 = vrot.slane %v2982, 4
      %v2985 = vshll.u32 %v2949, 16
      %v2987 = vrot.slane %v2985, 5
      %v2988 = vor.u32 %v2984, %v2987
      %v2989 = vrot.slane %v2988, 4
      %v2991 = vshll.u32 %v2950, 16
      %v2993 = vrot.slane %v2991, 5
      %v2994 = vsel %vm664, %v2989, %v2993
      %v2996 = vshrl.u32 %v2951, 16
      %v2998 = vrot.slane %v2996, 4
      %v2999 = vshll.u32 %v2951, 16
      %v3001 = vrot.slane %v2999, 5
      %v3002 = vor.u32 %v2998, %v3001
      %v3003 = vrot.slane %v3002, 4
      %v3005 = vshll.u32 %v2952, 16
      %v3007 = vrot.slane %v3005, 5
      %v3008 = vsel %vm664, %v3003, %v3007
      %v3010 = vshrl.u32 %v2953, 16
      %v3012 = vrot.slane %v3010, 4
      %v3013 = vshll.u32 %v2953, 16
      %v3015 = vrot.slane %v3013, 5
      %v3016 = vor.u32 %v3012, %v3015
      %v3017 = vrot.slane %v3016, 4
      %v3019 = vshll.u32 %v2954, 16
      %v3021 = vrot.slane %v3019, 5
      %v3022 = vsel %vm664, %v3017, %v3021
      %v3024 = vshrl.u32 %v2955, 16
      %v3026 = vrot.slane %v3024, 4
      %v3027 = vshll.u32 %v2955, 16
      %v3029 = vrot.slane %v3027, 5
      %v3030 = vor.u32 %v3026, %v3029
      %v3031 = vrot.slane %v3030, 4
      %v3033 = vshll.u32 %v2956, 16
      %v3035 = vrot.slane %v3033, 5
      %v3036 = vsel %vm664, %v3031, %v3035
      %v3038 = vshrl.u32 %v2957, 16
      %v3040 = vrot.slane %v3038, 4
      %v3041 = vshll.u32 %v2957, 16
      %v3043 = vrot.slane %v3041, 5
      %v3044 = vor.u32 %v3040, %v3043
      %v3045 = vrot.slane %v3044, 4
      %v3047 = vshll.u32 %v2958, 16
      %v3049 = vrot.slane %v3047, 5
      %v3050 = vsel %vm664, %v3045, %v3049
      %v3052 = vshrl.u32 %v2959, 16
      %v3054 = vrot.slane %v3052, 4
      %v3055 = vshll.u32 %v2959, 16
      %v3057 = vrot.slane %v3055, 5
      %v3058 = vor.u32 %v3054, %v3057
      %v3059 = vrot.slane %v3058, 4
      %v3061 = vshll.u32 %v2960, 16
      %v3063 = vrot.slane %v3061, 5
      %v3064 = vsel %vm664, %v3059, %v3063
      %v3066 = vshrl.u32 %v2961, 16
      %v3068 = vrot.slane %v3066, 4
      %v3069 = vshll.u32 %v2961, 16
      %v3071 = vrot.slane %v3069, 5
      %v3072 = vor.u32 %v3068, %v3071
      %v3073 = vrot.slane %v3072, 4
      %v3075 = vshll.u32 %v2962, 16
      %v3077 = vrot.slane %v3075, 5
      %v3078 = vsel %vm664, %v3073, %v3077
      %v3080 = vshrl.u32 %v2963, 16
      %v3082 = vrot.slane %v3080, 4
      %v3083 = vshll.u32 %v2963, 16
      %v3085 = vrot.slane %v3083, 5
      %v3086 = vor.u32 %v3082, %v3085
      %v3087 = vrot.slane %v3086, 4
      %v3089 = vshll.u32 %v2964, 16
      %v3091 = vrot.slane %v3089, 5
      %v3092 = vsel %vm664, %v3087, %v3091
      %v3094 = vshrl.u32 %v2965, 16
      %v3096 = vrot.slane %v3094, 4
      %v3097 = vshll.u32 %v2965, 16
      %v3099 = vrot.slane %v3097, 5
      %v3100 = vor.u32 %v3096, %v3099
      %v3101 = vrot.slane %v3100, 4
      %v3103 = vshll.u32 %v2966, 16
      %v3105 = vrot.slane %v3103, 5
      %v3106 = vsel %vm664, %v3101, %v3105
      %v3108 = vshrl.u32 %v2967, 16
      %v3110 = vrot.slane %v3108, 4
      %v3111 = vshll.u32 %v2967, 16
      %v3113 = vrot.slane %v3111, 5
      %v3114 = vor.u32 %v3110, %v3113
      %v3115 = vrot.slane %v3114, 4
      %v3117 = vshll.u32 %v2968, 16
      %v3119 = vrot.slane %v3117, 5
      %v3120 = vsel %vm664, %v3115, %v3119
      %v3122 = vshrl.u32 %v2969, 16
      %v3124 = vrot.slane %v3122, 4
      %v3125 = vshll.u32 %v2969, 16
      %v3127 = vrot.slane %v3125, 5
      %v3128 = vor.u32 %v3124, %v3127
      %v3129 = vrot.slane %v3128, 4
      %v3131 = vshll.u32 %v2970, 16
      %v3133 = vrot.slane %v3131, 5
      %v3134 = vsel %vm664, %v3129, %v3133
      %v3136 = vshrl.u32 %v2971, 16
      %v3138 = vrot.slane %v3136, 4
      %v3139 = vshll.u32 %v2971, 16
      %v3141 = vrot.slane %v3139, 5
      %v3142 = vor.u32 %v3138, %v3141
      %v3143 = vrot.slane %v3142, 4
      %v3145 = vshll.u32 %v2972, 16
      %v3147 = vrot.slane %v3145, 5
      %v3148 = vsel %vm664, %v3143, %v3147
      %v3150 = vshrl.u32 %v2973, 16
      %v3152 = vrot.slane %v3150, 4
      %v3153 = vshll.u32 %v2973, 16
      %v3155 = vrot.slane %v3153, 5
      %v3156 = vor.u32 %v3152, %v3155
      %v3157 = vrot.slane %v3156, 4
      %v3159 = vshll.u32 %v2974, 16
      %v3161 = vrot.slane %v3159, 5
      %v3162 = vsel %vm664, %v3157, %v3161
      %v3164 = vshrl.u32 %v2975, 16
      %v3166 = vrot.slane %v3164, 4
      %v3167 = vshll.u32 %v2975, 16
      %v3169 = vrot.slane %v3167, 5
      %v3170 = vor.u32 %v3166, %v3169
      %v3171 = vrot.slane %v3170, 4
      %v3173 = vshll.u32 %v2976, 16
      %v3175 = vrot.slane %v3173, 5
      %v3176 = vsel %vm664, %v3171, %v3175
      %v3178 = vshrl.u32 %v2977, 16
      %v3180 = vrot.slane %v3178, 4
      %v3181 = vshll.u32 %v2977, 16
      %v3183 = vrot.slane %v3181, 5
      %v3184 = vor.u32 %v3180, %v3183
      %v3185 = vrot.slane %v3184, 4
      %v3187 = vshll.u32 %v2978, 16
      %v3189 = vrot.slane %v3187, 5
      %v3190 = vsel %vm664, %v3185, %v3189
      %v3192 = vshrl.u32 %v2979, 16
      %v3194 = vrot.slane %v3192, 4
      %v3195 = vshll.u32 %v2979, 16
      %v3197 = vrot.slane %v3195, 5
      %v3198 = vor.u32 %v3194, %v3197
      %v3199 = vrot.slane %v3198, 4
      %v3201 = vshll.u32 %v2980, 16
      %v3203 = vrot.slane %v3201, 5
      %v3204 = vsel %vm664, %v3199, %v3203
      %s3205 = scalar_lea.vmem %s3, 24
      %v3206 = vld [vmem:[%s3205] sm:$0xf]
      %v3207 = vunpack.c.l.b16 %v2994
      %v3208 = vunpack.c.l.b16 %v3008
      %v3209 = vunpack.c.l.b16 %v3022
      %v3210 = vunpack.c.l.b16 %v3036
      %v3211 = vunpack.c.l.b16 %v3050
      %v3212 = vunpack.c.l.b16 %v3064
      %v3213 = vunpack.c.l.b16 %v3078
      %v3214 = vunpack.c.l.b16 %v3092
      %v3215 = vunpack.c.l.b16 %v3106
      %v3216 = vunpack.c.l.b16 %v3120
      %v3217 = vunpack.c.l.b16 %v3134
      %v3218 = vunpack.c.l.b16 %v3148
      %v3219 = vunpack.c.l.b16 %v3162
      %v3220 = vunpack.c.l.b16 %v3176
      %v3221 = vunpack.c.l.b16 %v3190
      %v3222 = vunpack.c.l.b16 %v3204
      %v3223 = vpack.c.b16 %v3208, %v3207
      %v3224 = vpack.c.b16 %v3210, %v3209
      %v3225 = vpack.c.b16 %v3212, %v3211
      %v3226 = vpack.c.b16 %v3214, %v3213
      %v3227 = vpack.c.b16 %v3216, %v3215
      %v3228 = vpack.c.b16 %v3218, %v3217
      %v3229 = vpack.c.b16 %v3220, %v3219
      %v3230 = vpack.c.b16 %v3222, %v3221
      %v3232 = vsel %vm1031, %v3223, 0
      %v3235 = vsel %vm1031, %v3224, 0
      %v3238 = vsel %vm1031, %v3225, 0
      %v3241 = vsel %vm1031, %v3226, 0
      %v3244 = vsel %vm1031, %v3227, 0
      %v3247 = vsel %vm1031, %v3228, 0
      %v3250 = vsel %vm1031, %v3229, 0
      %v3253 = vsel %vm1031, %v3230, 0
      %v3256 = vsel %vm1056, %v3206, 0
      %3258 = vmatprep.subr.bf16.mxu0 0
      %3259 = vmatpush1.bf16.msra.mxu0 %v3256
      %3260 = vmatprep.subr.bf16.mxu0 0
      %3261 = vmatpush1.bf16.msra.mxu0 0
      %3262 = vmatprep.subr.bf16.mxu0 0
      %3263 = vmatpush1.bf16.msra.mxu0 0
      %3264 = vmatprep.subr.bf16.mxu0 0
      %3265 = vmatpush1.bf16.msra.mxu0 0
      %3266 = vmatprep.subr.bf16.mxu0 0
      %3267 = vmatpush1.bf16.msra.mxu0 0
      %3268 = vmatprep.subr.bf16.mxu0 0
      %3269 = vmatpush1.bf16.msra.mxu0 0
      %3270 = vmatprep.subr.bf16.mxu0 0
      %3271 = vmatpush1.bf16.msra.mxu0 0
      %3272 = vmatprep.subr.bf16.mxu0 0
      %3273 = vmatpush1.bf16.msra.mxu0 0
      %3274 = vmatprep.subr.bf16.mxu0 0
      %3275 = vmatpush1.bf16.msra.mxu0 0
      %3276 = vmatprep.subr.bf16.mxu0 0
      %3277 = vmatpush1.bf16.msra.mxu0 0
      %3278 = vmatprep.subr.bf16.mxu0 0
      %3279 = vmatpush1.bf16.msra.mxu0 0
      %3280 = vmatprep.subr.bf16.mxu0 0
      %3281 = vmatpush1.bf16.msra.mxu0 0
      %3282 = vmatprep.subr.bf16.mxu0 0
      %3283 = vmatpush1.bf16.msra.mxu0 0
      %3284 = vmatprep.subr.bf16.mxu0 0
      %3285 = vmatpush1.bf16.msra.mxu0 0
      %3286 = vmatprep.subr.bf16.mxu0 0
      %3287 = vmatpush1.bf16.msra.mxu0 0
      %3288 = vmatprep.subr.bf16.mxu0 0
      %3289 = vmatpush1.bf16.msra.mxu0 0
      %3290 = vmatprep.mubr.bf16.mxu0 0
      %3291 = vmatmul.mubr.bf16.gmra.mrb[0].mxu0 %v3232
      %v3292 = vpop.f32.mrb[0].mxu0
      %v3293 = vadd.f32 0.0, %v3292
      %v3294 = vpop.f32.mrb[0].mxu0
      %v3295 = vpop.f32.mrb[0].mxu0
      %v3296 = vadd.f32 0.0, %v3295
      %v3297 = vpop.f32.mrb[0].mxu0
      %3298 = vmatprep.mubr.bf16.mxu0 0
      %3299 = vmatmul.mubr.bf16.gmra.mrb[0].mxu0 %v3235
      %v3300 = vpop.f32.mrb[0].mxu0
      %v3301 = vadd.f32 0.0, %v3300
      %v3302 = vpop.f32.mrb[0].mxu0
      %v3303 = vpop.f32.mrb[0].mxu0
      %v3304 = vadd.f32 0.0, %v3303
      %v3305 = vpop.f32.mrb[0].mxu0
      %3306 = vmatprep.mubr.bf16.mxu0 0
      %3307 = vmatmul.mubr.bf16.gmra.mrb[0].mxu0 %v3238
      %v3308 = vpop.f32.mrb[0].mxu0
      %v3309 = vadd.f32 0.0, %v3308
      %v3310 = vpop.f32.mrb[0].mxu0
      %v3311 = vpop.f32.mrb[0].mxu0
      %v3312 = vadd.f32 0.0, %v3311
      %v3313 = vpop.f32.mrb[0].mxu0
      %3314 = vmatprep.mubr.bf16.mxu0 0
      %3315 = vmatmul.mubr.bf16.gmra.mrb[0].mxu0 %v3241
      %v3316 = vpop.f32.mrb[0].mxu0
      %v3317 = vadd.f32 0.0, %v3316
      %v3318 = vpop.f32.mrb[0].mxu0
      %v3319 = vpop.f32.mrb[0].mxu0
      %v3320 = vadd.f32 0.0, %v3319
      %v3321 = vpop.f32.mrb[0].mxu0
      %3322 = vmatprep.mubr.bf16.mxu0 0
      %3323 = vmatmul.mubr.bf16.gmra.mrb[0].mxu0 %v3244
      %v3324 = vpop.f32.mrb[0].mxu0
      %v3325 = vadd.f32 0.0, %v3324
      %v3326 = vpop.f32.mrb[0].mxu0
      %v3327 = vpop.f32.mrb[0].mxu0
      %v3328 = vadd.f32 0.0, %v3327
      %v3329 = vpop.f32.mrb[0].mxu0
      %3330 = vmatprep.mubr.bf16.mxu0 0
      %3331 = vmatmul.mubr.bf16.gmra.mrb[0].mxu0 %v3247
      %v3332 = vpop.f32.mrb[0].mxu0
      %v3333 = vadd.f32 0.0, %v3332
      %v3334 = vpop.f32.mrb[0].mxu0
      %v3335 = vpop.f32.mrb[0].mxu0
      %v3336 = vadd.f32 0.0, %v3335
      %v3337 = vpop.f32.mrb[0].mxu0
      %3338 = vmatprep.mubr.bf16.mxu0 0
      %3339 = vmatmul.mubr.bf16.gmra.mrb[0].mxu0 %v3250
      %v3340 = vpop.f32.mrb[0].mxu0
      %v3341 = vadd.f32 0.0, %v3340
      %v3342 = vpop.f32.mrb[0].mxu0
      %v3343 = vpop.f32.mrb[0].mxu0
      %v3344 = vadd.f32 0.0, %v3343
      %v3345 = vpop.f32.mrb[0].mxu0
      %3346 = vmatprep.mubr.bf16.mxu0 0
      %3347 = vmatmul.mubr.bf16.gmra.mrb[0].mxu0 %v3253
      %v3348 = vpop.f32.mrb[0].mxu0
      %v3349 = vadd.f32 0.0, %v3348
      %v3350 = vpop.f32.mrb[0].mxu0
      %v3351 = vpop.f32.mrb[0].mxu0
      %v3352 = vadd.f32 0.0, %v3351
      %v3353 = vpop.f32.mrb[0].mxu0
      %3354 = vdwg.mxu0
      %v3355 = vadd.f32 %v2932, %v3293
      %v3356 = vadd.f32 %v2933, %v3296
      %v3357 = vadd.f32 %v2934, %v3301
      %v3358 = vadd.f32 %v2935, %v3304
      %v3359 = vadd.f32 %v2936, %v3309
      %v3360 = vadd.f32 %v2937, %v3312
      %v3361 = vadd.f32 %v2938, %v3317
      %v3362 = vadd.f32 %v2939, %v3320
      %v3363 = vadd.f32 %v2940, %v3325
      %v3364 = vadd.f32 %v2941, %v3328
      %v3365 = vadd.f32 %v2942, %v3333
      %v3366 = vadd.f32 %v2943, %v3336
      %v3367 = vadd.f32 %v2944, %v3341
      %v3368 = vadd.f32 %v2945, %v3344
      %v3369 = vadd.f32 %v2946, %v3349
      %v3370 = vadd.f32 %v2947, %v3352
      %v3371 = vld [vmem:[%s2948] sm:$0xe]
      %v3372 = vld [vmem:[%s2948 + $0x8] sm:$0xe]
      %v3373 = vld [vmem:[%s2948 + $0x10] sm:$0xe]
      %v3374 = vld [vmem:[%s2948 + $0x18] sm:$0xe]
      %v3375 = vld [vmem:[%s2948 + $0x20] sm:$0xe]
      %v3376 = vld [vmem:[%s2948 + $0x28] sm:$0xe]
      %v3377 = vld [vmem:[%s2948 + $0x30] sm:$0xe]
      %v3378 = vld [vmem:[%s2948 + $0x38] sm:$0xe]
      %v3379 = vld [vmem:[%s2948 + $0x50] sm:$0xe]
      %v3380 = vld [vmem:[%s2948 + $0x58] sm:$0xe]
      %v3381 = vld [vmem:[%s2948 + $0x60] sm:$0xe]
      %v3382 = vld [vmem:[%s2948 + $0x68] sm:$0xe]
      %v3383 = vld [vmem:[%s2948 + $0x70] sm:$0xe]
      %v3384 = vld [vmem:[%s2948 + $0x78] sm:$0xe]
      %v3385 = vld [vmem:[%s2948 + $0x80] sm:$0xe]
      %v3386 = vld [vmem:[%s2948 + $0x88] sm:$0xe]
      %v3419 = vrot.slane %v3371, 5
      %v3420 = vrot.slane %v3419, 4
      %v3421 = vrot.slane %v2950, 5
      %v3422 = vsel %vm940, %v3420, %v3421
      %v3423 = vrot.slane %v3372, 5
      %v3424 = vrot.slane %v3423, 4
      %v3425 = vrot.slane %v2952, 5
      %v3426 = vsel %vm940, %v3424, %v3425
      %v3427 = vrot.slane %v3373, 5
      %v3428 = vrot.slane %v3427, 4
      %v3429 = vrot.slane %v2954, 5
      %v3430 = vsel %vm940, %v3428, %v3429
      %v3431 = vrot.slane %v3374, 5
      %v3432 = vrot.slane %v3431, 4
      %v3433 = vrot.slane %v2956, 5
      %v3434 = vsel %vm940, %v3432, %v3433
      %v3435 = vrot.slane %v3375, 5
      %v3436 = vrot.slane %v3435, 4
      %v3437 = vrot.slane %v2958, 5
      %v3438 = vsel %vm940, %v3436, %v3437
      %v3439 = vrot.slane %v3376, 5
      %v3440 = vrot.slane %v3439, 4
      %v3441 = vrot.slane %v2960, 5
      %v3442 = vsel %vm940, %v3440, %v3441
      %v3443 = vrot.slane %v3377, 5
      %v3444 = vrot.slane %v3443, 4
      %v3445 = vrot.slane %v2962, 5
      %v3446 = vsel %vm940, %v3444, %v3445
      %v3447 = vrot.slane %v3378, 5
      %v3448 = vrot.slane %v3447, 4
      %v3449 = vrot.slane %v2964, 5
      %v3450 = vsel %vm940, %v3448, %v3449
      %v3451 = vrot.slane %v3379, 5
      %v3452 = vrot.slane %v3451, 4
      %v3453 = vrot.slane %v2966, 5
      %v3454 = vsel %vm940, %v3452, %v3453
      %v3455 = vrot.slane %v3380, 5
      %v3456 = vrot.slane %v3455, 4
      %v3457 = vrot.slane %v2968, 5
      %v3458 = vsel %vm940, %v3456, %v3457
      %v3459 = vrot.slane %v3381, 5
      %v3460 = vrot.slane %v3459, 4
      %v3461 = vrot.slane %v2970, 5
      %v3462 = vsel %vm940, %v3460, %v3461
      %v3463 = vrot.slane %v3382, 5
      %v3464 = vrot.slane %v3463, 4
      %v3465 = vrot.slane %v2972, 5
      %v3466 = vsel %vm940, %v3464, %v3465
      %v3467 = vrot.slane %v3383, 5
      %v3468 = vrot.slane %v3467, 4
      %v3469 = vrot.slane %v2974, 5
      %v3470 = vsel %vm940, %v3468, %v3469
      %v3471 = vrot.slane %v3384, 5
      %v3472 = vrot.slane %v3471, 4
      %v3473 = vrot.slane %v2976, 5
      %v3474 = vsel %vm940, %v3472, %v3473
      %v3475 = vrot.slane %v3385, 5
      %v3476 = vrot.slane %v3475, 4
      %v3477 = vrot.slane %v2978, 5
      %v3478 = vsel %vm940, %v3476, %v3477
      %v3479 = vrot.slane %v3386, 5
      %v3480 = vrot.slane %v3479, 4
      %v3481 = vrot.slane %v2980, 5
      %v3482 = vsel %vm940, %v3480, %v3481
      %s3483 = scalar_lea.vmem %s3, 28
      %v3484 = vld [vmem:[%s3483] sm:$0xf]
      %v3485 = vunpack.c.l.b16 %v3422
      %v3486 = vunpack.c.l.b16 %v3426
      %v3487 = vunpack.c.l.b16 %v3430
      %v3488 = vunpack.c.l.b16 %v3434
      %v3489 = vunpack.c.l.b16 %v3438
      %v3490 = vunpack.c.l.b16 %v3442
      %v3491 = vunpack.c.l.b16 %v3446
      %v3492 = vunpack.c.l.b16 %v3450
      %v3493 = vunpack.c.l.b16 %v3454
      %v3494 = vunpack.c.l.b16 %v3458
      %v3495 = vunpack.c.l.b16 %v3462
      %v3496 = vunpack.c.l.b16 %v3466
      %v3497 = vunpack.c.l.b16 %v3470
      %v3498 = vunpack.c.l.b16 %v3474
      %v3499 = vunpack.c.l.b16 %v3478
      %v3500 = vunpack.c.l.b16 %v3482
      %v3501 = vpack.c.b16 %v3486, %v3485
      %v3502 = vpack.c.b16 %v3488, %v3487
      %v3503 = vpack.c.b16 %v3490, %v3489
      %v3504 = vpack.c.b16 %v3492, %v3491
      %v3505 = vpack.c.b16 %v3494, %v3493
      %v3506 = vpack.c.b16 %v3496, %v3495
      %v3507 = vpack.c.b16 %v3498, %v3497
      %v3508 = vpack.c.b16 %v3500, %v3499
      %v3510 = vsel %vm1031, %v3501, 0
      %v3513 = vsel %vm1031, %v3502, 0
      %v3516 = vsel %vm1031, %v3503, 0
      %v3519 = vsel %vm1031, %v3504, 0
      %v3522 = vsel %vm1031, %v3505, 0
      %v3525 = vsel %vm1031, %v3506, 0
      %v3528 = vsel %vm1031, %v3507, 0
      %v3531 = vsel %vm1031, %v3508, 0
      %v3534 = vsel %vm1056, %v3484, 0
      %3536 = vmatprep.subr.bf16.mxu0 0
      %3537 = vmatpush1.bf16.msra.mxu0 %v3534
      %3538 = vmatprep.subr.bf16.mxu0 0
      %3539 = vmatpush1.bf16.msra.mxu0 0
      %3540 = vmatprep.subr.bf16.mxu0 0
      %3541 = vmatpush1.bf16.msra.mxu0 0
      %3542 = vmatprep.subr.bf16.mxu0 0
      %3543 = vmatpush1.bf16.msra.mxu0 0
      %3544 = vmatprep.subr.bf16.mxu0 0
      %3545 = vmatpush1.bf16.msra.mxu0 0
      %3546 = vmatprep.subr.bf16.mxu0 0
      %3547 = vmatpush1.bf16.msra.mxu0 0
      %3548 = vmatprep.subr.bf16.mxu0 0
      %3549 = vmatpush1.bf16.msra.mxu0 0
      %3550 = vmatprep.subr.bf16.mxu0 0
      %3551 = vmatpush1.bf16.msra.mxu0 0
      %3552 = vmatprep.subr.bf16.mxu0 0
      %3553 = vmatpush1.bf16.msra.mxu0 0
      %3554 = vmatprep.subr.bf16.mxu0 0
      %3555 = vmatpush1.bf16.msra.mxu0 0
      %3556 = vmatprep.subr.bf16.mxu0 0
      %3557 = vmatpush1.bf16.msra.mxu0 0
      %3558 = vmatprep.subr.bf16.mxu0 0
      %3559 = vmatpush1.bf16.msra.mxu0 0
      %3560 = vmatprep.subr.bf16.mxu0 0
      %3561 = vmatpush1.bf16.msra.mxu0 0
      %3562 = vmatprep.subr.bf16.mxu0 0
      %3563 = vmatpush1.bf16.msra.mxu0 0
      %3564 = vmatprep.subr.bf16.mxu0 0
      %3565 = vmatpush1.bf16.msra.mxu0 0
      %3566 = vmatprep.subr.bf16.mxu0 0
      %3567 = vmatpush1.bf16.msra.mxu0 0
      %3568 = vmatprep.mubr.bf16.mxu0 0
      %3569 = vmatmul.mubr.bf16.gmra.mrb[0].mxu0 %v3510
      %v3570 = vpop.f32.mrb[0].mxu0
      %v3571 = vadd.f32 0.0, %v3570
      %v3572 = vpop.f32.mrb[0].mxu0
      %v3573 = vpop.f32.mrb[0].mxu0
      %v3574 = vadd.f32 0.0, %v3573
      %v3575 = vpop.f32.mrb[0].mxu0
      %3576 = vmatprep.mubr.bf16.mxu0 0
      %3577 = vmatmul.mubr.bf16.gmra.mrb[0].mxu0 %v3513
      %v3578 = vpop.f32.mrb[0].mxu0
      %v3579 = vadd.f32 0.0, %v3578
      %v3580 = vpop.f32.mrb[0].mxu0
      %v3581 = vpop.f32.mrb[0].mxu0
      %v3582 = vadd.f32 0.0, %v3581
      %v3583 = vpop.f32.mrb[0].mxu0
      %3584 = vmatprep.mubr.bf16.mxu0 0
      %3585 = vmatmul.mubr.bf16.gmra.mrb[0].mxu0 %v3516
      %v3586 = vpop.f32.mrb[0].mxu0
      %v3587 = vadd.f32 0.0, %v3586
      %v3588 = vpop.f32.mrb[0].mxu0
      %v3589 = vpop.f32.mrb[0].mxu0
      %v3590 = vadd.f32 0.0, %v3589
      %v3591 = vpop.f32.mrb[0].mxu0
      %3592 = vmatprep.mubr.bf16.mxu0 0
      %3593 = vmatmul.mubr.bf16.gmra.mrb[0].mxu0 %v3519
      %v3594 = vpop.f32.mrb[0].mxu0
      %v3595 = vadd.f32 0.0, %v3594
      %v3596 = vpop.f32.mrb[0].mxu0
      %v3597 = vpop.f32.mrb[0].mxu0
      %v3598 = vadd.f32 0.0, %v3597
      %v3599 = vpop.f32.mrb[0].mxu0
      %3600 = vmatprep.mubr.bf16.mxu0 0
      %3601 = vmatmul.mubr.bf16.gmra.mrb[0].mxu0 %v3522
      %v3602 = vpop.f32.mrb[0].mxu0
      %v3603 = vadd.f32 0.0, %v3602
      %v3604 = vpop.f32.mrb[0].mxu0
      %v3605 = vpop.f32.mrb[0].mxu0
      %v3606 = vadd.f32 0.0, %v3605
      %v3607 = vpop.f32.mrb[0].mxu0
      %3608 = vmatprep.mubr.bf16.mxu0 0
      %3609 = vmatmul.mubr.bf16.gmra.mrb[0].mxu0 %v3525
      %v3610 = vpop.f32.mrb[0].mxu0
      %v3611 = vadd.f32 0.0, %v3610
      %v3612 = vpop.f32.mrb[0].mxu0
      %v3613 = vpop.f32.mrb[0].mxu0
      %v3614 = vadd.f32 0.0, %v3613
      %v3615 = vpop.f32.mrb[0].mxu0
      %3616 = vmatprep.mubr.bf16.mxu0 0
      %3617 = vmatmul.mubr.bf16.gmra.mrb[0].mxu0 %v3528
      %v3618 = vpop.f32.mrb[0].mxu0
      %v3619 = vadd.f32 0.0, %v3618
      %v3620 = vpop.f32.mrb[0].mxu0
      %v3621 = vpop.f32.mrb[0].mxu0
      %v3622 = vadd.f32 0.0, %v3621
      %v3623 = vpop.f32.mrb[0].mxu0
      %3624 = vmatprep.mubr.bf16.mxu0 0
      %3625 = vmatmul.mubr.bf16.gmra.mrb[0].mxu0 %v3531
      %v3626 = vpop.f32.mrb[0].mxu0
      %v3627 = vadd.f32 0.0, %v3626
      %v3628 = vpop.f32.mrb[0].mxu0
      %v3629 = vpop.f32.mrb[0].mxu0
      %v3630 = vadd.f32 0.0, %v3629
      %v3631 = vpop.f32.mrb[0].mxu0
      %3632 = vdwg.mxu0
      %v3633 = vadd.f32 %v3355, %v3571
      %v3634 = vadd.f32 %v3356, %v3574
      %v3635 = vadd.f32 %v3357, %v3579
      %v3636 = vadd.f32 %v3358, %v3582
      %v3637 = vadd.f32 %v3359, %v3587
      %v3638 = vadd.f32 %v3360, %v3590
      %v3639 = vadd.f32 %v3361, %v3595
      %v3640 = vadd.f32 %v3362, %v3598
      %v3641 = vadd.f32 %v3363, %v3603
      %v3642 = vadd.f32 %v3364, %v3606
      %v3643 = vadd.f32 %v3365, %v3611
      %v3644 = vadd.f32 %v3366, %v3614
      %v3645 = vadd.f32 %v3367, %v3619
      %v3646 = vadd.f32 %v3368, %v3622
      %v3647 = vadd.f32 %v3369, %v3627
      %v3648 = vadd.f32 %v3370, %v3630
      %v3649 = vld [vmem:[%s2948 + $0x4] sm:$0x3]
      %v3650 = vld [vmem:[%s2948 + $0xc] sm:$0x3]
      %v3651 = vld [vmem:[%s2948 + $0x14] sm:$0x3]
      %v3652 = vld [vmem:[%s2948 + $0x1c] sm:$0x3]
      %v3653 = vld [vmem:[%s2948 + $0x24] sm:$0x3]
      %v3654 = vld [vmem:[%s2948 + $0x2c] sm:$0x3]
      %v3655 = vld [vmem:[%s2948 + $0x34] sm:$0x3]
      %v3656 = vld [vmem:[%s2948 + $0x3c] sm:$0x3]
      %v3657 = vld [vmem:[%s2948 + $0x54] sm:$0x3]
      %v3658 = vld [vmem:[%s2948 + $0x5c] sm:$0x3]
      %v3659 = vld [vmem:[%s2948 + $0x64] sm:$0x3]
      %v3660 = vld [vmem:[%s2948 + $0x6c] sm:$0x3]
      %v3661 = vld [vmem:[%s2948 + $0x74] sm:$0x3]
      %v3662 = vld [vmem:[%s2948 + $0x7c] sm:$0x3]
      %v3663 = vld [vmem:[%s2948 + $0x84] sm:$0x3]
      %v3664 = vld [vmem:[%s2948 + $0x8c] sm:$0x3]
      %v3666 = vshrl.u32 %v3371, 16
      %v3668 = vrot.slane %v3666, 5
      %v3669 = vshll.u32 %v3371, 16
      %v3671 = vrot.slane %v3669, 6
      %v3672 = vor.u32 %v3668, %v3671
      %v3673 = vrot.slane %v3672, 4
      %v3675 = vshrl.u32 %v3649, 16
      %v3677 = vrot.slane %v3675, 5
      %v3678 = vshll.u32 %v3649, 16
      %v3680 = vrot.slane %v3678, 6
      %v3681 = vor.u32 %v3677, %v3680
      %v3682 = vsel %vm1323, %v3673, %v3681
      %v3684 = vshrl.u32 %v3372, 16
      %v3686 = vrot.slane %v3684, 5
      %v3687 = vshll.u32 %v3372, 16
      %v3689 = vrot.slane %v3687, 6
      %v3690 = vor.u32 %v3686, %v3689
      %v3691 = vrot.slane %v3690, 4
      %v3693 = vshrl.u32 %v3650, 16
      %v3695 = vrot.slane %v3693, 5
      %v3696 = vshll.u32 %v3650, 16
      %v3698 = vrot.slane %v3696, 6
      %v3699 = vor.u32 %v3695, %v3698
      %v3700 = vsel %vm1323, %v3691, %v3699
      %v3702 = vshrl.u32 %v3373, 16
      %v3704 = vrot.slane %v3702, 5
      %v3705 = vshll.u32 %v3373, 16
      %v3707 = vrot.slane %v3705, 6
      %v3708 = vor.u32 %v3704, %v3707
      %v3709 = vrot.slane %v3708, 4
      %v3711 = vshrl.u32 %v3651, 16
      %v3713 = vrot.slane %v3711, 5
      %v3714 = vshll.u32 %v3651, 16
      %v3716 = vrot.slane %v3714, 6
      %v3717 = vor.u32 %v3713, %v3716
      %v3718 = vsel %vm1323, %v3709, %v3717
      %v3720 = vshrl.u32 %v3374, 16
      %v3722 = vrot.slane %v3720, 5
      %v3723 = vshll.u32 %v3374, 16
      %v3725 = vrot.slane %v3723, 6
      %v3726 = vor.u32 %v3722, %v3725
      %v3727 = vrot.slane %v3726, 4
      %v3729 = vshrl.u32 %v3652, 16
      %v3731 = vrot.slane %v3729, 5
      %v3732 = vshll.u32 %v3652, 16
      %v3734 = vrot.slane %v3732, 6
      %v3735 = vor.u32 %v3731, %v3734
      %v3736 = vsel %vm1323, %v3727, %v3735
      %v3738 = vshrl.u32 %v3375, 16
      %v3740 = vrot.slane %v3738, 5
      %v3741 = vshll.u32 %v3375, 16
      %v3743 = vrot.slane %v3741, 6
      %v3744 = vor.u32 %v3740, %v3743
      %v3745 = vrot.slane %v3744, 4
      %v3747 = vshrl.u32 %v3653, 16
      %v3749 = vrot.slane %v3747, 5
      %v3750 = vshll.u32 %v3653, 16
      %v3752 = vrot.slane %v3750, 6
      %v3753 = vor.u32 %v3749, %v3752
      %v3754 = vsel %vm1323, %v3745, %v3753
      %v3756 = vshrl.u32 %v3376, 16
      %v3758 = vrot.slane %v3756, 5
      %v3759 = vshll.u32 %v3376, 16
      %v3761 = vrot.slane %v3759, 6
      %v3762 = vor.u32 %v3758, %v3761
      %v3763 = vrot.slane %v3762, 4
      %v3765 = vshrl.u32 %v3654, 16
      %v3767 = vrot.slane %v3765, 5
      %v3768 = vshll.u32 %v3654, 16
      %v3770 = vrot.slane %v3768, 6
      %v3771 = vor.u32 %v3767, %v3770
      %v3772 = vsel %vm1323, %v3763, %v3771
      %v3774 = vshrl.u32 %v3377, 16
      %v3776 = vrot.slane %v3774, 5
      %v3777 = vshll.u32 %v3377, 16
      %v3779 = vrot.slane %v3777, 6
      %v3780 = vor.u32 %v3776, %v3779
      %v3781 = vrot.slane %v3780, 4
      %v3783 = vshrl.u32 %v3655, 16
      %v3785 = vrot.slane %v3783, 5
      %v3786 = vshll.u32 %v3655, 16
      %v3788 = vrot.slane %v3786, 6
      %v3789 = vor.u32 %v3785, %v3788
      %v3790 = vsel %vm1323, %v3781, %v3789
      %v3792 = vshrl.u32 %v3378, 16
      %v3794 = vrot.slane %v3792, 5
      %v3795 = vshll.u32 %v3378, 16
      %v3797 = vrot.slane %v3795, 6
      %v3798 = vor.u32 %v3794, %v3797
      %v3799 = vrot.slane %v3798, 4
      %v3801 = vshrl.u32 %v3656, 16
      %v3803 = vrot.slane %v3801, 5
      %v3804 = vshll.u32 %v3656, 16
      %v3806 = vrot.slane %v3804, 6
      %v3807 = vor.u32 %v3803, %v3806
      %v3808 = vsel %vm1323, %v3799, %v3807
      %v3810 = vshrl.u32 %v3379, 16
      %v3812 = vrot.slane %v3810, 5
      %v3813 = vshll.u32 %v3379, 16
      %v3815 = vrot.slane %v3813, 6
      %v3816 = vor.u32 %v3812, %v3815
      %v3817 = vrot.slane %v3816, 4
      %v3819 = vshrl.u32 %v3657, 16
      %v3821 = vrot.slane %v3819, 5
      %v3822 = vshll.u32 %v3657, 16
      %v3824 = vrot.slane %v3822, 6
      %v3825 = vor.u32 %v3821, %v3824
      %v3826 = vsel %vm1323, %v3817, %v3825
      %v3828 = vshrl.u32 %v3380, 16
      %v3830 = vrot.slane %v3828, 5
      %v3831 = vshll.u32 %v3380, 16
      %v3833 = vrot.slane %v3831, 6
      %v3834 = vor.u32 %v3830, %v3833
      %v3835 = vrot.slane %v3834, 4
      %v3837 = vshrl.u32 %v3658, 16
      %v3839 = vrot.slane %v3837, 5
      %v3840 = vshll.u32 %v3658, 16
      %v3842 = vrot.slane %v3840, 6
      %v3843 = vor.u32 %v3839, %v3842
      %v3844 = vsel %vm1323, %v3835, %v3843
      %v3846 = vshrl.u32 %v3381, 16
      %v3848 = vrot.slane %v3846, 5
      %v3849 = vshll.u32 %v3381, 16
      %v3851 = vrot.slane %v3849, 6
      %v3852 = vor.u32 %v3848, %v3851
      %v3853 = vrot.slane %v3852, 4
      %v3855 = vshrl.u32 %v3659, 16
      %v3857 = vrot.slane %v3855, 5
      %v3858 = vshll.u32 %v3659, 16
      %v3860 = vrot.slane %v3858, 6
      %v3861 = vor.u32 %v3857, %v3860
      %v3862 = vsel %vm1323, %v3853, %v3861
      %v3864 = vshrl.u32 %v3382, 16
      %v3866 = vrot.slane %v3864, 5
      %v3867 = vshll.u32 %v3382, 16
      %v3869 = vrot.slane %v3867, 6
      %v3870 = vor.u32 %v3866, %v3869
      %v3871 = vrot.slane %v3870, 4
      %v3873 = vshrl.u32 %v3660, 16
      %v3875 = vrot.slane %v3873, 5
      %v3876 = vshll.u32 %v3660, 16
      %v3878 = vrot.slane %v3876, 6
      %v3879 = vor.u32 %v3875, %v3878
      %v3880 = vsel %vm1323, %v3871, %v3879
      %v3882 = vshrl.u32 %v3383, 16
      %v3884 = vrot.slane %v3882, 5
      %v3885 = vshll.u32 %v3383, 16
      %v3887 = vrot.slane %v3885, 6
      %v3888 = vor.u32 %v3884, %v3887
      %v3889 = vrot.slane %v3888, 4
      %v3891 = vshrl.u32 %v3661, 16
      %v3893 = vrot.slane %v3891, 5
      %v3894 = vshll.u32 %v3661, 16
      %v3896 = vrot.slane %v3894, 6
      %v3897 = vor.u32 %v3893, %v3896
      %v3898 = vsel %vm1323, %v3889, %v3897
      %v3900 = vshrl.u32 %v3384, 16
      %v3902 = vrot.slane %v3900, 5
      %v3903 = vshll.u32 %v3384, 16
      %v3905 = vrot.slane %v3903, 6
      %v3906 = vor.u32 %v3902, %v3905
      %v3907 = vrot.slane %v3906, 4
      %v3909 = vshrl.u32 %v3662, 16
      %v3911 = vrot.slane %v3909, 5
      %v3912 = vshll.u32 %v3662, 16
      %v3914 = vrot.slane %v3912, 6
      %v3915 = vor.u32 %v3911, %v3914
      %v3916 = vsel %vm1323, %v3907, %v3915
      %v3918 = vshrl.u32 %v3385, 16
      %v3920 = vrot.slane %v3918, 5
      %v3921 = vshll.u32 %v3385, 16
      %v3923 = vrot.slane %v3921, 6
      %v3924 = vor.u32 %v3920, %v3923
      %v3925 = vrot.slane %v3924, 4
      %v3927 = vshrl.u32 %v3663, 16
      %v3929 = vrot.slane %v3927, 5
      %v3930 = vshll.u32 %v3663, 16
      %v3932 = vrot.slane %v3930, 6
      %v3933 = vor.u32 %v3929, %v3932
      %v3934 = vsel %vm1323, %v3925, %v3933
      %v3936 = vshrl.u32 %v3386, 16
      %v3938 = vrot.slane %v3936, 5
      %v3939 = vshll.u32 %v3386, 16
      %v3941 = vrot.slane %v3939, 6
      %v3942 = vor.u32 %v3938, %v3941
      %v3943 = vrot.slane %v3942, 4
      %v3945 = vshrl.u32 %v3664, 16
      %v3947 = vrot.slane %v3945, 5
      %v3948 = vshll.u32 %v3664, 16
      %v3950 = vrot.slane %v3948, 6
      %v3951 = vor.u32 %v3947, %v3950
      %v3952 = vsel %vm1323, %v3943, %v3951
      %s3953 = scalar_lea.vmem %s3, 32
      %v3954 = vld [vmem:[%s3953] sm:$0xf]
      %v3955 = vunpack.c.l.b16 %v3682
      %v3956 = vunpack.c.l.b16 %v3700
      %v3957 = vunpack.c.l.b16 %v3718
      %v3958 = vunpack.c.l.b16 %v3736
      %v3959 = vunpack.c.l.b16 %v3754
      %v3960 = vunpack.c.l.b16 %v3772
      %v3961 = vunpack.c.l.b16 %v3790
      %v3962 = vunpack.c.l.b16 %v3808
      %v3963 = vunpack.c.l.b16 %v3826
      %v3964 = vunpack.c.l.b16 %v3844
      %v3965 = vunpack.c.l.b16 %v3862
      %v3966 = vunpack.c.l.b16 %v3880
      %v3967 = vunpack.c.l.b16 %v3898
      %v3968 = vunpack.c.l.b16 %v3916
      %v3969 = vunpack.c.l.b16 %v3934
      %v3970 = vunpack.c.l.b16 %v3952
      %v3971 = vpack.c.b16 %v3956, %v3955
      %v3972 = vpack.c.b16 %v3958, %v3957
      %v3973 = vpack.c.b16 %v3960, %v3959
      %v3974 = vpack.c.b16 %v3962, %v3961
      %v3975 = vpack.c.b16 %v3964, %v3963
      %v3976 = vpack.c.b16 %v3966, %v3965
      %v3977 = vpack.c.b16 %v3968, %v3967
      %v3978 = vpack.c.b16 %v3970, %v3969
      %v3980 = vsel %vm1031, %v3971, 0
      %v3983 = vsel %vm1031, %v3972, 0
      %v3986 = vsel %vm1031, %v3973, 0
      %v3989 = vsel %vm1031, %v3974, 0
      %v3992 = vsel %vm1031, %v3975, 0
      %v3995 = vsel %vm1031, %v3976, 0
      %v3998 = vsel %vm1031, %v3977, 0
      %v4001 = vsel %vm1031, %v3978, 0
      %v4004 = vsel %vm1056, %v3954, 0
      %4006 = vmatprep.subr.bf16.mxu0 0
      %4007 = vmatpush1.bf16.msra.mxu0 %v4004
      %4008 = vmatprep.subr.bf16.mxu0 0
      %4009 = vmatpush1.bf16.msra.mxu0 0
      %4010 = vmatprep.subr.bf16.mxu0 0
      %4011 = vmatpush1.bf16.msra.mxu0 0
      %4012 = vmatprep.subr.bf16.mxu0 0
      %4013 = vmatpush1.bf16.msra.mxu0 0
      %4014 = vmatprep.subr.bf16.mxu0 0
      %4015 = vmatpush1.bf16.msra.mxu0 0
      %4016 = vmatprep.subr.bf16.mxu0 0
      %4017 = vmatpush1.bf16.msra.mxu0 0
      %4018 = vmatprep.subr.bf16.mxu0 0
      %4019 = vmatpush1.bf16.msra.mxu0 0
      %4020 = vmatprep.subr.bf16.mxu0 0
      %4021 = vmatpush1.bf16.msra.mxu0 0
      %4022 = vmatprep.subr.bf16.mxu0 0
      %4023 = vmatpush1.bf16.msra.mxu0 0
      %4024 = vmatprep.subr.bf16.mxu0 0
      %4025 = vmatpush1.bf16.msra.mxu0 0
      %4026 = vmatprep.subr.bf16.mxu0 0
      %4027 = vmatpush1.bf16.msra.mxu0 0
      %4028 = vmatprep.subr.bf16.mxu0 0
      %4029 = vmatpush1.bf16.msra.mxu0 0
      %4030 = vmatprep.subr.bf16.mxu0 0
      %4031 = vmatpush1.bf16.msra.mxu0 0
      %4032 = vmatprep.subr.bf16.mxu0 0
      %4033 = vmatpush1.bf16.msra.mxu0 0
      %4034 = vmatprep.subr.bf16.mxu0 0
      %4035 = vmatpush1.bf16.msra.mxu0 0
      %4036 = vmatprep.subr.bf16.mxu0 0
      %4037 = vmatpush1.bf16.msra.mxu0 0
      %4038 = vmatprep.mubr.bf16.mxu0 0
      %4039 = vmatmul.mubr.bf16.gmra.mrb[0].mxu0 %v3980
      %v4040 = vpop.f32.mrb[0].mxu0
      %v4041 = vadd.f32 0.0, %v4040
      %v4042 = vpop.f32.mrb[0].mxu0
      %v4043 = vpop.f32.mrb[0].mxu0
      %v4044 = vadd.f32 0.0, %v4043
      %v4045 = vpop.f32.mrb[0].mxu0
      %4046 = vmatprep.mubr.bf16.mxu0 0
      %4047 = vmatmul.mubr.bf16.gmra.mrb[0].mxu0 %v3983
      %v4048 = vpop.f32.mrb[0].mxu0
      %v4049 = vadd.f32 0.0, %v4048
      %v4050 = vpop.f32.mrb[0].mxu0
      %v4051 = vpop.f32.mrb[0].mxu0
      %v4052 = vadd.f32 0.0, %v4051
      %v4053 = vpop.f32.mrb[0].mxu0
      %4054 = vmatprep.mubr.bf16.mxu0 0
      %4055 = vmatmul.mubr.bf16.gmra.mrb[0].mxu0 %v3986
      %v4056 = vpop.f32.mrb[0].mxu0
      %v4057 = vadd.f32 0.0, %v4056
      %v4058 = vpop.f32.mrb[0].mxu0
      %v4059 = vpop.f32.mrb[0].mxu0
      %v4060 = vadd.f32 0.0, %v4059
      %v4061 = vpop.f32.mrb[0].mxu0
      %4062 = vmatprep.mubr.bf16.mxu0 0
      %4063 = vmatmul.mubr.bf16.gmra.mrb[0].mxu0 %v3989
      %v4064 = vpop.f32.mrb[0].mxu0
      %v4065 = vadd.f32 0.0, %v4064
      %v4066 = vpop.f32.mrb[0].mxu0
      %v4067 = vpop.f32.mrb[0].mxu0
      %v4068 = vadd.f32 0.0, %v4067
      %v4069 = vpop.f32.mrb[0].mxu0
      %4070 = vmatprep.mubr.bf16.mxu0 0
      %4071 = vmatmul.mubr.bf16.gmra.mrb[0].mxu0 %v3992
      %v4072 = vpop.f32.mrb[0].mxu0
      %v4073 = vadd.f32 0.0, %v4072
      %v4074 = vpop.f32.mrb[0].mxu0
      %v4075 = vpop.f32.mrb[0].mxu0
      %v4076 = vadd.f32 0.0, %v4075
      %v4077 = vpop.f32.mrb[0].mxu0
      %4078 = vmatprep.mubr.bf16.mxu0 0
      %4079 = vmatmul.mubr.bf16.gmra.mrb[0].mxu0 %v3995
      %v4080 = vpop.f32.mrb[0].mxu0
      %v4081 = vadd.f32 0.0, %v4080
      %v4082 = vpop.f32.mrb[0].mxu0
      %v4083 = vpop.f32.mrb[0].mxu0
      %v4084 = vadd.f32 0.0, %v4083
      %v4085 = vpop.f32.mrb[0].mxu0
      %4086 = vmatprep.mubr.bf16.mxu0 0
      %4087 = vmatmul.mubr.bf16.gmra.mrb[0].mxu0 %v3998
      %v4088 = vpop.f32.mrb[0].mxu0
      %v4089 = vadd.f32 0.0, %v4088
      %v4090 = vpop.f32.mrb[0].mxu0
      %v4091 = vpop.f32.mrb[0].mxu0
      %v4092 = vadd.f32 0.0, %v4091
      %v4093 = vpop.f32.mrb[0].mxu0
      %4094 = vmatprep.mubr.bf16.mxu0 0
      %4095 = vmatmul.mubr.bf16.gmra.mrb[0].mxu0 %v4001
      %v4096 = vpop.f32.mrb[0].mxu0
      %v4097 = vadd.f32 0.0, %v4096
      %v4098 = vpop.f32.mrb[0].mxu0
      %v4099 = vpop.f32.mrb[0].mxu0
      %v4100 = vadd.f32 0.0, %v4099
      %v4101 = vpop.f32.mrb[0].mxu0
      %4102 = vdwg.mxu0
      %v4103 = vadd.f32 %v3633, %v4041
      %v4104 = vadd.f32 %v3634, %v4044
      %v4105 = vadd.f32 %v3635, %v4049
      %v4106 = vadd.f32 %v3636, %v4052
      %v4107 = vadd.f32 %v3637, %v4057
      %v4108 = vadd.f32 %v3638, %v4060
      %v4109 = vadd.f32 %v3639, %v4065
      %v4110 = vadd.f32 %v3640, %v4068
      %v4111 = vadd.f32 %v3641, %v4073
      %v4112 = vadd.f32 %v3642, %v4076
      %v4113 = vadd.f32 %v3643, %v4081
      %v4114 = vadd.f32 %v3644, %v4084
      %v4115 = vadd.f32 %v3645, %v4089
      %v4116 = vadd.f32 %v3646, %v4092
      %v4117 = vadd.f32 %v3647, %v4097
      %v4118 = vadd.f32 %v3648, %v4100
      %v4119 = vld [vmem:[%s4] sm:$0x1]
      %v4121 = vlaneseq
      %v4122 = vshrl.u32 %v4121, 7
      %v4123 = vsub.s32 0, %v4122
      %v4124 = vrot.slane %v4119, %v4123
      %v4126 = vmul.f32 %v4103, %v4124
      %v4127 = vmul.f32 %v4104, %v4124
      %v4128 = vmul.f32 %v4105, %v4124
      %v4129 = vmul.f32 %v4106, %v4124
      %v4130 = vmul.f32 %v4107, %v4124
      %v4131 = vmul.f32 %v4108, %v4124
      %v4132 = vmul.f32 %v4109, %v4124
      %v4133 = vmul.f32 %v4110, %v4124
      %v4134 = vmul.f32 %v4111, %v4124
      %v4135 = vmul.f32 %v4112, %v4124
      %v4136 = vmul.f32 %v4113, %v4124
      %v4137 = vmul.f32 %v4114, %v4124
      %v4138 = vmul.f32 %v4115, %v4124
      %v4139 = vmul.f32 %v4116, %v4124
      %v4140 = vmul.f32 %v4117, %v4124
      %v4141 = vmul.f32 %v4118, %v4124
      %v4142 = vld [vmem:[%s5] sm:$0x1]
      %v4144 = vlaneseq
      %v4145 = vshrl.u32 %v4144, 7
      %v4146 = vsub.s32 0, %v4145
      %v4147 = vrot.slane %v4142, %v4146
      %v4149 = vadd.f32 %v4126, %v4147
      %v4150 = vadd.f32 %v4127, %v4147
      %v4151 = vadd.f32 %v4128, %v4147
      %v4152 = vadd.f32 %v4129, %v4147
      %v4153 = vadd.f32 %v4130, %v4147
      %v4154 = vadd.f32 %v4131, %v4147
      %v4155 = vadd.f32 %v4132, %v4147
      %v4156 = vadd.f32 %v4133, %v4147
      %v4157 = vadd.f32 %v4134, %v4147
      %v4158 = vadd.f32 %v4135, %v4147
      %v4159 = vadd.f32 %v4136, %v4147
      %v4160 = vadd.f32 %v4137, %v4147
      %v4161 = vadd.f32 %v4138, %v4147
      %v4162 = vadd.f32 %v4139, %v4147
      %v4163 = vadd.f32 %v4140, %v4147
      %v4164 = vadd.f32 %v4141, %v4147
      %v4165 = vmax.f32 %v4149, 0.0
      %v4166 = vmax.f32 %v4150, 0.0
      %v4167 = vmax.f32 %v4151, 0.0
      %v4168 = vmax.f32 %v4152, 0.0
      %v4169 = vmax.f32 %v4153, 0.0
      %v4170 = vmax.f32 %v4154, 0.0
      %v4171 = vmax.f32 %v4155, 0.0
      %v4172 = vmax.f32 %v4156, 0.0
      %v4173 = vmax.f32 %v4157, 0.0
      %v4174 = vmax.f32 %v4158, 0.0
      %v4175 = vmax.f32 %v4159, 0.0
      %v4176 = vmax.f32 %v4160, 0.0
      %v4177 = vmax.f32 %v4161, 0.0
      %v4178 = vmax.f32 %v4162, 0.0
      %v4179 = vmax.f32 %v4163, 0.0
      %v4180 = vmax.f32 %v4164, 0.0
      %v4181 = vpack.c.bf16 %v4165, %v4165
      %v4182 = vpack.c.bf16 %v4166, %v4166
      %v4183 = vpack.c.bf16 %v4167, %v4167
      %v4184 = vpack.c.bf16 %v4168, %v4168
      %v4185 = vpack.c.bf16 %v4169, %v4169
      %v4186 = vpack.c.bf16 %v4170, %v4170
      %v4187 = vpack.c.bf16 %v4171, %v4171
      %v4188 = vpack.c.bf16 %v4172, %v4172
      %v4189 = vpack.c.bf16 %v4173, %v4173
      %v4190 = vpack.c.bf16 %v4174, %v4174
      %v4191 = vpack.c.bf16 %v4175, %v4175
      %v4192 = vpack.c.bf16 %v4176, %v4176
      %v4193 = vpack.c.bf16 %v4177, %v4177
      %v4194 = vpack.c.bf16 %v4178, %v4178
      %v4195 = vpack.c.bf16 %v4179, %v4179
      %v4196 = vpack.c.bf16 %v4180, %v4180
      %v4213 = vunpack.c.l.b16 %v4181
      %v4214 = vunpack.c.l.b16 %v4182
      %v4215 = vunpack.c.l.b16 %v4183
      %v4216 = vunpack.c.l.b16 %v4184
      %v4217 = vunpack.c.l.b16 %v4185
      %v4218 = vunpack.c.l.b16 %v4186
      %v4219 = vunpack.c.l.b16 %v4187
      %v4220 = vunpack.c.l.b16 %v4188
      %v4221 = vunpack.c.l.b16 %v4189
      %v4222 = vunpack.c.l.b16 %v4190
      %v4223 = vunpack.c.l.b16 %v4191
      %v4224 = vunpack.c.l.b16 %v4192
      %v4225 = vunpack.c.l.b16 %v4193
      %v4226 = vunpack.c.l.b16 %v4194
      %v4227 = vunpack.c.l.b16 %v4195
      %v4228 = vunpack.c.l.b16 %v4196
      %v4229 = vpack.c.b16 %v4213, %v4213
      %v4230 = vpack.c.b16 %v4214, %v4214
      %v4231 = vpack.c.b16 %v4215, %v4215
      %v4232 = vpack.c.b16 %v4216, %v4216
      %v4233 = vpack.c.b16 %v4217, %v4217
      %v4234 = vpack.c.b16 %v4218, %v4218
      %v4235 = vpack.c.b16 %v4219, %v4219
      %v4236 = vpack.c.b16 %v4220, %v4220
      %v4237 = vpack.c.b16 %v4221, %v4221
      %v4238 = vpack.c.b16 %v4222, %v4222
      %v4239 = vpack.c.b16 %v4223, %v4223
      %v4240 = vpack.c.b16 %v4224, %v4224
      %v4241 = vpack.c.b16 %v4225, %v4225
      %v4242 = vpack.c.b16 %v4226, %v4226
      %v4243 = vpack.c.b16 %v4227, %v4227
      %v4244 = vpack.c.b16 %v4228, %v4228
      %v4245 = vrot.slane %v4229, 7
      %v4246 = vrot.slane %v4245, 4
      %v4247 = vrot.slane %v4230, 7
      %v4248 = vrot.slane %v4247, 4
      %v4249 = vrot.slane %v4231, 7
      %v4250 = vrot.slane %v4249, 4
      %v4251 = vrot.slane %v4232, 7
      %v4252 = vrot.slane %v4251, 4
      %v4253 = vrot.slane %v4233, 7
      %v4254 = vrot.slane %v4253, 4
      %v4255 = vrot.slane %v4234, 7
      %v4256 = vrot.slane %v4255, 4
      %v4257 = vrot.slane %v4235, 7
      %v4258 = vrot.slane %v4257, 4
      %v4259 = vrot.slane %v4236, 7
      %v4260 = vrot.slane %v4259, 4
      %v4261 = vrot.slane %v4237, 7
      %v4262 = vrot.slane %v4261, 4
      %v4263 = vrot.slane %v4238, 7
      %v4264 = vrot.slane %v4263, 4
      %v4265 = vrot.slane %v4239, 7
      %v4266 = vrot.slane %v4265, 4
      %v4267 = vrot.slane %v4240, 7
      %v4268 = vrot.slane %v4267, 4
      %v4269 = vrot.slane %v4241, 7
      %v4270 = vrot.slane %v4269, 4
      %v4271 = vrot.slane %v4242, 7
      %v4272 = vrot.slane %v4271, 4
      %v4273 = vrot.slane %v4243, 7
      %v4274 = vrot.slane %v4273, 4
      %v4275 = vrot.slane %v4244, 7
      %v4276 = vrot.slane %v4275, 4
      %s4309 = scalar_lea.vmem [#allocation3], 8
      %4310 = vst.msk [vmem:[%s4309] sm:$0xe] %vm597, %v4245
      %4311 = vst.msk [vmem:[%s4309 + $0x4] sm:$0x1] %vm299, %v4246
      %4312 = vst.msk [vmem:[%s4309 + $0x8] sm:$0xe] %vm597, %v4247
      %4313 = vst.msk [vmem:[%s4309 + $0xc] sm:$0x1] %vm299, %v4248
      %4314 = vst.msk [vmem:[%s4309 + $0x10] sm:$0xe] %vm597, %v4249
      %4315 = vst.msk [vmem:[%s4309 + $0x14] sm:$0x1] %vm299, %v4250
      %4316 = vst.msk [vmem:[%s4309 + $0x18] sm:$0xe] %vm597, %v4251
      %4317 = vst.msk [vmem:[%s4309 + $0x1c] sm:$0x1] %vm299, %v4252
      %4318 = vst.msk [vmem:[%s4309 + $0x20] sm:$0xe] %vm597, %v4253
      %4319 = vst.msk [vmem:[%s4309 + $0x24] sm:$0x1] %vm299, %v4254
      %4320 = vst.msk [vmem:[%s4309 + $0x28] sm:$0xe] %vm597, %v4255
      %4321 = vst.msk [vmem:[%s4309 + $0x2c] sm:$0x1] %vm299, %v4256
      %4322 = vst.msk [vmem:[%s4309 + $0x30] sm:$0xe] %vm597, %v4257
      %4323 = vst.msk [vmem:[%s4309 + $0x34] sm:$0x1] %vm299, %v4258
      %4324 = vst.msk [vmem:[%s4309 + $0x38] sm:$0xe] %vm597, %v4259
      %4325 = vst.msk [vmem:[%s4309 + $0x3c] sm:$0x1] %vm299, %v4260
      %4326 = vst.msk [vmem:[%s4309 + $0x50] sm:$0xe] %vm597, %v4261
      %4327 = vst.msk [vmem:[%s4309 + $0x54] sm:$0x1] %vm299, %v4262
      %4328 = vst.msk [vmem:[%s4309 + $0x58] sm:$0xe] %vm597, %v4263
      %4329 = vst.msk [vmem:[%s4309 + $0x5c] sm:$0x1] %vm299, %v4264
      %4330 = vst.msk [vmem:[%s4309 + $0x60] sm:$0xe] %vm597, %v4265
      %4331 = vst.msk [vmem:[%s4309 + $0x64] sm:$0x1] %vm299, %v4266
      %4332 = vst.msk [vmem:[%s4309 + $0x68] sm:$0xe] %vm597, %v4267
      %4333 = vst.msk [vmem:[%s4309 + $0x6c] sm:$0x1] %vm299, %v4268
      %4334 = vst.msk [vmem:[%s4309 + $0x70] sm:$0xe] %vm597, %v4269
      %4335 = vst.msk [vmem:[%s4309 + $0x74] sm:$0x1] %vm299, %v4270
      %4336 = vst.msk [vmem:[%s4309 + $0x78] sm:$0xe] %vm597, %v4271
      %4337 = vst.msk [vmem:[%s4309 + $0x7c] sm:$0x1] %vm299, %v4272
      %4338 = vst.msk [vmem:[%s4309 + $0x80] sm:$0xe] %vm597, %v4273
      %4339 = vst.msk [vmem:[%s4309 + $0x84] sm:$0x1] %vm299, %v4274
      %4340 = vst.msk [vmem:[%s4309 + $0x88] sm:$0xe] %vm597, %v4275
      %4341 = vst.msk [vmem:[%s4309 + $0x8c] sm:$0x1] %vm299, %v4276
      %v4342 = vld [vmem:[#allocation3] sm:$0xf]
      %v4343 = vld [vmem:[#allocation3 + $0x4] sm:$0x1]
      %v4344 = vld [vmem:[#allocation3 + $0x8] sm:$0xf]
      %v4345 = vld [vmem:[#allocation3 + $0xc] sm:$0x1]
      %v4346 = vld [vmem:[#allocation3 + $0x10] sm:$0xf]
      %v4347 = vld [vmem:[#allocation3 + $0x14] sm:$0x1]
      %v4348 = vld [vmem:[#allocation3 + $0x18] sm:$0xf]
      %v4349 = vld [vmem:[#allocation3 + $0x1c] sm:$0x1]
      %v4350 = vld [vmem:[#allocation3 + $0x20] sm:$0xf]
      %v4351 = vld [vmem:[#allocation3 + $0x24] sm:$0x1]
      %v4352 = vld [vmem:[#allocation3 + $0x28] sm:$0xf]
      %v4353 = vld [vmem:[#allocation3 + $0x2c] sm:$0x1]
      %v4354 = vld [vmem:[#allocation3 + $0x30] sm:$0xf]
      %v4355 = vld [vmem:[#allocation3 + $0x34] sm:$0x1]
      %v4356 = vld [vmem:[#allocation3 + $0x38] sm:$0xf]
      %v4357 = vld [vmem:[#allocation3 + $0x3c] sm:$0x1]
      %v4358 = vld [vmem:[#allocation3 + $0x50] sm:$0xf]
      %v4359 = vld [vmem:[#allocation3 + $0x54] sm:$0x1]
      %v4360 = vld [vmem:[#allocation3 + $0x58] sm:$0xf]
      %v4361 = vld [vmem:[#allocation3 + $0x5c] sm:$0x1]
      %v4362 = vld [vmem:[#allocation3 + $0x60] sm:$0xf]
      %v4363 = vld [vmem:[#allocation3 + $0x64] sm:$0x1]
      %v4364 = vld [vmem:[#allocation3 + $0x68] sm:$0xf]
      %v4365 = vld [vmem:[#allocation3 + $0x6c] sm:$0x1]
      %v4366 = vld [vmem:[#allocation3 + $0x70] sm:$0xf]
      %v4367 = vld [vmem:[#allocation3 + $0x74] sm:$0x1]
      %v4368 = vld [vmem:[#allocation3 + $0x78] sm:$0xf]
      %v4369 = vld [vmem:[#allocation3 + $0x7c] sm:$0x1]
      %v4370 = vld [vmem:[#allocation3 + $0x80] sm:$0xf]
      %v4371 = vld [vmem:[#allocation3 + $0x84] sm:$0x1]
      %v4372 = vld [vmem:[#allocation3 + $0x88] sm:$0xf]
      %v4373 = vld [vmem:[#allocation3 + $0x8c] sm:$0x1]
      %v4375 = vshrl.u32 %v4342, 16
      %v4377 = vrot.slane %v4375, 4
      %v4378 = vshll.u32 %v4342, 16
      %v4380 = vrot.slane %v4378, 5
      %v4381 = vor.u32 %v4377, %v4380
      %v4382 = vrot.slane %v4381, 4
      %v4384 = vshll.u32 %v4343, 16
      %v4386 = vrot.slane %v4384, 5
      %v4387 = vsel %vm664, %v4382, %v4386
      %v4389 = vshrl.u32 %v4344, 16
      %v4391 = vrot.slane %v4389, 4
      %v4392 = vshll.u32 %v4344, 16
      %v4394 = vrot.slane %v4392, 5
      %v4395 = vor.u32 %v4391, %v4394
      %v4396 = vrot.slane %v4395, 4
      %v4398 = vshll.u32 %v4345, 16
      %v4400 = vrot.slane %v4398, 5
      %v4401 = vsel %vm664, %v4396, %v4400
      %v4403 = vshrl.u32 %v4346, 16
      %v4405 = vrot.slane %v4403, 4
      %v4406 = vshll.u32 %v4346, 16
      %v4408 = vrot.slane %v4406, 5
      %v4409 = vor.u32 %v4405, %v4408
      %v4410 = vrot.slane %v4409, 4
      %v4412 = vshll.u32 %v4347, 16
      %v4414 = vrot.slane %v4412, 5
      %v4415 = vsel %vm664, %v4410, %v4414
      %v4417 = vshrl.u32 %v4348, 16
      %v4419 = vrot.slane %v4417, 4
      %v4420 = vshll.u32 %v4348, 16
      %v4422 = vrot.slane %v4420, 5
      %v4423 = vor.u32 %v4419, %v4422
      %v4424 = vrot.slane %v4423, 4
      %v4426 = vshll.u32 %v4349, 16
      %v4428 = vrot.slane %v4426, 5
      %v4429 = vsel %vm664, %v4424, %v4428
      %v4431 = vshrl.u32 %v4350, 16
      %v4433 = vrot.slane %v4431, 4
      %v4434 = vshll.u32 %v4350, 16
      %v4436 = vrot.slane %v4434, 5
      %v4437 = vor.u32 %v4433, %v4436
      %v4438 = vrot.slane %v4437, 4
      %v4440 = vshll.u32 %v4351, 16
      %v4442 = vrot.slane %v4440, 5
      %v4443 = vsel %vm664, %v4438, %v4442
      %v4445 = vshrl.u32 %v4352, 16
      %v4447 = vrot.slane %v4445, 4
      %v4448 = vshll.u32 %v4352, 16
      %v4450 = vrot.slane %v4448, 5
      %v4451 = vor.u32 %v4447, %v4450
      %v4452 = vrot.slane %v4451, 4
      %v4454 = vshll.u32 %v4353, 16
      %v4456 = vrot.slane %v4454, 5
      %v4457 = vsel %vm664, %v4452, %v4456
      %v4459 = vshrl.u32 %v4354, 16
      %v4461 = vrot.slane %v4459, 4
      %v4462 = vshll.u32 %v4354, 16
      %v4464 = vrot.slane %v4462, 5
      %v4465 = vor.u32 %v4461, %v4464
      %v4466 = vrot.slane %v4465, 4
      %v4468 = vshll.u32 %v4355, 16
      %v4470 = vrot.slane %v4468, 5
      %v4471 = vsel %vm664, %v4466, %v4470
      %v4473 = vshrl.u32 %v4356, 16
      %v4475 = vrot.slane %v4473, 4
      %v4476 = vshll.u32 %v4356, 16
      %v4478 = vrot.slane %v4476, 5
      %v4479 = vor.u32 %v4475, %v4478
      %v4480 = vrot.slane %v4479, 4
      %v4482 = vshll.u32 %v4357, 16
      %v4484 = vrot.slane %v4482, 5
      %v4485 = vsel %vm664, %v4480, %v4484
      %v4487 = vshrl.u32 %v4358, 16
      %v4489 = vrot.slane %v4487, 4
      %v4490 = vshll.u32 %v4358, 16
      %v4492 = vrot.slane %v4490, 5
      %v4493 = vor.u32 %v4489, %v4492
      %v4494 = vrot.slane %v4493, 4
      %v4496 = vshll.u32 %v4359, 16
      %v4498 = vrot.slane %v4496, 5
      %v4499 = vsel %vm664, %v4494, %v4498
      %v4501 = vshrl.u32 %v4360, 16
      %v4503 = vrot.slane %v4501, 4
      %v4504 = vshll.u32 %v4360, 16
      %v4506 = vrot.slane %v4504, 5
      %v4507 = vor.u32 %v4503, %v4506
      %v4508 = vrot.slane %v4507, 4
      %v4510 = vshll.u32 %v4361, 16
      %v4512 = vrot.slane %v4510, 5
      %v4513 = vsel %vm664, %v4508, %v4512
      %v4515 = vshrl.u32 %v4362, 16
      %v4517 = vrot.slane %v4515, 4
      %v4518 = vshll.u32 %v4362, 16
      %v4520 = vrot.slane %v4518, 5
      %v4521 = vor.u32 %v4517, %v4520
      %v4522 = vrot.slane %v4521, 4
      %v4524 = vshll.u32 %v4363, 16
      %v4526 = vrot.slane %v4524, 5
      %v4527 = vsel %vm664, %v4522, %v4526
      %v4529 = vshrl.u32 %v4364, 16
      %v4531 = vrot.slane %v4529, 4
      %v4532 = vshll.u32 %v4364, 16
      %v4534 = vrot.slane %v4532, 5
      %v4535 = vor.u32 %v4531, %v4534
      %v4536 = vrot.slane %v4535, 4
      %v4538 = vshll.u32 %v4365, 16
      %v4540 = vrot.slane %v4538, 5
      %v4541 = vsel %vm664, %v4536, %v4540
      %v4543 = vshrl.u32 %v4366, 16
      %v4545 = vrot.slane %v4543, 4
      %v4546 = vshll.u32 %v4366, 16
      %v4548 = vrot.slane %v4546, 5
      %v4549 = vor.u32 %v4545, %v4548
      %v4550 = vrot.slane %v4549, 4
      %v4552 = vshll.u32 %v4367, 16
      %v4554 = vrot.slane %v4552, 5
      %v4555 = vsel %vm664, %v4550, %v4554
      %v4557 = vshrl.u32 %v4368, 16
      %v4559 = vrot.slane %v4557, 4
      %v4560 = vshll.u32 %v4368, 16
      %v4562 = vrot.slane %v4560, 5
      %v4563 = vor.u32 %v4559, %v4562
      %v4564 = vrot.slane %v4563, 4
      %v4566 = vshll.u32 %v4369, 16
      %v4568 = vrot.slane %v4566, 5
      %v4569 = vsel %vm664, %v4564, %v4568
      %v4571 = vshrl.u32 %v4370, 16
      %v4573 = vrot.slane %v4571, 4
      %v4574 = vshll.u32 %v4370, 16
      %v4576 = vrot.slane %v4574, 5
      %v4577 = vor.u32 %v4573, %v4576
      %v4578 = vrot.slane %v4577, 4
      %v4580 = vshll.u32 %v4371, 16
      %v4582 = vrot.slane %v4580, 5
      %v4583 = vsel %vm664, %v4578, %v4582
      %v4585 = vshrl.u32 %v4372, 16
      %v4587 = vrot.slane %v4585, 4
      %v4588 = vshll.u32 %v4372, 16
      %v4590 = vrot.slane %v4588, 5
      %v4591 = vor.u32 %v4587, %v4590
      %v4592 = vrot.slane %v4591, 4
      %v4594 = vshll.u32 %v4373, 16
      %v4596 = vrot.slane %v4594, 5
      %v4597 = vsel %vm664, %v4592, %v4596
      %v4598 = vld [vmem:[%s6] sm:$0xf]
      %v4599 = vld [vmem:[#allocation3] sm:$0xe]
      %v4600 = vld [vmem:[#allocation3 + $0x8] sm:$0xe]
      %v4601 = vld [vmem:[#allocation3 + $0x10] sm:$0xe]
      %v4602 = vld [vmem:[#allocation3 + $0x18] sm:$0xe]
      %v4603 = vld [vmem:[#allocation3 + $0x20] sm:$0xe]
      %v4604 = vld [vmem:[#allocation3 + $0x28] sm:$0xe]
      %v4605 = vld [vmem:[#allocation3 + $0x30] sm:$0xe]
      %v4606 = vld [vmem:[#allocation3 + $0x38] sm:$0xe]
      %v4607 = vld [vmem:[#allocation3 + $0x50] sm:$0xe]
      %v4608 = vld [vmem:[#allocation3 + $0x58] sm:$0xe]
      %v4609 = vld [vmem:[#allocation3 + $0x60] sm:$0xe]
      %v4610 = vld [vmem:[#allocation3 + $0x68] sm:$0xe]
      %v4611 = vld [vmem:[#allocation3 + $0x70] sm:$0xe]
      %v4612 = vld [vmem:[#allocation3 + $0x78] sm:$0xe]
      %v4613 = vld [vmem:[#allocation3 + $0x80] sm:$0xe]
      %v4614 = vld [vmem:[#allocation3 + $0x88] sm:$0xe]
      %v4647 = vrot.slane %v4599, 5
      %v4648 = vrot.slane %v4647, 4
      %v4649 = vrot.slane %v4343, 5
      %v4650 = vsel %vm940, %v4648, %v4649
      %v4651 = vrot.slane %v4600, 5
      %v4652 = vrot.slane %v4651, 4
      %v4653 = vrot.slane %v4345, 5
      %v4654 = vsel %vm940, %v4652, %v4653
      %v4655 = vrot.slane %v4601, 5
      %v4656 = vrot.slane %v4655, 4
      %v4657 = vrot.slane %v4347, 5
      %v4658 = vsel %vm940, %v4656, %v4657
      %v4659 = vrot.slane %v4602, 5
      %v4660 = vrot.slane %v4659, 4
      %v4661 = vrot.slane %v4349, 5
      %v4662 = vsel %vm940, %v4660, %v4661
      %v4663 = vrot.slane %v4603, 5
      %v4664 = vrot.slane %v4663, 4
      %v4665 = vrot.slane %v4351, 5
      %v4666 = vsel %vm940, %v4664, %v4665
      %v4667 = vrot.slane %v4604, 5
      %v4668 = vrot.slane %v4667, 4
      %v4669 = vrot.slane %v4353, 5
      %v4670 = vsel %vm940, %v4668, %v4669
      %v4671 = vrot.slane %v4605, 5
      %v4672 = vrot.slane %v4671, 4
      %v4673 = vrot.slane %v4355, 5
      %v4674 = vsel %vm940, %v4672, %v4673
      %v4675 = vrot.slane %v4606, 5
      %v4676 = vrot.slane %v4675, 4
      %v4677 = vrot.slane %v4357, 5
      %v4678 = vsel %vm940, %v4676, %v4677
      %v4679 = vrot.slane %v4607, 5
      %v4680 = vrot.slane %v4679, 4
      %v4681 = vrot.slane %v4359, 5
      %v4682 = vsel %vm940, %v4680, %v4681
      %v4683 = vrot.slane %v4608, 5
      %v4684 = vrot.slane %v4683, 4
      %v4685 = vrot.slane %v4361, 5
      %v4686 = vsel %vm940, %v4684, %v4685
      %v4687 = vrot.slane %v4609, 5
      %v4688 = vrot.slane %v4687, 4
      %v4689 = vrot.slane %v4363, 5
      %v4690 = vsel %vm940, %v4688, %v4689
      %v4691 = vrot.slane %v4610, 5
      %v4692 = vrot.slane %v4691, 4
      %v4693 = vrot.slane %v4365, 5
      %v4694 = vsel %vm940, %v4692, %v4693
      %v4695 = vrot.slane %v4611, 5
      %v4696 = vrot.slane %v4695, 4
      %v4697 = vrot.slane %v4367, 5
      %v4698 = vsel %vm940, %v4696, %v4697
      %v4699 = vrot.slane %v4612, 5
      %v4700 = vrot.slane %v4699, 4
      %v4701 = vrot.slane %v4369, 5
      %v4702 = vsel %vm940, %v4700, %v4701
      %v4703 = vrot.slane %v4613, 5
      %v4704 = vrot.slane %v4703, 4
      %v4705 = vrot.slane %v4371, 5
      %v4706 = vsel %vm940, %v4704, %v4705
      %v4707 = vrot.slane %v4614, 5
      %v4708 = vrot.slane %v4707, 4
      %v4709 = vrot.slane %v4373, 5
      %v4710 = vsel %vm940, %v4708, %v4709
      %s4711 = scalar_lea.vmem %s6, 4
      %v4712 = vld [vmem:[%s4711] sm:$0xf]
      %v4713 = vunpack.c.l.b16 %v4650
      %v4714 = vunpack.c.l.b16 %v4654
      %v4715 = vunpack.c.l.b16 %v4658
      %v4716 = vunpack.c.l.b16 %v4662
      %v4717 = vunpack.c.l.b16 %v4666
      %v4718 = vunpack.c.l.b16 %v4670
      %v4719 = vunpack.c.l.b16 %v4674
      %v4720 = vunpack.c.l.b16 %v4678
      %v4721 = vunpack.c.l.b16 %v4682
      %v4722 = vunpack.c.l.b16 %v4686
      %v4723 = vunpack.c.l.b16 %v4690
      %v4724 = vunpack.c.l.b16 %v4694
      %v4725 = vunpack.c.l.b16 %v4698
      %v4726 = vunpack.c.l.b16 %v4702
      %v4727 = vunpack.c.l.b16 %v4706
      %v4728 = vunpack.c.l.b16 %v4710
      %v4729 = vpack.c.b16 %v4714, %v4713
      %v4730 = vpack.c.b16 %v4716, %v4715
      %v4731 = vpack.c.b16 %v4718, %v4717
      %v4732 = vpack.c.b16 %v4720, %v4719
      %v4733 = vpack.c.b16 %v4722, %v4721
      %v4734 = vpack.c.b16 %v4724, %v4723
      %v4735 = vpack.c.b16 %v4726, %v4725
      %v4736 = vpack.c.b16 %v4728, %v4727
      %v4738 = vsel %vm1031, %v4729, 0
      %v4741 = vsel %vm1031, %v4730, 0
      %v4744 = vsel %vm1031, %v4731, 0
      %v4747 = vsel %vm1031, %v4732, 0
      %v4750 = vsel %vm1031, %v4733, 0
      %v4753 = vsel %vm1031, %v4734, 0
      %v4756 = vsel %vm1031, %v4735, 0
      %v4759 = vsel %vm1031, %v4736, 0
      %v4762 = vsel %vm1056, %v4712, 0
      %4764 = vmatprep.subr.bf16.mxu0 0
      %4765 = vmatpush1.bf16.msra.mxu0 %v4762
      %4766 = vmatprep.subr.bf16.mxu0 0
      %4767 = vmatpush1.bf16.msra.mxu0 0
      %4768 = vmatprep.subr.bf16.mxu0 0
      %4769 = vmatpush1.bf16.msra.mxu0 0
      %4770 = vmatprep.subr.bf16.mxu0 0
      %4771 = vmatpush1.bf16.msra.mxu0 0
      %4772 = vmatprep.subr.bf16.mxu0 0
      %4773 = vmatpush1.bf16.msra.mxu0 0
      %4774 = vmatprep.subr.bf16.mxu0 0
      %4775 = vmatpush1.bf16.msra.mxu0 0
      %4776 = vmatprep.subr.bf16.mxu0 0
      %4777 = vmatpush1.bf16.msra.mxu0 0
      %4778 = vmatprep.subr.bf16.mxu0 0
      %4779 = vmatpush1.bf16.msra.mxu0 0
      %4780 = vmatprep.subr.bf16.mxu0 0
      %4781 = vmatpush1.bf16.msra.mxu0 0
      %4782 = vmatprep.subr.bf16.mxu0 0
      %4783 = vmatpush1.bf16.msra.mxu0 0
      %4784 = vmatprep.subr.bf16.mxu0 0
      %4785 = vmatpush1.bf16.msra.mxu0 0
      %4786 = vmatprep.subr.bf16.mxu0 0
      %4787 = vmatpush1.bf16.msra.mxu0 0
      %4788 = vmatprep.subr.bf16.mxu0 0
      %4789 = vmatpush1.bf16.msra.mxu0 0
      %4790 = vmatprep.subr.bf16.mxu0 0
      %4791 = vmatpush1.bf16.msra.mxu0 0
      %4792 = vmatprep.subr.bf16.mxu0 0
      %4793 = vmatpush1.bf16.msra.mxu0 0
      %4794 = vmatprep.subr.bf16.mxu0 0
      %4795 = vmatpush1.bf16.msra.mxu0 0
      %4796 = vmatprep.mubr.bf16.mxu0 0
      %4797 = vmatmul.mubr.bf16.gmra.mrb[0].mxu0 %v4738
      %v4798 = vpop.f32.mrb[0].mxu0
      %v4799 = vadd.f32 0.0, %v4798
      %v4800 = vpop.f32.mrb[0].mxu0
      %v4801 = vpop.f32.mrb[0].mxu0
      %v4802 = vadd.f32 0.0, %v4801
      %v4803 = vpop.f32.mrb[0].mxu0
      %4804 = vmatprep.mubr.bf16.mxu0 0
      %4805 = vmatmul.mubr.bf16.gmra.mrb[0].mxu0 %v4741
      %v4806 = vpop.f32.mrb[0].mxu0
      %v4807 = vadd.f32 0.0, %v4806
      %v4808 = vpop.f32.mrb[0].mxu0
      %v4809 = vpop.f32.mrb[0].mxu0
      %v4810 = vadd.f32 0.0, %v4809
      %v4811 = vpop.f32.mrb[0].mxu0
      %4812 = vmatprep.mubr.bf16.mxu0 0
      %4813 = vmatmul.mubr.bf16.gmra.mrb[0].mxu0 %v4744
      %v4814 = vpop.f32.mrb[0].mxu0
      %v4815 = vadd.f32 0.0, %v4814
      %v4816 = vpop.f32.mrb[0].mxu0
      %v4817 = vpop.f32.mrb[0].mxu0
      %v4818 = vadd.f32 0.0, %v4817
      %v4819 = vpop.f32.mrb[0].mxu0
      %4820 = vmatprep.mubr.bf16.mxu0 0
      %4821 = vmatmul.mubr.bf16.gmra.mrb[0].mxu0 %v4747
      %v4822 = vpop.f32.mrb[0].mxu0
      %v4823 = vadd.f32 0.0, %v4822
      %v4824 = vpop.f32.mrb[0].mxu0
      %v4825 = vpop.f32.mrb[0].mxu0
      %v4826 = vadd.f32 0.0, %v4825
      %v4827 = vpop.f32.mrb[0].mxu0
      %4828 = vmatprep.mubr.bf16.mxu0 0
      %4829 = vmatmul.mubr.bf16.gmra.mrb[0].mxu0 %v4750
      %v4830 = vpop.f32.mrb[0].mxu0
      %v4831 = vadd.f32 0.0, %v4830
      %v4832 = vpop.f32.mrb[0].mxu0
      %v4833 = vpop.f32.mrb[0].mxu0
      %v4834 = vadd.f32 0.0, %v4833
      %v4835 = vpop.f32.mrb[0].mxu0
      %4836 = vmatprep.mubr.bf16.mxu0 0
      %4837 = vmatmul.mubr.bf16.gmra.mrb[0].mxu0 %v4753
      %v4838 = vpop.f32.mrb[0].mxu0
      %v4839 = vadd.f32 0.0, %v4838
      %v4840 = vpop.f32.mrb[0].mxu0
      %v4841 = vpop.f32.mrb[0].mxu0
      %v4842 = vadd.f32 0.0, %v4841
      %v4843 = vpop.f32.mrb[0].mxu0
      %4844 = vmatprep.mubr.bf16.mxu0 0
      %4845 = vmatmul.mubr.bf16.gmra.mrb[0].mxu0 %v4756
      %v4846 = vpop.f32.mrb[0].mxu0
      %v4847 = vadd.f32 0.0, %v4846
      %v4848 = vpop.f32.mrb[0].mxu0
      %v4849 = vpop.f32.mrb[0].mxu0
      %v4850 = vadd.f32 0.0, %v4849
      %v4851 = vpop.f32.mrb[0].mxu0
      %4852 = vmatprep.mubr.bf16.mxu0 0
      %4853 = vmatmul.mubr.bf16.gmra.mrb[0].mxu0 %v4759
      %v4854 = vpop.f32.mrb[0].mxu0
      %v4855 = vadd.f32 0.0, %v4854
      %v4856 = vpop.f32.mrb[0].mxu0
      %v4857 = vpop.f32.mrb[0].mxu0
      %v4858 = vadd.f32 0.0, %v4857
      %v4859 = vpop.f32.mrb[0].mxu0
      %4860 = vdwg.mxu0
      %v4861 = vunpack.c.l.b16 %v4387
      %v4862 = vunpack.c.l.b16 %v4401
      %v4863 = vunpack.c.l.b16 %v4415
      %v4864 = vunpack.c.l.b16 %v4429
      %v4865 = vunpack.c.l.b16 %v4443
      %v4866 = vunpack.c.l.b16 %v4457
      %v4867 = vunpack.c.l.b16 %v4471
      %v4868 = vunpack.c.l.b16 %v4485
      %v4869 = vunpack.c.l.b16 %v4499
      %v4870 = vunpack.c.l.b16 %v4513
      %v4871 = vunpack.c.l.b16 %v4527
      %v4872 = vunpack.c.l.b16 %v4541
      %v4873 = vunpack.c.l.b16 %v4555
      %v4874 = vunpack.c.l.b16 %v4569
      %v4875 = vunpack.c.l.b16 %v4583
      %v4876 = vunpack.c.l.b16 %v4597
      %v4877 = vpack.c.b16 %v4862, %v4861
      %v4878 = vpack.c.b16 %v4864, %v4863
      %v4879 = vpack.c.b16 %v4866, %v4865
      %v4880 = vpack.c.b16 %v4868, %v4867
      %v4881 = vpack.c.b16 %v4870, %v4869
      %v4882 = vpack.c.b16 %v4872, %v4871
      %v4883 = vpack.c.b16 %v4874, %v4873
      %v4884 = vpack.c.b16 %v4876, %v4875
      %v4886 = vsel %vm1031, %v4877, 0
      %v4889 = vsel %vm1031, %v4878, 0
      %v4892 = vsel %vm1031, %v4879, 0
      %v4895 = vsel %vm1031, %v4880, 0
      %v4898 = vsel %vm1031, %v4881, 0
      %v4901 = vsel %vm1031, %v4882, 0
      %v4904 = vsel %vm1031, %v4883, 0
      %v4907 = vsel %vm1031, %v4884, 0
      %v4910 = vsel %vm1056, %v4598, 0
      %4912 = vmatprep.subr.bf16.mxu0 0
      %4913 = vmatpush1.bf16.msra.mxu0 %v4910
      %4914 = vmatprep.subr.bf16.mxu0 0
      %4915 = vmatpush1.bf16.msra.mxu0 0
      %4916 = vmatprep.subr.bf16.mxu0 0
      %4917 = vmatpush1.bf16.msra.mxu0 0
      %4918 = vmatprep.subr.bf16.mxu0 0
      %4919 = vmatpush1.bf16.msra.mxu0 0
      %4920 = vmatprep.subr.bf16.mxu0 0
      %4921 = vmatpush1.bf16.msra.mxu0 0
      %4922 = vmatprep.subr.bf16.mxu0 0
      %4923 = vmatpush1.bf16.msra.mxu0 0
      %4924 = vmatprep.subr.bf16.mxu0 0
      %4925 = vmatpush1.bf16.msra.mxu0 0
      %4926 = vmatprep.subr.bf16.mxu0 0
      %4927 = vmatpush1.bf16.msra.mxu0 0
      %4928 = vmatprep.subr.bf16.mxu0 0
      %4929 = vmatpush1.bf16.msra.mxu0 0
      %4930 = vmatprep.subr.bf16.mxu0 0
      %4931 = vmatpush1.bf16.msra.mxu0 0
      %4932 = vmatprep.subr.bf16.mxu0 0
      %4933 = vmatpush1.bf16.msra.mxu0 0
      %4934 = vmatprep.subr.bf16.mxu0 0
      %4935 = vmatpush1.bf16.msra.mxu0 0
      %4936 = vmatprep.subr.bf16.mxu0 0
      %4937 = vmatpush1.bf16.msra.mxu0 0
      %4938 = vmatprep.subr.bf16.mxu0 0
      %4939 = vmatpush1.bf16.msra.mxu0 0
      %4940 = vmatprep.subr.bf16.mxu0 0
      %4941 = vmatpush1.bf16.msra.mxu0 0
      %4942 = vmatprep.subr.bf16.mxu0 0
      %4943 = vmatpush1.bf16.msra.mxu0 0
      %4944 = vmatprep.mubr.bf16.mxu0 0
      %4945 = vmatmul.mubr.bf16.gmra.mrb[0].mxu0 %v4886
      %v4946 = vpop.f32.mrb[0].mxu0
      %v4947 = vadd.f32 %v4799, %v4946
      %v4948 = vpop.f32.mrb[0].mxu0
      %v4949 = vpop.f32.mrb[0].mxu0
      %v4950 = vadd.f32 %v4802, %v4949
      %v4951 = vpop.f32.mrb[0].mxu0
      %4952 = vmatprep.mubr.bf16.mxu0 0
      %4953 = vmatmul.mubr.bf16.gmra.mrb[0].mxu0 %v4889
      %v4954 = vpop.f32.mrb[0].mxu0
      %v4955 = vadd.f32 %v4807, %v4954
      %v4956 = vpop.f32.mrb[0].mxu0
      %v4957 = vpop.f32.mrb[0].mxu0
      %v4958 = vadd.f32 %v4810, %v4957
      %v4959 = vpop.f32.mrb[0].mxu0
      %4960 = vmatprep.mubr.bf16.mxu0 0
      %4961 = vmatmul.mubr.bf16.gmra.mrb[0].mxu0 %v4892
      %v4962 = vpop.f32.mrb[0].mxu0
      %v4963 = vadd.f32 %v4815, %v4962
      %v4964 = vpop.f32.mrb[0].mxu0
      %v4965 = vpop.f32.mrb[0].mxu0
      %v4966 = vadd.f32 %v4818, %v4965
      %v4967 = vpop.f32.mrb[0].mxu0
      %4968 = vmatprep.mubr.bf16.mxu0 0
      %4969 = vmatmul.mubr.bf16.gmra.mrb[0].mxu0 %v4895
      %v4970 = vpop.f32.mrb[0].mxu0
      %v4971 = vadd.f32 %v4823, %v4970
      %v4972 = vpop.f32.mrb[0].mxu0
      %v4973 = vpop.f32.mrb[0].mxu0
      %v4974 = vadd.f32 %v4826, %v4973
      %v4975 = vpop.f32.mrb[0].mxu0
      %4976 = vmatprep.mubr.bf16.mxu0 0
      %4977 = vmatmul.mubr.bf16.gmra.mrb[0].mxu0 %v4898
      %v4978 = vpop.f32.mrb[0].mxu0
      %v4979 = vadd.f32 %v4831, %v4978
      %v4980 = vpop.f32.mrb[0].mxu0
      %v4981 = vpop.f32.mrb[0].mxu0
      %v4982 = vadd.f32 %v4834, %v4981
      %v4983 = vpop.f32.mrb[0].mxu0
      %4984 = vmatprep.mubr.bf16.mxu0 0
      %4985 = vmatmul.mubr.bf16.gmra.mrb[0].mxu0 %v4901
      %v4986 = vpop.f32.mrb[0].mxu0
      %v4987 = vadd.f32 %v4839, %v4986
      %v4988 = vpop.f32.mrb[0].mxu0
      %v4989 = vpop.f32.mrb[0].mxu0
      %v4990 = vadd.f32 %v4842, %v4989
      %v4991 = vpop.f32.mrb[0].mxu0
      %4992 = vmatprep.mubr.bf16.mxu0 0
      %4993 = vmatmul.mubr.bf16.gmra.mrb[0].mxu0 %v4904
      %v4994 = vpop.f32.mrb[0].mxu0
      %v4995 = vadd.f32 %v4847, %v4994
      %v4996 = vpop.f32.mrb[0].mxu0
      %v4997 = vpop.f32.mrb[0].mxu0
      %v4998 = vadd.f32 %v4850, %v4997
      %v4999 = vpop.f32.mrb[0].mxu0
      %5000 = vmatprep.mubr.bf16.mxu0 0
      %5001 = vmatmul.mubr.bf16.gmra.mrb[0].mxu0 %v4907
      %v5002 = vpop.f32.mrb[0].mxu0
      %v5003 = vadd.f32 %v4855, %v5002
      %v5004 = vpop.f32.mrb[0].mxu0
      %v5005 = vpop.f32.mrb[0].mxu0
      %v5006 = vadd.f32 %v4858, %v5005
      %v5007 = vpop.f32.mrb[0].mxu0
      %5008 = vdwg.mxu0
      %v5009 = vld [vmem:[#allocation3 + $0x4] sm:$0x3]
      %v5010 = vld [vmem:[#allocation3 + $0xc] sm:$0x3]
      %v5011 = vld [vmem:[#allocation3 + $0x14] sm:$0x3]
      %v5012 = vld [vmem:[#allocation3 + $0x1c] sm:$0x3]
      %v5013 = vld [vmem:[#allocation3 + $0x24] sm:$0x3]
      %v5014 = vld [vmem:[#allocation3 + $0x2c] sm:$0x3]
      %v5015 = vld [vmem:[#allocation3 + $0x34] sm:$0x3]
      %v5016 = vld [vmem:[#allocation3 + $0x3c] sm:$0x3]
      %v5017 = vld [vmem:[#allocation3 + $0x54] sm:$0x3]
      %v5018 = vld [vmem:[#allocation3 + $0x5c] sm:$0x3]
      %v5019 = vld [vmem:[#allocation3 + $0x64] sm:$0x3]
      %v5020 = vld [vmem:[#allocation3 + $0x6c] sm:$0x3]
      %v5021 = vld [vmem:[#allocation3 + $0x74] sm:$0x3]
      %v5022 = vld [vmem:[#allocation3 + $0x7c] sm:$0x3]
      %v5023 = vld [vmem:[#allocation3 + $0x84] sm:$0x3]
      %v5024 = vld [vmem:[#allocation3 + $0x8c] sm:$0x3]
      %v5026 = vshrl.u32 %v4599, 16
      %v5028 = vrot.slane %v5026, 5
      %v5029 = vshll.u32 %v4599, 16
      %v5031 = vrot.slane %v5029, 6
      %v5032 = vor.u32 %v5028, %v5031
      %v5033 = vrot.slane %v5032, 4
      %v5035 = vshrl.u32 %v5009, 16
      %v5037 = vrot.slane %v5035, 5
      %v5038 = vshll.u32 %v5009, 16
      %v5040 = vrot.slane %v5038, 6
      %v5041 = vor.u32 %v5037, %v5040
      %v5042 = vsel %vm1323, %v5033, %v5041
      %v5044 = vshrl.u32 %v4600, 16
      %v5046 = vrot.slane %v5044, 5
      %v5047 = vshll.u32 %v4600, 16
      %v5049 = vrot.slane %v5047, 6
      %v5050 = vor.u32 %v5046, %v5049
      %v5051 = vrot.slane %v5050, 4
      %v5053 = vshrl.u32 %v5010, 16
      %v5055 = vrot.slane %v5053, 5
      %v5056 = vshll.u32 %v5010, 16
      %v5058 = vrot.slane %v5056, 6
      %v5059 = vor.u32 %v5055, %v5058
      %v5060 = vsel %vm1323, %v5051, %v5059
      %v5062 = vshrl.u32 %v4601, 16
      %v5064 = vrot.slane %v5062, 5
      %v5065 = vshll.u32 %v4601, 16
      %v5067 = vrot.slane %v5065, 6
      %v5068 = vor.u32 %v5064, %v5067
      %v5069 = vrot.slane %v5068, 4
      %v5071 = vshrl.u32 %v5011, 16
      %v5073 = vrot.slane %v5071, 5
      %v5074 = vshll.u32 %v5011, 16
      %v5076 = vrot.slane %v5074, 6
      %v5077 = vor.u32 %v5073, %v5076
      %v5078 = vsel %vm1323, %v5069, %v5077
      %v5080 = vshrl.u32 %v4602, 16
      %v5082 = vrot.slane %v5080, 5
      %v5083 = vshll.u32 %v4602, 16
      %v5085 = vrot.slane %v5083, 6
      %v5086 = vor.u32 %v5082, %v5085
      %v5087 = vrot.slane %v5086, 4
      %v5089 = vshrl.u32 %v5012, 16
      %v5091 = vrot.slane %v5089, 5
      %v5092 = vshll.u32 %v5012, 16
      %v5094 = vrot.slane %v5092, 6
      %v5095 = vor.u32 %v5091, %v5094
      %v5096 = vsel %vm1323, %v5087, %v5095
      %v5098 = vshrl.u32 %v4603, 16
      %v5100 = vrot.slane %v5098, 5
      %v5101 = vshll.u32 %v4603, 16
      %v5103 = vrot.slane %v5101, 6
      %v5104 = vor.u32 %v5100, %v5103
      %v5105 = vrot.slane %v5104, 4
      %v5107 = vshrl.u32 %v5013, 16
      %v5109 = vrot.slane %v5107, 5
      %v5110 = vshll.u32 %v5013, 16
      %v5112 = vrot.slane %v5110, 6
      %v5113 = vor.u32 %v5109, %v5112
      %v5114 = vsel %vm1323, %v5105, %v5113
      %v5116 = vshrl.u32 %v4604, 16
      %v5118 = vrot.slane %v5116, 5
      %v5119 = vshll.u32 %v4604, 16
      %v5121 = vrot.slane %v5119, 6
      %v5122 = vor.u32 %v5118, %v5121
      %v5123 = vrot.slane %v5122, 4
      %v5125 = vshrl.u32 %v5014, 16
      %v5127 = vrot.slane %v5125, 5
      %v5128 = vshll.u32 %v5014, 16
      %v5130 = vrot.slane %v5128, 6
      %v5131 = vor.u32 %v5127, %v5130
      %v5132 = vsel %vm1323, %v5123, %v5131
      %v5134 = vshrl.u32 %v4605, 16
      %v5136 = vrot.slane %v5134, 5
      %v5137 = vshll.u32 %v4605, 16
      %v5139 = vrot.slane %v5137, 6
      %v5140 = vor.u32 %v5136, %v5139
      %v5141 = vrot.slane %v5140, 4
      %v5143 = vshrl.u32 %v5015, 16
      %v5145 = vrot.slane %v5143, 5
      %v5146 = vshll.u32 %v5015, 16
      %v5148 = vrot.slane %v5146, 6
      %v5149 = vor.u32 %v5145, %v5148
      %v5150 = vsel %vm1323, %v5141, %v5149
      %v5152 = vshrl.u32 %v4606, 16
      %v5154 = vrot.slane %v5152, 5
      %v5155 = vshll.u32 %v4606, 16
      %v5157 = vrot.slane %v5155, 6
      %v5158 = vor.u32 %v5154, %v5157
      %v5159 = vrot.slane %v5158, 4
      %v5161 = vshrl.u32 %v5016, 16
      %v5163 = vrot.slane %v5161, 5
      %v5164 = vshll.u32 %v5016, 16
      %v5166 = vrot.slane %v5164, 6
      %v5167 = vor.u32 %v5163, %v5166
      %v5168 = vsel %vm1323, %v5159, %v5167
      %v5170 = vshrl.u32 %v4607, 16
      %v5172 = vrot.slane %v5170, 5
      %v5173 = vshll.u32 %v4607, 16
      %v5175 = vrot.slane %v5173, 6
      %v5176 = vor.u32 %v5172, %v5175
      %v5177 = vrot.slane %v5176, 4
      %v5179 = vshrl.u32 %v5017, 16
      %v5181 = vrot.slane %v5179, 5
      %v5182 = vshll.u32 %v5017, 16
      %v5184 = vrot.slane %v5182, 6
      %v5185 = vor.u32 %v5181, %v5184
      %v5186 = vsel %vm1323, %v5177, %v5185
      %v5188 = vshrl.u32 %v4608, 16
      %v5190 = vrot.slane %v5188, 5
      %v5191 = vshll.u32 %v4608, 16
      %v5193 = vrot.slane %v5191, 6
      %v5194 = vor.u32 %v5190, %v5193
      %v5195 = vrot.slane %v5194, 4
      %v5197 = vshrl.u32 %v5018, 16
      %v5199 = vrot.slane %v5197, 5
      %v5200 = vshll.u32 %v5018, 16
      %v5202 = vrot.slane %v5200, 6
      %v5203 = vor.u32 %v5199, %v5202
      %v5204 = vsel %vm1323, %v5195, %v5203
      %v5206 = vshrl.u32 %v4609, 16
      %v5208 = vrot.slane %v5206, 5
      %v5209 = vshll.u32 %v4609, 16
      %v5211 = vrot.slane %v5209, 6
      %v5212 = vor.u32 %v5208, %v5211
      %v5213 = vrot.slane %v5212, 4
      %v5215 = vshrl.u32 %v5019, 16
      %v5217 = vrot.slane %v5215, 5
      %v5218 = vshll.u32 %v5019, 16
      %v5220 = vrot.slane %v5218, 6
      %v5221 = vor.u32 %v5217, %v5220
      %v5222 = vsel %vm1323, %v5213, %v5221
      %v5224 = vshrl.u32 %v4610, 16
      %v5226 = vrot.slane %v5224, 5
      %v5227 = vshll.u32 %v4610, 16
      %v5229 = vrot.slane %v5227, 6
      %v5230 = vor.u32 %v5226, %v5229
      %v5231 = vrot.slane %v5230, 4
      %v5233 = vshrl.u32 %v5020, 16
      %v5235 = vrot.slane %v5233, 5
      %v5236 = vshll.u32 %v5020, 16
      %v5238 = vrot.slane %v5236, 6
      %v5239 = vor.u32 %v5235, %v5238
      %v5240 = vsel %vm1323, %v5231, %v5239
      %v5242 = vshrl.u32 %v4611, 16
      %v5244 = vrot.slane %v5242, 5
      %v5245 = vshll.u32 %v4611, 16
      %v5247 = vrot.slane %v5245, 6
      %v5248 = vor.u32 %v5244, %v5247
      %v5249 = vrot.slane %v5248, 4
      %v5251 = vshrl.u32 %v5021, 16
      %v5253 = vrot.slane %v5251, 5
      %v5254 = vshll.u32 %v5021, 16
      %v5256 = vrot.slane %v5254, 6
      %v5257 = vor.u32 %v5253, %v5256
      %v5258 = vsel %vm1323, %v5249, %v5257
      %v5260 = vshrl.u32 %v4612, 16
      %v5262 = vrot.slane %v5260, 5
      %v5263 = vshll.u32 %v4612, 16
      %v5265 = vrot.slane %v5263, 6
      %v5266 = vor.u32 %v5262, %v5265
      %v5267 = vrot.slane %v5266, 4
      %v5269 = vshrl.u32 %v5022, 16
      %v5271 = vrot.slane %v5269, 5
      %v5272 = vshll.u32 %v5022, 16
      %v5274 = vrot.slane %v5272, 6
      %v5275 = vor.u32 %v5271, %v5274
      %v5276 = vsel %vm1323, %v5267, %v5275
      %v5278 = vshrl.u32 %v4613, 16
      %v5280 = vrot.slane %v5278, 5
      %v5281 = vshll.u32 %v4613, 16
      %v5283 = vrot.slane %v5281, 6
      %v5284 = vor.u32 %v5280, %v5283
      %v5285 = vrot.slane %v5284, 4
      %v5287 = vshrl.u32 %v5023, 16
      %v5289 = vrot.slane %v5287, 5
      %v5290 = vshll.u32 %v5023, 16
      %v5292 = vrot.slane %v5290, 6
      %v5293 = vor.u32 %v5289, %v5292
      %v5294 = vsel %vm1323, %v5285, %v5293
      %v5296 = vshrl.u32 %v4614, 16
      %v5298 = vrot.slane %v5296, 5
      %v5299 = vshll.u32 %v4614, 16
      %v5301 = vrot.slane %v5299, 6
      %v5302 = vor.u32 %v5298, %v5301
      %v5303 = vrot.slane %v5302, 4
      %v5305 = vshrl.u32 %v5024, 16
      %v5307 = vrot.slane %v5305, 5
      %v5308 = vshll.u32 %v5024, 16
      %v5310 = vrot.slane %v5308, 6
      %v5311 = vor.u32 %v5307, %v5310
      %v5312 = vsel %vm1323, %v5303, %v5311
      %s5313 = scalar_lea.vmem %s6, 8
      %v5314 = vld [vmem:[%s5313] sm:$0xf]
      %v5315 = vunpack.c.l.b16 %v5042
      %v5316 = vunpack.c.l.b16 %v5060
      %v5317 = vunpack.c.l.b16 %v5078
      %v5318 = vunpack.c.l.b16 %v5096
      %v5319 = vunpack.c.l.b16 %v5114
      %v5320 = vunpack.c.l.b16 %v5132
      %v5321 = vunpack.c.l.b16 %v5150
      %v5322 = vunpack.c.l.b16 %v5168
      %v5323 = vunpack.c.l.b16 %v5186
      %v5324 = vunpack.c.l.b16 %v5204
      %v5325 = vunpack.c.l.b16 %v5222
      %v5326 = vunpack.c.l.b16 %v5240
      %v5327 = vunpack.c.l.b16 %v5258
      %v5328 = vunpack.c.l.b16 %v5276
      %v5329 = vunpack.c.l.b16 %v5294
      %v5330 = vunpack.c.l.b16 %v5312
      %v5331 = vpack.c.b16 %v5316, %v5315
      %v5332 = vpack.c.b16 %v5318, %v5317
      %v5333 = vpack.c.b16 %v5320, %v5319
      %v5334 = vpack.c.b16 %v5322, %v5321
      %v5335 = vpack.c.b16 %v5324, %v5323
      %v5336 = vpack.c.b16 %v5326, %v5325
      %v5337 = vpack.c.b16 %v5328, %v5327
      %v5338 = vpack.c.b16 %v5330, %v5329
      %v5340 = vsel %vm1031, %v5331, 0
      %v5343 = vsel %vm1031, %v5332, 0
      %v5346 = vsel %vm1031, %v5333, 0
      %v5349 = vsel %vm1031, %v5334, 0
      %v5352 = vsel %vm1031, %v5335, 0
      %v5355 = vsel %vm1031, %v5336, 0
      %v5358 = vsel %vm1031, %v5337, 0
      %v5361 = vsel %vm1031, %v5338, 0
      %v5364 = vsel %vm1056, %v5314, 0
      %5366 = vmatprep.subr.bf16.mxu0 0
      %5367 = vmatpush1.bf16.msra.mxu0 %v5364
      %5368 = vmatprep.subr.bf16.mxu0 0
      %5369 = vmatpush1.bf16.msra.mxu0 0
      %5370 = vmatprep.subr.bf16.mxu0 0
      %5371 = vmatpush1.bf16.msra.mxu0 0
      %5372 = vmatprep.subr.bf16.mxu0 0
      %5373 = vmatpush1.bf16.msra.mxu0 0
      %5374 = vmatprep.subr.bf16.mxu0 0
      %5375 = vmatpush1.bf16.msra.mxu0 0
      %5376 = vmatprep.subr.bf16.mxu0 0
      %5377 = vmatpush1.bf16.msra.mxu0 0
      %5378 = vmatprep.subr.bf16.mxu0 0
      %5379 = vmatpush1.bf16.msra.mxu0 0
      %5380 = vmatprep.subr.bf16.mxu0 0
      %5381 = vmatpush1.bf16.msra.mxu0 0
      %5382 = vmatprep.subr.bf16.mxu0 0
      %5383 = vmatpush1.bf16.msra.mxu0 0
      %5384 = vmatprep.subr.bf16.mxu0 0
      %5385 = vmatpush1.bf16.msra.mxu0 0
      %5386 = vmatprep.subr.bf16.mxu0 0
      %5387 = vmatpush1.bf16.msra.mxu0 0
      %5388 = vmatprep.subr.bf16.mxu0 0
      %5389 = vmatpush1.bf16.msra.mxu0 0
      %5390 = vmatprep.subr.bf16.mxu0 0
      %5391 = vmatpush1.bf16.msra.mxu0 0
      %5392 = vmatprep.subr.bf16.mxu0 0
      %5393 = vmatpush1.bf16.msra.mxu0 0
      %5394 = vmatprep.subr.bf16.mxu0 0
      %5395 = vmatpush1.bf16.msra.mxu0 0
      %5396 = vmatprep.subr.bf16.mxu0 0
      %5397 = vmatpush1.bf16.msra.mxu0 0
      %5398 = vmatprep.mubr.bf16.mxu0 0
      %5399 = vmatmul.mubr.bf16.gmra.mrb[0].mxu0 %v5340
      %v5400 = vpop.f32.mrb[0].mxu0
      %v5401 = vadd.f32 0.0, %v5400
      %v5402 = vpop.f32.mrb[0].mxu0
      %v5403 = vpop.f32.mrb[0].mxu0
      %v5404 = vadd.f32 0.0, %v5403
      %v5405 = vpop.f32.mrb[0].mxu0
      %5406 = vmatprep.mubr.bf16.mxu0 0
      %5407 = vmatmul.mubr.bf16.gmra.mrb[0].mxu0 %v5343
      %v5408 = vpop.f32.mrb[0].mxu0
      %v5409 = vadd.f32 0.0, %v5408
      %v5410 = vpop.f32.mrb[0].mxu0
      %v5411 = vpop.f32.mrb[0].mxu0
      %v5412 = vadd.f32 0.0, %v5411
      %v5413 = vpop.f32.mrb[0].mxu0
      %5414 = vmatprep.mubr.bf16.mxu0 0
      %5415 = vmatmul.mubr.bf16.gmra.mrb[0].mxu0 %v5346
      %v5416 = vpop.f32.mrb[0].mxu0
      %v5417 = vadd.f32 0.0, %v5416
      %v5418 = vpop.f32.mrb[0].mxu0
      %v5419 = vpop.f32.mrb[0].mxu0
      %v5420 = vadd.f32 0.0, %v5419
      %v5421 = vpop.f32.mrb[0].mxu0
      %5422 = vmatprep.mubr.bf16.mxu0 0
      %5423 = vmatmul.mubr.bf16.gmra.mrb[0].mxu0 %v5349
      %v5424 = vpop.f32.mrb[0].mxu0
      %v5425 = vadd.f32 0.0, %v5424
      %v5426 = vpop.f32.mrb[0].mxu0
      %v5427 = vpop.f32.mrb[0].mxu0
      %v5428 = vadd.f32 0.0, %v5427
      %v5429 = vpop.f32.mrb[0].mxu0
      %5430 = vmatprep.mubr.bf16.mxu0 0
      %5431 = vmatmul.mubr.bf16.gmra.mrb[0].mxu0 %v5352
      %v5432 = vpop.f32.mrb[0].mxu0
      %v5433 = vadd.f32 0.0, %v5432
      %v5434 = vpop.f32.mrb[0].mxu0
      %v5435 = vpop.f32.mrb[0].mxu0
      %v5436 = vadd.f32 0.0, %v5435
      %v5437 = vpop.f32.mrb[0].mxu0
      %5438 = vmatprep.mubr.bf16.mxu0 0
      %5439 = vmatmul.mubr.bf16.gmra.mrb[0].mxu0 %v5355
      %v5440 = vpop.f32.mrb[0].mxu0
      %v5441 = vadd.f32 0.0, %v5440
      %v5442 = vpop.f32.mrb[0].mxu0
      %v5443 = vpop.f32.mrb[0].mxu0
      %v5444 = vadd.f32 0.0, %v5443
      %v5445 = vpop.f32.mrb[0].mxu0
      %5446 = vmatprep.mubr.bf16.mxu0 0
      %5447 = vmatmul.mubr.bf16.gmra.mrb[0].mxu0 %v5358
      %v5448 = vpop.f32.mrb[0].mxu0
      %v5449 = vadd.f32 0.0, %v5448
      %v5450 = vpop.f32.mrb[0].mxu0
      %v5451 = vpop.f32.mrb[0].mxu0
      %v5452 = vadd.f32 0.0, %v5451
      %v5453 = vpop.f32.mrb[0].mxu0
      %5454 = vmatprep.mubr.bf16.mxu0 0
      %5455 = vmatmul.mubr.bf16.gmra.mrb[0].mxu0 %v5361
      %v5456 = vpop.f32.mrb[0].mxu0
      %v5457 = vadd.f32 0.0, %v5456
      %v5458 = vpop.f32.mrb[0].mxu0
      %v5459 = vpop.f32.mrb[0].mxu0
      %v5460 = vadd.f32 0.0, %v5459
      %v5461 = vpop.f32.mrb[0].mxu0
      %5462 = vdwg.mxu0
      %v5463 = vadd.f32 %v4947, %v5401
      %v5464 = vadd.f32 %v4950, %v5404
      %v5465 = vadd.f32 %v4955, %v5409
      %v5466 = vadd.f32 %v4958, %v5412
      %v5467 = vadd.f32 %v4963, %v5417
      %v5468 = vadd.f32 %v4966, %v5420
      %v5469 = vadd.f32 %v4971, %v5425
      %v5470 = vadd.f32 %v4974, %v5428
      %v5471 = vadd.f32 %v4979, %v5433
      %v5472 = vadd.f32 %v4982, %v5436
      %v5473 = vadd.f32 %v4987, %v5441
      %v5474 = vadd.f32 %v4990, %v5444
      %v5475 = vadd.f32 %v4995, %v5449
      %v5476 = vadd.f32 %v4998, %v5452
      %v5477 = vadd.f32 %v5003, %v5457
      %v5478 = vadd.f32 %v5006, %v5460
      %v5479 = vld [vmem:[%s4309] sm:$0xf]
      %v5480 = vld [vmem:[%s4309 + $0x4] sm:$0x1]
      %v5481 = vld [vmem:[%s4309 + $0x8] sm:$0xf]
      %v5482 = vld [vmem:[%s4309 + $0xc] sm:$0x1]
      %v5483 = vld [vmem:[%s4309 + $0x10] sm:$0xf]
      %v5484 = vld [vmem:[%s4309 + $0x14] sm:$0x1]
      %v5485 = vld [vmem:[%s4309 + $0x18] sm:$0xf]
      %v5486 = vld [vmem:[%s4309 + $0x1c] sm:$0x1]
      %v5487 = vld [vmem:[%s4309 + $0x20] sm:$0xf]
      %v5488 = vld [vmem:[%s4309 + $0x24] sm:$0x1]
      %v5489 = vld [vmem:[%s4309 + $0x28] sm:$0xf]
      %v5490 = vld [vmem:[%s4309 + $0x2c] sm:$0x1]
      %v5491 = vld [vmem:[%s4309 + $0x30] sm:$0xf]
      %v5492 = vld [vmem:[%s4309 + $0x34] sm:$0x1]
      %v5493 = vld [vmem:[%s4309 + $0x38] sm:$0xf]
      %v5494 = vld [vmem:[%s4309 + $0x3c] sm:$0x1]
      %v5495 = vld [vmem:[%s4309 + $0x50] sm:$0xf]
      %v5496 = vld [vmem:[%s4309 + $0x54] sm:$0x1]
      %v5497 = vld [vmem:[%s4309 + $0x58] sm:$0xf]
      %v5498 = vld [vmem:[%s4309 + $0x5c] sm:$0x1]
      %v5499 = vld [vmem:[%s4309 + $0x60] sm:$0xf]
      %v5500 = vld [vmem:[%s4309 + $0x64] sm:$0x1]
      %v5501 = vld [vmem:[%s4309 + $0x68] sm:$0xf]
      %v5502 = vld [vmem:[%s4309 + $0x6c] sm:$0x1]
      %v5503 = vld [vmem:[%s4309 + $0x70] sm:$0xf]
      %v5504 = vld [vmem:[%s4309 + $0x74] sm:$0x1]
      %v5505 = vld [vmem:[%s4309 + $0x78] sm:$0xf]
      %v5506 = vld [vmem:[%s4309 + $0x7c] sm:$0x1]
      %v5507 = vld [vmem:[%s4309 + $0x80] sm:$0xf]
      %v5508 = vld [vmem:[%s4309 + $0x84] sm:$0x1]
      %v5509 = vld [vmem:[%s4309 + $0x88] sm:$0xf]
      %v5510 = vld [vmem:[%s4309 + $0x8c] sm:$0x1]
      %v5512 = vshrl.u32 %v5479, 16
      %v5514 = vrot.slane %v5512, 4
      %v5515 = vshll.u32 %v5479, 16
      %v5517 = vrot.slane %v5515, 5
      %v5518 = vor.u32 %v5514, %v5517
      %v5519 = vrot.slane %v5518, 4
      %v5521 = vshll.u32 %v5480, 16
      %v5523 = vrot.slane %v5521, 5
      %v5524 = vsel %vm664, %v5519, %v5523
      %v5526 = vshrl.u32 %v5481, 16
      %v5528 = vrot.slane %v5526, 4
      %v5529 = vshll.u32 %v5481, 16
      %v5531 = vrot.slane %v5529, 5
      %v5532 = vor.u32 %v5528, %v5531
      %v5533 = vrot.slane %v5532, 4
      %v5535 = vshll.u32 %v5482, 16
      %v5537 = vrot.slane %v5535, 5
      %v5538 = vsel %vm664, %v5533, %v5537
      %v5540 = vshrl.u32 %v5483, 16
      %v5542 = vrot.slane %v5540, 4
      %v5543 = vshll.u32 %v5483, 16
      %v5545 = vrot.slane %v5543, 5
      %v5546 = vor.u32 %v5542, %v5545
      %v5547 = vrot.slane %v5546, 4
      %v5549 = vshll.u32 %v5484, 16
      %v5551 = vrot.slane %v5549, 5
      %v5552 = vsel %vm664, %v5547, %v5551
      %v5554 = vshrl.u32 %v5485, 16
      %v5556 = vrot.slane %v5554, 4
      %v5557 = vshll.u32 %v5485, 16
      %v5559 = vrot.slane %v5557, 5
      %v5560 = vor.u32 %v5556, %v5559
      %v5561 = vrot.slane %v5560, 4
      %v5563 = vshll.u32 %v5486, 16
      %v5565 = vrot.slane %v5563, 5
      %v5566 = vsel %vm664, %v5561, %v5565
      %v5568 = vshrl.u32 %v5487, 16
      %v5570 = vrot.slane %v5568, 4
      %v5571 = vshll.u32 %v5487, 16
      %v5573 = vrot.slane %v5571, 5
      %v5574 = vor.u32 %v5570, %v5573
      %v5575 = vrot.slane %v5574, 4
      %v5577 = vshll.u32 %v5488, 16
      %v5579 = vrot.slane %v5577, 5
      %v5580 = vsel %vm664, %v5575, %v5579
      %v5582 = vshrl.u32 %v5489, 16
      %v5584 = vrot.slane %v5582, 4
      %v5585 = vshll.u32 %v5489, 16
      %v5587 = vrot.slane %v5585, 5
      %v5588 = vor.u32 %v5584, %v5587
      %v5589 = vrot.slane %v5588, 4
      %v5591 = vshll.u32 %v5490, 16
      %v5593 = vrot.slane %v5591, 5
      %v5594 = vsel %vm664, %v5589, %v5593
      %v5596 = vshrl.u32 %v5491, 16
      %v5598 = vrot.slane %v5596, 4
      %v5599 = vshll.u32 %v5491, 16
      %v5601 = vrot.slane %v5599, 5
      %v5602 = vor.u32 %v5598, %v5601
      %v5603 = vrot.slane %v5602, 4
      %v5605 = vshll.u32 %v5492, 16
      %v5607 = vrot.slane %v5605, 5
      %v5608 = vsel %vm664, %v5603, %v5607
      %v5610 = vshrl.u32 %v5493, 16
      %v5612 = vrot.slane %v5610, 4
      %v5613 = vshll.u32 %v5493, 16
      %v5615 = vrot.slane %v5613, 5
      %v5616 = vor.u32 %v5612, %v5615
      %v5617 = vrot.slane %v5616, 4
      %v5619 = vshll.u32 %v5494, 16
      %v5621 = vrot.slane %v5619, 5
      %v5622 = vsel %vm664, %v5617, %v5621
      %v5624 = vshrl.u32 %v5495, 16
      %v5626 = vrot.slane %v5624, 4
      %v5627 = vshll.u32 %v5495, 16
      %v5629 = vrot.slane %v5627, 5
      %v5630 = vor.u32 %v5626, %v5629
      %v5631 = vrot.slane %v5630, 4
      %v5633 = vshll.u32 %v5496, 16
      %v5635 = vrot.slane %v5633, 5
      %v5636 = vsel %vm664, %v5631, %v5635
      %v5638 = vshrl.u32 %v5497, 16
      %v5640 = vrot.slane %v5638, 4
      %v5641 = vshll.u32 %v5497, 16
      %v5643 = vrot.slane %v5641, 5
      %v5644 = vor.u32 %v5640, %v5643
      %v5645 = vrot.slane %v5644, 4
      %v5647 = vshll.u32 %v5498, 16
      %v5649 = vrot.slane %v5647, 5
      %v5650 = vsel %vm664, %v5645, %v5649
      %v5652 = vshrl.u32 %v5499, 16
      %v5654 = vrot.slane %v5652, 4
      %v5655 = vshll.u32 %v5499, 16
      %v5657 = vrot.slane %v5655, 5
      %v5658 = vor.u32 %v5654, %v5657
      %v5659 = vrot.slane %v5658, 4
      %v5661 = vshll.u32 %v5500, 16
      %v5663 = vrot.slane %v5661, 5
      %v5664 = vsel %vm664, %v5659, %v5663
      %v5666 = vshrl.u32 %v5501, 16
      %v5668 = vrot.slane %v5666, 4
      %v5669 = vshll.u32 %v5501, 16
      %v5671 = vrot.slane %v5669, 5
      %v5672 = vor.u32 %v5668, %v5671
      %v5673 = vrot.slane %v5672, 4
      %v5675 = vshll.u32 %v5502, 16
      %v5677 = vrot.slane %v5675, 5
      %v5678 = vsel %vm664, %v5673, %v5677
      %v5680 = vshrl.u32 %v5503, 16
      %v5682 = vrot.slane %v5680, 4
      %v5683 = vshll.u32 %v5503, 16
      %v5685 = vrot.slane %v5683, 5
      %v5686 = vor.u32 %v5682, %v5685
      %v5687 = vrot.slane %v5686, 4
      %v5689 = vshll.u32 %v5504, 16
      %v5691 = vrot.slane %v5689, 5
      %v5692 = vsel %vm664, %v5687, %v5691
      %v5694 = vshrl.u32 %v5505, 16
      %v5696 = vrot.slane %v5694, 4
      %v5697 = vshll.u32 %v5505, 16
      %v5699 = vrot.slane %v5697, 5
      %v5700 = vor.u32 %v5696, %v5699
      %v5701 = vrot.slane %v5700, 4
      %v5703 = vshll.u32 %v5506, 16
      %v5705 = vrot.slane %v5703, 5
      %v5706 = vsel %vm664, %v5701, %v5705
      %v5708 = vshrl.u32 %v5507, 16
      %v5710 = vrot.slane %v5708, 4
      %v5711 = vshll.u32 %v5507, 16
      %v5713 = vrot.slane %v5711, 5
      %v5714 = vor.u32 %v5710, %v5713
      %v5715 = vrot.slane %v5714, 4
      %v5717 = vshll.u32 %v5508, 16
      %v5719 = vrot.slane %v5717, 5
      %v5720 = vsel %vm664, %v5715, %v5719
      %v5722 = vshrl.u32 %v5509, 16
      %v5724 = vrot.slane %v5722, 4
      %v5725 = vshll.u32 %v5509, 16
      %v5727 = vrot.slane %v5725, 5
      %v5728 = vor.u32 %v5724, %v5727
      %v5729 = vrot.slane %v5728, 4
      %v5731 = vshll.u32 %v5510, 16
      %v5733 = vrot.slane %v5731, 5
      %v5734 = vsel %vm664, %v5729, %v5733
      %s5735 = scalar_lea.vmem %s6, 12
      %v5736 = vld [vmem:[%s5735] sm:$0xf]
      %v5737 = vunpack.c.l.b16 %v5524
      %v5738 = vunpack.c.l.b16 %v5538
      %v5739 = vunpack.c.l.b16 %v5552
      %v5740 = vunpack.c.l.b16 %v5566
      %v5741 = vunpack.c.l.b16 %v5580
      %v5742 = vunpack.c.l.b16 %v5594
      %v5743 = vunpack.c.l.b16 %v5608
      %v5744 = vunpack.c.l.b16 %v5622
      %v5745 = vunpack.c.l.b16 %v5636
      %v5746 = vunpack.c.l.b16 %v5650
      %v5747 = vunpack.c.l.b16 %v5664
      %v5748 = vunpack.c.l.b16 %v5678
      %v5749 = vunpack.c.l.b16 %v5692
      %v5750 = vunpack.c.l.b16 %v5706
      %v5751 = vunpack.c.l.b16 %v5720
      %v5752 = vunpack.c.l.b16 %v5734
      %v5753 = vpack.c.b16 %v5738, %v5737
      %v5754 = vpack.c.b16 %v5740, %v5739
      %v5755 = vpack.c.b16 %v5742, %v5741
      %v5756 = vpack.c.b16 %v5744, %v5743
      %v5757 = vpack.c.b16 %v5746, %v5745
      %v5758 = vpack.c.b16 %v5748, %v5747
      %v5759 = vpack.c.b16 %v5750, %v5749
      %v5760 = vpack.c.b16 %v5752, %v5751
      %v5762 = vsel %vm1031, %v5753, 0
      %v5765 = vsel %vm1031, %v5754, 0
      %v5768 = vsel %vm1031, %v5755, 0
      %v5771 = vsel %vm1031, %v5756, 0
      %v5774 = vsel %vm1031, %v5757, 0
      %v5777 = vsel %vm1031, %v5758, 0
      %v5780 = vsel %vm1031, %v5759, 0
      %v5783 = vsel %vm1031, %v5760, 0
      %v5786 = vsel %vm1056, %v5736, 0
      %5788 = vmatprep.subr.bf16.mxu0 0
      %5789 = vmatpush1.bf16.msra.mxu0 %v5786
      %5790 = vmatprep.subr.bf16.mxu0 0
      %5791 = vmatpush1.bf16.msra.mxu0 0
      %5792 = vmatprep.subr.bf16.mxu0 0
      %5793 = vmatpush1.bf16.msra.mxu0 0
      %5794 = vmatprep.subr.bf16.mxu0 0
      %5795 = vmatpush1.bf16.msra.mxu0 0
      %5796 = vmatprep.subr.bf16.mxu0 0
      %5797 = vmatpush1.bf16.msra.mxu0 0
      %5798 = vmatprep.subr.bf16.mxu0 0
      %5799 = vmatpush1.bf16.msra.mxu0 0
      %5800 = vmatprep.subr.bf16.mxu0 0
      %5801 = vmatpush1.bf16.msra.mxu0 0
      %5802 = vmatprep.subr.bf16.mxu0 0
      %5803 = vmatpush1.bf16.msra.mxu0 0
      %5804 = vmatprep.subr.bf16.mxu0 0
      %5805 = vmatpush1.bf16.msra.mxu0 0
      %5806 = vmatprep.subr.bf16.mxu0 0
      %5807 = vmatpush1.bf16.msra.mxu0 0
      %5808 = vmatprep.subr.bf16.mxu0 0
      %5809 = vmatpush1.bf16.msra.mxu0 0
      %5810 = vmatprep.subr.bf16.mxu0 0
      %5811 = vmatpush1.bf16.msra.mxu0 0
      %5812 = vmatprep.subr.bf16.mxu0 0
      %5813 = vmatpush1.bf16.msra.mxu0 0
      %5814 = vmatprep.subr.bf16.mxu0 0
      %5815 = vmatpush1.bf16.msra.mxu0 0
      %5816 = vmatprep.subr.bf16.mxu0 0
      %5817 = vmatpush1.bf16.msra.mxu0 0
      %5818 = vmatprep.subr.bf16.mxu0 0
      %5819 = vmatpush1.bf16.msra.mxu0 0
      %5820 = vmatprep.mubr.bf16.mxu0 0
      %5821 = vmatmul.mubr.bf16.gmra.mrb[0].mxu0 %v5762
      %v5822 = vpop.f32.mrb[0].mxu0
      %v5823 = vadd.f32 0.0, %v5822
      %v5824 = vpop.f32.mrb[0].mxu0
      %v5825 = vpop.f32.mrb[0].mxu0
      %v5826 = vadd.f32 0.0, %v5825
      %v5827 = vpop.f32.mrb[0].mxu0
      %5828 = vmatprep.mubr.bf16.mxu0 0
      %5829 = vmatmul.mubr.bf16.gmra.mrb[0].mxu0 %v5765
      %v5830 = vpop.f32.mrb[0].mxu0
      %v5831 = vadd.f32 0.0, %v5830
      %v5832 = vpop.f32.mrb[0].mxu0
      %v5833 = vpop.f32.mrb[0].mxu0
      %v5834 = vadd.f32 0.0, %v5833
      %v5835 = vpop.f32.mrb[0].mxu0
      %5836 = vmatprep.mubr.bf16.mxu0 0
      %5837 = vmatmul.mubr.bf16.gmra.mrb[0].mxu0 %v5768
      %v5838 = vpop.f32.mrb[0].mxu0
      %v5839 = vadd.f32 0.0, %v5838
      %v5840 = vpop.f32.mrb[0].mxu0
      %v5841 = vpop.f32.mrb[0].mxu0
      %v5842 = vadd.f32 0.0, %v5841
      %v5843 = vpop.f32.mrb[0].mxu0
      %5844 = vmatprep.mubr.bf16.mxu0 0
      %5845 = vmatmul.mubr.bf16.gmra.mrb[0].mxu0 %v5771
      %v5846 = vpop.f32.mrb[0].mxu0
      %v5847 = vadd.f32 0.0, %v5846
      %v5848 = vpop.f32.mrb[0].mxu0
      %v5849 = vpop.f32.mrb[0].mxu0
      %v5850 = vadd.f32 0.0, %v5849
      %v5851 = vpop.f32.mrb[0].mxu0
      %5852 = vmatprep.mubr.bf16.mxu0 0
      %5853 = vmatmul.mubr.bf16.gmra.mrb[0].mxu0 %v5774
      %v5854 = vpop.f32.mrb[0].mxu0
      %v5855 = vadd.f32 0.0, %v5854
      %v5856 = vpop.f32.mrb[0].mxu0
      %v5857 = vpop.f32.mrb[0].mxu0
      %v5858 = vadd.f32 0.0, %v5857
      %v5859 = vpop.f32.mrb[0].mxu0
      %5860 = vmatprep.mubr.bf16.mxu0 0
      %5861 = vmatmul.mubr.bf16.gmra.mrb[0].mxu0 %v5777
      %v5862 = vpop.f32.mrb[0].mxu0
      %v5863 = vadd.f32 0.0, %v5862
      %v5864 = vpop.f32.mrb[0].mxu0
      %v5865 = vpop.f32.mrb[0].mxu0
      %v5866 = vadd.f32 0.0, %v5865
      %v5867 = vpop.f32.mrb[0].mxu0
      %5868 = vmatprep.mubr.bf16.mxu0 0
      %5869 = vmatmul.mubr.bf16.gmra.mrb[0].mxu0 %v5780
      %v5870 = vpop.f32.mrb[0].mxu0
      %v5871 = vadd.f32 0.0, %v5870
      %v5872 = vpop.f32.mrb[0].mxu0
      %v5873 = vpop.f32.mrb[0].mxu0
      %v5874 = vadd.f32 0.0, %v5873
      %v5875 = vpop.f32.mrb[0].mxu0
      %5876 = vmatprep.mubr.bf16.mxu0 0
      %5877 = vmatmul.mubr.bf16.gmra.mrb[0].mxu0 %v5783
      %v5878 = vpop.f32.mrb[0].mxu0
      %v5879 = vadd.f32 0.0, %v5878
      %v5880 = vpop.f32.mrb[0].mxu0
      %v5881 = vpop.f32.mrb[0].mxu0
      %v5882 = vadd.f32 0.0, %v5881
      %v5883 = vpop.f32.mrb[0].mxu0
      %5884 = vdwg.mxu0
      %v5885 = vadd.f32 %v5463, %v5823
      %v5886 = vadd.f32 %v5464, %v5826
      %v5887 = vadd.f32 %v5465, %v5831
      %v5888 = vadd.f32 %v5466, %v5834
      %v5889 = vadd.f32 %v5467, %v5839
      %v5890 = vadd.f32 %v5468, %v5842
      %v5891 = vadd.f32 %v5469, %v5847
      %v5892 = vadd.f32 %v5470, %v5850
      %v5893 = vadd.f32 %v5471, %v5855
      %v5894 = vadd.f32 %v5472, %v5858
      %v5895 = vadd.f32 %v5473, %v5863
      %v5896 = vadd.f32 %v5474, %v5866
      %v5897 = vadd.f32 %v5475, %v5871
      %v5898 = vadd.f32 %v5476, %v5874
      %v5899 = vadd.f32 %v5477, %v5879
      %v5900 = vadd.f32 %v5478, %v5882
      %v5901 = vld [vmem:[%s4309] sm:$0xe]
      %v5902 = vld [vmem:[%s4309 + $0x8] sm:$0xe]
      %v5903 = vld [vmem:[%s4309 + $0x10] sm:$0xe]
      %v5904 = vld [vmem:[%s4309 + $0x18] sm:$0xe]
      %v5905 = vld [vmem:[%s4309 + $0x20] sm:$0xe]
      %v5906 = vld [vmem:[%s4309 + $0x28] sm:$0xe]
      %v5907 = vld [vmem:[%s4309 + $0x30] sm:$0xe]
      %v5908 = vld [vmem:[%s4309 + $0x38] sm:$0xe]
      %v5909 = vld [vmem:[%s4309 + $0x50] sm:$0xe]
      %v5910 = vld [vmem:[%s4309 + $0x58] sm:$0xe]
      %v5911 = vld [vmem:[%s4309 + $0x60] sm:$0xe]
      %v5912 = vld [vmem:[%s4309 + $0x68] sm:$0xe]
      %v5913 = vld [vmem:[%s4309 + $0x70] sm:$0xe]
      %v5914 = vld [vmem:[%s4309 + $0x78] sm:$0xe]
      %v5915 = vld [vmem:[%s4309 + $0x80] sm:$0xe]
      %v5916 = vld [vmem:[%s4309 + $0x88] sm:$0xe]
      %v5949 = vrot.slane %v5901, 5
      %v5950 = vrot.slane %v5949, 4
      %v5951 = vrot.slane %v5480, 5
      %v5952 = vsel %vm940, %v5950, %v5951
      %v5953 = vrot.slane %v5902, 5
      %v5954 = vrot.slane %v5953, 4
      %v5955 = vrot.slane %v5482, 5
      %v5956 = vsel %vm940, %v5954, %v5955
      %v5957 = vrot.slane %v5903, 5
      %v5958 = vrot.slane %v5957, 4
      %v5959 = vrot.slane %v5484, 5
      %v5960 = vsel %vm940, %v5958, %v5959
      %v5961 = vrot.slane %v5904, 5
      %v5962 = vrot.slane %v5961, 4
      %v5963 = vrot.slane %v5486, 5
      %v5964 = vsel %vm940, %v5962, %v5963
      %v5965 = vrot.slane %v5905, 5
      %v5966 = vrot.slane %v5965, 4
      %v5967 = vrot.slane %v5488, 5
      %v5968 = vsel %vm940, %v5966, %v5967
      %v5969 = vrot.slane %v5906, 5
      %v5970 = vrot.slane %v5969, 4
      %v5971 = vrot.slane %v5490, 5
      %v5972 = vsel %vm940, %v5970, %v5971
      %v5973 = vrot.slane %v5907, 5
      %v5974 = vrot.slane %v5973, 4
      %v5975 = vrot.slane %v5492, 5
      %v5976 = vsel %vm940, %v5974, %v5975
      %v5977 = vrot.slane %v5908, 5
      %v5978 = vrot.slane %v5977, 4
      %v5979 = vrot.slane %v5494, 5
      %v5980 = vsel %vm940, %v5978, %v5979
      %v5981 = vrot.slane %v5909, 5
      %v5982 = vrot.slane %v5981, 4
      %v5983 = vrot.slane %v5496, 5
      %v5984 = vsel %vm940, %v5982, %v5983
      %v5985 = vrot.slane %v5910, 5
      %v5986 = vrot.slane %v5985, 4
      %v5987 = vrot.slane %v5498, 5
      %v5988 = vsel %vm940, %v5986, %v5987
      %v5989 = vrot.slane %v5911, 5
      %v5990 = vrot.slane %v5989, 4
      %v5991 = vrot.slane %v5500, 5
      %v5992 = vsel %vm940, %v5990, %v5991
      %v5993 = vrot.slane %v5912, 5
      %v5994 = vrot.slane %v5993, 4
      %v5995 = vrot.slane %v5502, 5
      %v5996 = vsel %vm940, %v5994, %v5995
      %v5997 = vrot.slane %v5913, 5
      %v5998 = vrot.slane %v5997, 4
      %v5999 = vrot.slane %v5504, 5
      %v6000 = vsel %vm940, %v5998, %v5999
      %v6001 = vrot.slane %v5914, 5
      %v6002 = vrot.slane %v6001, 4
      %v6003 = vrot.slane %v5506, 5
      %v6004 = vsel %vm940, %v6002, %v6003
      %v6005 = vrot.slane %v5915, 5
      %v6006 = vrot.slane %v6005, 4
      %v6007 = vrot.slane %v5508, 5
      %v6008 = vsel %vm940, %v6006, %v6007
      %v6009 = vrot.slane %v5916, 5
      %v6010 = vrot.slane %v6009, 4
      %v6011 = vrot.slane %v5510, 5
      %v6012 = vsel %vm940, %v6010, %v6011
      %s6013 = scalar_lea.vmem %s6, 16
      %v6014 = vld [vmem:[%s6013] sm:$0xf]
      %v6015 = vunpack.c.l.b16 %v5952
      %v6016 = vunpack.c.l.b16 %v5956
      %v6017 = vunpack.c.l.b16 %v5960
      %v6018 = vunpack.c.l.b16 %v5964
      %v6019 = vunpack.c.l.b16 %v5968
      %v6020 = vunpack.c.l.b16 %v5972
      %v6021 = vunpack.c.l.b16 %v5976
      %v6022 = vunpack.c.l.b16 %v5980
      %v6023 = vunpack.c.l.b16 %v5984
      %v6024 = vunpack.c.l.b16 %v5988
      %v6025 = vunpack.c.l.b16 %v5992
      %v6026 = vunpack.c.l.b16 %v5996
      %v6027 = vunpack.c.l.b16 %v6000
      %v6028 = vunpack.c.l.b16 %v6004
      %v6029 = vunpack.c.l.b16 %v6008
      %v6030 = vunpack.c.l.b16 %v6012
      %v6031 = vpack.c.b16 %v6016, %v6015
      %v6032 = vpack.c.b16 %v6018, %v6017
      %v6033 = vpack.c.b16 %v6020, %v6019
      %v6034 = vpack.c.b16 %v6022, %v6021
      %v6035 = vpack.c.b16 %v6024, %v6023
      %v6036 = vpack.c.b16 %v6026, %v6025
      %v6037 = vpack.c.b16 %v6028, %v6027
      %v6038 = vpack.c.b16 %v6030, %v6029
      %v6040 = vsel %vm1031, %v6031, 0
      %v6043 = vsel %vm1031, %v6032, 0
      %v6046 = vsel %vm1031, %v6033, 0
      %v6049 = vsel %vm1031, %v6034, 0
      %v6052 = vsel %vm1031, %v6035, 0
      %v6055 = vsel %vm1031, %v6036, 0
      %v6058 = vsel %vm1031, %v6037, 0
      %v6061 = vsel %vm1031, %v6038, 0
      %v6064 = vsel %vm1056, %v6014, 0
      %6066 = vmatprep.subr.bf16.mxu0 0
      %6067 = vmatpush1.bf16.msra.mxu0 %v6064
      %6068 = vmatprep.subr.bf16.mxu0 0
      %6069 = vmatpush1.bf16.msra.mxu0 0
      %6070 = vmatprep.subr.bf16.mxu0 0
      %6071 = vmatpush1.bf16.msra.mxu0 0
      %6072 = vmatprep.subr.bf16.mxu0 0
      %6073 = vmatpush1.bf16.msra.mxu0 0
      %6074 = vmatprep.subr.bf16.mxu0 0
      %6075 = vmatpush1.bf16.msra.mxu0 0
      %6076 = vmatprep.subr.bf16.mxu0 0
      %6077 = vmatpush1.bf16.msra.mxu0 0
      %6078 = vmatprep.subr.bf16.mxu0 0
      %6079 = vmatpush1.bf16.msra.mxu0 0
      %6080 = vmatprep.subr.bf16.mxu0 0
      %6081 = vmatpush1.bf16.msra.mxu0 0
      %6082 = vmatprep.subr.bf16.mxu0 0
      %6083 = vmatpush1.bf16.msra.mxu0 0
      %6084 = vmatprep.subr.bf16.mxu0 0
      %6085 = vmatpush1.bf16.msra.mxu0 0
      %6086 = vmatprep.subr.bf16.mxu0 0
      %6087 = vmatpush1.bf16.msra.mxu0 0
      %6088 = vmatprep.subr.bf16.mxu0 0
      %6089 = vmatpush1.bf16.msra.mxu0 0
      %6090 = vmatprep.subr.bf16.mxu0 0
      %6091 = vmatpush1.bf16.msra.mxu0 0
      %6092 = vmatprep.subr.bf16.mxu0 0
      %6093 = vmatpush1.bf16.msra.mxu0 0
      %6094 = vmatprep.subr.bf16.mxu0 0
      %6095 = vmatpush1.bf16.msra.mxu0 0
      %6096 = vmatprep.subr.bf16.mxu0 0
      %6097 = vmatpush1.bf16.msra.mxu0 0
      %6098 = vmatprep.mubr.bf16.mxu0 0
      %6099 = vmatmul.mubr.bf16.gmra.mrb[0].mxu0 %v6040
      %v6100 = vpop.f32.mrb[0].mxu0
      %v6101 = vadd.f32 0.0, %v6100
      %v6102 = vpop.f32.mrb[0].mxu0
      %v6103 = vpop.f32.mrb[0].mxu0
      %v6104 = vadd.f32 0.0, %v6103
      %v6105 = vpop.f32.mrb[0].mxu0
      %6106 = vmatprep.mubr.bf16.mxu0 0
      %6107 = vmatmul.mubr.bf16.gmra.mrb[0].mxu0 %v6043
      %v6108 = vpop.f32.mrb[0].mxu0
      %v6109 = vadd.f32 0.0, %v6108
      %v6110 = vpop.f32.mrb[0].mxu0
      %v6111 = vpop.f32.mrb[0].mxu0
      %v6112 = vadd.f32 0.0, %v6111
      %v6113 = vpop.f32.mrb[0].mxu0
      %6114 = vmatprep.mubr.bf16.mxu0 0
      %6115 = vmatmul.mubr.bf16.gmra.mrb[0].mxu0 %v6046
      %v6116 = vpop.f32.mrb[0].mxu0
      %v6117 = vadd.f32 0.0, %v6116
      %v6118 = vpop.f32.mrb[0].mxu0
      %v6119 = vpop.f32.mrb[0].mxu0
      %v6120 = vadd.f32 0.0, %v6119
      %v6121 = vpop.f32.mrb[0].mxu0
      %6122 = vmatprep.mubr.bf16.mxu0 0
      %6123 = vmatmul.mubr.bf16.gmra.mrb[0].mxu0 %v6049
      %v6124 = vpop.f32.mrb[0].mxu0
      %v6125 = vadd.f32 0.0, %v6124
      %v6126 = vpop.f32.mrb[0].mxu0
      %v6127 = vpop.f32.mrb[0].mxu0
      %v6128 = vadd.f32 0.0, %v6127
      %v6129 = vpop.f32.mrb[0].mxu0
      %6130 = vmatprep.mubr.bf16.mxu0 0
      %6131 = vmatmul.mubr.bf16.gmra.mrb[0].mxu0 %v6052
      %v6132 = vpop.f32.mrb[0].mxu0
      %v6133 = vadd.f32 0.0, %v6132
      %v6134 = vpop.f32.mrb[0].mxu0
      %v6135 = vpop.f32.mrb[0].mxu0
      %v6136 = vadd.f32 0.0, %v6135
      %v6137 = vpop.f32.mrb[0].mxu0
      %6138 = vmatprep.mubr.bf16.mxu0 0
      %6139 = vmatmul.mubr.bf16.gmra.mrb[0].mxu0 %v6055
      %v6140 = vpop.f32.mrb[0].mxu0
      %v6141 = vadd.f32 0.0, %v6140
      %v6142 = vpop.f32.mrb[0].mxu0
      %v6143 = vpop.f32.mrb[0].mxu0
      %v6144 = vadd.f32 0.0, %v6143
      %v6145 = vpop.f32.mrb[0].mxu0
      %6146 = vmatprep.mubr.bf16.mxu0 0
      %6147 = vmatmul.mubr.bf16.gmra.mrb[0].mxu0 %v6058
      %v6148 = vpop.f32.mrb[0].mxu0
      %v6149 = vadd.f32 0.0, %v6148
      %v6150 = vpop.f32.mrb[0].mxu0
      %v6151 = vpop.f32.mrb[0].mxu0
      %v6152 = vadd.f32 0.0, %v6151
      %v6153 = vpop.f32.mrb[0].mxu0
      %6154 = vmatprep.mubr.bf16.mxu0 0
      %6155 = vmatmul.mubr.bf16.gmra.mrb[0].mxu0 %v6061
      %v6156 = vpop.f32.mrb[0].mxu0
      %v6157 = vadd.f32 0.0, %v6156
      %v6158 = vpop.f32.mrb[0].mxu0
      %v6159 = vpop.f32.mrb[0].mxu0
      %v6160 = vadd.f32 0.0, %v6159
      %v6161 = vpop.f32.mrb[0].mxu0
      %6162 = vdwg.mxu0
      %v6163 = vadd.f32 %v5885, %v6101
      %v6164 = vadd.f32 %v5886, %v6104
      %v6165 = vadd.f32 %v5887, %v6109
      %v6166 = vadd.f32 %v5888, %v6112
      %v6167 = vadd.f32 %v5889, %v6117
      %v6168 = vadd.f32 %v5890, %v6120
      %v6169 = vadd.f32 %v5891, %v6125
      %v6170 = vadd.f32 %v5892, %v6128
      %v6171 = vadd.f32 %v5893, %v6133
      %v6172 = vadd.f32 %v5894, %v6136
      %v6173 = vadd.f32 %v5895, %v6141
      %v6174 = vadd.f32 %v5896, %v6144
      %v6175 = vadd.f32 %v5897, %v6149
      %v6176 = vadd.f32 %v5898, %v6152
      %v6177 = vadd.f32 %v5899, %v6157
      %v6178 = vadd.f32 %v5900, %v6160
      %v6179 = vld [vmem:[%s4309 + $0x4] sm:$0x3]
      %v6180 = vld [vmem:[%s4309 + $0xc] sm:$0x3]
      %v6181 = vld [vmem:[%s4309 + $0x14] sm:$0x3]
      %v6182 = vld [vmem:[%s4309 + $0x1c] sm:$0x3]
      %v6183 = vld [vmem:[%s4309 + $0x24] sm:$0x3]
      %v6184 = vld [vmem:[%s4309 + $0x2c] sm:$0x3]
      %v6185 = vld [vmem:[%s4309 + $0x34] sm:$0x3]
      %v6186 = vld [vmem:[%s4309 + $0x3c] sm:$0x3]
      %v6187 = vld [vmem:[%s4309 + $0x54] sm:$0x3]
      %v6188 = vld [vmem:[%s4309 + $0x5c] sm:$0x3]
      %v6189 = vld [vmem:[%s4309 + $0x64] sm:$0x3]
      %v6190 = vld [vmem:[%s4309 + $0x6c] sm:$0x3]
      %v6191 = vld [vmem:[%s4309 + $0x74] sm:$0x3]
      %v6192 = vld [vmem:[%s4309 + $0x7c] sm:$0x3]
      %v6193 = vld [vmem:[%s4309 + $0x84] sm:$0x3]
      %v6194 = vld [vmem:[%s4309 + $0x8c] sm:$0x3]
      %v6196 = vshrl.u32 %v5901, 16
      %v6198 = vrot.slane %v6196, 5
      %v6199 = vshll.u32 %v5901, 16
      %v6201 = vrot.slane %v6199, 6
      %v6202 = vor.u32 %v6198, %v6201
      %v6203 = vrot.slane %v6202, 4
      %v6205 = vshrl.u32 %v6179, 16
      %v6207 = vrot.slane %v6205, 5
      %v6208 = vshll.u32 %v6179, 16
      %v6210 = vrot.slane %v6208, 6
      %v6211 = vor.u32 %v6207, %v6210
      %v6212 = vsel %vm1323, %v6203, %v6211
      %v6214 = vshrl.u32 %v5902, 16
      %v6216 = vrot.slane %v6214, 5
      %v6217 = vshll.u32 %v5902, 16
      %v6219 = vrot.slane %v6217, 6
      %v6220 = vor.u32 %v6216, %v6219
      %v6221 = vrot.slane %v6220, 4
      %v6223 = vshrl.u32 %v6180, 16
      %v6225 = vrot.slane %v6223, 5
      %v6226 = vshll.u32 %v6180, 16
      %v6228 = vrot.slane %v6226, 6
      %v6229 = vor.u32 %v6225, %v6228
      %v6230 = vsel %vm1323, %v6221, %v6229
      %v6232 = vshrl.u32 %v5903, 16
      %v6234 = vrot.slane %v6232, 5
      %v6235 = vshll.u32 %v5903, 16
      %v6237 = vrot.slane %v6235, 6
      %v6238 = vor.u32 %v6234, %v6237
      %v6239 = vrot.slane %v6238, 4
      %v6241 = vshrl.u32 %v6181, 16
      %v6243 = vrot.slane %v6241, 5
      %v6244 = vshll.u32 %v6181, 16
      %v6246 = vrot.slane %v6244, 6
      %v6247 = vor.u32 %v6243, %v6246
      %v6248 = vsel %vm1323, %v6239, %v6247
      %v6250 = vshrl.u32 %v5904, 16
      %v6252 = vrot.slane %v6250, 5
      %v6253 = vshll.u32 %v5904, 16
      %v6255 = vrot.slane %v6253, 6
      %v6256 = vor.u32 %v6252, %v6255
      %v6257 = vrot.slane %v6256, 4
      %v6259 = vshrl.u32 %v6182, 16
      %v6261 = vrot.slane %v6259, 5
      %v6262 = vshll.u32 %v6182, 16
      %v6264 = vrot.slane %v6262, 6
      %v6265 = vor.u32 %v6261, %v6264
      %v6266 = vsel %vm1323, %v6257, %v6265
      %v6268 = vshrl.u32 %v5905, 16
      %v6270 = vrot.slane %v6268, 5
      %v6271 = vshll.u32 %v5905, 16
      %v6273 = vrot.slane %v6271, 6
      %v6274 = vor.u32 %v6270, %v6273
      %v6275 = vrot.slane %v6274, 4
      %v6277 = vshrl.u32 %v6183, 16
      %v6279 = vrot.slane %v6277, 5
      %v6280 = vshll.u32 %v6183, 16
      %v6282 = vrot.slane %v6280, 6
      %v6283 = vor.u32 %v6279, %v6282
      %v6284 = vsel %vm1323, %v6275, %v6283
      %v6286 = vshrl.u32 %v5906, 16
      %v6288 = vrot.slane %v6286, 5
      %v6289 = vshll.u32 %v5906, 16
      %v6291 = vrot.slane %v6289, 6
      %v6292 = vor.u32 %v6288, %v6291
      %v6293 = vrot.slane %v6292, 4
      %v6295 = vshrl.u32 %v6184, 16
      %v6297 = vrot.slane %v6295, 5
      %v6298 = vshll.u32 %v6184, 16
      %v6300 = vrot.slane %v6298, 6
      %v6301 = vor.u32 %v6297, %v6300
      %v6302 = vsel %vm1323, %v6293, %v6301
      %v6304 = vshrl.u32 %v5907, 16
      %v6306 = vrot.slane %v6304, 5
      %v6307 = vshll.u32 %v5907, 16
      %v6309 = vrot.slane %v6307, 6
      %v6310 = vor.u32 %v6306, %v6309
      %v6311 = vrot.slane %v6310, 4
      %v6313 = vshrl.u32 %v6185, 16
      %v6315 = vrot.slane %v6313, 5
      %v6316 = vshll.u32 %v6185, 16
      %v6318 = vrot.slane %v6316, 6
      %v6319 = vor.u32 %v6315, %v6318
      %v6320 = vsel %vm1323, %v6311, %v6319
      %v6322 = vshrl.u32 %v5908, 16
      %v6324 = vrot.slane %v6322, 5
      %v6325 = vshll.u32 %v5908, 16
      %v6327 = vrot.slane %v6325, 6
      %v6328 = vor.u32 %v6324, %v6327
      %v6329 = vrot.slane %v6328, 4
      %v6331 = vshrl.u32 %v6186, 16
      %v6333 = vrot.slane %v6331, 5
      %v6334 = vshll.u32 %v6186, 16
      %v6336 = vrot.slane %v6334, 6
      %v6337 = vor.u32 %v6333, %v6336
      %v6338 = vsel %vm1323, %v6329, %v6337
      %v6340 = vshrl.u32 %v5909, 16
      %v6342 = vrot.slane %v6340, 5
      %v6343 = vshll.u32 %v5909, 16
      %v6345 = vrot.slane %v6343, 6
      %v6346 = vor.u32 %v6342, %v6345
      %v6347 = vrot.slane %v6346, 4
      %v6349 = vshrl.u32 %v6187, 16
      %v6351 = vrot.slane %v6349, 5
      %v6352 = vshll.u32 %v6187, 16
      %v6354 = vrot.slane %v6352, 6
      %v6355 = vor.u32 %v6351, %v6354
      %v6356 = vsel %vm1323, %v6347, %v6355
      %v6358 = vshrl.u32 %v5910, 16
      %v6360 = vrot.slane %v6358, 5
      %v6361 = vshll.u32 %v5910, 16
      %v6363 = vrot.slane %v6361, 6
      %v6364 = vor.u32 %v6360, %v6363
      %v6365 = vrot.slane %v6364, 4
      %v6367 = vshrl.u32 %v6188, 16
      %v6369 = vrot.slane %v6367, 5
      %v6370 = vshll.u32 %v6188, 16
      %v6372 = vrot.slane %v6370, 6
      %v6373 = vor.u32 %v6369, %v6372
      %v6374 = vsel %vm1323, %v6365, %v6373
      %v6376 = vshrl.u32 %v5911, 16
      %v6378 = vrot.slane %v6376, 5
      %v6379 = vshll.u32 %v5911, 16
      %v6381 = vrot.slane %v6379, 6
      %v6382 = vor.u32 %v6378, %v6381
      %v6383 = vrot.slane %v6382, 4
      %v6385 = vshrl.u32 %v6189, 16
      %v6387 = vrot.slane %v6385, 5
      %v6388 = vshll.u32 %v6189, 16
      %v6390 = vrot.slane %v6388, 6
      %v6391 = vor.u32 %v6387, %v6390
      %v6392 = vsel %vm1323, %v6383, %v6391
      %v6394 = vshrl.u32 %v5912, 16
      %v6396 = vrot.slane %v6394, 5
      %v6397 = vshll.u32 %v5912, 16
      %v6399 = vrot.slane %v6397, 6
      %v6400 = vor.u32 %v6396, %v6399
      %v6401 = vrot.slane %v6400, 4
      %v6403 = vshrl.u32 %v6190, 16
      %v6405 = vrot.slane %v6403, 5
      %v6406 = vshll.u32 %v6190, 16
      %v6408 = vrot.slane %v6406, 6
      %v6409 = vor.u32 %v6405, %v6408
      %v6410 = vsel %vm1323, %v6401, %v6409
      %v6412 = vshrl.u32 %v5913, 16
      %v6414 = vrot.slane %v6412, 5
      %v6415 = vshll.u32 %v5913, 16
      %v6417 = vrot.slane %v6415, 6
      %v6418 = vor.u32 %v6414, %v6417
      %v6419 = vrot.slane %v6418, 4
      %v6421 = vshrl.u32 %v6191, 16
      %v6423 = vrot.slane %v6421, 5
      %v6424 = vshll.u32 %v6191, 16
      %v6426 = vrot.slane %v6424, 6
      %v6427 = vor.u32 %v6423, %v6426
      %v6428 = vsel %vm1323, %v6419, %v6427
      %v6430 = vshrl.u32 %v5914, 16
      %v6432 = vrot.slane %v6430, 5
      %v6433 = vshll.u32 %v5914, 16
      %v6435 = vrot.slane %v6433, 6
      %v6436 = vor.u32 %v6432, %v6435
      %v6437 = vrot.slane %v6436, 4
      %v6439 = vshrl.u32 %v6192, 16
      %v6441 = vrot.slane %v6439, 5
      %v6442 = vshll.u32 %v6192, 16
      %v6444 = vrot.slane %v6442, 6
      %v6445 = vor.u32 %v6441, %v6444
      %v6446 = vsel %vm1323, %v6437, %v6445
      %v6448 = vshrl.u32 %v5915, 16
      %v6450 = vrot.slane %v6448, 5
      %v6451 = vshll.u32 %v5915, 16
      %v6453 = vrot.slane %v6451, 6
      %v6454 = vor.u32 %v6450, %v6453
      %v6455 = vrot.slane %v6454, 4
      %v6457 = vshrl.u32 %v6193, 16
      %v6459 = vrot.slane %v6457, 5
      %v6460 = vshll.u32 %v6193, 16
      %v6462 = vrot.slane %v6460, 6
      %v6463 = vor.u32 %v6459, %v6462
      %v6464 = vsel %vm1323, %v6455, %v6463
      %v6466 = vshrl.u32 %v5916, 16
      %v6468 = vrot.slane %v6466, 5
      %v6469 = vshll.u32 %v5916, 16
      %v6471 = vrot.slane %v6469, 6
      %v6472 = vor.u32 %v6468, %v6471
      %v6473 = vrot.slane %v6472, 4
      %v6475 = vshrl.u32 %v6194, 16
      %v6477 = vrot.slane %v6475, 5
      %v6478 = vshll.u32 %v6194, 16
      %v6480 = vrot.slane %v6478, 6
      %v6481 = vor.u32 %v6477, %v6480
      %v6482 = vsel %vm1323, %v6473, %v6481
      %s6483 = scalar_lea.vmem %s6, 20
      %v6484 = vld [vmem:[%s6483] sm:$0xf]
      %v6485 = vunpack.c.l.b16 %v6212
      %v6486 = vunpack.c.l.b16 %v6230
      %v6487 = vunpack.c.l.b16 %v6248
      %v6488 = vunpack.c.l.b16 %v6266
      %v6489 = vunpack.c.l.b16 %v6284
      %v6490 = vunpack.c.l.b16 %v6302
      %v6491 = vunpack.c.l.b16 %v6320
      %v6492 = vunpack.c.l.b16 %v6338
      %v6493 = vunpack.c.l.b16 %v6356
      %v6494 = vunpack.c.l.b16 %v6374
      %v6495 = vunpack.c.l.b16 %v6392
      %v6496 = vunpack.c.l.b16 %v6410
      %v6497 = vunpack.c.l.b16 %v6428
      %v6498 = vunpack.c.l.b16 %v6446
      %v6499 = vunpack.c.l.b16 %v6464
      %v6500 = vunpack.c.l.b16 %v6482
      %v6501 = vpack.c.b16 %v6486, %v6485
      %v6502 = vpack.c.b16 %v6488, %v6487
      %v6503 = vpack.c.b16 %v6490, %v6489
      %v6504 = vpack.c.b16 %v6492, %v6491
      %v6505 = vpack.c.b16 %v6494, %v6493
      %v6506 = vpack.c.b16 %v6496, %v6495
      %v6507 = vpack.c.b16 %v6498, %v6497
      %v6508 = vpack.c.b16 %v6500, %v6499
      %v6510 = vsel %vm1031, %v6501, 0
      %v6513 = vsel %vm1031, %v6502, 0
      %v6516 = vsel %vm1031, %v6503, 0
      %v6519 = vsel %vm1031, %v6504, 0
      %v6522 = vsel %vm1031, %v6505, 0
      %v6525 = vsel %vm1031, %v6506, 0
      %v6528 = vsel %vm1031, %v6507, 0
      %v6531 = vsel %vm1031, %v6508, 0
      %v6534 = vsel %vm1056, %v6484, 0
      %6536 = vmatprep.subr.bf16.mxu0 0
      %6537 = vmatpush1.bf16.msra.mxu0 %v6534
      %6538 = vmatprep.subr.bf16.mxu0 0
      %6539 = vmatpush1.bf16.msra.mxu0 0
      %6540 = vmatprep.subr.bf16.mxu0 0
      %6541 = vmatpush1.bf16.msra.mxu0 0
      %6542 = vmatprep.subr.bf16.mxu0 0
      %6543 = vmatpush1.bf16.msra.mxu0 0
      %6544 = vmatprep.subr.bf16.mxu0 0
      %6545 = vmatpush1.bf16.msra.mxu0 0
      %6546 = vmatprep.subr.bf16.mxu0 0
      %6547 = vmatpush1.bf16.msra.mxu0 0
      %6548 = vmatprep.subr.bf16.mxu0 0
      %6549 = vmatpush1.bf16.msra.mxu0 0
      %6550 = vmatprep.subr.bf16.mxu0 0
      %6551 = vmatpush1.bf16.msra.mxu0 0
      %6552 = vmatprep.subr.bf16.mxu0 0
      %6553 = vmatpush1.bf16.msra.mxu0 0
      %6554 = vmatprep.subr.bf16.mxu0 0
      %6555 = vmatpush1.bf16.msra.mxu0 0
      %6556 = vmatprep.subr.bf16.mxu0 0
      %6557 = vmatpush1.bf16.msra.mxu0 0
      %6558 = vmatprep.subr.bf16.mxu0 0
      %6559 = vmatpush1.bf16.msra.mxu0 0
      %6560 = vmatprep.subr.bf16.mxu0 0
      %6561 = vmatpush1.bf16.msra.mxu0 0
      %6562 = vmatprep.subr.bf16.mxu0 0
      %6563 = vmatpush1.bf16.msra.mxu0 0
      %6564 = vmatprep.subr.bf16.mxu0 0
      %6565 = vmatpush1.bf16.msra.mxu0 0
      %6566 = vmatprep.subr.bf16.mxu0 0
      %6567 = vmatpush1.bf16.msra.mxu0 0
      %6568 = vmatprep.mubr.bf16.mxu0 0
      %6569 = vmatmul.mubr.bf16.gmra.mrb[0].mxu0 %v6510
      %v6570 = vpop.f32.mrb[0].mxu0
      %v6571 = vadd.f32 0.0, %v6570
      %v6572 = vpop.f32.mrb[0].mxu0
      %v6573 = vpop.f32.mrb[0].mxu0
      %v6574 = vadd.f32 0.0, %v6573
      %v6575 = vpop.f32.mrb[0].mxu0
      %6576 = vmatprep.mubr.bf16.mxu0 0
      %6577 = vmatmul.mubr.bf16.gmra.mrb[0].mxu0 %v6513
      %v6578 = vpop.f32.mrb[0].mxu0
      %v6579 = vadd.f32 0.0, %v6578
      %v6580 = vpop.f32.mrb[0].mxu0
      %v6581 = vpop.f32.mrb[0].mxu0
      %v6582 = vadd.f32 0.0, %v6581
      %v6583 = vpop.f32.mrb[0].mxu0
      %6584 = vmatprep.mubr.bf16.mxu0 0
      %6585 = vmatmul.mubr.bf16.gmra.mrb[0].mxu0 %v6516
      %v6586 = vpop.f32.mrb[0].mxu0
      %v6587 = vadd.f32 0.0, %v6586
      %v6588 = vpop.f32.mrb[0].mxu0
      %v6589 = vpop.f32.mrb[0].mxu0
      %v6590 = vadd.f32 0.0, %v6589
      %v6591 = vpop.f32.mrb[0].mxu0
      %6592 = vmatprep.mubr.bf16.mxu0 0
      %6593 = vmatmul.mubr.bf16.gmra.mrb[0].mxu0 %v6519
      %v6594 = vpop.f32.mrb[0].mxu0
      %v6595 = vadd.f32 0.0, %v6594
      %v6596 = vpop.f32.mrb[0].mxu0
      %v6597 = vpop.f32.mrb[0].mxu0
      %v6598 = vadd.f32 0.0, %v6597
      %v6599 = vpop.f32.mrb[0].mxu0
      %6600 = vmatprep.mubr.bf16.mxu0 0
      %6601 = vmatmul.mubr.bf16.gmra.mrb[0].mxu0 %v6522
      %v6602 = vpop.f32.mrb[0].mxu0
      %v6603 = vadd.f32 0.0, %v6602
      %v6604 = vpop.f32.mrb[0].mxu0
      %v6605 = vpop.f32.mrb[0].mxu0
      %v6606 = vadd.f32 0.0, %v6605
      %v6607 = vpop.f32.mrb[0].mxu0
      %6608 = vmatprep.mubr.bf16.mxu0 0
      %6609 = vmatmul.mubr.bf16.gmra.mrb[0].mxu0 %v6525
      %v6610 = vpop.f32.mrb[0].mxu0
      %v6611 = vadd.f32 0.0, %v6610
      %v6612 = vpop.f32.mrb[0].mxu0
      %v6613 = vpop.f32.mrb[0].mxu0
      %v6614 = vadd.f32 0.0, %v6613
      %v6615 = vpop.f32.mrb[0].mxu0
      %6616 = vmatprep.mubr.bf16.mxu0 0
      %6617 = vmatmul.mubr.bf16.gmra.mrb[0].mxu0 %v6528
      %v6618 = vpop.f32.mrb[0].mxu0
      %v6619 = vadd.f32 0.0, %v6618
      %v6620 = vpop.f32.mrb[0].mxu0
      %v6621 = vpop.f32.mrb[0].mxu0
      %v6622 = vadd.f32 0.0, %v6621
      %v6623 = vpop.f32.mrb[0].mxu0
      %6624 = vmatprep.mubr.bf16.mxu0 0
      %6625 = vmatmul.mubr.bf16.gmra.mrb[0].mxu0 %v6531
      %v6626 = vpop.f32.mrb[0].mxu0
      %v6627 = vadd.f32 0.0, %v6626
      %v6628 = vpop.f32.mrb[0].mxu0
      %v6629 = vpop.f32.mrb[0].mxu0
      %v6630 = vadd.f32 0.0, %v6629
      %v6631 = vpop.f32.mrb[0].mxu0
      %6632 = vdwg.mxu0
      %v6633 = vadd.f32 %v6163, %v6571
      %v6634 = vadd.f32 %v6164, %v6574
      %v6635 = vadd.f32 %v6165, %v6579
      %v6636 = vadd.f32 %v6166, %v6582
      %v6637 = vadd.f32 %v6167, %v6587
      %v6638 = vadd.f32 %v6168, %v6590
      %v6639 = vadd.f32 %v6169, %v6595
      %v6640 = vadd.f32 %v6170, %v6598
      %v6641 = vadd.f32 %v6171, %v6603
      %v6642 = vadd.f32 %v6172, %v6606
      %v6643 = vadd.f32 %v6173, %v6611
      %v6644 = vadd.f32 %v6174, %v6614
      %v6645 = vadd.f32 %v6175, %v6619
      %v6646 = vadd.f32 %v6176, %v6622
      %v6647 = vadd.f32 %v6177, %v6627
      %v6648 = vadd.f32 %v6178, %v6630
      %s6649 = scalar_lea.vmem [#allocation3], 16
      %v6650 = vld [vmem:[%s6649] sm:$0xf]
      %v6651 = vld [vmem:[%s6649 + $0x4] sm:$0x1]
      %v6652 = vld [vmem:[%s6649 + $0x8] sm:$0xf]
      %v6653 = vld [vmem:[%s6649 + $0xc] sm:$0x1]
      %v6654 = vld [vmem:[%s6649 + $0x10] sm:$0xf]
      %v6655 = vld [vmem:[%s6649 + $0x14] sm:$0x1]
      %v6656 = vld [vmem:[%s6649 + $0x18] sm:$0xf]
      %v6657 = vld [vmem:[%s6649 + $0x1c] sm:$0x1]
      %v6658 = vld [vmem:[%s6649 + $0x20] sm:$0xf]
      %v6659 = vld [vmem:[%s6649 + $0x24] sm:$0x1]
      %v6660 = vld [vmem:[%s6649 + $0x28] sm:$0xf]
      %v6661 = vld [vmem:[%s6649 + $0x2c] sm:$0x1]
      %v6662 = vld [vmem:[%s6649 + $0x30] sm:$0xf]
      %v6663 = vld [vmem:[%s6649 + $0x34] sm:$0x1]
      %v6664 = vld [vmem:[%s6649 + $0x38] sm:$0xf]
      %v6665 = vld [vmem:[%s6649 + $0x3c] sm:$0x1]
      %v6666 = vld [vmem:[%s6649 + $0x50] sm:$0xf]
      %v6667 = vld [vmem:[%s6649 + $0x54] sm:$0x1]
      %v6668 = vld [vmem:[%s6649 + $0x58] sm:$0xf]
      %v6669 = vld [vmem:[%s6649 + $0x5c] sm:$0x1]
      %v6670 = vld [vmem:[%s6649 + $0x60] sm:$0xf]
      %v6671 = vld [vmem:[%s6649 + $0x64] sm:$0x1]
      %v6672 = vld [vmem:[%s6649 + $0x68] sm:$0xf]
      %v6673 = vld [vmem:[%s6649 + $0x6c] sm:$0x1]
      %v6674 = vld [vmem:[%s6649 + $0x70] sm:$0xf]
      %v6675 = vld [vmem:[%s6649 + $0x74] sm:$0x1]
      %v6676 = vld [vmem:[%s6649 + $0x78] sm:$0xf]
      %v6677 = vld [vmem:[%s6649 + $0x7c] sm:$0x1]
      %v6678 = vld [vmem:[%s6649 + $0x80] sm:$0xf]
      %v6679 = vld [vmem:[%s6649 + $0x84] sm:$0x1]
      %v6680 = vld [vmem:[%s6649 + $0x88] sm:$0xf]
      %v6681 = vld [vmem:[%s6649 + $0x8c] sm:$0x1]
      %v6683 = vshrl.u32 %v6650, 16
      %v6685 = vrot.slane %v6683, 4
      %v6686 = vshll.u32 %v6650, 16
      %v6688 = vrot.slane %v6686, 5
      %v6689 = vor.u32 %v6685, %v6688
      %v6690 = vrot.slane %v6689, 4
      %v6692 = vshll.u32 %v6651, 16
      %v6694 = vrot.slane %v6692, 5
      %v6695 = vsel %vm664, %v6690, %v6694
      %v6697 = vshrl.u32 %v6652, 16
      %v6699 = vrot.slane %v6697, 4
      %v6700 = vshll.u32 %v6652, 16
      %v6702 = vrot.slane %v6700, 5
      %v6703 = vor.u32 %v6699, %v6702
      %v6704 = vrot.slane %v6703, 4
      %v6706 = vshll.u32 %v6653, 16
      %v6708 = vrot.slane %v6706, 5
      %v6709 = vsel %vm664, %v6704, %v6708
      %v6711 = vshrl.u32 %v6654, 16
      %v6713 = vrot.slane %v6711, 4
      %v6714 = vshll.u32 %v6654, 16
      %v6716 = vrot.slane %v6714, 5
      %v6717 = vor.u32 %v6713, %v6716
      %v6718 = vrot.slane %v6717, 4
      %v6720 = vshll.u32 %v6655, 16
      %v6722 = vrot.slane %v6720, 5
      %v6723 = vsel %vm664, %v6718, %v6722
      %v6725 = vshrl.u32 %v6656, 16
      %v6727 = vrot.slane %v6725, 4
      %v6728 = vshll.u32 %v6656, 16
      %v6730 = vrot.slane %v6728, 5
      %v6731 = vor.u32 %v6727, %v6730
      %v6732 = vrot.slane %v6731, 4
      %v6734 = vshll.u32 %v6657, 16
      %v6736 = vrot.slane %v6734, 5
      %v6737 = vsel %vm664, %v6732, %v6736
      %v6739 = vshrl.u32 %v6658, 16
      %v6741 = vrot.slane %v6739, 4
      %v6742 = vshll.u32 %v6658, 16
      %v6744 = vrot.slane %v6742, 5
      %v6745 = vor.u32 %v6741, %v6744
      %v6746 = vrot.slane %v6745, 4
      %v6748 = vshll.u32 %v6659, 16
      %v6750 = vrot.slane %v6748, 5
      %v6751 = vsel %vm664, %v6746, %v6750
      %v6753 = vshrl.u32 %v6660, 16
      %v6755 = vrot.slane %v6753, 4
      %v6756 = vshll.u32 %v6660, 16
      %v6758 = vrot.slane %v6756, 5
      %v6759 = vor.u32 %v6755, %v6758
      %v6760 = vrot.slane %v6759, 4
      %v6762 = vshll.u32 %v6661, 16
      %v6764 = vrot.slane %v6762, 5
      %v6765 = vsel %vm664, %v6760, %v6764
      %v6767 = vshrl.u32 %v6662, 16
      %v6769 = vrot.slane %v6767, 4
      %v6770 = vshll.u32 %v6662, 16
      %v6772 = vrot.slane %v6770, 5
      %v6773 = vor.u32 %v6769, %v6772
      %v6774 = vrot.slane %v6773, 4
      %v6776 = vshll.u32 %v6663, 16
      %v6778 = vrot.slane %v6776, 5
      %v6779 = vsel %vm664, %v6774, %v6778
      %v6781 = vshrl.u32 %v6664, 16
      %v6783 = vrot.slane %v6781, 4
      %v6784 = vshll.u32 %v6664, 16
      %v6786 = vrot.slane %v6784, 5
      %v6787 = vor.u32 %v6783, %v6786
      %v6788 = vrot.slane %v6787, 4
      %v6790 = vshll.u32 %v6665, 16
      %v6792 = vrot.slane %v6790, 5
      %v6793 = vsel %vm664, %v6788, %v6792
      %v6795 = vshrl.u32 %v6666, 16
      %v6797 = vrot.slane %v6795, 4
      %v6798 = vshll.u32 %v6666, 16
      %v6800 = vrot.slane %v6798, 5
      %v6801 = vor.u32 %v6797, %v6800
      %v6802 = vrot.slane %v6801, 4
      %v6804 = vshll.u32 %v6667, 16
      %v6806 = vrot.slane %v6804, 5
      %v6807 = vsel %vm664, %v6802, %v6806
      %v6809 = vshrl.u32 %v6668, 16
      %v6811 = vrot.slane %v6809, 4
      %v6812 = vshll.u32 %v6668, 16
      %v6814 = vrot.slane %v6812, 5
      %v6815 = vor.u32 %v6811, %v6814
      %v6816 = vrot.slane %v6815, 4
      %v6818 = vshll.u32 %v6669, 16
      %v6820 = vrot.slane %v6818, 5
      %v6821 = vsel %vm664, %v6816, %v6820
      %v6823 = vshrl.u32 %v6670, 16
      %v6825 = vrot.slane %v6823, 4
      %v6826 = vshll.u32 %v6670, 16
      %v6828 = vrot.slane %v6826, 5
      %v6829 = vor.u32 %v6825, %v6828
      %v6830 = vrot.slane %v6829, 4
      %v6832 = vshll.u32 %v6671, 16
      %v6834 = vrot.slane %v6832, 5
      %v6835 = vsel %vm664, %v6830, %v6834
      %v6837 = vshrl.u32 %v6672, 16
      %v6839 = vrot.slane %v6837, 4
      %v6840 = vshll.u32 %v6672, 16
      %v6842 = vrot.slane %v6840, 5
      %v6843 = vor.u32 %v6839, %v6842
      %v6844 = vrot.slane %v6843, 4
      %v6846 = vshll.u32 %v6673, 16
      %v6848 = vrot.slane %v6846, 5
      %v6849 = vsel %vm664, %v6844, %v6848
      %v6851 = vshrl.u32 %v6674, 16
      %v6853 = vrot.slane %v6851, 4
      %v6854 = vshll.u32 %v6674, 16
      %v6856 = vrot.slane %v6854, 5
      %v6857 = vor.u32 %v6853, %v6856
      %v6858 = vrot.slane %v6857, 4
      %v6860 = vshll.u32 %v6675, 16
      %v6862 = vrot.slane %v6860, 5
      %v6863 = vsel %vm664, %v6858, %v6862
      %v6865 = vshrl.u32 %v6676, 16
      %v6867 = vrot.slane %v6865, 4
      %v6868 = vshll.u32 %v6676, 16
      %v6870 = vrot.slane %v6868, 5
      %v6871 = vor.u32 %v6867, %v6870
      %v6872 = vrot.slane %v6871, 4
      %v6874 = vshll.u32 %v6677, 16
      %v6876 = vrot.slane %v6874, 5
      %v6877 = vsel %vm664, %v6872, %v6876
      %v6879 = vshrl.u32 %v6678, 16
      %v6881 = vrot.slane %v6879, 4
      %v6882 = vshll.u32 %v6678, 16
      %v6884 = vrot.slane %v6882, 5
      %v6885 = vor.u32 %v6881, %v6884
      %v6886 = vrot.slane %v6885, 4
      %v6888 = vshll.u32 %v6679, 16
      %v6890 = vrot.slane %v6888, 5
      %v6891 = vsel %vm664, %v6886, %v6890
      %v6893 = vshrl.u32 %v6680, 16
      %v6895 = vrot.slane %v6893, 4
      %v6896 = vshll.u32 %v6680, 16
      %v6898 = vrot.slane %v6896, 5
      %v6899 = vor.u32 %v6895, %v6898
      %v6900 = vrot.slane %v6899, 4
      %v6902 = vshll.u32 %v6681, 16
      %v6904 = vrot.slane %v6902, 5
      %v6905 = vsel %vm664, %v6900, %v6904
      %s6906 = scalar_lea.vmem %s6, 24
      %v6907 = vld [vmem:[%s6906] sm:$0xf]
      %v6908 = vunpack.c.l.b16 %v6695
      %v6909 = vunpack.c.l.b16 %v6709
      %v6910 = vunpack.c.l.b16 %v6723
      %v6911 = vunpack.c.l.b16 %v6737
      %v6912 = vunpack.c.l.b16 %v6751
      %v6913 = vunpack.c.l.b16 %v6765
      %v6914 = vunpack.c.l.b16 %v6779
      %v6915 = vunpack.c.l.b16 %v6793
      %v6916 = vunpack.c.l.b16 %v6807
      %v6917 = vunpack.c.l.b16 %v6821
      %v6918 = vunpack.c.l.b16 %v6835
      %v6919 = vunpack.c.l.b16 %v6849
      %v6920 = vunpack.c.l.b16 %v6863
      %v6921 = vunpack.c.l.b16 %v6877
      %v6922 = vunpack.c.l.b16 %v6891
      %v6923 = vunpack.c.l.b16 %v6905
      %v6924 = vpack.c.b16 %v6909, %v6908
      %v6925 = vpack.c.b16 %v6911, %v6910
      %v6926 = vpack.c.b16 %v6913, %v6912
      %v6927 = vpack.c.b16 %v6915, %v6914
      %v6928 = vpack.c.b16 %v6917, %v6916
      %v6929 = vpack.c.b16 %v6919, %v6918
      %v6930 = vpack.c.b16 %v6921, %v6920
      %v6931 = vpack.c.b16 %v6923, %v6922
      %v6933 = vsel %vm1031, %v6924, 0
      %v6936 = vsel %vm1031, %v6925, 0
      %v6939 = vsel %vm1031, %v6926, 0
      %v6942 = vsel %vm1031, %v6927, 0
      %v6945 = vsel %vm1031, %v6928, 0
      %v6948 = vsel %vm1031, %v6929, 0
      %v6951 = vsel %vm1031, %v6930, 0
      %v6954 = vsel %vm1031, %v6931, 0
      %v6957 = vsel %vm1056, %v6907, 0
      %6959 = vmatprep.subr.bf16.mxu0 0
      %6960 = vmatpush1.bf16.msra.mxu0 %v6957
      %6961 = vmatprep.subr.bf16.mxu0 0
      %6962 = vmatpush1.bf16.msra.mxu0 0
      %6963 = vmatprep.subr.bf16.mxu0 0
      %6964 = vmatpush1.bf16.msra.mxu0 0
      %6965 = vmatprep.subr.bf16.mxu0 0
      %6966 = vmatpush1.bf16.msra.mxu0 0
      %6967 = vmatprep.subr.bf16.mxu0 0
      %6968 = vmatpush1.bf16.msra.mxu0 0
      %6969 = vmatprep.subr.bf16.mxu0 0
      %6970 = vmatpush1.bf16.msra.mxu0 0
      %6971 = vmatprep.subr.bf16.mxu0 0
      %6972 = vmatpush1.bf16.msra.mxu0 0
      %6973 = vmatprep.subr.bf16.mxu0 0
      %6974 = vmatpush1.bf16.msra.mxu0 0
      %6975 = vmatprep.subr.bf16.mxu0 0
      %6976 = vmatpush1.bf16.msra.mxu0 0
      %6977 = vmatprep.subr.bf16.mxu0 0
      %6978 = vmatpush1.bf16.msra.mxu0 0
      %6979 = vmatprep.subr.bf16.mxu0 0
      %6980 = vmatpush1.bf16.msra.mxu0 0
      %6981 = vmatprep.subr.bf16.mxu0 0
      %6982 = vmatpush1.bf16.msra.mxu0 0
      %6983 = vmatprep.subr.bf16.mxu0 0
      %6984 = vmatpush1.bf16.msra.mxu0 0
      %6985 = vmatprep.subr.bf16.mxu0 0
      %6986 = vmatpush1.bf16.msra.mxu0 0
      %6987 = vmatprep.subr.bf16.mxu0 0
      %6988 = vmatpush1.bf16.msra.mxu0 0
      %6989 = vmatprep.subr.bf16.mxu0 0
      %6990 = vmatpush1.bf16.msra.mxu0 0
      %6991 = vmatprep.mubr.bf16.mxu0 0
      %6992 = vmatmul.mubr.bf16.gmra.mrb[0].mxu0 %v6933
      %v6993 = vpop.f32.mrb[0].mxu0
      %v6994 = vadd.f32 0.0, %v6993
      %v6995 = vpop.f32.mrb[0].mxu0
      %v6996 = vpop.f32.mrb[0].mxu0
      %v6997 = vadd.f32 0.0, %v6996
      %v6998 = vpop.f32.mrb[0].mxu0
      %6999 = vmatprep.mubr.bf16.mxu0 0
      %7000 = vmatmul.mubr.bf16.gmra.mrb[0].mxu0 %v6936
      %v7001 = vpop.f32.mrb[0].mxu0
      %v7002 = vadd.f32 0.0, %v7001
      %v7003 = vpop.f32.mrb[0].mxu0
      %v7004 = vpop.f32.mrb[0].mxu0
      %v7005 = vadd.f32 0.0, %v7004
      %v7006 = vpop.f32.mrb[0].mxu0
      %7007 = vmatprep.mubr.bf16.mxu0 0
      %7008 = vmatmul.mubr.bf16.gmra.mrb[0].mxu0 %v6939
      %v7009 = vpop.f32.mrb[0].mxu0
      %v7010 = vadd.f32 0.0, %v7009
      %v7011 = vpop.f32.mrb[0].mxu0
      %v7012 = vpop.f32.mrb[0].mxu0
      %v7013 = vadd.f32 0.0, %v7012
      %v7014 = vpop.f32.mrb[0].mxu0
      %7015 = vmatprep.mubr.bf16.mxu0 0
      %7016 = vmatmul.mubr.bf16.gmra.mrb[0].mxu0 %v6942
      %v7017 = vpop.f32.mrb[0].mxu0
      %v7018 = vadd.f32 0.0, %v7017
      %v7019 = vpop.f32.mrb[0].mxu0
      %v7020 = vpop.f32.mrb[0].mxu0
      %v7021 = vadd.f32 0.0, %v7020
      %v7022 = vpop.f32.mrb[0].mxu0
      %7023 = vmatprep.mubr.bf16.mxu0 0
      %7024 = vmatmul.mubr.bf16.gmra.mrb[0].mxu0 %v6945
      %v7025 = vpop.f32.mrb[0].mxu0
      %v7026 = vadd.f32 0.0, %v7025
      %v7027 = vpop.f32.mrb[0].mxu0
      %v7028 = vpop.f32.mrb[0].mxu0
      %v7029 = vadd.f32 0.0, %v7028
      %v7030 = vpop.f32.mrb[0].mxu0
      %7031 = vmatprep.mubr.bf16.mxu0 0
      %7032 = vmatmul.mubr.bf16.gmra.mrb[0].mxu0 %v6948
      %v7033 = vpop.f32.mrb[0].mxu0
      %v7034 = vadd.f32 0.0, %v7033
      %v7035 = vpop.f32.mrb[0].mxu0
      %v7036 = vpop.f32.mrb[0].mxu0
      %v7037 = vadd.f32 0.0, %v7036
      %v7038 = vpop.f32.mrb[0].mxu0
      %7039 = vmatprep.mubr.bf16.mxu0 0
      %7040 = vmatmul.mubr.bf16.gmra.mrb[0].mxu0 %v6951
      %v7041 = vpop.f32.mrb[0].mxu0
      %v7042 = vadd.f32 0.0, %v7041
      %v7043 = vpop.f32.mrb[0].mxu0
      %v7044 = vpop.f32.mrb[0].mxu0
      %v7045 = vadd.f32 0.0, %v7044
      %v7046 = vpop.f32.mrb[0].mxu0
      %7047 = vmatprep.mubr.bf16.mxu0 0
      %7048 = vmatmul.mubr.bf16.gmra.mrb[0].mxu0 %v6954
      %v7049 = vpop.f32.mrb[0].mxu0
      %v7050 = vadd.f32 0.0, %v7049
      %v7051 = vpop.f32.mrb[0].mxu0
      %v7052 = vpop.f32.mrb[0].mxu0
      %v7053 = vadd.f32 0.0, %v7052
      %v7054 = vpop.f32.mrb[0].mxu0
      %7055 = vdwg.mxu0
      %v7056 = vadd.f32 %v6633, %v6994
      %v7057 = vadd.f32 %v6634, %v6997
      %v7058 = vadd.f32 %v6635, %v7002
      %v7059 = vadd.f32 %v6636, %v7005
      %v7060 = vadd.f32 %v6637, %v7010
      %v7061 = vadd.f32 %v6638, %v7013
      %v7062 = vadd.f32 %v6639, %v7018
      %v7063 = vadd.f32 %v6640, %v7021
      %v7064 = vadd.f32 %v6641, %v7026
      %v7065 = vadd.f32 %v6642, %v7029
      %v7066 = vadd.f32 %v6643, %v7034
      %v7067 = vadd.f32 %v6644, %v7037
      %v7068 = vadd.f32 %v6645, %v7042
      %v7069 = vadd.f32 %v6646, %v7045
      %v7070 = vadd.f32 %v6647, %v7050
      %v7071 = vadd.f32 %v6648, %v7053
      %v7072 = vld [vmem:[%s6649] sm:$0xe]
      %v7073 = vld [vmem:[%s6649 + $0x8] sm:$0xe]
      %v7074 = vld [vmem:[%s6649 + $0x10] sm:$0xe]
      %v7075 = vld [vmem:[%s6649 + $0x18] sm:$0xe]
      %v7076 = vld [vmem:[%s6649 + $0x20] sm:$0xe]
      %v7077 = vld [vmem:[%s6649 + $0x28] sm:$0xe]
      %v7078 = vld [vmem:[%s6649 + $0x30] sm:$0xe]
      %v7079 = vld [vmem:[%s6649 + $0x38] sm:$0xe]
      %v7080 = vld [vmem:[%s6649 + $0x50] sm:$0xe]
      %v7081 = vld [vmem:[%s6649 + $0x58] sm:$0xe]
      %v7082 = vld [vmem:[%s6649 + $0x60] sm:$0xe]
      %v7083 = vld [vmem:[%s6649 + $0x68] sm:$0xe]
      %v7084 = vld [vmem:[%s6649 + $0x70] sm:$0xe]
      %v7085 = vld [vmem:[%s6649 + $0x78] sm:$0xe]
      %v7086 = vld [vmem:[%s6649 + $0x80] sm:$0xe]
      %v7087 = vld [vmem:[%s6649 + $0x88] sm:$0xe]
      %v7120 = vrot.slane %v7072, 5
      %v7121 = vrot.slane %v7120, 4
      %v7122 = vrot.slane %v6651, 5
      %v7123 = vsel %vm940, %v7121, %v7122
      %v7124 = vrot.slane %v7073, 5
      %v7125 = vrot.slane %v7124, 4
      %v7126 = vrot.slane %v6653, 5
      %v7127 = vsel %vm940, %v7125, %v7126
      %v7128 = vrot.slane %v7074, 5
      %v7129 = vrot.slane %v7128, 4
      %v7130 = vrot.slane %v6655, 5
      %v7131 = vsel %vm940, %v7129, %v7130
      %v7132 = vrot.slane %v7075, 5
      %v7133 = vrot.slane %v7132, 4
      %v7134 = vrot.slane %v6657, 5
      %v7135 = vsel %vm940, %v7133, %v7134
      %v7136 = vrot.slane %v7076, 5
      %v7137 = vrot.slane %v7136, 4
      %v7138 = vrot.slane %v6659, 5
      %v7139 = vsel %vm940, %v7137, %v7138
      %v7140 = vrot.slane %v7077, 5
      %v7141 = vrot.slane %v7140, 4
      %v7142 = vrot.slane %v6661, 5
      %v7143 = vsel %vm940, %v7141, %v7142
      %v7144 = vrot.slane %v7078, 5
      %v7145 = vrot.slane %v7144, 4
      %v7146 = vrot.slane %v6663, 5
      %v7147 = vsel %vm940, %v7145, %v7146
      %v7148 = vrot.slane %v7079, 5
      %v7149 = vrot.slane %v7148, 4
      %v7150 = vrot.slane %v6665, 5
      %v7151 = vsel %vm940, %v7149, %v7150
      %v7152 = vrot.slane %v7080, 5
      %v7153 = vrot.slane %v7152, 4
      %v7154 = vrot.slane %v6667, 5
      %v7155 = vsel %vm940, %v7153, %v7154
      %v7156 = vrot.slane %v7081, 5
      %v7157 = vrot.slane %v7156, 4
      %v7158 = vrot.slane %v6669, 5
      %v7159 = vsel %vm940, %v7157, %v7158
      %v7160 = vrot.slane %v7082, 5
      %v7161 = vrot.slane %v7160, 4
      %v7162 = vrot.slane %v6671, 5
      %v7163 = vsel %vm940, %v7161, %v7162
      %v7164 = vrot.slane %v7083, 5
      %v7165 = vrot.slane %v7164, 4
      %v7166 = vrot.slane %v6673, 5
      %v7167 = vsel %vm940, %v7165, %v7166
      %v7168 = vrot.slane %v7084, 5
      %v7169 = vrot.slane %v7168, 4
      %v7170 = vrot.slane %v6675, 5
      %v7171 = vsel %vm940, %v7169, %v7170
      %v7172 = vrot.slane %v7085, 5
      %v7173 = vrot.slane %v7172, 4
      %v7174 = vrot.slane %v6677, 5
      %v7175 = vsel %vm940, %v7173, %v7174
      %v7176 = vrot.slane %v7086, 5
      %v7177 = vrot.slane %v7176, 4
      %v7178 = vrot.slane %v6679, 5
      %v7179 = vsel %vm940, %v7177, %v7178
      %v7180 = vrot.slane %v7087, 5
      %v7181 = vrot.slane %v7180, 4
      %v7182 = vrot.slane %v6681, 5
      %v7183 = vsel %vm940, %v7181, %v7182
      %s7184 = scalar_lea.vmem %s6, 28
      %v7185 = vld [vmem:[%s7184] sm:$0xf]
      %v7186 = vunpack.c.l.b16 %v7123
      %v7187 = vunpack.c.l.b16 %v7127
      %v7188 = vunpack.c.l.b16 %v7131
      %v7189 = vunpack.c.l.b16 %v7135
      %v7190 = vunpack.c.l.b16 %v7139
      %v7191 = vunpack.c.l.b16 %v7143
      %v7192 = vunpack.c.l.b16 %v7147
      %v7193 = vunpack.c.l.b16 %v7151
      %v7194 = vunpack.c.l.b16 %v7155
      %v7195 = vunpack.c.l.b16 %v7159
      %v7196 = vunpack.c.l.b16 %v7163
      %v7197 = vunpack.c.l.b16 %v7167
      %v7198 = vunpack.c.l.b16 %v7171
      %v7199 = vunpack.c.l.b16 %v7175
      %v7200 = vunpack.c.l.b16 %v7179
      %v7201 = vunpack.c.l.b16 %v7183
      %v7202 = vpack.c.b16 %v7187, %v7186
      %v7203 = vpack.c.b16 %v7189, %v7188
      %v7204 = vpack.c.b16 %v7191, %v7190
      %v7205 = vpack.c.b16 %v7193, %v7192
      %v7206 = vpack.c.b16 %v7195, %v7194
      %v7207 = vpack.c.b16 %v7197, %v7196
      %v7208 = vpack.c.b16 %v7199, %v7198
      %v7209 = vpack.c.b16 %v7201, %v7200
      %v7211 = vsel %vm1031, %v7202, 0
      %v7214 = vsel %vm1031, %v7203, 0
      %v7217 = vsel %vm1031, %v7204, 0
      %v7220 = vsel %vm1031, %v7205, 0
      %v7223 = vsel %vm1031, %v7206, 0
      %v7226 = vsel %vm1031, %v7207, 0
      %v7229 = vsel %vm1031, %v7208, 0
      %v7232 = vsel %vm1031, %v7209, 0
      %v7235 = vsel %vm1056, %v7185, 0
      %7237 = vmatprep.subr.bf16.mxu0 0
      %7238 = vmatpush1.bf16.msra.mxu0 %v7235
      %7239 = vmatprep.subr.bf16.mxu0 0
      %7240 = vmatpush1.bf16.msra.mxu0 0
      %7241 = vmatprep.subr.bf16.mxu0 0
      %7242 = vmatpush1.bf16.msra.mxu0 0
      %7243 = vmatprep.subr.bf16.mxu0 0
      %7244 = vmatpush1.bf16.msra.mxu0 0
      %7245 = vmatprep.subr.bf16.mxu0 0
      %7246 = vmatpush1.bf16.msra.mxu0 0
      %7247 = vmatprep.subr.bf16.mxu0 0
      %7248 = vmatpush1.bf16.msra.mxu0 0
      %7249 = vmatprep.subr.bf16.mxu0 0
      %7250 = vmatpush1.bf16.msra.mxu0 0
      %7251 = vmatprep.subr.bf16.mxu0 0
      %7252 = vmatpush1.bf16.msra.mxu0 0
      %7253 = vmatprep.subr.bf16.mxu0 0
      %7254 = vmatpush1.bf16.msra.mxu0 0
      %7255 = vmatprep.subr.bf16.mxu0 0
      %7256 = vmatpush1.bf16.msra.mxu0 0
      %7257 = vmatprep.subr.bf16.mxu0 0
      %7258 = vmatpush1.bf16.msra.mxu0 0
      %7259 = vmatprep.subr.bf16.mxu0 0
      %7260 = vmatpush1.bf16.msra.mxu0 0
      %7261 = vmatprep.subr.bf16.mxu0 0
      %7262 = vmatpush1.bf16.msra.mxu0 0
      %7263 = vmatprep.subr.bf16.mxu0 0
      %7264 = vmatpush1.bf16.msra.mxu0 0
      %7265 = vmatprep.subr.bf16.mxu0 0
      %7266 = vmatpush1.bf16.msra.mxu0 0
      %7267 = vmatprep.subr.bf16.mxu0 0
      %7268 = vmatpush1.bf16.msra.mxu0 0
      %7269 = vmatprep.mubr.bf16.mxu0 0
      %7270 = vmatmul.mubr.bf16.gmra.mrb[0].mxu0 %v7211
      %v7271 = vpop.f32.mrb[0].mxu0
      %v7272 = vadd.f32 0.0, %v7271
      %v7273 = vpop.f32.mrb[0].mxu0
      %v7274 = vpop.f32.mrb[0].mxu0
      %v7275 = vadd.f32 0.0, %v7274
      %v7276 = vpop.f32.mrb[0].mxu0
      %7277 = vmatprep.mubr.bf16.mxu0 0
      %7278 = vmatmul.mubr.bf16.gmra.mrb[0].mxu0 %v7214
      %v7279 = vpop.f32.mrb[0].mxu0
      %v7280 = vadd.f32 0.0, %v7279
      %v7281 = vpop.f32.mrb[0].mxu0
      %v7282 = vpop.f32.mrb[0].mxu0
      %v7283 = vadd.f32 0.0, %v7282
      %v7284 = vpop.f32.mrb[0].mxu0
      %7285 = vmatprep.mubr.bf16.mxu0 0
      %7286 = vmatmul.mubr.bf16.gmra.mrb[0].mxu0 %v7217
      %v7287 = vpop.f32.mrb[0].mxu0
      %v7288 = vadd.f32 0.0, %v7287
      %v7289 = vpop.f32.mrb[0].mxu0
      %v7290 = vpop.f32.mrb[0].mxu0
      %v7291 = vadd.f32 0.0, %v7290
      %v7292 = vpop.f32.mrb[0].mxu0
      %7293 = vmatprep.mubr.bf16.mxu0 0
      %7294 = vmatmul.mubr.bf16.gmra.mrb[0].mxu0 %v7220
      %v7295 = vpop.f32.mrb[0].mxu0
      %v7296 = vadd.f32 0.0, %v7295
      %v7297 = vpop.f32.mrb[0].mxu0
      %v7298 = vpop.f32.mrb[0].mxu0
      %v7299 = vadd.f32 0.0, %v7298
      %v7300 = vpop.f32.mrb[0].mxu0
      %7301 = vmatprep.mubr.bf16.mxu0 0
      %7302 = vmatmul.mubr.bf16.gmra.mrb[0].mxu0 %v7223
      %v7303 = vpop.f32.mrb[0].mxu0
      %v7304 = vadd.f32 0.0, %v7303
      %v7305 = vpop.f32.mrb[0].mxu0
      %v7306 = vpop.f32.mrb[0].mxu0
      %v7307 = vadd.f32 0.0, %v7306
      %v7308 = vpop.f32.mrb[0].mxu0
      %7309 = vmatprep.mubr.bf16.mxu0 0
      %7310 = vmatmul.mubr.bf16.gmra.mrb[0].mxu0 %v7226
      %v7311 = vpop.f32.mrb[0].mxu0
      %v7312 = vadd.f32 0.0, %v7311
      %v7313 = vpop.f32.mrb[0].mxu0
      %v7314 = vpop.f32.mrb[0].mxu0
      %v7315 = vadd.f32 0.0, %v7314
      %v7316 = vpop.f32.mrb[0].mxu0
      %7317 = vmatprep.mubr.bf16.mxu0 0
      %7318 = vmatmul.mubr.bf16.gmra.mrb[0].mxu0 %v7229
      %v7319 = vpop.f32.mrb[0].mxu0
      %v7320 = vadd.f32 0.0, %v7319
      %v7321 = vpop.f32.mrb[0].mxu0
      %v7322 = vpop.f32.mrb[0].mxu0
      %v7323 = vadd.f32 0.0, %v7322
      %v7324 = vpop.f32.mrb[0].mxu0
      %7325 = vmatprep.mubr.bf16.mxu0 0
      %7326 = vmatmul.mubr.bf16.gmra.mrb[0].mxu0 %v7232
      %v7327 = vpop.f32.mrb[0].mxu0
      %v7328 = vadd.f32 0.0, %v7327
      %v7329 = vpop.f32.mrb[0].mxu0
      %v7330 = vpop.f32.mrb[0].mxu0
      %v7331 = vadd.f32 0.0, %v7330
      %v7332 = vpop.f32.mrb[0].mxu0
      %7333 = vdwg.mxu0
      %v7334 = vadd.f32 %v7056, %v7272
      %v7335 = vadd.f32 %v7057, %v7275
      %v7336 = vadd.f32 %v7058, %v7280
      %v7337 = vadd.f32 %v7059, %v7283
      %v7338 = vadd.f32 %v7060, %v7288
      %v7339 = vadd.f32 %v7061, %v7291
      %v7340 = vadd.f32 %v7062, %v7296
      %v7341 = vadd.f32 %v7063, %v7299
      %v7342 = vadd.f32 %v7064, %v7304
      %v7343 = vadd.f32 %v7065, %v7307
      %v7344 = vadd.f32 %v7066, %v7312
      %v7345 = vadd.f32 %v7067, %v7315
      %v7346 = vadd.f32 %v7068, %v7320
      %v7347 = vadd.f32 %v7069, %v7323
      %v7348 = vadd.f32 %v7070, %v7328
      %v7349 = vadd.f32 %v7071, %v7331
      %v7350 = vld [vmem:[%s6649 + $0x4] sm:$0x3]
      %v7351 = vld [vmem:[%s6649 + $0xc] sm:$0x3]
      %v7352 = vld [vmem:[%s6649 + $0x14] sm:$0x3]
      %v7353 = vld [vmem:[%s6649 + $0x1c] sm:$0x3]
      %v7354 = vld [vmem:[%s6649 + $0x24] sm:$0x3]
      %v7355 = vld [vmem:[%s6649 + $0x2c] sm:$0x3]
      %v7356 = vld [vmem:[%s6649 + $0x34] sm:$0x3]
      %v7357 = vld [vmem:[%s6649 + $0x3c] sm:$0x3]
      %v7358 = vld [vmem:[%s6649 + $0x54] sm:$0x3]
      %v7359 = vld [vmem:[%s6649 + $0x5c] sm:$0x3]
      %v7360 = vld [vmem:[%s6649 + $0x64] sm:$0x3]
      %v7361 = vld [vmem:[%s6649 + $0x6c] sm:$0x3]
      %v7362 = vld [vmem:[%s6649 + $0x74] sm:$0x3]
      %v7363 = vld [vmem:[%s6649 + $0x7c] sm:$0x3]
      %v7364 = vld [vmem:[%s6649 + $0x84] sm:$0x3]
      %v7365 = vld [vmem:[%s6649 + $0x8c] sm:$0x3]
      %v7367 = vshrl.u32 %v7072, 16
      %v7369 = vrot.slane %v7367, 5
      %v7370 = vshll.u32 %v7072, 16
      %v7372 = vrot.slane %v7370, 6
      %v7373 = vor.u32 %v7369, %v7372
      %v7374 = vrot.slane %v7373, 4
      %v7376 = vshrl.u32 %v7350, 16
      %v7378 = vrot.slane %v7376, 5
      %v7379 = vshll.u32 %v7350, 16
      %v7381 = vrot.slane %v7379, 6
      %v7382 = vor.u32 %v7378, %v7381
      %v7383 = vsel %vm1323, %v7374, %v7382
      %v7385 = vshrl.u32 %v7073, 16
      %v7387 = vrot.slane %v7385, 5
      %v7388 = vshll.u32 %v7073, 16
      %v7390 = vrot.slane %v7388, 6
      %v7391 = vor.u32 %v7387, %v7390
      %v7392 = vrot.slane %v7391, 4
      %v7394 = vshrl.u32 %v7351, 16
      %v7396 = vrot.slane %v7394, 5
      %v7397 = vshll.u32 %v7351, 16
      %v7399 = vrot.slane %v7397, 6
      %v7400 = vor.u32 %v7396, %v7399
      %v7401 = vsel %vm1323, %v7392, %v7400
      %v7403 = vshrl.u32 %v7074, 16
      %v7405 = vrot.slane %v7403, 5
      %v7406 = vshll.u32 %v7074, 16
      %v7408 = vrot.slane %v7406, 6
      %v7409 = vor.u32 %v7405, %v7408
      %v7410 = vrot.slane %v7409, 4
      %v7412 = vshrl.u32 %v7352, 16
      %v7414 = vrot.slane %v7412, 5
      %v7415 = vshll.u32 %v7352, 16
      %v7417 = vrot.slane %v7415, 6
      %v7418 = vor.u32 %v7414, %v7417
      %v7419 = vsel %vm1323, %v7410, %v7418
      %v7421 = vshrl.u32 %v7075, 16
      %v7423 = vrot.slane %v7421, 5
      %v7424 = vshll.u32 %v7075, 16
      %v7426 = vrot.slane %v7424, 6
      %v7427 = vor.u32 %v7423, %v7426
      %v7428 = vrot.slane %v7427, 4
      %v7430 = vshrl.u32 %v7353, 16
      %v7432 = vrot.slane %v7430, 5
      %v7433 = vshll.u32 %v7353, 16
      %v7435 = vrot.slane %v7433, 6
      %v7436 = vor.u32 %v7432, %v7435
      %v7437 = vsel %vm1323, %v7428, %v7436
      %v7439 = vshrl.u32 %v7076, 16
      %v7441 = vrot.slane %v7439, 5
      %v7442 = vshll.u32 %v7076, 16
      %v7444 = vrot.slane %v7442, 6
      %v7445 = vor.u32 %v7441, %v7444
      %v7446 = vrot.slane %v7445, 4
      %v7448 = vshrl.u32 %v7354, 16
      %v7450 = vrot.slane %v7448, 5
      %v7451 = vshll.u32 %v7354, 16
      %v7453 = vrot.slane %v7451, 6
      %v7454 = vor.u32 %v7450, %v7453
      %v7455 = vsel %vm1323, %v7446, %v7454
      %v7457 = vshrl.u32 %v7077, 16
      %v7459 = vrot.slane %v7457, 5
      %v7460 = vshll.u32 %v7077, 16
      %v7462 = vrot.slane %v7460, 6
      %v7463 = vor.u32 %v7459, %v7462
      %v7464 = vrot.slane %v7463, 4
      %v7466 = vshrl.u32 %v7355, 16
      %v7468 = vrot.slane %v7466, 5
      %v7469 = vshll.u32 %v7355, 16
      %v7471 = vrot.slane %v7469, 6
      %v7472 = vor.u32 %v7468, %v7471
      %v7473 = vsel %vm1323, %v7464, %v7472
      %v7475 = vshrl.u32 %v7078, 16
      %v7477 = vrot.slane %v7475, 5
      %v7478 = vshll.u32 %v7078, 16
      %v7480 = vrot.slane %v7478, 6
      %v7481 = vor.u32 %v7477, %v7480
      %v7482 = vrot.slane %v7481, 4
      %v7484 = vshrl.u32 %v7356, 16
      %v7486 = vrot.slane %v7484, 5
      %v7487 = vshll.u32 %v7356, 16
      %v7489 = vrot.slane %v7487, 6
      %v7490 = vor.u32 %v7486, %v7489
      %v7491 = vsel %vm1323, %v7482, %v7490
      %v7493 = vshrl.u32 %v7079, 16
      %v7495 = vrot.slane %v7493, 5
      %v7496 = vshll.u32 %v7079, 16
      %v7498 = vrot.slane %v7496, 6
      %v7499 = vor.u32 %v7495, %v7498
      %v7500 = vrot.slane %v7499, 4
      %v7502 = vshrl.u32 %v7357, 16
      %v7504 = vrot.slane %v7502, 5
      %v7505 = vshll.u32 %v7357, 16
      %v7507 = vrot.slane %v7505, 6
      %v7508 = vor.u32 %v7504, %v7507
      %v7509 = vsel %vm1323, %v7500, %v7508
      %v7511 = vshrl.u32 %v7080, 16
      %v7513 = vrot.slane %v7511, 5
      %v7514 = vshll.u32 %v7080, 16
      %v7516 = vrot.slane %v7514, 6
      %v7517 = vor.u32 %v7513, %v7516
      %v7518 = vrot.slane %v7517, 4
      %v7520 = vshrl.u32 %v7358, 16
      %v7522 = vrot.slane %v7520, 5
      %v7523 = vshll.u32 %v7358, 16
      %v7525 = vrot.slane %v7523, 6
      %v7526 = vor.u32 %v7522, %v7525
      %v7527 = vsel %vm1323, %v7518, %v7526
      %v7529 = vshrl.u32 %v7081, 16
      %v7531 = vrot.slane %v7529, 5
      %v7532 = vshll.u32 %v7081, 16
      %v7534 = vrot.slane %v7532, 6
      %v7535 = vor.u32 %v7531, %v7534
      %v7536 = vrot.slane %v7535, 4
      %v7538 = vshrl.u32 %v7359, 16
      %v7540 = vrot.slane %v7538, 5
      %v7541 = vshll.u32 %v7359, 16
      %v7543 = vrot.slane %v7541, 6
      %v7544 = vor.u32 %v7540, %v7543
      %v7545 = vsel %vm1323, %v7536, %v7544
      %v7547 = vshrl.u32 %v7082, 16
      %v7549 = vrot.slane %v7547, 5
      %v7550 = vshll.u32 %v7082, 16
      %v7552 = vrot.slane %v7550, 6
      %v7553 = vor.u32 %v7549, %v7552
      %v7554 = vrot.slane %v7553, 4
      %v7556 = vshrl.u32 %v7360, 16
      %v7558 = vrot.slane %v7556, 5
      %v7559 = vshll.u32 %v7360, 16
      %v7561 = vrot.slane %v7559, 6
      %v7562 = vor.u32 %v7558, %v7561
      %v7563 = vsel %vm1323, %v7554, %v7562
      %v7565 = vshrl.u32 %v7083, 16
      %v7567 = vrot.slane %v7565, 5
      %v7568 = vshll.u32 %v7083, 16
      %v7570 = vrot.slane %v7568, 6
      %v7571 = vor.u32 %v7567, %v7570
      %v7572 = vrot.slane %v7571, 4
      %v7574 = vshrl.u32 %v7361, 16
      %v7576 = vrot.slane %v7574, 5
      %v7577 = vshll.u32 %v7361, 16
      %v7579 = vrot.slane %v7577, 6
      %v7580 = vor.u32 %v7576, %v7579
      %v7581 = vsel %vm1323, %v7572, %v7580
      %v7583 = vshrl.u32 %v7084, 16
      %v7585 = vrot.slane %v7583, 5
      %v7586 = vshll.u32 %v7084, 16
      %v7588 = vrot.slane %v7586, 6
      %v7589 = vor.u32 %v7585, %v7588
      %v7590 = vrot.slane %v7589, 4
      %v7592 = vshrl.u32 %v7362, 16
      %v7594 = vrot.slane %v7592, 5
      %v7595 = vshll.u32 %v7362, 16
      %v7597 = vrot.slane %v7595, 6
      %v7598 = vor.u32 %v7594, %v7597
      %v7599 = vsel %vm1323, %v7590, %v7598
      %v7601 = vshrl.u32 %v7085, 16
      %v7603 = vrot.slane %v7601, 5
      %v7604 = vshll.u32 %v7085, 16
      %v7606 = vrot.slane %v7604, 6
      %v7607 = vor.u32 %v7603, %v7606
      %v7608 = vrot.slane %v7607, 4
      %v7610 = vshrl.u32 %v7363, 16
      %v7612 = vrot.slane %v7610, 5
      %v7613 = vshll.u32 %v7363, 16
      %v7615 = vrot.slane %v7613, 6
      %v7616 = vor.u32 %v7612, %v7615
      %v7617 = vsel %vm1323, %v7608, %v7616
      %v7619 = vshrl.u32 %v7086, 16
      %v7621 = vrot.slane %v7619, 5
      %v7622 = vshll.u32 %v7086, 16
      %v7624 = vrot.slane %v7622, 6
      %v7625 = vor.u32 %v7621, %v7624
      %v7626 = vrot.slane %v7625, 4
      %v7628 = vshrl.u32 %v7364, 16
      %v7630 = vrot.slane %v7628, 5
      %v7631 = vshll.u32 %v7364, 16
      %v7633 = vrot.slane %v7631, 6
      %v7634 = vor.u32 %v7630, %v7633
      %v7635 = vsel %vm1323, %v7626, %v7634
      %v7637 = vshrl.u32 %v7087, 16
      %v7639 = vrot.slane %v7637, 5
      %v7640 = vshll.u32 %v7087, 16
      %v7642 = vrot.slane %v7640, 6
      %v7643 = vor.u32 %v7639, %v7642
      %v7644 = vrot.slane %v7643, 4
      %v7646 = vshrl.u32 %v7365, 16
      %v7648 = vrot.slane %v7646, 5
      %v7649 = vshll.u32 %v7365, 16
      %v7651 = vrot.slane %v7649, 6
      %v7652 = vor.u32 %v7648, %v7651
      %v7653 = vsel %vm1323, %v7644, %v7652
      %s7654 = scalar_lea.vmem %s6, 32
      %v7655 = vld [vmem:[%s7654] sm:$0xf]
      %v7656 = vunpack.c.l.b16 %v7383
      %v7657 = vunpack.c.l.b16 %v7401
      %v7658 = vunpack.c.l.b16 %v7419
      %v7659 = vunpack.c.l.b16 %v7437
      %v7660 = vunpack.c.l.b16 %v7455
      %v7661 = vunpack.c.l.b16 %v7473
      %v7662 = vunpack.c.l.b16 %v7491
      %v7663 = vunpack.c.l.b16 %v7509
      %v7664 = vunpack.c.l.b16 %v7527
      %v7665 = vunpack.c.l.b16 %v7545
      %v7666 = vunpack.c.l.b16 %v7563
      %v7667 = vunpack.c.l.b16 %v7581
      %v7668 = vunpack.c.l.b16 %v7599
      %v7669 = vunpack.c.l.b16 %v7617
      %v7670 = vunpack.c.l.b16 %v7635
      %v7671 = vunpack.c.l.b16 %v7653
      %v7672 = vpack.c.b16 %v7657, %v7656
      %v7673 = vpack.c.b16 %v7659, %v7658
      %v7674 = vpack.c.b16 %v7661, %v7660
      %v7675 = vpack.c.b16 %v7663, %v7662
      %v7676 = vpack.c.b16 %v7665, %v7664
      %v7677 = vpack.c.b16 %v7667, %v7666
      %v7678 = vpack.c.b16 %v7669, %v7668
      %v7679 = vpack.c.b16 %v7671, %v7670
      %v7681 = vsel %vm1031, %v7672, 0
      %v7684 = vsel %vm1031, %v7673, 0
      %v7687 = vsel %vm1031, %v7674, 0
      %v7690 = vsel %vm1031, %v7675, 0
      %v7693 = vsel %vm1031, %v7676, 0
      %v7696 = vsel %vm1031, %v7677, 0
      %v7699 = vsel %vm1031, %v7678, 0
      %v7702 = vsel %vm1031, %v7679, 0
      %v7705 = vsel %vm1056, %v7655, 0
      %7707 = vmatprep.subr.bf16.mxu0 0
      %7708 = vmatpush1.bf16.msra.mxu0 %v7705
      %7709 = vmatprep.subr.bf16.mxu0 0
      %7710 = vmatpush1.bf16.msra.mxu0 0
      %7711 = vmatprep.subr.bf16.mxu0 0
      %7712 = vmatpush1.bf16.msra.mxu0 0
      %7713 = vmatprep.subr.bf16.mxu0 0
      %7714 = vmatpush1.bf16.msra.mxu0 0
      %7715 = vmatprep.subr.bf16.mxu0 0
      %7716 = vmatpush1.bf16.msra.mxu0 0
      %7717 = vmatprep.subr.bf16.mxu0 0
      %7718 = vmatpush1.bf16.msra.mxu0 0
      %7719 = vmatprep.subr.bf16.mxu0 0
      %7720 = vmatpush1.bf16.msra.mxu0 0
      %7721 = vmatprep.subr.bf16.mxu0 0
      %7722 = vmatpush1.bf16.msra.mxu0 0
      %7723 = vmatprep.subr.bf16.mxu0 0
      %7724 = vmatpush1.bf16.msra.mxu0 0
      %7725 = vmatprep.subr.bf16.mxu0 0
      %7726 = vmatpush1.bf16.msra.mxu0 0
      %7727 = vmatprep.subr.bf16.mxu0 0
      %7728 = vmatpush1.bf16.msra.mxu0 0
      %7729 = vmatprep.subr.bf16.mxu0 0
      %7730 = vmatpush1.bf16.msra.mxu0 0
      %7731 = vmatprep.subr.bf16.mxu0 0
      %7732 = vmatpush1.bf16.msra.mxu0 0
      %7733 = vmatprep.subr.bf16.mxu0 0
      %7734 = vmatpush1.bf16.msra.mxu0 0
      %7735 = vmatprep.subr.bf16.mxu0 0
      %7736 = vmatpush1.bf16.msra.mxu0 0
      %7737 = vmatprep.subr.bf16.mxu0 0
      %7738 = vmatpush1.bf16.msra.mxu0 0
      %7739 = vmatprep.mubr.bf16.mxu0 0
      %7740 = vmatmul.mubr.bf16.gmra.mrb[0].mxu0 %v7681
      %v7741 = vpop.f32.mrb[0].mxu0
      %v7742 = vadd.f32 0.0, %v7741
      %v7743 = vpop.f32.mrb[0].mxu0
      %v7744 = vpop.f32.mrb[0].mxu0
      %v7745 = vadd.f32 0.0, %v7744
      %v7746 = vpop.f32.mrb[0].mxu0
      %7747 = vmatprep.mubr.bf16.mxu0 0
      %7748 = vmatmul.mubr.bf16.gmra.mrb[0].mxu0 %v7684
      %v7749 = vpop.f32.mrb[0].mxu0
      %v7750 = vadd.f32 0.0, %v7749
      %v7751 = vpop.f32.mrb[0].mxu0
      %v7752 = vpop.f32.mrb[0].mxu0
      %v7753 = vadd.f32 0.0, %v7752
      %v7754 = vpop.f32.mrb[0].mxu0
      %7755 = vmatprep.mubr.bf16.mxu0 0
      %7756 = vmatmul.mubr.bf16.gmra.mrb[0].mxu0 %v7687
      %v7757 = vpop.f32.mrb[0].mxu0
      %v7758 = vadd.f32 0.0, %v7757
      %v7759 = vpop.f32.mrb[0].mxu0
      %v7760 = vpop.f32.mrb[0].mxu0
      %v7761 = vadd.f32 0.0, %v7760
      %v7762 = vpop.f32.mrb[0].mxu0
      %7763 = vmatprep.mubr.bf16.mxu0 0
      %7764 = vmatmul.mubr.bf16.gmra.mrb[0].mxu0 %v7690
      %v7765 = vpop.f32.mrb[0].mxu0
      %v7766 = vadd.f32 0.0, %v7765
      %v7767 = vpop.f32.mrb[0].mxu0
      %v7768 = vpop.f32.mrb[0].mxu0
      %v7769 = vadd.f32 0.0, %v7768
      %v7770 = vpop.f32.mrb[0].mxu0
      %7771 = vmatprep.mubr.bf16.mxu0 0
      %7772 = vmatmul.mubr.bf16.gmra.mrb[0].mxu0 %v7693
      %v7773 = vpop.f32.mrb[0].mxu0
      %v7774 = vadd.f32 0.0, %v7773
      %v7775 = vpop.f32.mrb[0].mxu0
      %v7776 = vpop.f32.mrb[0].mxu0
      %v7777 = vadd.f32 0.0, %v7776
      %v7778 = vpop.f32.mrb[0].mxu0
      %7779 = vmatprep.mubr.bf16.mxu0 0
      %7780 = vmatmul.mubr.bf16.gmra.mrb[0].mxu0 %v7696
      %v7781 = vpop.f32.mrb[0].mxu0
      %v7782 = vadd.f32 0.0, %v7781
      %v7783 = vpop.f32.mrb[0].mxu0
      %v7784 = vpop.f32.mrb[0].mxu0
      %v7785 = vadd.f32 0.0, %v7784
      %v7786 = vpop.f32.mrb[0].mxu0
      %7787 = vmatprep.mubr.bf16.mxu0 0
      %7788 = vmatmul.mubr.bf16.gmra.mrb[0].mxu0 %v7699
      %v7789 = vpop.f32.mrb[0].mxu0
      %v7790 = vadd.f32 0.0, %v7789
      %v7791 = vpop.f32.mrb[0].mxu0
      %v7792 = vpop.f32.mrb[0].mxu0
      %v7793 = vadd.f32 0.0, %v7792
      %v7794 = vpop.f32.mrb[0].mxu0
      %7795 = vmatprep.mubr.bf16.mxu0 0
      %7796 = vmatmul.mubr.bf16.gmra.mrb[0].mxu0 %v7702
      %v7797 = vpop.f32.mrb[0].mxu0
      %v7798 = vadd.f32 0.0, %v7797
      %v7799 = vpop.f32.mrb[0].mxu0
      %v7800 = vpop.f32.mrb[0].mxu0
      %v7801 = vadd.f32 0.0, %v7800
      %v7802 = vpop.f32.mrb[0].mxu0
      %7803 = vdwg.mxu0
      %v7804 = vadd.f32 %v7334, %v7742
      %v7805 = vadd.f32 %v7335, %v7745
      %v7806 = vadd.f32 %v7336, %v7750
      %v7807 = vadd.f32 %v7337, %v7753
      %v7808 = vadd.f32 %v7338, %v7758
      %v7809 = vadd.f32 %v7339, %v7761
      %v7810 = vadd.f32 %v7340, %v7766
      %v7811 = vadd.f32 %v7341, %v7769
      %v7812 = vadd.f32 %v7342, %v7774
      %v7813 = vadd.f32 %v7343, %v7777
      %v7814 = vadd.f32 %v7344, %v7782
      %v7815 = vadd.f32 %v7345, %v7785
      %v7816 = vadd.f32 %v7346, %v7790
      %v7817 = vadd.f32 %v7347, %v7793
      %v7818 = vadd.f32 %v7348, %v7798
      %v7819 = vadd.f32 %v7349, %v7801
      %v7820 = vadd.f32 %v390, %v7804
      %v7821 = vadd.f32 %v391, %v7805
      %v7822 = vadd.f32 %v392, %v7806
      %v7823 = vadd.f32 %v393, %v7807
      %v7824 = vadd.f32 %v394, %v7808
      %v7825 = vadd.f32 %v395, %v7809
      %v7826 = vadd.f32 %v396, %v7810
      %v7827 = vadd.f32 %v397, %v7811
      %v7828 = vadd.f32 %v398, %v7812
      %v7829 = vadd.f32 %v399, %v7813
      %v7830 = vadd.f32 %v400, %v7814
      %v7831 = vadd.f32 %v401, %v7815
      %v7832 = vadd.f32 %v402, %v7816
      %v7833 = vadd.f32 %v403, %v7817
      %v7834 = vadd.f32 %v404, %v7818
      %v7835 = vadd.f32 %v405, %v7819
      %7836 = vst.msk [vmem:[%s285] sm:$0xff] %vm1031, %v7820
      %7837 = vst.msk [vmem:[%s285 + $0x8] sm:$0xff] %vm1031, %v7821
      %7838 = vst.msk [vmem:[%s285 + $0x10] sm:$0xff] %vm1031, %v7822
      %7839 = vst.msk [vmem:[%s285 + $0x18] sm:$0xff] %vm1031, %v7823
      %7840 = vst.msk [vmem:[%s285 + $0x20] sm:$0xff] %vm1031, %v7824
      %7841 = vst.msk [vmem:[%s285 + $0x28] sm:$0xff] %vm1031, %v7825
      %7842 = vst.msk [vmem:[%s285 + $0x30] sm:$0xff] %vm1031, %v7826
      %7843 = vst.msk [vmem:[%s285 + $0x38] sm:$0xff] %vm1031, %v7827
      %7844 = vst.msk [vmem:[%s285 + $0x40] sm:$0xff] %vm1031, %v7828
      %7845 = vst.msk [vmem:[%s285 + $0x48] sm:$0xff] %vm1031, %v7829
      %7846 = vst.msk [vmem:[%s285 + $0x50] sm:$0xff] %vm1031, %v7830
      %7847 = vst.msk [vmem:[%s285 + $0x58] sm:$0xff] %vm1031, %v7831
      %7848 = vst.msk [vmem:[%s285 + $0x60] sm:$0xff] %vm1031, %v7832
      %7849 = vst.msk [vmem:[%s285 + $0x68] sm:$0xff] %vm1031, %v7833
      %7850 = vst.msk [vmem:[%s285 + $0x70] sm:$0xff] %vm1031, %v7834
      %7851 = vst.msk [vmem:[%s285 + $0x78] sm:$0xff] %vm1031, %v7835
      %s7852 = smul.u32 2, %s18
      %p7853 = scmp.lt.s32.totalorder %s7852, 3
      %s7854 = scalar_select %p7853, %s7852, 3
      %s7855 = smul.addr %s7854, 8
      %s7856 = smul.addr %s7855, 8
      %s7857 = scalar_lea.vmem %s7, %s7856
      // Predicated region
      $region49: #{network_block_forward.3} parent=47 // pred_check
        %p7858 = pneg %p188
      $region50: #{network_block_forward.3} parent=47 // pred_check_branch
        %7860 = sbr.rel (%p7858) target = $region52
      $region51: #{network_block_forward.3} parent=47 // pred_region
        %s7861 = smul.u32 2, %s18
      $region52: #{network_block_forward.3} parent=47 // pred_fallthru
        _
    $region48: #{network_block_forward.3} parent=5 // pred_fallthru
      _
    %p7862 = scmp.le.s32.totalorder 2, %s13
    // Predicated region
    $region53: #{network_block_forward.3} parent=5 // pred_check
      %p7863 = pneg %p7862
    $region54: #{network_block_forward.3} parent=5 // pred_check_branch
      %7865 = sbr.rel (%p7863) target = $region56
    $region55: #{network_block_forward.3} parent=5 // pred_region
      %s7866 = ssub.s32 %s13, 2
      // Predicated region
      $region57: #{network_block_forward.3} parent=55 // pred_check
        %p7867 = pneg %p194
      $region58: #{network_block_forward.3} parent=55 // pred_check_branch
        %7869 = sbr.rel (%p7867) target = $region60
      $region59: #{network_block_forward.3} parent=55 // pred_region
        %s7870 = smul.u32 2, %s19
        %p7871 = scmp.lt.s32.totalorder %s7870, 3
        %s7872 = scalar_select %p7871, %s7870, 3
        %s7873 = smul.addr %s7872, 8
        %s7874 = smul.addr %s7873, 8
        %s7875 = scalar_lea.vmem %s7, %s7874
      $region60: #{network_block_forward.3} parent=55 // pred_fallthru
        _
    $region56: #{network_block_forward.3} parent=5 // pred_fallthru
      _
  $region6: #{network_block_forward.3} parent=0 // loop_footer
    %s17 = sadd.s32 1, %s13
  $region7: #{network_block_forward.3} parent=0 // loop_footer_branch
    %12 = sbr.rel target = $region3
  $region8: #{network_block_forward.3} parent=0 // loop_exit
    _

</llo_original>
